<compile_context>
chip_gen: v5e
topology: v5e:2x2
jax: 0.10.0
libtpu: 0.0.40
codegen_flags: <defaults>
</compile_context>

<pallas_src>
import functools

import jax
import jax.numpy as jnp
from jax import lax
from jax.experimental import pallas as pl
from jax.experimental.pallas import tpu as pltpu


KSIZE, STRIDE = 5, 2


def _out_size(n):
    return (n - KSIZE) // STRIDE + 1


# ----------------------------------------------------------------------------
# Static geometry for one fused conv(k5,s2)+ReLU+maxpool(k5,s2) stage
# ----------------------------------------------------------------------------
def _stage_geometry(H, W, block):
    """Flat phase-major layout: position = oh_pos*block + w_pos, where
       oh_pos < ceil(OH/2)  -> natural conv row  2*oh_pos            (even rows)
       else                 -> natural conv row  2*(oh_pos-ceil)+1   (odd rows)
       w_pos  < block//2    -> natural conv col  2*w_pos             (even cols)
       else                 -> natural conv col  2*(w_pos-block//2)+1 (odd)
    In this layout every max-pool tap (kh, kw) is a static contiguous slice."""
    OH, OW = _out_size(H), _out_size(W)
    PH, PW = _out_size(OH), _out_size(OW)
    half = block // 2
    ceil_oh, ceil_ow = (OH + 1) // 2, (OW + 1) // 2
    assert ceil_ow <= half, "lane block too small for this width"
    w_offs = tuple((kw % 2) * half + kw // 2 for kw in range(KSIZE))
    h_offs = tuple(((kh % 2) * ceil_oh + kh // 2) * block for kh in range(KSIZE))
    o_len = PH * block                       # lane-dense pooled output width
    w_len = max(h_offs) + o_len              # width of the W-pooled intermediate
    flat = 2 * ceil_oh * block               # exact width produced by the glue
    assert max(w_offs) + w_len <= flat
    return dict(OH=OH, OW=OW, PH=PH, PW=PW, block=block, half=half,
                ceil_oh=ceil_oh, ceil_ow=ceil_ow, w_offs=w_offs, h_offs=h_offs,
                o_len=o_len, w_len=w_len, flat=flat)


# ----------------------------------------------------------------------------
# XLA glue: phase-major flat im2col (dense strided slices, bf16, ~2-3 passes)
# ----------------------------------------------------------------------------
def _im2col_phase(x, geom):
    """x: (B, C, H, Wrow) -> (B, C*25, flat) bf16 phase-major patch columns.
    Only the columns the conv actually reads are touched, so x's trailing lane
    padding (e.g. stage-1's 128-wide pooled rows with only 61 valid columns)
    is ignored for free -- no inter-stage relayout.  Row q = ci*25 + kh*5 + kw
    matches torch Conv2d weight.reshape(Cout, -1)."""
    B, C = x.shape[0], x.shape[1]
    OH, OW = geom["OH"], geom["OW"]
    ceil_oh, ceil_ow, half = geom["ceil_oh"], geom["ceil_ow"], geom["half"]
    x = x.astype(jnp.bfloat16)
    taps = [x[:, :, kh:kh + 2 * (OH - 1) + 1:2, kw:kw + 2 * (OW - 1) + 1:2]
            for kh in range(KSIZE) for kw in range(KSIZE)]
    p = jnp.stack(taps, axis=2)                              # (B, C, 25, OH, OW)
    # pad OH/OW to even so the even/odd phase split is a pure reshape+transpose
    p = jnp.pad(p, ((0, 0), (0, 0), (0, 0),
                    (0, 2 * ceil_oh - OH), (0, 2 * ceil_ow - OW)))
    p = p.reshape(B, C * 25, ceil_oh, 2, ceil_ow, 2)
    p = p.transpose(0, 1, 3, 2, 5, 4)        # even rows/cols first, then odd
    p = jnp.pad(p, ((0, 0), (0, 0), (0, 0), (0, 0), (0, 0),
                    (0, half - ceil_ow)))
    return p.reshape(B, C * 25, geom["flat"])


# ----------------------------------------------------------------------------
# Kernel 1: conv1(3->8,k5,s2) GEMM + bias + ReLU + MaxPool(5,2), batch-parallel
# ----------------------------------------------------------------------------
def _conv_relu_pool_kernel(p_ref, w_ref, b_ref, o_ref, *, w_offs, w_len,
                           h_offs, o_len):
    # p_ref: (1, Cin*25, flat) bf16 phase-major patches for one image
    # w_ref: (Cout, Cin*25) bf16, b_ref: (Cout, 1) f32
    # o_ref: (1, Cout, PH*block) bf16 pooled output
    c = jnp.dot(w_ref[...], p_ref[0], preferred_element_type=jnp.float32)
    c = jnp.maximum(c + b_ref[...], 0.0)                  # fused bias + ReLU
    # max-pool, W direction: 5 shifted static slices (phase-major -> contiguous)
    sw = c[:, w_offs[0]:w_offs[0] + w_len]
    for o in w_offs[1:]:
        sw = jnp.maximum(sw, c[:, o:o + w_len])
    # max-pool, H direction: 5 shifted static slices (whole row blocks)
    m = sw[:, h_offs[0]:h_offs[0] + o_len]
    for o in h_offs[1:]:
        m = jnp.maximum(m, sw[:, o:o + o_len])
    o_ref[0] = m.astype(o_ref.dtype)


def conv_relu_pool(patches, w_mat, b, geom):
    """Fused conv-as-GEMM + bias + ReLU + maxpool(5,2) for a batch of images."""
    B, K, Wf = patches.shape
    Cout = w_mat.shape[0]
    kernel = functools.partial(
        _conv_relu_pool_kernel, w_offs=geom["w_offs"], w_len=geom["w_len"],
        h_offs=geom["h_offs"], o_len=geom["o_len"])
    return pl.pallas_call(
        kernel,
        out_shape=jax.ShapeDtypeStruct((B, Cout, geom["o_len"]), jnp.bfloat16),
        grid=(B,),
        in_specs=[
            pl.BlockSpec((1, K, Wf), lambda i: (i, 0, 0)),
            pl.BlockSpec((Cout, K), lambda i: (0, 0)),
            pl.BlockSpec((Cout, 1), lambda i: (0, 0)),
        ],
        out_specs=pl.BlockSpec((1, Cout, geom["o_len"]), lambda i: (i, 0, 0)),
        compiler_params=pltpu.CompilerParams(
            dimension_semantics=("parallel",)),      # megacore split on v7x
    )(patches, w_mat, b)


# ----------------------------------------------------------------------------
# Kernel 2: conv2(8->16) GEMM + ReLU + MaxPool(5,2) fused with the whole head
#           (pos Linear+ReLU, virtual concat, Linear(1264,256)+ReLU,
#            Linear(256,A) padded to 128 lanes).  enc2 never leaves VMEM.
# ----------------------------------------------------------------------------
def _conv_pool_head_kernel(p_ref, wc_ref, bc_ref, pos_ref, lw_ref, lb_ref,
                           w1p_ref, w1i_ref, b1_ref, w2_ref, b2_ref,
                           o_ref, acc_ref, *, w_offs, w_len, h_offs, o_len,
                           nchan):
    B = o_ref.shape[0]
    # per-image conv2 + ReLU + pool + fc1 image contribution (static unroll;
    # B is small here -- re-split over a batch grid for large B).
    for b in range(B):
        c = jnp.dot(wc_ref[...], p_ref[b], preferred_element_type=jnp.float32)
        c = jnp.maximum(c + bc_ref[...], 0.0)
        sw = c[:, w_offs[0]:w_offs[0] + w_len]
        for o in w_offs[1:]:
            sw = jnp.maximum(sw, c[:, o:o + w_len])
        m = sw[:, h_offs[0]:h_offs[0] + o_len]
        for o in h_offs[1:]:
            m = jnp.maximum(m, sw[:, o:o + o_len])
        mb = m.astype(jnp.bfloat16)          # (16, PH2*block2); junk lanes x 0
        # fc1 image part: per-channel GEMM against the pre-scattered,
        # lane-dense fc1 weight (zeros on the phantom lanes).
        row = jnp.dot(mb[0:1, :], w1i_ref[0],
                      preferred_element_type=jnp.float32)
        for ci in range(1, nchan):
            row = row + jnp.dot(mb[ci:ci + 1, :], w1i_ref[ci],
                                preferred_element_type=jnp.float32)
        acc_ref[pl.ds(b, 1), :] = row
    # batched head over all rows
    enc1 = jnp.maximum(
        jnp.dot(pos_ref[...], lw_ref[...], preferred_element_type=jnp.float32)
        + lb_ref[...], 0.0)
    h = jnp.maximum(
        jnp.dot(enc1.astype(jnp.bfloat16), w1p_ref[...],
                preferred_element_type=jnp.float32)
        + acc_ref[...] + b1_ref[...], 0.0)
    o_ref[...] = (jnp.dot(h.astype(jnp.bfloat16), w2_ref[...],
                          preferred_element_type=jnp.float32) + b2_ref[...])


def conv_pool_head(p2, pos, prep, geom):
    B = p2.shape[0]
    kernel = functools.partial(
        _conv_pool_head_kernel, w_offs=geom["w_offs"], w_len=geom["w_len"],
        h_offs=geom["h_offs"], o_len=geom["o_len"],
        nchan=prep["w2"].shape[0])
    return pl.pallas_call(
        kernel,
        out_shape=jax.ShapeDtypeStruct((B, 128), jnp.float32),
        scratch_shapes=[pltpu.VMEM((B, 256), jnp.float32)],
    )(p2, prep["w2"], prep["b2"], pos, prep["lw"], prep["lb"],
      prep["w1p"], prep["w1i"], prep["b1h"], prep["w2h"], prep["b2h"])


# ----------------------------------------------------------------------------
# One-time parameter preprocessing (per review: no per-call weight layout ops)
# ----------------------------------------------------------------------------
def prepare_params(params, H, W):
    g1 = _stage_geometry(H, W, block=128)
    g2 = _stage_geometry(g1["PH"], g1["PW"], block=32)
    bf16, f32 = jnp.bfloat16, jnp.float32
    n_pos = params["lin_w"].shape[0]                       # 16
    n_img = 16 * g2["PH"] * g2["PW"]                       # 1248
    assert params["fc1_w"].shape[1] == n_pos + n_img, \
        "image size inconsistent with the hard-coded Linear(1264, 256)"
    A = params["fc2_w"].shape[0]

    # conv weights as GEMM matrices (bf16)
    w1 = params["conv1_w"].reshape(8, -1).astype(bf16)
    b1 = params["conv1_b"].reshape(8, 1).astype(f32)
    w2 = params["conv2_w"].reshape(16, -1).astype(bf16)
    b2 = params["conv2_b"].reshape(16, 1).astype(f32)
    # pos branch
    lw = params["lin_w"].T.astype(f32)                     # (S, 16)
    lb = params["lin_b"][None, :].astype(f32)
    # fc1: split pos / image parts; scatter image rows to the lane-dense
    # (16, PH2*block2, 256) layout of the in-kernel pooled activation.
    w1p = params["fc1_w"][:, :n_pos].T.astype(bf16)        # (16, 256)
    wimg = params["fc1_w"][:, n_pos:].T.reshape(16, g2["PH"], g2["PW"], 256)
    w1i = (jnp.zeros((16, g2["PH"], g2["block"], 256), f32)
           .at[:, :, :g2["PW"], :].set(wimg)
           .reshape(16, g2["PH"] * g2["block"], 256).astype(bf16))
    b1h = params["fc1_b"][None, :].astype(f32)
    # fc2 padded to a lane-dense 128-wide output (sliced back in the wrapper)
    w2h = (jnp.zeros((256, 128), f32).at[:, :A].set(params["fc2_w"].T)
           .astype(bf16))
    b2h = jnp.zeros((1, 128), f32).at[:, :A].set(params["fc2_b"][None, :])
    return dict(w1=w1, b1=b1, w2=w2, b2=b2, lw=lw, lb=lb, w1p=w1p, w1i=w1i,
                b1h=b1h, w2h=w2h, b2h=b2h)


# ----------------------------------------------------------------------------
# ActorCNN forward: 2 pallas_calls total
# ----------------------------------------------------------------------------
@functools.partial(jax.jit, static_argnames=("action_space",))
def actor_cnn_forward(prep, pos, img, *, action_space):
    B, _, H, W = img.shape
    g1 = _stage_geometry(H, W, block=128)
    g2 = _stage_geometry(g1["PH"], g1["PW"], block=32)

    # stage 1: Conv2d(3->8,5,2) + ReLU + MaxPool2d(5,2)  -- one fused kernel
    p1 = _im2col_phase(img, g1)
    y1 = conv_relu_pool(p1, prep["w1"], prep["b1"], g1)     # (B, 8, PH1*128) bf16
    y1 = y1.reshape(B, 8, g1["PH"], g1["block"])            # free reshape

    # stage 2 + head: Conv2d(8->16,5,2)+ReLU+MaxPool2d(5,2), pos Linear+ReLU,
    # concat, Linear(1264,256)+ReLU, Linear(256,A)  -- one fused kernel.
    # The stage-2 im2col reads y1's phase layout directly (no relayout).
    p2 = _im2col_phase(y1, g2)
    out = conv_pool_head(p2, pos, prep, g2)                 # (B, 128) lane-dense
    return out[:, :action_space]


# ----------------------------------------------------------------------------
# Deterministic synthetic parameters (torch-shaped) + pure-JAX reference
# ----------------------------------------------------------------------------
def init_params(key, state_space, action_space):
    ks = jax.random.split(key, 10)

    def w(k, shape, scale):
        return scale * jax.random.normal(k, shape, jnp.float32)

    return {
        "conv1_w": w(ks[0], (8, 3, 5, 5), 0.05),
        "conv1_b": w(ks[1], (8,), 0.05),
        "conv2_w": w(ks[2], (16, 8, 5, 5), 0.05),
        "conv2_b": w(ks[3], (16,), 0.05),
        "lin_w": w(ks[4], (16, state_space), 0.10),
        "lin_b": w(ks[5], (16,), 0.10),
        "fc1_w": w(ks[6], (256, 1264), 0.03),
        "fc1_b": w(ks[7], (256,), 0.03),
        "fc2_w": w(ks[8], (action_space, 256), 0.05),
        "fc2_b": w(ks[9], (action_space,), 0.05),
    }


def reference_forward(params, pos, img):
    enc1 = jax.nn.relu(pos @ params["lin_w"].T + params["lin_b"])

    def conv(x, w, b):
        y = lax.conv_general_dilated(
            x, w, (2, 2), "VALID",
            dimension_numbers=("NCHW", "OIHW", "NCHW"),
            precision=lax.Precision.HIGHEST)
        return jax.nn.relu(y + b.reshape(1, -1, 1, 1))

    def pool(x):
        return lax.reduce_window(x, -jnp.inf, lax.max,
                                 (1, 1, 5, 5), (1, 1, 2, 2), "VALID")

    y = pool(conv(img, params["conv1_w"], params["conv1_b"]))
    y = pool(conv(y, params["conv2_w"], params["conv2_b"]))
    enc2 = y.reshape(y.shape[0], -1)
    enc = jnp.concatenate([enc1, enc2], axis=1)
    h = jax.nn.relu(enc @ params["fc1_w"].T + params["fc1_b"])
    return h @ params["fc2_w"].T + params["fc2_b"]


if __name__ == "__main__":
    STATE_SPACE, ACTION_SPACE, B = 8, 5, 2
    # Image size chosen so the conv trunk flattens to exactly 1248 features
    # (1248 + 16 = 1264, the hard-coded Linear(1264, 256) input).
    H, W = 144, 256

    key = jax.random.PRNGKey(0)
    kp, kpos, kimg = jax.random.split(key, 3)
    params = init_params(kp, STATE_SPACE, ACTION_SPACE)
    prep = prepare_params(params, H, W)          # one-time weight preprocessing
    pos = jax.random.normal(kpos, (B, STATE_SPACE), jnp.float32)
    img = jax.random.normal(kimg, (B, 3, H, W), jnp.float32)

    out = jax.block_until_ready(
        actor_cnn_forward(prep, pos, img, action_space=ACTION_SPACE))
    assert out.shape == (B, ACTION_SPACE), out.shape

    ref = jax.block_until_ready(reference_forward(params, pos, img))
    max_err = float(jnp.max(jnp.abs(out - ref)))
    # bf16 patch/weight path with f32 accumulation: small K per layer keeps the
    # error well inside the tolerance used for the f32 version.
    assert jnp.allclose(out, ref, rtol=2e-2, atol=2e-2), f"max_err={max_err}"

    print("KERNEL_OK")
</pallas_src>

<mosaic_0001>
module attributes {stable_mosaic.version = 11 : i64} {
  func.func @_conv_relu_pool_kernel(%arg0: i32, %arg1: memref<1x75x8960xbf16, #tpu.memory_space<vmem>>, %arg2: memref<8x75xbf16, #tpu.memory_space<vmem>>, %arg3: memref<8x1xf32, #tpu.memory_space<vmem>>, %arg4: memref<1x8x4224xbf16, #tpu.memory_space<vmem>>) attributes {dimension_semantics = [#tpu.dimension_semantics<parallel>], iteration_bounds = array<i64: 2>, scalar_prefetch = 0 : i64, scratch_operands = 0 : i64, tpu.core_type = #tpu.core_type<tc>, window_params = [{transform_indices = @transform_0, window_bounds = array<i64: 1, 75, 8960>}, {pipeline_mode = #tpu.pipeline_mode<synchronous>, transform_indices = @transform_1, window_bounds = array<i64: 8, 75>}, {pipeline_mode = #tpu.pipeline_mode<synchronous>, transform_indices = @transform_2, window_bounds = array<i64: 8, 1>}, {transform_indices = @transform_3, window_bounds = array<i64: 1, 8, 4224>}]} {
    %c0 = arith.constant 0 : index
    %c0_0 = arith.constant 0 : index
    %0 = vector.load %arg2[%c0, %c0_0] : memref<8x75xbf16, #tpu.memory_space<vmem>>, vector<8x75xbf16>
    %c0_1 = arith.constant 0 : index
    %c0_2 = arith.constant 0 : index
    %c0_3 = arith.constant 0 : index
    %1 = vector.load %arg1[%c0_1, %c0_2, %c0_3] : memref<1x75x8960xbf16, #tpu.memory_space<vmem>>, vector<1x75x8960xbf16>
    %2 = vector.shape_cast %1 : vector<1x75x8960xbf16> to vector<75x8960xbf16>
    %cst = arith.constant dense<0.000000e+00> : vector<8x8960xf32>
    %3 = tpu.matmul %0, %2, %cst {dimension_numbers = #tpu.dot_dimension_numbers<[1], [0], [0], [1], [0, 0, 1, 1], [], []>} : vector<8x75xbf16>, vector<75x8960xbf16>, vector<8x8960xf32> -> vector<8x8960xf32>
    %c0_4 = arith.constant 0 : index
    %c0_5 = arith.constant 0 : index
    %4 = vector.load %arg3[%c0_4, %c0_5] : memref<8x1xf32, #tpu.memory_space<vmem>>, vector<8x1xf32>
    %5 = vector.broadcast %4 : vector<8x1xf32> to vector<8x8960xf32>
    %6 = arith.addf %3, %5 : vector<8x8960xf32>
    %cst_6 = arith.constant 0.000000e+00 : f32
    %7 = vector.broadcast %cst_6 : f32 to vector<8x8960xf32>
    %8 = arith.maximumf %6, %7 : vector<8x8960xf32>
    %9 = vector.extract_strided_slice %8 {offsets = [0, 0], sizes = [8, 8832], strides = [1, 1]} : vector<8x8960xf32> to vector<8x8832xf32>
    %10 = vector.extract_strided_slice %8 {offsets = [0, 64], sizes = [8, 8832], strides = [1, 1]} : vector<8x8960xf32> to vector<8x8832xf32>
    %11 = arith.maximumf %9, %10 : vector<8x8832xf32>
    %12 = vector.extract_strided_slice %8 {offsets = [0, 1], sizes = [8, 8832], strides = [1, 1]} : vector<8x8960xf32> to vector<8x8832xf32>
    %13 = arith.maximumf %11, %12 : vector<8x8832xf32>
    %14 = vector.extract_strided_slice %8 {offsets = [0, 65], sizes = [8, 8832], strides = [1, 1]} : vector<8x8960xf32> to vector<8x8832xf32>
    %15 = arith.maximumf %13, %14 : vector<8x8832xf32>
    %16 = vector.extract_strided_slice %8 {offsets = [0, 2], sizes = [8, 8832], strides = [1, 1]} : vector<8x8960xf32> to vector<8x8832xf32>
    %17 = arith.maximumf %15, %16 : vector<8x8832xf32>
    %18 = vector.extract_strided_slice %17 {offsets = [0, 0], sizes = [8, 4224], strides = [1, 1]} : vector<8x8832xf32> to vector<8x4224xf32>
    %19 = vector.extract_strided_slice %17 {offsets = [0, 4480], sizes = [8, 4224], strides = [1, 1]} : vector<8x8832xf32> to vector<8x4224xf32>
    %20 = arith.maximumf %18, %19 : vector<8x4224xf32>
    %21 = vector.extract_strided_slice %17 {offsets = [0, 128], sizes = [8, 4224], strides = [1, 1]} : vector<8x8832xf32> to vector<8x4224xf32>
    %22 = arith.maximumf %20, %21 : vector<8x4224xf32>
    %23 = vector.extract_strided_slice %17 {offsets = [0, 4608], sizes = [8, 4224], strides = [1, 1]} : vector<8x8832xf32> to vector<8x4224xf32>
    %24 = arith.maximumf %22, %23 : vector<8x4224xf32>
    %25 = vector.extract_strided_slice %17 {offsets = [0, 256], sizes = [8, 4224], strides = [1, 1]} : vector<8x8832xf32> to vector<8x4224xf32>
    %26 = arith.maximumf %24, %25 : vector<8x4224xf32>
    %27 = arith.truncf %26 : vector<8x4224xf32> to vector<8x4224xbf16>
    %c0_7 = arith.constant 0 : index
    %c0_8 = arith.constant 0 : index
    %c0_9 = arith.constant 0 : index
    %28 = vector.load %arg4[%c0_7, %c0_8, %c0_9] : memref<1x8x4224xbf16, #tpu.memory_space<vmem>>, vector<1x8x4224xbf16>
    %29 = vector.shape_cast %28 : vector<1x8x4224xbf16> to vector<8x4224xbf16>
    %30 = vector.shape_cast %27 : vector<8x4224xbf16> to vector<1x8x4224xbf16>
    tpu.vector_store %arg4[%c0_7, %c0_8, %c0_9], %30 {strides = array<i32>} : memref<1x8x4224xbf16, #tpu.memory_space<vmem>>, vector<1x8x4224xbf16>,
    return
  }
  func.func @transform_0(%arg0: i32) -> (i32, i32, i32) {
    %c0_i32 = arith.constant 0 : i32
    %c0_i32_0 = arith.constant 0 : i32
    %c0_i32_1 = arith.constant 0 : i32
    return %arg0, %c0_i32, %c0_i32_0 : i32, i32, i32
  }
  func.func @transform_1(%arg0: i32) -> (i32, i32) {
    %c0_i32 = arith.constant 0 : i32
    %c0_i32_0 = arith.constant 0 : i32
    %c0_i32_1 = arith.constant 0 : i32
    return %c0_i32, %c0_i32_0 : i32, i32
  }
  func.func @transform_2(%arg0: i32) -> (i32, i32) {
    %c0_i32 = arith.constant 0 : i32
    %c0_i32_0 = arith.constant 0 : i32
    %c0_i32_1 = arith.constant 0 : i32
    return %c0_i32, %c0_i32_0 : i32, i32
  }
  func.func @transform_3(%arg0: i32) -> (i32, i32, i32) {
    %c0_i32 = arith.constant 0 : i32
    %c0_i32_0 = arith.constant 0 : i32
    %c0_i32_1 = arith.constant 0 : i32
    return %arg0, %c0_i32, %c0_i32_0 : i32, i32, i32
  }
}

module attributes {stable_mosaic.version = 11 : i64} {
  func.func @_conv_pool_head_kernel(%arg0: memref<2x200x512xbf16, #tpu.memory_space<vmem>>, %arg1: memref<16x200xbf16, #tpu.memory_space<vmem>>, %arg2: memref<16x1xf32, #tpu.memory_space<vmem>>, %arg3: memref<2x8xf32, #tpu.memory_space<vmem>>, %arg4: memref<8x16xf32, #tpu.memory_space<vmem>>, %arg5: memref<1x16xf32, #tpu.memory_space<vmem>>, %arg6: memref<16x256xbf16, #tpu.memory_space<vmem>>, %arg7: memref<16x192x256xbf16, #tpu.memory_space<vmem>>, %arg8: memref<1x256xf32, #tpu.memory_space<vmem>>, %arg9: memref<256x128xbf16, #tpu.memory_space<vmem>>, %arg10: memref<1x128xf32, #tpu.memory_space<vmem>>, %arg11: memref<2x128xf32, #tpu.memory_space<vmem>>, %arg12: memref<2x256xf32, #tpu.memory_space<vmem>>) attributes {dimension_semantics = [], scalar_prefetch = 0 : i64, scratch_operands = 1 : i64, tpu.core_type = #tpu.core_type<tc>} {
    %c0 = arith.constant 0 : index
    %c0_0 = arith.constant 0 : index
    %0 = vector.load %arg1[%c0, %c0_0] : memref<16x200xbf16, #tpu.memory_space<vmem>>, vector<16x200xbf16>
    %c0_1 = arith.constant 0 : index
    %c0_2 = arith.constant 0 : index
    %c0_3 = arith.constant 0 : index
    %1 = vector.load %arg0[%c0_1, %c0_2, %c0_3] : memref<2x200x512xbf16, #tpu.memory_space<vmem>>, vector<1x200x512xbf16>
    %2 = vector.shape_cast %1 : vector<1x200x512xbf16> to vector<200x512xbf16>
    %cst = arith.constant dense<0.000000e+00> : vector<16x512xf32>
    %3 = tpu.matmul %0, %2, %cst {dimension_numbers = #tpu.dot_dimension_numbers<[1], [0], [0], [1], [0, 0, 1, 1], [], []>} : vector<16x200xbf16>, vector<200x512xbf16>, vector<16x512xf32> -> vector<16x512xf32>
    %c0_4 = arith.constant 0 : index
    %c0_5 = arith.constant 0 : index
    %4 = vector.load %arg2[%c0_4, %c0_5] : memref<16x1xf32, #tpu.memory_space<vmem>>, vector<16x1xf32>
    %5 = vector.broadcast %4 : vector<16x1xf32> to vector<16x512xf32>
    %6 = arith.addf %3, %5 : vector<16x512xf32>
    %cst_6 = arith.constant 0.000000e+00 : f32
    %7 = vector.broadcast %cst_6 : f32 to vector<16x512xf32>
    %8 = arith.maximumf %6, %7 : vector<16x512xf32>
    %9 = vector.extract_strided_slice %8 {offsets = [0, 0], sizes = [16, 480], strides = [1, 1]} : vector<16x512xf32> to vector<16x480xf32>
    %10 = vector.extract_strided_slice %8 {offsets = [0, 16], sizes = [16, 480], strides = [1, 1]} : vector<16x512xf32> to vector<16x480xf32>
    %11 = arith.maximumf %9, %10 : vector<16x480xf32>
    %12 = vector.extract_strided_slice %8 {offsets = [0, 1], sizes = [16, 480], strides = [1, 1]} : vector<16x512xf32> to vector<16x480xf32>
    %13 = arith.maximumf %11, %12 : vector<16x480xf32>
    %14 = vector.extract_strided_slice %8 {offsets = [0, 17], sizes = [16, 480], strides = [1, 1]} : vector<16x512xf32> to vector<16x480xf32>
    %15 = arith.maximumf %13, %14 : vector<16x480xf32>
    %16 = vector.extract_strided_slice %8 {offsets = [0, 2], sizes = [16, 480], strides = [1, 1]} : vector<16x512xf32> to vector<16x480xf32>
    %17 = arith.maximumf %15, %16 : vector<16x480xf32>
    %18 = vector.extract_strided_slice %17 {offsets = [0, 0], sizes = [16, 192], strides = [1, 1]} : vector<16x480xf32> to vector<16x192xf32>
    %19 = vector.extract_strided_slice %17 {offsets = [0, 256], sizes = [16, 192], strides = [1, 1]} : vector<16x480xf32> to vector<16x192xf32>
    %20 = arith.maximumf %18, %19 : vector<16x192xf32>
    %21 = vector.extract_strided_slice %17 {offsets = [0, 32], sizes = [16, 192], strides = [1, 1]} : vector<16x480xf32> to vector<16x192xf32>
    %22 = arith.maximumf %20, %21 : vector<16x192xf32>
    %23 = vector.extract_strided_slice %17 {offsets = [0, 288], sizes = [16, 192], strides = [1, 1]} : vector<16x480xf32> to vector<16x192xf32>
    %24 = arith.maximumf %22, %23 : vector<16x192xf32>
    %25 = vector.extract_strided_slice %17 {offsets = [0, 64], sizes = [16, 192], strides = [1, 1]} : vector<16x480xf32> to vector<16x192xf32>
    %26 = arith.maximumf %24, %25 : vector<16x192xf32>
    %27 = arith.truncf %26 : vector<16x192xf32> to vector<16x192xbf16>
    %28 = vector.extract_strided_slice %27 {offsets = [0, 0], sizes = [1, 192], strides = [1, 1]} : vector<16x192xbf16> to vector<1x192xbf16>
    %c0_7 = arith.constant 0 : index
    %c0_8 = arith.constant 0 : index
    %c0_9 = arith.constant 0 : index
    %29 = vector.load %arg7[%c0_7, %c0_8, %c0_9] : memref<16x192x256xbf16, #tpu.memory_space<vmem>>, vector<1x192x256xbf16>
    %30 = vector.shape_cast %29 : vector<1x192x256xbf16> to vector<192x256xbf16>
    %cst_10 = arith.constant dense<0.000000e+00> : vector<1x256xf32>
    %31 = tpu.matmul %28, %30, %cst_10 {dimension_numbers = #tpu.dot_dimension_numbers<[1], [0], [0], [1], [0, 0, 1, 1], [], []>} : vector<1x192xbf16>, vector<192x256xbf16>, vector<1x256xf32> -> vector<1x256xf32>
    %32 = vector.extract_strided_slice %27 {offsets = [1, 0], sizes = [1, 192], strides = [1, 1]} : vector<16x192xbf16> to vector<1x192xbf16>
    %c1 = arith.constant 1 : index
    %c0_11 = arith.constant 0 : index
    %c0_12 = arith.constant 0 : index
    %33 = vector.load %arg7[%c1, %c0_11, %c0_12] : memref<16x192x256xbf16, #tpu.memory_space<vmem>>, vector<1x192x256xbf16>
    %34 = vector.shape_cast %33 : vector<1x192x256xbf16> to vector<192x256xbf16>
    %cst_13 = arith.constant dense<0.000000e+00> : vector<1x256xf32>
    %35 = tpu.matmul %32, %34, %cst_13 {dimension_numbers = #tpu.dot_dimension_numbers<[1], [0], [0], [1], [0, 0, 1, 1], [], []>} : vector<1x192xbf16>, vector<192x256xbf16>, vector<1x256xf32> -> vector<1x256xf32>
    %36 = arith.addf %31, %35 : vector<1x256xf32>
    %37 = vector.extract_strided_slice %27 {offsets = [2, 0], sizes = [1, 192], strides = [1, 1]} : vector<16x192xbf16> to vector<1x192xbf16>
    %c2 = arith.constant 2 : index
    %c0_14 = arith.constant 0 : index
    %c0_15 = arith.constant 0 : index
    %38 = vector.load %arg7[%c2, %c0_14, %c0_15] : memref<16x192x256xbf16, #tpu.memory_space<vmem>>, vector<1x192x256xbf16>
    %39 = vector.shape_cast %38 : vector<1x192x256xbf16> to vector<192x256xbf16>
    %cst_16 = arith.constant dense<0.000000e+00> : vector<1x256xf32>
    %40 = tpu.matmul %37, %39, %cst_16 {dimension_numbers = #tpu.dot_dimension_numbers<[1], [0], [0], [1], [0, 0, 1, 1], [], []>} : vector<1x192xbf16>, vector<192x256xbf16>, vector<1x256xf32> -> vector<1x256xf32>
    %41 = arith.addf %36, %40 : vector<1x256xf32>
    %42 = vector.extract_strided_slice %27 {offsets = [3, 0], sizes = [1, 192], strides = [1, 1]} : vector<16x192xbf16> to vector<1x192xbf16>
    %c3 = arith.constant 3 : index
    %c0_17 = arith.constant 0 : index
    %c0_18 = arith.constant 0 : index
    %43 = vector.load %arg7[%c3, %c0_17, %c0_18] : memref<16x192x256xbf16, #tpu.memory_space<vmem>>, vector<1x192x256xbf16>
    %44 = vector.shape_cast %43 : vector<1x192x256xbf16> to vector<192x256xbf16>
    %cst_19 = arith.constant dense<0.000000e+00> : vector<1x256xf32>
    %45 = tpu.matmul %42, %44, %cst_19 {dimension_numbers = #tpu.dot_dimension_numbers<[1], [0], [0], [1], [0, 0, 1, 1], [], []>} : vector<1x192xbf16>, vector<192x256xbf16>, vector<1x256xf32> -> vector<1x256xf32>
    %46 = arith.addf %41, %45 : vector<1x256xf32>
    %47 = vector.extract_strided_slice %27 {offsets = [4, 0], sizes = [1, 192], strides = [1, 1]} : vector<16x192xbf16> to vector<1x192xbf16>
    %c4 = arith.constant 4 : index
    %c0_20 = arith.constant 0 : index
    %c0_21 = arith.constant 0 : index
    %48 = vector.load %arg7[%c4, %c0_20, %c0_21] : memref<16x192x256xbf16, #tpu.memory_space<vmem>>, vector<1x192x256xbf16>
    %49 = vector.shape_cast %48 : vector<1x192x256xbf16> to vector<192x256xbf16>
    %cst_22 = arith.constant dense<0.000000e+00> : vector<1x256xf32>
    %50 = tpu.matmul %47, %49, %cst_22 {dimension_numbers = #tpu.dot_dimension_numbers<[1], [0], [0], [1], [0, 0, 1, 1], [], []>} : vector<1x192xbf16>, vector<192x256xbf16>, vector<1x256xf32> -> vector<1x256xf32>
    %51 = arith.addf %46, %50 : vector<1x256xf32>
    %52 = vector.extract_strided_slice %27 {offsets = [5, 0], sizes = [1, 192], strides = [1, 1]} : vector<16x192xbf16> to vector<1x192xbf16>
    %c5 = arith.constant 5 : index
    %c0_23 = arith.constant 0 : index
    %c0_24 = arith.constant 0 : index
    %53 = vector.load %arg7[%c5, %c0_23, %c0_24] : memref<16x192x256xbf16, #tpu.memory_space<vmem>>, vector<1x192x256xbf16>
    %54 = vector.shape_cast %53 : vector<1x192x256xbf16> to vector<192x256xbf16>
    %cst_25 = arith.constant dense<0.000000e+00> : vector<1x256xf32>
    %55 = tpu.matmul %52, %54, %cst_25 {dimension_numbers = #tpu.dot_dimension_numbers<[1], [0], [0], [1], [0, 0, 1, 1], [], []>} : vector<1x192xbf16>, vector<192x256xbf16>, vector<1x256xf32> -> vector<1x256xf32>
    %56 = arith.addf %51, %55 : vector<1x256xf32>
    %57 = vector.extract_strided_slice %27 {offsets = [6, 0], sizes = [1, 192], strides = [1, 1]} : vector<16x192xbf16> to vector<1x192xbf16>
    %c6 = arith.constant 6 : index
    %c0_26 = arith.constant 0 : index
    %c0_27 = arith.constant 0 : index
    %58 = vector.load %arg7[%c6, %c0_26, %c0_27] : memref<16x192x256xbf16, #tpu.memory_space<vmem>>, vector<1x192x256xbf16>
    %59 = vector.shape_cast %58 : vector<1x192x256xbf16> to vector<192x256xbf16>
    %cst_28 = arith.constant dense<0.000000e+00> : vector<1x256xf32>
    %60 = tpu.matmul %57, %59, %cst_28 {dimension_numbers = #tpu.dot_dimension_numbers<[1], [0], [0], [1], [0, 0, 1, 1], [], []>} : vector<1x192xbf16>, vector<192x256xbf16>, vector<1x256xf32> -> vector<1x256xf32>
    %61 = arith.addf %56, %60 : vector<1x256xf32>
    %62 = vector.extract_strided_slice %27 {offsets = [7, 0], sizes = [1, 192], strides = [1, 1]} : vector<16x192xbf16> to vector<1x192xbf16>
    %c7 = arith.constant 7 : index
    %c0_29 = arith.constant 0 : index
    %c0_30 = arith.constant 0 : index
    %63 = vector.load %arg7[%c7, %c0_29, %c0_30] : memref<16x192x256xbf16, #tpu.memory_space<vmem>>, vector<1x192x256xbf16>
    %64 = vector.shape_cast %63 : vector<1x192x256xbf16> to vector<192x256xbf16>
    %cst_31 = arith.constant dense<0.000000e+00> : vector<1x256xf32>
    %65 = tpu.matmul %62, %64, %cst_31 {dimension_numbers = #tpu.dot_dimension_numbers<[1], [0], [0], [1], [0, 0, 1, 1], [], []>} : vector<1x192xbf16>, vector<192x256xbf16>, vector<1x256xf32> -> vector<1x256xf32>
    %66 = arith.addf %61, %65 : vector<1x256xf32>
    %67 = vector.extract_strided_slice %27 {offsets = [8, 0], sizes = [1, 192], strides = [1, 1]} : vector<16x192xbf16> to vector<1x192xbf16>
    %c8 = arith.constant 8 : index
    %c0_32 = arith.constant 0 : index
    %c0_33 = arith.constant 0 : index
    %68 = vector.load %arg7[%c8, %c0_32, %c0_33] : memref<16x192x256xbf16, #tpu.memory_space<vmem>>, vector<1x192x256xbf16>
    %69 = vector.shape_cast %68 : vector<1x192x256xbf16> to vector<192x256xbf16>
    %cst_34 = arith.constant dense<0.000000e+00> : vector<1x256xf32>
    %70 = tpu.matmul %67, %69, %cst_34 {dimension_numbers = #tpu.dot_dimension_numbers<[1], [0], [0], [1], [0, 0, 1, 1], [], []>} : vector<1x192xbf16>, vector<192x256xbf16>, vector<1x256xf32> -> vector<1x256xf32>
    %71 = arith.addf %66, %70 : vector<1x256xf32>
    %72 = vector.extract_strided_slice %27 {offsets = [9, 0], sizes = [1, 192], strides = [1, 1]} : vector<16x192xbf16> to vector<1x192xbf16>
    %c9 = arith.constant 9 : index
    %c0_35 = arith.constant 0 : index
    %c0_36 = arith.constant 0 : index
    %73 = vector.load %arg7[%c9, %c0_35, %c0_36] : memref<16x192x256xbf16, #tpu.memory_space<vmem>>, vector<1x192x256xbf16>
    %74 = vector.shape_cast %73 : vector<1x192x256xbf16> to vector<192x256xbf16>
    %cst_37 = arith.constant dense<0.000000e+00> : vector<1x256xf32>
    %75 = tpu.matmul %72, %74, %cst_37 {dimension_numbers = #tpu.dot_dimension_numbers<[1], [0], [0], [1], [0, 0, 1, 1], [], []>} : vector<1x192xbf16>, vector<192x256xbf16>, vector<1x256xf32> -> vector<1x256xf32>
    %76 = arith.addf %71, %75 : vector<1x256xf32>
    %77 = vector.extract_strided_slice %27 {offsets = [10, 0], sizes = [1, 192], strides = [1, 1]} : vector<16x192xbf16> to vector<1x192xbf16>
    %c10 = arith.constant 10 : index
    %c0_38 = arith.constant 0 : index
    %c0_39 = arith.constant 0 : index
    %78 = vector.load %arg7[%c10, %c0_38, %c0_39] : memref<16x192x256xbf16, #tpu.memory_space<vmem>>, vector<1x192x256xbf16>
    %79 = vector.shape_cast %78 : vector<1x192x256xbf16> to vector<192x256xbf16>
    %cst_40 = arith.constant dense<0.000000e+00> : vector<1x256xf32>
    %80 = tpu.matmul %77, %79, %cst_40 {dimension_numbers = #tpu.dot_dimension_numbers<[1], [0], [0], [1], [0, 0, 1, 1], [], []>} : vector<1x192xbf16>, vector<192x256xbf16>, vector<1x256xf32> -> vector<1x256xf32>
    %81 = arith.addf %76, %80 : vector<1x256xf32>
    %82 = vector.extract_strided_slice %27 {offsets = [11, 0], sizes = [1, 192], strides = [1, 1]} : vector<16x192xbf16> to vector<1x192xbf16>
    %c11 = arith.constant 11 : index
    %c0_41 = arith.constant 0 : index
    %c0_42 = arith.constant 0 : index
    %83 = vector.load %arg7[%c11, %c0_41, %c0_42] : memref<16x192x256xbf16, #tpu.memory_space<vmem>>, vector<1x192x256xbf16>
    %84 = vector.shape_cast %83 : vector<1x192x256xbf16> to vector<192x256xbf16>
    %cst_43 = arith.constant dense<0.000000e+00> : vector<1x256xf32>
    %85 = tpu.matmul %82, %84, %cst_43 {dimension_numbers = #tpu.dot_dimension_numbers<[1], [0], [0], [1], [0, 0, 1, 1], [], []>} : vector<1x192xbf16>, vector<192x256xbf16>, vector<1x256xf32> -> vector<1x256xf32>
    %86 = arith.addf %81, %85 : vector<1x256xf32>
    %87 = vector.extract_strided_slice %27 {offsets = [12, 0], sizes = [1, 192], strides = [1, 1]} : vector<16x192xbf16> to vector<1x192xbf16>
    %c12 = arith.constant 12 : index
    %c0_44 = arith.constant 0 : index
    %c0_45 = arith.constant 0 : index
    %88 = vector.load %arg7[%c12, %c0_44, %c0_45] : memref<16x192x256xbf16, #tpu.memory_space<vmem>>, vector<1x192x256xbf16>
    %89 = vector.shape_cast %88 : vector<1x192x256xbf16> to vector<192x256xbf16>
    %cst_46 = arith.constant dense<0.000000e+00> : vector<1x256xf32>
    %90 = tpu.matmul %87, %89, %cst_46 {dimension_numbers = #tpu.dot_dimension_numbers<[1], [0], [0], [1], [0, 0, 1, 1], [], []>} : vector<1x192xbf16>, vector<192x256xbf16>, vector<1x256xf32> -> vector<1x256xf32>
    %91 = arith.addf %86, %90 : vector<1x256xf32>
    %92 = vector.extract_strided_slice %27 {offsets = [13, 0], sizes = [1, 192], strides = [1, 1]} : vector<16x192xbf16> to vector<1x192xbf16>
    %c13 = arith.constant 13 : index
    %c0_47 = arith.constant 0 : index
    %c0_48 = arith.constant 0 : index
    %93 = vector.load %arg7[%c13, %c0_47, %c0_48] : memref<16x192x256xbf16, #tpu.memory_space<vmem>>, vector<1x192x256xbf16>
    %94 = vector.shape_cast %93 : vector<1x192x256xbf16> to vector<192x256xbf16>
    %cst_49 = arith.constant dense<0.000000e+00> : vector<1x256xf32>
    %95 = tpu.matmul %92, %94, %cst_49 {dimension_numbers = #tpu.dot_dimension_numbers<[1], [0], [0], [1], [0, 0, 1, 1], [], []>} : vector<1x192xbf16>, vector<192x256xbf16>, vector<1x256xf32> -> vector<1x256xf32>
    %96 = arith.addf %91, %95 : vector<1x256xf32>
    %97 = vector.extract_strided_slice %27 {offsets = [14, 0], sizes = [1, 192], strides = [1, 1]} : vector<16x192xbf16> to vector<1x192xbf16>
    %c14 = arith.constant 14 : index
    %c0_50 = arith.constant 0 : index
    %c0_51 = arith.constant 0 : index
    %98 = vector.load %arg7[%c14, %c0_50, %c0_51] : memref<16x192x256xbf16, #tpu.memory_space<vmem>>, vector<1x192x256xbf16>
    %99 = vector.shape_cast %98 : vector<1x192x256xbf16> to vector<192x256xbf16>
    %cst_52 = arith.constant dense<0.000000e+00> : vector<1x256xf32>
    %100 = tpu.matmul %97, %99, %cst_52 {dimension_numbers = #tpu.dot_dimension_numbers<[1], [0], [0], [1], [0, 0, 1, 1], [], []>} : vector<1x192xbf16>, vector<192x256xbf16>, vector<1x256xf32> -> vector<1x256xf32>
    %101 = arith.addf %96, %100 : vector<1x256xf32>
    %102 = vector.extract_strided_slice %27 {offsets = [15, 0], sizes = [1, 192], strides = [1, 1]} : vector<16x192xbf16> to vector<1x192xbf16>
    %c15 = arith.constant 15 : index
    %c0_53 = arith.constant 0 : index
    %c0_54 = arith.constant 0 : index
    %103 = vector.load %arg7[%c15, %c0_53, %c0_54] : memref<16x192x256xbf16, #tpu.memory_space<vmem>>, vector<1x192x256xbf16>
    %104 = vector.shape_cast %103 : vector<1x192x256xbf16> to vector<192x256xbf16>
    %cst_55 = arith.constant dense<0.000000e+00> : vector<1x256xf32>
    %105 = tpu.matmul %102, %104, %cst_55 {dimension_numbers = #tpu.dot_dimension_numbers<[1], [0], [0], [1], [0, 0, 1, 1], [], []>} : vector<1x192xbf16>, vector<192x256xbf16>, vector<1x256xf32> -> vector<1x256xf32>
    %106 = arith.addf %101, %105 : vector<1x256xf32>
    %c0_56 = arith.constant 0 : index
    %c0_57 = arith.constant 0 : index
    %107 = vector.load %arg12[%c0_56, %c0_57] : memref<2x256xf32, #tpu.memory_space<vmem>>, vector<1x256xf32>
    tpu.vector_store %arg12[%c0_56, %c0_57], %106 {strides = array<i32>} : memref<2x256xf32, #tpu.memory_space<vmem>>, vector<1x256xf32>,
    %c0_58 = arith.constant 0 : index
    %c0_59 = arith.constant 0 : index
    %108 = vector.load %arg1[%c0_58, %c0_59] : memref<16x200xbf16, #tpu.memory_space<vmem>>, vector<16x200xbf16>
    %c1_60 = arith.constant 1 : index
    %c0_61 = arith.constant 0 : index
    %c0_62 = arith.constant 0 : index
    %109 = vector.load %arg0[%c1_60, %c0_61, %c0_62] : memref<2x200x512xbf16, #tpu.memory_space<vmem>>, vector<1x200x512xbf16>
    %110 = vector.shape_cast %109 : vector<1x200x512xbf16> to vector<200x512xbf16>
    %cst_63 = arith.constant dense<0.000000e+00> : vector<16x512xf32>
    %111 = tpu.matmul %108, %110, %cst_63 {dimension_numbers = #tpu.dot_dimension_numbers<[1], [0], [0], [1], [0, 0, 1, 1], [], []>} : vector<16x200xbf16>, vector<200x512xbf16>, vector<16x512xf32> -> vector<16x512xf32>
    %c0_64 = arith.constant 0 : index
    %c0_65 = arith.constant 0 : index
    %112 = vector.load %arg2[%c0_64, %c0_65] : memref<16x1xf32, #tpu.memory_space<vmem>>, vector<16x1xf32>
    %113 = vector.broadcast %112 : vector<16x1xf32> to vector<16x512xf32>
    %114 = arith.addf %111, %113 : vector<16x512xf32>
    %cst_66 = arith.constant 0.000000e+00 : f32
    %115 = vector.broadcast %cst_66 : f32 to vector<16x512xf32>
    %116 = arith.maximumf %114, %115 : vector<16x512xf32>
    %117 = vector.extract_strided_slice %116 {offsets = [0, 0], sizes = [16, 480], strides = [1, 1]} : vector<16x512xf32> to vector<16x480xf32>
    %118 = vector.extract_strided_slice %116 {offsets = [0, 16], sizes = [16, 480], strides = [1, 1]} : vector<16x512xf32> to vector<16x480xf32>
    %119 = arith.maximumf %117, %118 : vector<16x480xf32>
    %120 = vector.extract_strided_slice %116 {offsets = [0, 1], sizes = [16, 480], strides = [1, 1]} : vector<16x512xf32> to vector<16x480xf32>
    %121 = arith.maximumf %119, %120 : vector<16x480xf32>
    %122 = vector.extract_strided_slice %116 {offsets = [0, 17], sizes = [16, 480], strides = [1, 1]} : vector<16x512xf32> to vector<16x480xf32>
    %123 = arith.maximumf %121, %122 : vector<16x480xf32>
    %124 = vector.extract_strided_slice %116 {offsets = [0, 2], sizes = [16, 480], strides = [1, 1]} : vector<16x512xf32> to vector<16x480xf32>
    %125 = arith.maximumf %123, %124 : vector<16x480xf32>
    %126 = vector.extract_strided_slice %125 {offsets = [0, 0], sizes = [16, 192], strides = [1, 1]} : vector<16x480xf32> to vector<16x192xf32>
    %127 = vector.extract_strided_slice %125 {offsets = [0, 256], sizes = [16, 192], strides = [1, 1]} : vector<16x480xf32> to vector<16x192xf32>
    %128 = arith.maximumf %126, %127 : vector<16x192xf32>
    %129 = vector.extract_strided_slice %125 {offsets = [0, 32], sizes = [16, 192], strides = [1, 1]} : vector<16x480xf32> to vector<16x192xf32>
    %130 = arith.maximumf %128, %129 : vector<16x192xf32>
    %131 = vector.extract_strided_slice %125 {offsets = [0, 288], sizes = [16, 192], strides = [1, 1]} : vector<16x480xf32> to vector<16x192xf32>
    %132 = arith.maximumf %130, %131 : vector<16x192xf32>
    %133 = vector.extract_strided_slice %125 {offsets = [0, 64], sizes = [16, 192], strides = [1, 1]} : vector<16x480xf32> to vector<16x192xf32>
    %134 = arith.maximumf %132, %133 : vector<16x192xf32>
    %135 = arith.truncf %134 : vector<16x192xf32> to vector<16x192xbf16>
    %136 = vector.extract_strided_slice %135 {offsets = [0, 0], sizes = [1, 192], strides = [1, 1]} : vector<16x192xbf16> to vector<1x192xbf16>
    %c0_67 = arith.constant 0 : index
    %c0_68 = arith.constant 0 : index
    %c0_69 = arith.constant 0 : index
    %137 = vector.load %arg7[%c0_67, %c0_68, %c0_69] : memref<16x192x256xbf16, #tpu.memory_space<vmem>>, vector<1x192x256xbf16>
    %138 = vector.shape_cast %137 : vector<1x192x256xbf16> to vector<192x256xbf16>
    %cst_70 = arith.constant dense<0.000000e+00> : vector<1x256xf32>
    %139 = tpu.matmul %136, %138, %cst_70 {dimension_numbers = #tpu.dot_dimension_numbers<[1], [0], [0], [1], [0, 0, 1, 1], [], []>} : vector<1x192xbf16>, vector<192x256xbf16>, vector<1x256xf32> -> vector<1x256xf32>
    %140 = vector.extract_strided_slice %135 {offsets = [1, 0], sizes = [1, 192], strides = [1, 1]} : vector<16x192xbf16> to vector<1x192xbf16>
    %c1_71 = arith.constant 1 : index
    %c0_72 = arith.constant 0 : index
    %c0_73 = arith.constant 0 : index
    %141 = vector.load %arg7[%c1_71, %c0_72, %c0_73] : memref<16x192x256xbf16, #tpu.memory_space<vmem>>, vector<1x192x256xbf16>
    %142 = vector.shape_cast %141 : vector<1x192x256xbf16> to vector<192x256xbf16>
    %cst_74 = arith.constant dense<0.000000e+00> : vector<1x256xf32>
    %143 = tpu.matmul %140, %142, %cst_74 {dimension_numbers = #tpu.dot_dimension_numbers<[1], [0], [0], [1], [0, 0, 1, 1], [], []>} : vector<1x192xbf16>, vector<192x256xbf16>, vector<1x256xf32> -> vector<1x256xf32>
    %144 = arith.addf %139, %143 : vector<1x256xf32>
    %145 = vector.extract_strided_slice %135 {offsets = [2, 0], sizes = [1, 192], strides = [1, 1]} : vector<16x192xbf16> to vector<1x192xbf16>
    %c2_75 = arith.constant 2 : index
    %c0_76 = arith.constant 0 : index
    %c0_77 = arith.constant 0 : index
    %146 = vector.load %arg7[%c2_75, %c0_76, %c0_77] : memref<16x192x256xbf16, #tpu.memory_space<vmem>>, vector<1x192x256xbf16>
    %147 = vector.shape_cast %146 : vector<1x192x256xbf16> to vector<192x256xbf16>
    %cst_78 = arith.constant dense<0.000000e+00> : vector<1x256xf32>
    %148 = tpu.matmul %145, %147, %cst_78 {dimension_numbers = #tpu.dot_dimension_numbers<[1], [0], [0], [1], [0, 0, 1, 1], [], []>} : vector<1x192xbf16>, vector<192x256xbf16>, vector<1x256xf32> -> vector<1x256xf32>
    %149 = arith.addf %144, %148 : vector<1x256xf32>
    %150 = vector.extract_strided_slice %135 {offsets = [3, 0], sizes = [1, 192], strides = [1, 1]} : vector<16x192xbf16> to vector<1x192xbf16>
    %c3_79 = arith.constant 3 : index
    %c0_80 = arith.constant 0 : index
    %c0_81 = arith.constant 0 : index
    %151 = vector.load %arg7[%c3_79, %c0_80, %c0_81] : memref<16x192x256xbf16, #tpu.memory_space<vmem>>, vector<1x192x256xbf16>
    %152 = vector.shape_cast %151 : vector<1x192x256xbf16> to vector<192x256xbf16>
    %cst_82 = arith.constant dense<0.000000e+00> : vector<1x256xf32>
    %153 = tpu.matmul %150, %152, %cst_82 {dimension_numbers = #tpu.dot_dimension_numbers<[1], [0], [0], [1], [0, 0, 1, 1], [], []>} : vector<1x192xbf16>, vector<192x256xbf16>, vector<1x256xf32> -> vector<1x256xf32>
    %154 = arith.addf %149, %153 : vector<1x256xf32>
    %155 = vector.extract_strided_slice %135 {offsets = [4, 0], sizes = [1, 192], strides = [1, 1]} : vector<16x192xbf16> to vector<1x192xbf16>
    %c4_83 = arith.constant 4 : index
    %c0_84 = arith.constant 0 : index
    %c0_85 = arith.constant 0 : index
    %156 = vector.load %arg7[%c4_83, %c0_84, %c0_85] : memref<16x192x256xbf16, #tpu.memory_space<vmem>>, vector<1x192x256xbf16>
    %157 = vector.shape_cast %156 : vector<1x192x256xbf16> to vector<192x256xbf16>
    %cst_86 = arith.constant dense<0.000000e+00> : vector<1x256xf32>
    %158 = tpu.matmul %155, %157, %cst_86 {dimension_numbers = #tpu.dot_dimension_numbers<[1], [0], [0], [1], [0, 0, 1, 1], [], []>} : vector<1x192xbf16>, vector<192x256xbf16>, vector<1x256xf32> -> vector<1x256xf32>
    %159 = arith.addf %154, %158 : vector<1x256xf32>
    %160 = vector.extract_strided_slice %135 {offsets = [5, 0], sizes = [1, 192], strides = [1, 1]} : vector<16x192xbf16> to vector<1x192xbf16>
    %c5_87 = arith.constant 5 : index
    %c0_88 = arith.constant 0 : index
    %c0_89 = arith.constant 0 : index
    %161 = vector.load %arg7[%c5_87, %c0_88, %c0_89] : memref<16x192x256xbf16, #tpu.memory_space<vmem>>, vector<1x192x256xbf16>
    %162 = vector.shape_cast %161 : vector<1x192x256xbf16> to vector<192x256xbf16>
    %cst_90 = arith.constant dense<0.000000e+00> : vector<1x256xf32>
    %163 = tpu.matmul %160, %162, %cst_90 {dimension_numbers = #tpu.dot_dimension_numbers<[1], [0], [0], [1], [0, 0, 1, 1], [], []>} : vector<1x192xbf16>, vector<192x256xbf16>, vector<1x256xf32> -> vector<1x256xf32>
    %164 = arith.addf %159, %163 : vector<1x256xf32>
    %165 = vector.extract_strided_slice %135 {offsets = [6, 0], sizes = [1, 192], strides = [1, 1]} : vector<16x192xbf16> to vector<1x192xbf16>
    %c6_91 = arith.constant 6 : index
    %c0_92 = arith.constant 0 : index
    %c0_93 = arith.constant 0 : index
    %166 = vector.load %arg7[%c6_91, %c0_92, %c0_93] : memref<16x192x256xbf16, #tpu.memory_space<vmem>>, vector<1x192x256xbf16>
    %167 = vector.shape_cast %166 : vector<1x192x256xbf16> to vector<192x256xbf16>
    %cst_94 = arith.constant dense<0.000000e+00> : vector<1x256xf32>
    %168 = tpu.matmul %165, %167, %cst_94 {dimension_numbers = #tpu.dot_dimension_numbers<[1], [0], [0], [1], [0, 0, 1, 1], [], []>} : vector<1x192xbf16>, vector<192x256xbf16>, vector<1x256xf32> -> vector<1x256xf32>
    %169 = arith.addf %164, %168 : vector<1x256xf32>
    %170 = vector.extract_strided_slice %135 {offsets = [7, 0], sizes = [1, 192], strides = [1, 1]} : vector<16x192xbf16> to vector<1x192xbf16>
    %c7_95 = arith.constant 7 : index
    %c0_96 = arith.constant 0 : index
    %c0_97 = arith.constant 0 : index
    %171 = vector.load %arg7[%c7_95, %c0_96, %c0_97] : memref<16x192x256xbf16, #tpu.memory_space<vmem>>, vector<1x192x256xbf16>
    %172 = vector.shape_cast %171 : vector<1x192x256xbf16> to vector<192x256xbf16>
    %cst_98 = arith.constant dense<0.000000e+00> : vector<1x256xf32>
    %173 = tpu.matmul %170, %172, %cst_98 {dimension_numbers = #tpu.dot_dimension_numbers<[1], [0], [0], [1], [0, 0, 1, 1], [], []>} : vector<1x192xbf16>, vector<192x256xbf16>, vector<1x256xf32> -> vector<1x256xf32>
    %174 = arith.addf %169, %173 : vector<1x256xf32>
    %175 = vector.extract_strided_slice %135 {offsets = [8, 0], sizes = [1, 192], strides = [1, 1]} : vector<16x192xbf16> to vector<1x192xbf16>
    %c8_99 = arith.constant 8 : index
    %c0_100 = arith.constant 0 : index
    %c0_101 = arith.constant 0 : index
    %176 = vector.load %arg7[%c8_99, %c0_100, %c0_101] : memref<16x192x256xbf16, #tpu.memory_space<vmem>>, vector<1x192x256xbf16>
    %177 = vector.shape_cast %176 : vector<1x192x256xbf16> to vector<192x256xbf16>
    %cst_102 = arith.constant dense<0.000000e+00> : vector<1x256xf32>
    %178 = tpu.matmul %175, %177, %cst_102 {dimension_numbers = #tpu.dot_dimension_numbers<[1], [0], [0], [1], [0, 0, 1, 1], [], []>} : vector<1x192xbf16>, vector<192x256xbf16>, vector<1x256xf32> -> vector<1x256xf32>
    %179 = arith.addf %174, %178 : vector<1x256xf32>
    %180 = vector.extract_strided_slice %135 {offsets = [9, 0], sizes = [1, 192], strides = [1, 1]} : vector<16x192xbf16> to vector<1x192xbf16>
    %c9_103 = arith.constant 9 : index
    %c0_104 = arith.constant 0 : index
    %c0_105 = arith.constant 0 : index
    %181 = vector.load %arg7[%c9_103, %c0_104, %c0_105] : memref<16x192x256xbf16, #tpu.memory_space<vmem>>, vector<1x192x256xbf16>
    %182 = vector.shape_cast %181 : vector<1x192x256xbf16> to vector<192x256xbf16>
    %cst_106 = arith.constant dense<0.000000e+00> : vector<1x256xf32>
    %183 = tpu.matmul %180, %182, %cst_106 {dimension_numbers = #tpu.dot_dimension_numbers<[1], [0], [0], [1], [0, 0, 1, 1], [], []>} : vector<1x192xbf16>, vector<192x256xbf16>, vector<1x256xf32> -> vector<1x256xf32>
    %184 = arith.addf %179, %183 : vector<1x256xf32>
    %185 = vector.extract_strided_slice %135 {offsets = [10, 0], sizes = [1, 192], strides = [1, 1]} : vector<16x192xbf16> to vector<1x192xbf16>
    %c10_107 = arith.constant 10 : index
    %c0_108 = arith.constant 0 : index
    %c0_109 = arith.constant 0 : index
    %186 = vector.load %arg7[%c10_107, %c0_108, %c0_109] : memref<16x192x256xbf16, #tpu.memory_space<vmem>>, vector<1x192x256xbf16>
    %187 = vector.shape_cast %186 : vector<1x192x256xbf16> to vector<192x256xbf16>
    %cst_110 = arith.constant dense<0.000000e+00> : vector<1x256xf32>
    %188 = tpu.matmul %185, %187, %cst_110 {dimension_numbers = #tpu.dot_dimension_numbers<[1], [0], [0], [1], [0, 0, 1, 1], [], []>} : vector<1x192xbf16>, vector<192x256xbf16>, vector<1x256xf32> -> vector<1x256xf32>
    %189 = arith.addf %184, %188 : vector<1x256xf32>
    %190 = vector.extract_strided_slice %135 {offsets = [11, 0], sizes = [1, 192], strides = [1, 1]} : vector<16x192xbf16> to vector<1x192xbf16>
    %c11_111 = arith.constant 11 : index
    %c0_112 = arith.constant 0 : index
    %c0_113 = arith.constant 0 : index
    %191 = vector.load %arg7[%c11_111, %c0_112, %c0_113] : memref<16x192x256xbf16, #tpu.memory_space<vmem>>, vector<1x192x256xbf16>
    %192 = vector.shape_cast %191 : vector<1x192x256xbf16> to vector<192x256xbf16>
    %cst_114 = arith.constant dense<0.000000e+00> : vector<1x256xf32>
    %193 = tpu.matmul %190, %192, %cst_114 {dimension_numbers = #tpu.dot_dimension_numbers<[1], [0], [0], [1], [0, 0, 1, 1], [], []>} : vector<1x192xbf16>, vector<192x256xbf16>, vector<1x256xf32> -> vector<1x256xf32>
    %194 = arith.addf %189, %193 : vector<1x256xf32>
    %195 = vector.extract_strided_slice %135 {offsets = [12, 0], sizes = [1, 192], strides = [1, 1]} : vector<16x192xbf16> to vector<1x192xbf16>
    %c12_115 = arith.constant 12 : index
    %c0_116 = arith.constant 0 : index
    %c0_117 = arith.constant 0 : index
    %196 = vector.load %arg7[%c12_115, %c0_116, %c0_117] : memref<16x192x256xbf16, #tpu.memory_space<vmem>>, vector<1x192x256xbf16>
    %197 = vector.shape_cast %196 : vector<1x192x256xbf16> to vector<192x256xbf16>
    %cst_118 = arith.constant dense<0.000000e+00> : vector<1x256xf32>
    %198 = tpu.matmul %195, %197, %cst_118 {dimension_numbers = #tpu.dot_dimension_numbers<[1], [0], [0], [1], [0, 0, 1, 1], [], []>} : vector<1x192xbf16>, vector<192x256xbf16>, vector<1x256xf32> -> vector<1x256xf32>
    %199 = arith.addf %194, %198 : vector<1x256xf32>
    %200 = vector.extract_strided_slice %135 {offsets = [13, 0], sizes = [1, 192], strides = [1, 1]} : vector<16x192xbf16> to vector<1x192xbf16>
    %c13_119 = arith.constant 13 : index
    %c0_120 = arith.constant 0 : index
    %c0_121 = arith.constant 0 : index
    %201 = vector.load %arg7[%c13_119, %c0_120, %c0_121] : memref<16x192x256xbf16, #tpu.memory_space<vmem>>, vector<1x192x256xbf16>
    %202 = vector.shape_cast %201 : vector<1x192x256xbf16> to vector<192x256xbf16>
    %cst_122 = arith.constant dense<0.000000e+00> : vector<1x256xf32>
    %203 = tpu.matmul %200, %202, %cst_122 {dimension_numbers = #tpu.dot_dimension_numbers<[1], [0], [0], [1], [0, 0, 1, 1], [], []>} : vector<1x192xbf16>, vector<192x256xbf16>, vector<1x256xf32> -> vector<1x256xf32>
    %204 = arith.addf %199, %203 : vector<1x256xf32>
    %205 = vector.extract_strided_slice %135 {offsets = [14, 0], sizes = [1, 192], strides = [1, 1]} : vector<16x192xbf16> to vector<1x192xbf16>
    %c14_123 = arith.constant 14 : index
    %c0_124 = arith.constant 0 : index
    %c0_125 = arith.constant 0 : index
    %206 = vector.load %arg7[%c14_123, %c0_124, %c0_125] : memref<16x192x256xbf16, #tpu.memory_space<vmem>>, vector<1x192x256xbf16>
    %207 = vector.shape_cast %206 : vector<1x192x256xbf16> to vector<192x256xbf16>
    %cst_126 = arith.constant dense<0.000000e+00> : vector<1x256xf32>
    %208 = tpu.matmul %205, %207, %cst_126 {dimension_numbers = #tpu.dot_dimension_numbers<[1], [0], [0], [1], [0, 0, 1, 1], [], []>} : vector<1x192xbf16>, vector<192x256xbf16>, vector<1x256xf32> -> vector<1x256xf32>
    %209 = arith.addf %204, %208 : vector<1x256xf32>
    %210 = vector.extract_strided_slice %135 {offsets = [15, 0], sizes = [1, 192], strides = [1, 1]} : vector<16x192xbf16> to vector<1x192xbf16>
    %c15_127 = arith.constant 15 : index
    %c0_128 = arith.constant 0 : index
    %c0_129 = arith.constant 0 : index
    %211 = vector.load %arg7[%c15_127, %c0_128, %c0_129] : memref<16x192x256xbf16, #tpu.memory_space<vmem>>, vector<1x192x256xbf16>
    %212 = vector.shape_cast %211 : vector<1x192x256xbf16> to vector<192x256xbf16>
    %cst_130 = arith.constant dense<0.000000e+00> : vector<1x256xf32>
    %213 = tpu.matmul %210, %212, %cst_130 {dimension_numbers = #tpu.dot_dimension_numbers<[1], [0], [0], [1], [0, 0, 1, 1], [], []>} : vector<1x192xbf16>, vector<192x256xbf16>, vector<1x256xf32> -> vector<1x256xf32>
    %214 = arith.addf %209, %213 : vector<1x256xf32>
    %c1_131 = arith.constant 1 : index
    %c0_132 = arith.constant 0 : index
    %215 = vector.load %arg12[%c1_131, %c0_132] : memref<2x256xf32, #tpu.memory_space<vmem>>, vector<1x256xf32>
    tpu.vector_store %arg12[%c1_131, %c0_132], %214 {strides = array<i32>} : memref<2x256xf32, #tpu.memory_space<vmem>>, vector<1x256xf32>,
    %c0_133 = arith.constant 0 : index
    %c0_134 = arith.constant 0 : index
    %216 = vector.load %arg3[%c0_133, %c0_134] : memref<2x8xf32, #tpu.memory_space<vmem>>, vector<2x8xf32>
    %c0_135 = arith.constant 0 : index
    %c0_136 = arith.constant 0 : index
    %217 = vector.load %arg4[%c0_135, %c0_136] : memref<8x16xf32, #tpu.memory_space<vmem>>, vector<8x16xf32>
    %cst_137 = arith.constant dense<0.000000e+00> : vector<2x16xf32>
    %218 = tpu.matmul %216, %217, %cst_137 {dimension_numbers = #tpu.dot_dimension_numbers<[1], [0], [0], [1], [0, 0, 1, 1], [], []>} : vector<2x8xf32>, vector<8x16xf32>, vector<2x16xf32> -> vector<2x16xf32>
    %c0_138 = arith.constant 0 : index
    %c0_139 = arith.constant 0 : index
    %219 = vector.load %arg5[%c0_138, %c0_139] : memref<1x16xf32, #tpu.memory_space<vmem>>, vector<1x16xf32>
    %220 = vector.broadcast %219 : vector<1x16xf32> to vector<2x16xf32>
    %221 = arith.addf %218, %220 : vector<2x16xf32>
    %cst_140 = arith.constant 0.000000e+00 : f32
    %222 = vector.broadcast %cst_140 : f32 to vector<2x16xf32>
    %223 = arith.maximumf %221, %222 : vector<2x16xf32>
    %224 = arith.truncf %223 : vector<2x16xf32> to vector<2x16xbf16>
    %c0_141 = arith.constant 0 : index
    %c0_142 = arith.constant 0 : index
    %225 = vector.load %arg6[%c0_141, %c0_142] : memref<16x256xbf16, #tpu.memory_space<vmem>>, vector<16x256xbf16>
    %cst_143 = arith.constant dense<0.000000e+00> : vector<2x256xf32>
    %226 = tpu.matmul %224, %225, %cst_143 {dimension_numbers = #tpu.dot_dimension_numbers<[1], [0], [0], [1], [0, 0, 1, 1], [], []>} : vector<2x16xbf16>, vector<16x256xbf16>, vector<2x256xf32> -> vector<2x256xf32>
    %c0_144 = arith.constant 0 : index
    %c0_145 = arith.constant 0 : index
    %227 = vector.load %arg12[%c0_144, %c0_145] : memref<2x256xf32, #tpu.memory_space<vmem>>, vector<2x256xf32>
    %228 = arith.addf %226, %227 : vector<2x256xf32>
    %c0_146 = arith.constant 0 : index
    %c0_147 = arith.constant 0 : index
    %229 = vector.load %arg8[%c0_146, %c0_147] : memref<1x256xf32, #tpu.memory_space<vmem>>, vector<1x256xf32>
    %230 = vector.broadcast %229 : vector<1x256xf32> to vector<2x256xf32>
    %231 = arith.addf %228, %230 : vector<2x256xf32>
    %cst_148 = arith.constant 0.000000e+00 : f32
    %232 = vector.broadcast %cst_148 : f32 to vector<2x256xf32>
    %233 = arith.maximumf %231, %232 : vector<2x256xf32>
    %234 = arith.truncf %233 : vector<2x256xf32> to vector<2x256xbf16>
    %c0_149 = arith.constant 0 : index
    %c0_150 = arith.constant 0 : index
    %235 = vector.load %arg9[%c0_149, %c0_150] : memref<256x128xbf16, #tpu.memory_space<vmem>>, vector<256x128xbf16>
    %cst_151 = arith.constant dense<0.000000e+00> : vector<2x128xf32>
    %236 = tpu.matmul %234, %235, %cst_151 {dimension_numbers = #tpu.dot_dimension_numbers<[1], [0], [0], [1], [0, 0, 1, 1], [], []>} : vector<2x256xbf16>, vector<256x128xbf16>, vector<2x128xf32> -> vector<2x128xf32>
    %c0_152 = arith.constant 0 : index
    %c0_153 = arith.constant 0 : index
    %237 = vector.load %arg10[%c0_152, %c0_153] : memref<1x128xf32, #tpu.memory_space<vmem>>, vector<1x128xf32>
    %238 = vector.broadcast %237 : vector<1x128xf32> to vector<2x128xf32>
    %239 = arith.addf %236, %238 : vector<2x128xf32>
    %c0_154 = arith.constant 0 : index
    %c0_155 = arith.constant 0 : index
    %240 = vector.load %arg11[%c0_154, %c0_155] : memref<2x128xf32, #tpu.memory_space<vmem>>, vector<2x128xf32>
    tpu.vector_store %arg11[%c0_154, %c0_155], %239 {strides = array<i32>} : memref<2x128xf32, #tpu.memory_space<vmem>>, vector<2x128xf32>,
    return
  }
}

</mosaic_0001>

<llo_original>
// kernel: actor_cnn_forward.2
$region0: #{actor_cnn_forward.2}
  #allocation0 [shape = 'u32[]', space=smem, size = 0x4, offset = 0x4, fixed_abs, tag = 'smem constant byte address 0x4 - core index']
  #allocation1 [shape = 'u32[72,128]{1,0:T(1,128)}', space=vmem, size = 0x9000, scoped, tag = 'internal scratch']
  %s0 = inlined_call_operand.vmem [shape: bf16[2,75,8960], index: 0, kind: input, shape index: {}]
  %s1 = inlined_call_operand.vmem [shape: bf16[8,75], index: 1, kind: input, shape index: {}]
  %s2 = inlined_call_operand.vmem [shape: f32[8,1], index: 2, kind: input, shape index: {}]
  %s3 = inlined_call_operand.vmem [shape: bf16[2,8,4224], index: 3, kind: output, shape index: {}]
  %s4 = sld [smem:[#allocation0]]
  $region45: #{actor_cnn_forward.2} parent=0
    _
  %s6 = ssub.s32 1, %s4
  %s7 = scalar_select 0, %s6, %s4
  loop: start=0, step=1, limit=4
  $region2: #{actor_cnn_forward.2} parent=0 // loop_pre_header
    _
  $region3: #{actor_cnn_forward.2} parent=0 // loop_header
    %s9 = sphi 0, %s13
    %p10 = scmp.ge.s32.totalorder %s9, 4
    %s19 = sphi 0, %s21
    %s22 = sphi 0, %s19
    %s23 = sphi 0, %s22
    %s39 = sphi 0, %s23
    %s43 = sphi 0, %s43
    %s45 = sphi 0, %s43
    %s46 = sphi 0, %s45
    %s60 = sphi 0, %s46
    %s64 = sphi 0, %s64
    %s66 = sphi 0, %s64
    %s67 = sphi 0, %s66
    %s81 = sphi 0, %s67
    %s87 = sphi 0, %s89
    %s90 = sphi 0, %s87
    %s91 = sphi 0, %s90
    %s107 = sphi 0, %s91
  $region4: #{actor_cnn_forward.2} parent=0 // loop_header_branch
    %12 = sbr.rel (%p10) target = $region8
  $region5: #{actor_cnn_forward.2} parent=0 // loop_body
    %s14 = ssub.s32 %s9, 1
    %s15 = ssub.s32 %s9, 2
    %s16 = sadd.s32 %s9, 1
    %s17 = ssub.s32 %s9, %s16
    %p18 = scmp.eq.s32.totalorder %s17, 0
    %s20 = sadd.s32 %s19, 1
    %s21 = scalar_select %p18, %s19, %s20
    %p24 = pneg %p18
    %p25 = scmp.eq.s32.totalorder %s9, 1
    %p26 = por %p24, %p25
    %p27 = scmp.ne.s32.totalorder %s19, %s22
    %p28 = scmp.eq.s32.totalorder %s9, 0
    %p29 = por %p27, %p28
    %p30 = scmp.ne.s32.totalorder %s19, %s22
    %p31 = scmp.eq.s32.totalorder %s14, 1
    %p32 = por %p30, %p31
    %p33 = scmp.ne.s32.totalorder %s22, %s23
    %p34 = scmp.eq.s32.totalorder %s14, 0
    %p35 = por %p33, %p34
    %p36 = scmp.ne.s32.totalorder %s22, %s23
    %p37 = scmp.eq.s32.totalorder %s15, 1
    %p38 = por %p36, %p37
    %p40 = scmp.ne.s32.totalorder %s23, %s39
    %p41 = scmp.eq.s32.totalorder %s15, 0
    %p42 = por %p40, %p41
    %s44 = sadd.s32 %s43, 1
    %p47 = scmp.eq.s32.totalorder %s9, 1
    %p48 = scmp.ne.s32.totalorder %s43, %s45
    %p49 = scmp.eq.s32.totalorder %s9, 0
    %p50 = por %p48, %p49
    %p51 = scmp.ne.s32.totalorder %s43, %s45
    %p52 = scmp.eq.s32.totalorder %s14, 1
    %p53 = por %p51, %p52
    %p54 = scmp.ne.s32.totalorder %s45, %s46
    %p55 = scmp.eq.s32.totalorder %s14, 0
    %p56 = por %p54, %p55
    %p57 = scmp.ne.s32.totalorder %s45, %s46
    %p58 = scmp.eq.s32.totalorder %s15, 1
    %p59 = por %p57, %p58
    %p61 = scmp.ne.s32.totalorder %s46, %s60
    %p62 = scmp.eq.s32.totalorder %s15, 0
    %p63 = por %p61, %p62
    %s65 = sadd.s32 %s64, 1
    %p68 = scmp.eq.s32.totalorder %s9, 1
    %p69 = scmp.ne.s32.totalorder %s64, %s66
    %p70 = scmp.eq.s32.totalorder %s9, 0
    %p71 = por %p69, %p70
    %p72 = scmp.ne.s32.totalorder %s64, %s66
    %p73 = scmp.eq.s32.totalorder %s14, 1
    %p74 = por %p72, %p73
    %p75 = scmp.ne.s32.totalorder %s66, %s67
    %p76 = scmp.eq.s32.totalorder %s14, 0
    %p77 = por %p75, %p76
    %p78 = scmp.ne.s32.totalorder %s66, %s67
    %p79 = scmp.eq.s32.totalorder %s15, 1
    %p80 = por %p78, %p79
    %p82 = scmp.ne.s32.totalorder %s67, %s81
    %p83 = scmp.eq.s32.totalorder %s15, 0
    %p84 = por %p82, %p83
    %s85 = ssub.s32 %s9, %s16
    %p86 = scmp.eq.s32.totalorder %s85, 0
    %s88 = sadd.s32 %s87, 1
    %s89 = scalar_select %p86, %s87, %s88
    %p92 = pneg %p86
    %p93 = scmp.eq.s32.totalorder %s9, 1
    %p94 = por %p92, %p93
    %p95 = scmp.ne.s32.totalorder %s87, %s90
    %p96 = scmp.eq.s32.totalorder %s9, 0
    %p97 = por %p95, %p96
    %p98 = scmp.ne.s32.totalorder %s87, %s90
    %p99 = scmp.eq.s32.totalorder %s14, 1
    %p100 = por %p98, %p99
    %p101 = scmp.ne.s32.totalorder %s90, %s91
    %p102 = scmp.eq.s32.totalorder %s14, 0
    %p103 = por %p101, %p102
    %p104 = scmp.ne.s32.totalorder %s90, %s91
    %p105 = scmp.eq.s32.totalorder %s15, 1
    %p106 = por %p104, %p105
    %p108 = scmp.ne.s32.totalorder %s91, %s107
    %p109 = scmp.eq.s32.totalorder %s15, 0
    %p110 = por %p108, %p109
    %p111 = scmp.le.s32.totalorder 1, %s9
    %p112 = scmp.lt.s32.totalorder %s9, 3
    %p113 = pnand %p111, %p112
    %p114 = pneg %p113
    // Predicated region
    $region9: #{actor_cnn_forward.2} parent=5 // pred_check
      _
    $region10: #{actor_cnn_forward.2} parent=5 // pred_check_branch
      %116 = sbr.rel (%p113) target = $region12
    $region11: #{actor_cnn_forward.2} parent=5 // pred_region
      %s117 = ssub.s32 %s9, 1
      // Predicated region
      $region13: #{actor_cnn_forward.2} parent=11 // pred_check
        %p118 = pneg %p56
      $region14: #{actor_cnn_forward.2} parent=11 // pred_check_branch
        %120 = sbr.rel (%p118) target = $region16
      $region15: #{actor_cnn_forward.2} parent=11 // pred_region
        _
      $region16: #{actor_cnn_forward.2} parent=11 // pred_fallthru
        _
      // Predicated region
      $region17: #{actor_cnn_forward.2} parent=11 // pred_check
        %p121 = pneg %p77
      $region18: #{actor_cnn_forward.2} parent=11 // pred_check_branch
        %123 = sbr.rel (%p121) target = $region20
      $region19: #{actor_cnn_forward.2} parent=11 // pred_region
        _
      $region20: #{actor_cnn_forward.2} parent=11 // pred_fallthru
        _
    $region12: #{actor_cnn_forward.2} parent=5 // pred_fallthru
      _
    %p124 = scmp.lt.s32.totalorder %s9, 2
    // Predicated region
    $region21: #{actor_cnn_forward.2} parent=5 // pred_check
      %p125 = pneg %p124
    $region22: #{actor_cnn_forward.2} parent=5 // pred_check_branch
      %127 = sbr.rel (%p125) target = $region24
    $region23: #{actor_cnn_forward.2} parent=5 // pred_region
      // Predicated region
      $region25: #{actor_cnn_forward.2} parent=23 // pred_check
        %p128 = pneg %p29
      $region26: #{actor_cnn_forward.2} parent=23 // pred_check_branch
        %130 = sbr.rel (%p128) target = $region28
      $region27: #{actor_cnn_forward.2} parent=23 // pred_region
        %p131 = scmp.lt.s32.totalorder %s9, 1
        %s132 = scalar_select %p131, %s9, 1
        %s133 = smul.addr %s132, 700
        %s134 = smul.addr %s133, 4
        %s135 = scalar_lea.vmem %s0, %s134
      $region28: #{actor_cnn_forward.2} parent=23 // pred_fallthru
        _
    $region24: #{actor_cnn_forward.2} parent=5 // pred_fallthru
      _
    %p136 = scmp.le.s32.totalorder 1, %s9
    %p137 = scmp.lt.s32.totalorder %s9, 3
    %p138 = pnand %p136, %p137
    %p139 = pneg %p138
    // Predicated region
    $region29: #{actor_cnn_forward.2} parent=5 // pred_check
      _
    $region30: #{actor_cnn_forward.2} parent=5 // pred_check_branch
      %141 = sbr.rel (%p138) target = $region32
    $region31: #{actor_cnn_forward.2} parent=5 // pred_region
      %s142 = ssub.s32 %s9, 1
      %p143 = scmp.lt.s32.totalorder %s14, 1
      %s144 = scalar_select %p143, %s14, 1
      %s145 = smul.addr %s144, 700
      %s146 = smul.addr %s145, 4
      %s147 = scalar_lea.vmem %s0, %s146
      %p148 = pneg %p35
      %p149 = pneg %p32
      %p150 = pneg %p56
      %p151 = pneg %p53
      %p152 = pneg %p77
      %p153 = pneg %p74
      %p154 = pneg %p103
      %p155 = pneg %p100
      %p156 = scmp.lt.s32.totalorder %s14, 1
      %s157 = scalar_select %p156, %s14, 1
      %s158 = smul.addr %s157, 33
      %s159 = smul.addr %s158, 4
      %s160 = scalar_lea.vmem %s3, %s159
      %p161 = scmp.lt.s32.totalorder %s14, 1
      %s162 = scalar_select %p161, %s14, 1
      %s163 = smul.addr %s162, 700
      %s164 = smul.addr %s163, 4
      %s165 = scalar_lea.vmem %s0, %s164
      %p166 = scmp.lt.s32.totalorder %s14, 1
      %s167 = scalar_select %p166, %s14, 1
      %s168 = smul.addr %s167, 33
      %s169 = smul.addr %s168, 4
      %s170 = scalar_lea.vmem %s3, %s169
      %v172 = vld [vmem:[%s1] sm:$0xf]
      %v173 = vld [vmem:[%s165] sm:$0xff]
      %v174 = vld [vmem:[%s165 + $0x8] sm:$0xff]
      %v175 = vld [vmem:[%s165 + $0x10] sm:$0xff]
      %v176 = vld [vmem:[%s165 + $0x18] sm:$0xff]
      %v177 = vld [vmem:[%s165 + $0x20] sm:$0xff]
      %v178 = vld [vmem:[%s165 + $0x28] sm:$0xff]
      %v179 = vld [vmem:[%s165 + $0x30] sm:$0xff]
      %v180 = vld [vmem:[%s165 + $0x38] sm:$0xff]
      %v181 = vld [vmem:[%s165 + $0x40] sm:$0xff]
      %v182 = vld [vmem:[%s165 + $0x48] sm:$0xff]
      %v183 = vld [vmem:[%s165 + $0x50] sm:$0xff]
      %v184 = vld [vmem:[%s165 + $0x58] sm:$0xff]
      %v185 = vld [vmem:[%s165 + $0x60] sm:$0xff]
      %v186 = vld [vmem:[%s165 + $0x68] sm:$0xff]
      %v187 = vld [vmem:[%s165 + $0x70] sm:$0xff]
      %v188 = vld [vmem:[%s165 + $0x78] sm:$0xff]
      %v189 = vld [vmem:[%s165 + $0x80] sm:$0xff]
      %v190 = vld [vmem:[%s165 + $0x88] sm:$0xff]
      %v191 = vld [vmem:[%s165 + $0x90] sm:$0xff]
      %v192 = vld [vmem:[%s165 + $0x98] sm:$0xff]
      %v193 = vld [vmem:[%s165 + $0xa0] sm:$0xff]
      %v194 = vld [vmem:[%s165 + $0xa8] sm:$0xff]
      %v195 = vld [vmem:[%s165 + $0xb0] sm:$0xff]
      %v196 = vld [vmem:[%s165 + $0xb8] sm:$0xff]
      %v197 = vld [vmem:[%s165 + $0xc0] sm:$0xff]
      %v198 = vld [vmem:[%s165 + $0xc8] sm:$0xff]
      %v199 = vld [vmem:[%s165 + $0xd0] sm:$0xff]
      %v200 = vld [vmem:[%s165 + $0xd8] sm:$0xff]
      %v201 = vld [vmem:[%s165 + $0xe0] sm:$0xff]
      %v202 = vld [vmem:[%s165 + $0xe8] sm:$0xff]
      %v203 = vld [vmem:[%s165 + $0xf0] sm:$0xff]
      %v204 = vld [vmem:[%s165 + $0xf8] sm:$0xff]
      %v205 = vld [vmem:[%s165 + $0x100] sm:$0xff]
      %v206 = vld [vmem:[%s165 + $0x108] sm:$0xff]
      %v207 = vld [vmem:[%s165 + $0x110] sm:$0xff]
      %v208 = vld [vmem:[%s165 + $0x118] sm:$0xff]
      %v209 = vld [vmem:[%s165 + $0x120] sm:$0xff]
      %v210 = vld [vmem:[%s165 + $0x128] sm:$0xff]
      %v211 = vld [vmem:[%s165 + $0x130] sm:$0xff]
      %v212 = vld [vmem:[%s165 + $0x138] sm:$0xff]
      %v213 = vld [vmem:[%s165 + $0x140] sm:$0xff]
      %v214 = vld [vmem:[%s165 + $0x148] sm:$0xff]
      %v215 = vld [vmem:[%s165 + $0x150] sm:$0xff]
      %v216 = vld [vmem:[%s165 + $0x158] sm:$0xff]
      %v217 = vld [vmem:[%s165 + $0x160] sm:$0xff]
      %v218 = vld [vmem:[%s165 + $0x168] sm:$0xff]
      %v219 = vld [vmem:[%s165 + $0x170] sm:$0xff]
      %v220 = vld [vmem:[%s165 + $0x178] sm:$0xff]
      %v221 = vld [vmem:[%s165 + $0x180] sm:$0xff]
      %v222 = vld [vmem:[%s165 + $0x188] sm:$0xff]
      %v223 = vld [vmem:[%s165 + $0x190] sm:$0xff]
      %v224 = vld [vmem:[%s165 + $0x198] sm:$0xff]
      %v225 = vld [vmem:[%s165 + $0x1a0] sm:$0xff]
      %v226 = vld [vmem:[%s165 + $0x1a8] sm:$0xff]
      %v227 = vld [vmem:[%s165 + $0x1b0] sm:$0xff]
      %v228 = vld [vmem:[%s165 + $0x1b8] sm:$0xff]
      %v229 = vld [vmem:[%s165 + $0x1c0] sm:$0xff]
      %v230 = vld [vmem:[%s165 + $0x1c8] sm:$0xff]
      %v231 = vld [vmem:[%s165 + $0x1d0] sm:$0xff]
      %v232 = vld [vmem:[%s165 + $0x1d8] sm:$0xff]
      %v233 = vld [vmem:[%s165 + $0x1e0] sm:$0xff]
      %v234 = vld [vmem:[%s165 + $0x1e8] sm:$0xff]
      %v235 = vld [vmem:[%s165 + $0x1f0] sm:$0xff]
      %v236 = vld [vmem:[%s165 + $0x1f8] sm:$0xff]
      %v237 = vld [vmem:[%s165 + $0x200] sm:$0xff]
      %v238 = vld [vmem:[%s165 + $0x208] sm:$0xff]
      %v239 = vld [vmem:[%s165 + $0x210] sm:$0xff]
      %v240 = vld [vmem:[%s165 + $0x218] sm:$0xff]
      %v241 = vld [vmem:[%s165 + $0x220] sm:$0xff]
      %v242 = vld [vmem:[%s165 + $0x228] sm:$0xff]
      %v243 = vld [vmem:[%s165 + $0x230] sm:$0xff]
      %v244 = vld [vmem:[%s165 + $0x238] sm:$0xff]
      %v245 = vld [vmem:[%s165 + $0x240] sm:$0xff]
      %v246 = vld [vmem:[%s165 + $0x248] sm:$0xff]
      %v247 = vld [vmem:[%s165 + $0x250] sm:$0xff]
      %v248 = vld [vmem:[%s165 + $0x258] sm:$0xff]
      %v249 = vld [vmem:[%s165 + $0x260] sm:$0xff]
      %v250 = vld [vmem:[%s165 + $0x268] sm:$0xff]
      %v251 = vld [vmem:[%s165 + $0x270] sm:$0xff]
      %v252 = vld [vmem:[%s165 + $0x278] sm:$0xff]
      %v253 = vld [vmem:[%s165 + $0x280] sm:$0xff]
      %v254 = vld [vmem:[%s165 + $0x288] sm:$0xff]
      %v255 = vld [vmem:[%s165 + $0x290] sm:$0xff]
      %v256 = vld [vmem:[%s165 + $0x298] sm:$0xff]
      %v257 = vld [vmem:[%s165 + $0x2a0] sm:$0xff]
      %v258 = vld [vmem:[%s165 + $0x2a8] sm:$0xff]
      %v259 = vld [vmem:[%s165 + $0x2b0] sm:$0xff]
      %v260 = vld [vmem:[%s165 + $0x2b8] sm:$0xff]
      %v261 = vld [vmem:[%s165 + $0x2c0] sm:$0xff]
      %v262 = vld [vmem:[%s165 + $0x2c8] sm:$0xff]
      %v263 = vld [vmem:[%s165 + $0x2d0] sm:$0xff]
      %v264 = vld [vmem:[%s165 + $0x2d8] sm:$0xff]
      %v265 = vld [vmem:[%s165 + $0x2e0] sm:$0xff]
      %v266 = vld [vmem:[%s165 + $0x2e8] sm:$0xff]
      %v267 = vld [vmem:[%s165 + $0x2f0] sm:$0xff]
      %v268 = vld [vmem:[%s165 + $0x2f8] sm:$0xff]
      %v269 = vld [vmem:[%s165 + $0x300] sm:$0xff]
      %v270 = vld [vmem:[%s165 + $0x308] sm:$0xff]
      %v271 = vld [vmem:[%s165 + $0x310] sm:$0xff]
      %v272 = vld [vmem:[%s165 + $0x318] sm:$0xff]
      %v273 = vld [vmem:[%s165 + $0x320] sm:$0xff]
      %v274 = vld [vmem:[%s165 + $0x328] sm:$0xff]
      %v275 = vld [vmem:[%s165 + $0x330] sm:$0xff]
      %v276 = vld [vmem:[%s165 + $0x338] sm:$0xff]
      %v277 = vld [vmem:[%s165 + $0x340] sm:$0xff]
      %v278 = vld [vmem:[%s165 + $0x348] sm:$0xff]
      %v279 = vld [vmem:[%s165 + $0x350] sm:$0xff]
      %v280 = vld [vmem:[%s165 + $0x358] sm:$0xff]
      %v281 = vld [vmem:[%s165 + $0x360] sm:$0xff]
      %v282 = vld [vmem:[%s165 + $0x368] sm:$0xff]
      %v283 = vld [vmem:[%s165 + $0x370] sm:$0xff]
      %v284 = vld [vmem:[%s165 + $0x378] sm:$0xff]
      %v285 = vld [vmem:[%s165 + $0x380] sm:$0xff]
      %v286 = vld [vmem:[%s165 + $0x388] sm:$0xff]
      %v287 = vld [vmem:[%s165 + $0x390] sm:$0xff]
      %v288 = vld [vmem:[%s165 + $0x398] sm:$0xff]
      %v289 = vld [vmem:[%s165 + $0x3a0] sm:$0xff]
      %v290 = vld [vmem:[%s165 + $0x3a8] sm:$0xff]
      %v291 = vld [vmem:[%s165 + $0x3b0] sm:$0xff]
      %v292 = vld [vmem:[%s165 + $0x3b8] sm:$0xff]
      %v293 = vld [vmem:[%s165 + $0x3c0] sm:$0xff]
      %v294 = vld [vmem:[%s165 + $0x3c8] sm:$0xff]
      %v295 = vld [vmem:[%s165 + $0x3d0] sm:$0xff]
      %v296 = vld [vmem:[%s165 + $0x3d8] sm:$0xff]
      %v297 = vld [vmem:[%s165 + $0x3e0] sm:$0xff]
      %v298 = vld [vmem:[%s165 + $0x3e8] sm:$0xff]
      %v299 = vld [vmem:[%s165 + $0x3f0] sm:$0xff]
      %v300 = vld [vmem:[%s165 + $0x3f8] sm:$0xff]
      %v301 = vld [vmem:[%s165 + $0x400] sm:$0xff]
      %v302 = vld [vmem:[%s165 + $0x408] sm:$0xff]
      %v303 = vld [vmem:[%s165 + $0x410] sm:$0xff]
      %v304 = vld [vmem:[%s165 + $0x418] sm:$0xff]
      %v305 = vld [vmem:[%s165 + $0x420] sm:$0xff]
      %v306 = vld [vmem:[%s165 + $0x428] sm:$0xff]
      %v307 = vld [vmem:[%s165 + $0x430] sm:$0xff]
      %v308 = vld [vmem:[%s165 + $0x438] sm:$0xff]
      %v309 = vld [vmem:[%s165 + $0x440] sm:$0xff]
      %v310 = vld [vmem:[%s165 + $0x448] sm:$0xff]
      %v311 = vld [vmem:[%s165 + $0x450] sm:$0xff]
      %v312 = vld [vmem:[%s165 + $0x458] sm:$0xff]
      %v313 = vld [vmem:[%s165 + $0x460] sm:$0xff]
      %v314 = vld [vmem:[%s165 + $0x468] sm:$0xff]
      %v315 = vld [vmem:[%s165 + $0x470] sm:$0xff]
      %v316 = vld [vmem:[%s165 + $0x478] sm:$0xff]
      %v317 = vld [vmem:[%s165 + $0x480] sm:$0xff]
      %v318 = vld [vmem:[%s165 + $0x488] sm:$0xff]
      %v319 = vld [vmem:[%s165 + $0x490] sm:$0xff]
      %v320 = vld [vmem:[%s165 + $0x498] sm:$0xff]
      %v321 = vld [vmem:[%s165 + $0x4a0] sm:$0xff]
      %v322 = vld [vmem:[%s165 + $0x4a8] sm:$0xff]
      %v323 = vld [vmem:[%s165 + $0x4b0] sm:$0xff]
      %v324 = vld [vmem:[%s165 + $0x4b8] sm:$0xff]
      %v325 = vld [vmem:[%s165 + $0x4c0] sm:$0xff]
      %v326 = vld [vmem:[%s165 + $0x4c8] sm:$0xff]
      %v327 = vld [vmem:[%s165 + $0x4d0] sm:$0xff]
      %v328 = vld [vmem:[%s165 + $0x4d8] sm:$0xff]
      %v329 = vld [vmem:[%s165 + $0x4e0] sm:$0xff]
      %v330 = vld [vmem:[%s165 + $0x4e8] sm:$0xff]
      %v331 = vld [vmem:[%s165 + $0x4f0] sm:$0xff]
      %v332 = vld [vmem:[%s165 + $0x4f8] sm:$0xff]
      %v333 = vld [vmem:[%s165 + $0x500] sm:$0xff]
      %v334 = vld [vmem:[%s165 + $0x508] sm:$0xff]
      %v335 = vld [vmem:[%s165 + $0x510] sm:$0xff]
      %v336 = vld [vmem:[%s165 + $0x518] sm:$0xff]
      %v337 = vld [vmem:[%s165 + $0x520] sm:$0xff]
      %v338 = vld [vmem:[%s165 + $0x528] sm:$0xff]
      %v339 = vld [vmem:[%s165 + $0x530] sm:$0xff]
      %v340 = vld [vmem:[%s165 + $0x538] sm:$0xff]
      %v341 = vld [vmem:[%s165 + $0x540] sm:$0xff]
      %v342 = vld [vmem:[%s165 + $0x548] sm:$0xff]
      %v343 = vld [vmem:[%s165 + $0x550] sm:$0xff]
      %v344 = vld [vmem:[%s165 + $0x558] sm:$0xff]
      %v345 = vld [vmem:[%s165 + $0x560] sm:$0xff]
      %v346 = vld [vmem:[%s165 + $0x568] sm:$0xff]
      %v347 = vld [vmem:[%s165 + $0x570] sm:$0xff]
      %v348 = vld [vmem:[%s165 + $0x578] sm:$0xff]
      %v349 = vld [vmem:[%s165 + $0x580] sm:$0xff]
      %v350 = vld [vmem:[%s165 + $0x588] sm:$0xff]
      %v351 = vld [vmem:[%s165 + $0x590] sm:$0xff]
      %v352 = vld [vmem:[%s165 + $0x598] sm:$0xff]
      %v353 = vld [vmem:[%s165 + $0x5a0] sm:$0xff]
      %v354 = vld [vmem:[%s165 + $0x5a8] sm:$0xff]
      %v355 = vld [vmem:[%s165 + $0x5b0] sm:$0xff]
      %v356 = vld [vmem:[%s165 + $0x5b8] sm:$0xff]
      %v357 = vld [vmem:[%s165 + $0x5c0] sm:$0xff]
      %v358 = vld [vmem:[%s165 + $0x5c8] sm:$0xff]
      %v359 = vld [vmem:[%s165 + $0x5d0] sm:$0xff]
      %v360 = vld [vmem:[%s165 + $0x5d8] sm:$0xff]
      %v361 = vld [vmem:[%s165 + $0x5e0] sm:$0xff]
      %v362 = vld [vmem:[%s165 + $0x5e8] sm:$0xff]
      %v363 = vld [vmem:[%s165 + $0x5f0] sm:$0xff]
      %v364 = vld [vmem:[%s165 + $0x5f8] sm:$0xff]
      %v365 = vld [vmem:[%s165 + $0x600] sm:$0xff]
      %v366 = vld [vmem:[%s165 + $0x608] sm:$0xff]
      %v367 = vld [vmem:[%s165 + $0x610] sm:$0xff]
      %v368 = vld [vmem:[%s165 + $0x618] sm:$0xff]
      %v369 = vld [vmem:[%s165 + $0x620] sm:$0xff]
      %v370 = vld [vmem:[%s165 + $0x628] sm:$0xff]
      %v371 = vld [vmem:[%s165 + $0x630] sm:$0xff]
      %v372 = vld [vmem:[%s165 + $0x638] sm:$0xff]
      %v373 = vld [vmem:[%s165 + $0x640] sm:$0xff]
      %v374 = vld [vmem:[%s165 + $0x648] sm:$0xff]
      %v375 = vld [vmem:[%s165 + $0x650] sm:$0xff]
      %v376 = vld [vmem:[%s165 + $0x658] sm:$0xff]
      %v377 = vld [vmem:[%s165 + $0x660] sm:$0xff]
      %v378 = vld [vmem:[%s165 + $0x668] sm:$0xff]
      %v379 = vld [vmem:[%s165 + $0x670] sm:$0xff]
      %v380 = vld [vmem:[%s165 + $0x678] sm:$0xff]
      %v381 = vld [vmem:[%s165 + $0x680] sm:$0xff]
      %v382 = vld [vmem:[%s165 + $0x688] sm:$0xff]
      %v383 = vld [vmem:[%s165 + $0x690] sm:$0xff]
      %v384 = vld [vmem:[%s165 + $0x698] sm:$0xff]
      %v385 = vld [vmem:[%s165 + $0x6a0] sm:$0xff]
      %v386 = vld [vmem:[%s165 + $0x6a8] sm:$0xff]
      %v387 = vld [vmem:[%s165 + $0x6b0] sm:$0xff]
      %v388 = vld [vmem:[%s165 + $0x6b8] sm:$0xff]
      %v389 = vld [vmem:[%s165 + $0x6c0] sm:$0xff]
      %v390 = vld [vmem:[%s165 + $0x6c8] sm:$0xff]
      %v391 = vld [vmem:[%s165 + $0x6d0] sm:$0xff]
      %v392 = vld [vmem:[%s165 + $0x6d8] sm:$0xff]
      %v393 = vld [vmem:[%s165 + $0x6e0] sm:$0xff]
      %v394 = vld [vmem:[%s165 + $0x6e8] sm:$0xff]
      %v395 = vld [vmem:[%s165 + $0x6f0] sm:$0xff]
      %v396 = vld [vmem:[%s165 + $0x6f8] sm:$0xff]
      %v397 = vld [vmem:[%s165 + $0x700] sm:$0xff]
      %v398 = vld [vmem:[%s165 + $0x708] sm:$0xff]
      %v399 = vld [vmem:[%s165 + $0x710] sm:$0xff]
      %v400 = vld [vmem:[%s165 + $0x718] sm:$0xff]
      %v401 = vld [vmem:[%s165 + $0x720] sm:$0xff]
      %v402 = vld [vmem:[%s165 + $0x728] sm:$0xff]
      %v403 = vld [vmem:[%s165 + $0x730] sm:$0xff]
      %v404 = vld [vmem:[%s165 + $0x738] sm:$0xff]
      %v405 = vld [vmem:[%s165 + $0x740] sm:$0xff]
      %v406 = vld [vmem:[%s165 + $0x748] sm:$0xff]
      %v407 = vld [vmem:[%s165 + $0x750] sm:$0xff]
      %v408 = vld [vmem:[%s165 + $0x758] sm:$0xff]
      %v409 = vld [vmem:[%s165 + $0x760] sm:$0xff]
      %v410 = vld [vmem:[%s165 + $0x768] sm:$0xff]
      %v411 = vld [vmem:[%s165 + $0x770] sm:$0xff]
      %v412 = vld [vmem:[%s165 + $0x778] sm:$0xff]
      %v413 = vld [vmem:[%s165 + $0x780] sm:$0xff]
      %v414 = vld [vmem:[%s165 + $0x788] sm:$0xff]
      %v415 = vld [vmem:[%s165 + $0x790] sm:$0xff]
      %v416 = vld [vmem:[%s165 + $0x798] sm:$0xff]
      %v417 = vld [vmem:[%s165 + $0x7a0] sm:$0xff]
      %v418 = vld [vmem:[%s165 + $0x7a8] sm:$0xff]
      %v419 = vld [vmem:[%s165 + $0x7b0] sm:$0xff]
      %v420 = vld [vmem:[%s165 + $0x7b8] sm:$0xff]
      %v421 = vld [vmem:[%s165 + $0x7c0] sm:$0xff]
      %v422 = vld [vmem:[%s165 + $0x7c8] sm:$0xff]
      %v423 = vld [vmem:[%s165 + $0x7d0] sm:$0xff]
      %v424 = vld [vmem:[%s165 + $0x7d8] sm:$0xff]
      %v425 = vld [vmem:[%s165 + $0x7e0] sm:$0xff]
      %v426 = vld [vmem:[%s165 + $0x7e8] sm:$0xff]
      %v427 = vld [vmem:[%s165 + $0x7f0] sm:$0xff]
      %v428 = vld [vmem:[%s165 + $0x7f8] sm:$0xff]
      %v429 = vld [vmem:[%s165 + $0x800] sm:$0xff]
      %v430 = vld [vmem:[%s165 + $0x808] sm:$0xff]
      %v431 = vld [vmem:[%s165 + $0x810] sm:$0xff]
      %v432 = vld [vmem:[%s165 + $0x818] sm:$0xff]
      %v433 = vld [vmem:[%s165 + $0x820] sm:$0xff]
      %v434 = vld [vmem:[%s165 + $0x828] sm:$0xff]
      %v435 = vld [vmem:[%s165 + $0x830] sm:$0xff]
      %v436 = vld [vmem:[%s165 + $0x838] sm:$0xff]
      %v437 = vld [vmem:[%s165 + $0x840] sm:$0xff]
      %v438 = vld [vmem:[%s165 + $0x848] sm:$0xff]
      %v439 = vld [vmem:[%s165 + $0x850] sm:$0xff]
      %v440 = vld [vmem:[%s165 + $0x858] sm:$0xff]
      %v441 = vld [vmem:[%s165 + $0x860] sm:$0xff]
      %v442 = vld [vmem:[%s165 + $0x868] sm:$0xff]
      %v443 = vld [vmem:[%s165 + $0x870] sm:$0xff]
      %v444 = vld [vmem:[%s165 + $0x878] sm:$0xff]
      %v445 = vld [vmem:[%s165 + $0x880] sm:$0xff]
      %v446 = vld [vmem:[%s165 + $0x888] sm:$0xff]
      %v447 = vld [vmem:[%s165 + $0x890] sm:$0xff]
      %v448 = vld [vmem:[%s165 + $0x898] sm:$0xff]
      %v449 = vld [vmem:[%s165 + $0x8a0] sm:$0xff]
      %v450 = vld [vmem:[%s165 + $0x8a8] sm:$0xff]
      %v451 = vld [vmem:[%s165 + $0x8b0] sm:$0xff]
      %v452 = vld [vmem:[%s165 + $0x8b8] sm:$0xff]
      %v453 = vld [vmem:[%s165 + $0x8c0] sm:$0xff]
      %v454 = vld [vmem:[%s165 + $0x8c8] sm:$0xff]
      %v455 = vld [vmem:[%s165 + $0x8d0] sm:$0xff]
      %v456 = vld [vmem:[%s165 + $0x8d8] sm:$0xff]
      %v457 = vld [vmem:[%s165 + $0x8e0] sm:$0xff]
      %v458 = vld [vmem:[%s165 + $0x8e8] sm:$0xff]
      %v459 = vld [vmem:[%s165 + $0x8f0] sm:$0xff]
      %v460 = vld [vmem:[%s165 + $0x8f8] sm:$0xff]
      %v461 = vld [vmem:[%s165 + $0x900] sm:$0xff]
      %v462 = vld [vmem:[%s165 + $0x908] sm:$0xff]
      %v463 = vld [vmem:[%s165 + $0x910] sm:$0xff]
      %v464 = vld [vmem:[%s165 + $0x918] sm:$0xff]
      %v465 = vld [vmem:[%s165 + $0x920] sm:$0xff]
      %v466 = vld [vmem:[%s165 + $0x928] sm:$0xff]
      %v467 = vld [vmem:[%s165 + $0x930] sm:$0xff]
      %v468 = vld [vmem:[%s165 + $0x938] sm:$0xff]
      %v469 = vld [vmem:[%s165 + $0x940] sm:$0xff]
      %v470 = vld [vmem:[%s165 + $0x948] sm:$0xff]
      %v471 = vld [vmem:[%s165 + $0x950] sm:$0xff]
      %v472 = vld [vmem:[%s165 + $0x958] sm:$0xff]
      %v473 = vld [vmem:[%s165 + $0x960] sm:$0xff]
      %v474 = vld [vmem:[%s165 + $0x968] sm:$0xff]
      %v475 = vld [vmem:[%s165 + $0x970] sm:$0xff]
      %v476 = vld [vmem:[%s165 + $0x978] sm:$0xff]
      %v477 = vld [vmem:[%s165 + $0x980] sm:$0xff]
      %v478 = vld [vmem:[%s165 + $0x988] sm:$0xff]
      %v479 = vld [vmem:[%s165 + $0x990] sm:$0xff]
      %v480 = vld [vmem:[%s165 + $0x998] sm:$0xff]
      %v481 = vld [vmem:[%s165 + $0x9a0] sm:$0xff]
      %v482 = vld [vmem:[%s165 + $0x9a8] sm:$0xff]
      %v483 = vld [vmem:[%s165 + $0x9b0] sm:$0xff]
      %v484 = vld [vmem:[%s165 + $0x9b8] sm:$0xff]
      %v485 = vld [vmem:[%s165 + $0x9c0] sm:$0xff]
      %v486 = vld [vmem:[%s165 + $0x9c8] sm:$0xff]
      %v487 = vld [vmem:[%s165 + $0x9d0] sm:$0xff]
      %v488 = vld [vmem:[%s165 + $0x9d8] sm:$0x33]
      %v489 = vld [vmem:[%s165 + $0x9e0] sm:$0x33]
      %v490 = vld [vmem:[%s165 + $0x9e8] sm:$0x33]
      %v491 = vld [vmem:[%s165 + $0x9f0] sm:$0x33]
      %v492 = vld [vmem:[%s165 + $0x9f8] sm:$0x33]
      %v493 = vld [vmem:[%s165 + $0xa00] sm:$0x33]
      %v494 = vld [vmem:[%s165 + $0xa08] sm:$0x33]
      %v495 = vld [vmem:[%s165 + $0xa10] sm:$0x33]
      %v496 = vld [vmem:[%s165 + $0xa18] sm:$0x33]
      %v497 = vld [vmem:[%s165 + $0xa20] sm:$0x33]
      %v498 = vld [vmem:[%s165 + $0xa28] sm:$0x33]
      %v499 = vld [vmem:[%s165 + $0xa30] sm:$0x33]
      %v500 = vld [vmem:[%s165 + $0xa38] sm:$0x33]
      %v501 = vld [vmem:[%s165 + $0xa40] sm:$0x33]
      %v502 = vld [vmem:[%s165 + $0xa48] sm:$0x33]
      %v503 = vld [vmem:[%s165 + $0xa50] sm:$0x33]
      %v504 = vld [vmem:[%s165 + $0xa58] sm:$0x33]
      %v505 = vld [vmem:[%s165 + $0xa60] sm:$0x33]
      %v506 = vld [vmem:[%s165 + $0xa68] sm:$0x33]
      %v507 = vld [vmem:[%s165 + $0xa70] sm:$0x33]
      %v508 = vld [vmem:[%s165 + $0xa78] sm:$0x33]
      %v509 = vld [vmem:[%s165 + $0xa80] sm:$0x33]
      %v510 = vld [vmem:[%s165 + $0xa88] sm:$0x33]
      %v511 = vld [vmem:[%s165 + $0xa90] sm:$0x33]
      %v512 = vld [vmem:[%s165 + $0xa98] sm:$0x33]
      %v513 = vld [vmem:[%s165 + $0xaa0] sm:$0x33]
      %v514 = vld [vmem:[%s165 + $0xaa8] sm:$0x33]
      %v515 = vld [vmem:[%s165 + $0xab0] sm:$0x33]
      %v516 = vld [vmem:[%s165 + $0xab8] sm:$0x33]
      %v517 = vld [vmem:[%s165 + $0xac0] sm:$0x33]
      %v518 = vld [vmem:[%s165 + $0xac8] sm:$0x33]
      %v519 = vld [vmem:[%s165 + $0xad0] sm:$0x33]
      %v520 = vld [vmem:[%s165 + $0xad8] sm:$0x33]
      %v521 = vld [vmem:[%s165 + $0xae0] sm:$0x33]
      %v522 = vld [vmem:[%s165 + $0xae8] sm:$0x33]
      %v523 = vld [vmem:[%s2] sm:$0xff]
      %525 = vset.pattern.permute.xlu0 0
      %526 = vperm.xlu0 %525, %v523
      %v527 = vpop.permute.xlu0 %526
      %v879 = vunpack.c.l.b16 %v173
      %v880 = vunpack.c.h.b16 %v173
      %v881 = vunpack.c.l.b16 %v174
      %v882 = vunpack.c.h.b16 %v174
      %v883 = vunpack.c.l.b16 %v175
      %v884 = vunpack.c.h.b16 %v175
      %v885 = vunpack.c.l.b16 %v176
      %v886 = vunpack.c.h.b16 %v176
      %v887 = vunpack.c.l.b16 %v177
      %v888 = vunpack.c.h.b16 %v177
      %v889 = vunpack.c.l.b16 %v178
      %v890 = vunpack.c.h.b16 %v178
      %v891 = vunpack.c.l.b16 %v179
      %v892 = vunpack.c.h.b16 %v179
      %v893 = vunpack.c.l.b16 %v180
      %v894 = vunpack.c.h.b16 %v180
      %v895 = vunpack.c.l.b16 %v181
      %v896 = vunpack.c.h.b16 %v181
      %v897 = vunpack.c.l.b16 %v182
      %v898 = vunpack.c.h.b16 %v182
      %v899 = vunpack.c.l.b16 %v183
      %v900 = vunpack.c.h.b16 %v183
      %v901 = vunpack.c.l.b16 %v184
      %v902 = vunpack.c.h.b16 %v184
      %v903 = vunpack.c.l.b16 %v185
      %v904 = vunpack.c.h.b16 %v185
      %v905 = vunpack.c.l.b16 %v186
      %v906 = vunpack.c.h.b16 %v186
      %v907 = vunpack.c.l.b16 %v187
      %v908 = vunpack.c.h.b16 %v187
      %v909 = vunpack.c.l.b16 %v188
      %v910 = vunpack.c.h.b16 %v188
      %v911 = vunpack.c.l.b16 %v189
      %v912 = vunpack.c.h.b16 %v189
      %v913 = vunpack.c.l.b16 %v190
      %v914 = vunpack.c.h.b16 %v190
      %v915 = vunpack.c.l.b16 %v191
      %v916 = vunpack.c.h.b16 %v191
      %v917 = vunpack.c.l.b16 %v192
      %v918 = vunpack.c.h.b16 %v192
      %v919 = vunpack.c.l.b16 %v193
      %v920 = vunpack.c.h.b16 %v193
      %v921 = vunpack.c.l.b16 %v194
      %v922 = vunpack.c.h.b16 %v194
      %v923 = vunpack.c.l.b16 %v195
      %v924 = vunpack.c.h.b16 %v195
      %v925 = vunpack.c.l.b16 %v196
      %v926 = vunpack.c.h.b16 %v196
      %v927 = vunpack.c.l.b16 %v197
      %v928 = vunpack.c.h.b16 %v197
      %v929 = vunpack.c.l.b16 %v198
      %v930 = vunpack.c.h.b16 %v198
      %v931 = vunpack.c.l.b16 %v199
      %v932 = vunpack.c.h.b16 %v199
      %v933 = vunpack.c.l.b16 %v200
      %v934 = vunpack.c.h.b16 %v200
      %v935 = vunpack.c.l.b16 %v201
      %v936 = vunpack.c.h.b16 %v201
      %v937 = vunpack.c.l.b16 %v202
      %v938 = vunpack.c.h.b16 %v202
      %v939 = vunpack.c.l.b16 %v203
      %v940 = vunpack.c.h.b16 %v203
      %v941 = vunpack.c.l.b16 %v204
      %v942 = vunpack.c.h.b16 %v204
      %v943 = vunpack.c.l.b16 %v205
      %v944 = vunpack.c.h.b16 %v205
      %v945 = vunpack.c.l.b16 %v206
      %v946 = vunpack.c.h.b16 %v206
      %v947 = vunpack.c.l.b16 %v207
      %v948 = vunpack.c.h.b16 %v207
      %v949 = vunpack.c.l.b16 %v208
      %v950 = vunpack.c.h.b16 %v208
      %v951 = vunpack.c.l.b16 %v209
      %v952 = vunpack.c.h.b16 %v209
      %v953 = vunpack.c.l.b16 %v210
      %v954 = vunpack.c.h.b16 %v210
      %v955 = vunpack.c.l.b16 %v211
      %v956 = vunpack.c.h.b16 %v211
      %v957 = vunpack.c.l.b16 %v212
      %v958 = vunpack.c.h.b16 %v212
      %v959 = vunpack.c.l.b16 %v213
      %v960 = vunpack.c.h.b16 %v213
      %v961 = vunpack.c.l.b16 %v214
      %v962 = vunpack.c.h.b16 %v214
      %v963 = vunpack.c.l.b16 %v215
      %v964 = vunpack.c.h.b16 %v215
      %v965 = vunpack.c.l.b16 %v216
      %v966 = vunpack.c.h.b16 %v216
      %v967 = vunpack.c.l.b16 %v217
      %v968 = vunpack.c.h.b16 %v217
      %v969 = vunpack.c.l.b16 %v218
      %v970 = vunpack.c.h.b16 %v218
      %v971 = vunpack.c.l.b16 %v219
      %v972 = vunpack.c.h.b16 %v219
      %v973 = vunpack.c.l.b16 %v220
      %v974 = vunpack.c.h.b16 %v220
      %v975 = vunpack.c.l.b16 %v221
      %v976 = vunpack.c.h.b16 %v221
      %v977 = vunpack.c.l.b16 %v222
      %v978 = vunpack.c.h.b16 %v222
      %v979 = vunpack.c.l.b16 %v223
      %v980 = vunpack.c.h.b16 %v223
      %v981 = vunpack.c.l.b16 %v224
      %v982 = vunpack.c.h.b16 %v224
      %v983 = vunpack.c.l.b16 %v225
      %v984 = vunpack.c.h.b16 %v225
      %v985 = vunpack.c.l.b16 %v226
      %v986 = vunpack.c.h.b16 %v226
      %v987 = vunpack.c.l.b16 %v227
      %v988 = vunpack.c.h.b16 %v227
      %v989 = vunpack.c.l.b16 %v228
      %v990 = vunpack.c.h.b16 %v228
      %v991 = vunpack.c.l.b16 %v229
      %v992 = vunpack.c.h.b16 %v229
      %v993 = vunpack.c.l.b16 %v230
      %v994 = vunpack.c.h.b16 %v230
      %v995 = vunpack.c.l.b16 %v231
      %v996 = vunpack.c.h.b16 %v231
      %v997 = vunpack.c.l.b16 %v232
      %v998 = vunpack.c.h.b16 %v232
      %v999 = vunpack.c.l.b16 %v233
      %v1000 = vunpack.c.h.b16 %v233
      %v1001 = vunpack.c.l.b16 %v234
      %v1002 = vunpack.c.h.b16 %v234
      %v1003 = vunpack.c.l.b16 %v235
      %v1004 = vunpack.c.h.b16 %v235
      %v1005 = vunpack.c.l.b16 %v236
      %v1006 = vunpack.c.h.b16 %v236
      %v1007 = vunpack.c.l.b16 %v237
      %v1008 = vunpack.c.h.b16 %v237
      %v1009 = vunpack.c.l.b16 %v238
      %v1010 = vunpack.c.h.b16 %v238
      %v1011 = vunpack.c.l.b16 %v239
      %v1012 = vunpack.c.h.b16 %v239
      %v1013 = vunpack.c.l.b16 %v240
      %v1014 = vunpack.c.h.b16 %v240
      %v1015 = vunpack.c.l.b16 %v241
      %v1016 = vunpack.c.h.b16 %v241
      %v1017 = vunpack.c.l.b16 %v242
      %v1018 = vunpack.c.h.b16 %v242
      %v1019 = vunpack.c.l.b16 %v243
      %v1020 = vunpack.c.h.b16 %v243
      %v1021 = vunpack.c.l.b16 %v244
      %v1022 = vunpack.c.h.b16 %v244
      %v1023 = vunpack.c.l.b16 %v245
      %v1024 = vunpack.c.h.b16 %v245
      %v1025 = vunpack.c.l.b16 %v246
      %v1026 = vunpack.c.h.b16 %v246
      %v1027 = vunpack.c.l.b16 %v247
      %v1028 = vunpack.c.h.b16 %v247
      %v1029 = vunpack.c.l.b16 %v248
      %v1030 = vunpack.c.h.b16 %v248
      %v1031 = vunpack.c.l.b16 %v249
      %v1032 = vunpack.c.h.b16 %v249
      %v1033 = vunpack.c.l.b16 %v250
      %v1034 = vunpack.c.h.b16 %v250
      %v1035 = vunpack.c.l.b16 %v251
      %v1036 = vunpack.c.h.b16 %v251
      %v1037 = vunpack.c.l.b16 %v252
      %v1038 = vunpack.c.h.b16 %v252
      %v1039 = vunpack.c.l.b16 %v253
      %v1040 = vunpack.c.h.b16 %v253
      %v1041 = vunpack.c.l.b16 %v254
      %v1042 = vunpack.c.h.b16 %v254
      %v1043 = vunpack.c.l.b16 %v255
      %v1044 = vunpack.c.h.b16 %v255
      %v1045 = vunpack.c.l.b16 %v256
      %v1046 = vunpack.c.h.b16 %v256
      %v1047 = vunpack.c.l.b16 %v257
      %v1048 = vunpack.c.h.b16 %v257
      %v1049 = vunpack.c.l.b16 %v258
      %v1050 = vunpack.c.h.b16 %v258
      %v1051 = vunpack.c.l.b16 %v259
      %v1052 = vunpack.c.h.b16 %v259
      %v1053 = vunpack.c.l.b16 %v260
      %v1054 = vunpack.c.h.b16 %v260
      %v1055 = vunpack.c.l.b16 %v261
      %v1056 = vunpack.c.h.b16 %v261
      %v1057 = vunpack.c.l.b16 %v262
      %v1058 = vunpack.c.h.b16 %v262
      %v1059 = vunpack.c.l.b16 %v263
      %v1060 = vunpack.c.h.b16 %v263
      %v1061 = vunpack.c.l.b16 %v264
      %v1062 = vunpack.c.h.b16 %v264
      %v1063 = vunpack.c.l.b16 %v265
      %v1064 = vunpack.c.h.b16 %v265
      %v1065 = vunpack.c.l.b16 %v266
      %v1066 = vunpack.c.h.b16 %v266
      %v1067 = vunpack.c.l.b16 %v267
      %v1068 = vunpack.c.h.b16 %v267
      %v1069 = vunpack.c.l.b16 %v268
      %v1070 = vunpack.c.h.b16 %v268
      %v1071 = vunpack.c.l.b16 %v269
      %v1072 = vunpack.c.h.b16 %v269
      %v1073 = vunpack.c.l.b16 %v270
      %v1074 = vunpack.c.h.b16 %v270
      %v1075 = vunpack.c.l.b16 %v271
      %v1076 = vunpack.c.h.b16 %v271
      %v1077 = vunpack.c.l.b16 %v272
      %v1078 = vunpack.c.h.b16 %v272
      %v1079 = vunpack.c.l.b16 %v273
      %v1080 = vunpack.c.h.b16 %v273
      %v1081 = vunpack.c.l.b16 %v274
      %v1082 = vunpack.c.h.b16 %v274
      %v1083 = vunpack.c.l.b16 %v275
      %v1084 = vunpack.c.h.b16 %v275
      %v1085 = vunpack.c.l.b16 %v276
      %v1086 = vunpack.c.h.b16 %v276
      %v1087 = vunpack.c.l.b16 %v277
      %v1088 = vunpack.c.h.b16 %v277
      %v1089 = vunpack.c.l.b16 %v278
      %v1090 = vunpack.c.h.b16 %v278
      %v1091 = vunpack.c.l.b16 %v279
      %v1092 = vunpack.c.h.b16 %v279
      %v1093 = vunpack.c.l.b16 %v280
      %v1094 = vunpack.c.h.b16 %v280
      %v1095 = vunpack.c.l.b16 %v281
      %v1096 = vunpack.c.h.b16 %v281
      %v1097 = vunpack.c.l.b16 %v282
      %v1098 = vunpack.c.h.b16 %v282
      %v1099 = vunpack.c.l.b16 %v283
      %v1100 = vunpack.c.h.b16 %v283
      %v1101 = vunpack.c.l.b16 %v284
      %v1102 = vunpack.c.h.b16 %v284
      %v1103 = vunpack.c.l.b16 %v285
      %v1104 = vunpack.c.h.b16 %v285
      %v1105 = vunpack.c.l.b16 %v286
      %v1106 = vunpack.c.h.b16 %v286
      %v1107 = vunpack.c.l.b16 %v287
      %v1108 = vunpack.c.h.b16 %v287
      %v1109 = vunpack.c.l.b16 %v288
      %v1110 = vunpack.c.h.b16 %v288
      %v1111 = vunpack.c.l.b16 %v289
      %v1112 = vunpack.c.h.b16 %v289
      %v1113 = vunpack.c.l.b16 %v290
      %v1114 = vunpack.c.h.b16 %v290
      %v1115 = vunpack.c.l.b16 %v291
      %v1116 = vunpack.c.h.b16 %v291
      %v1117 = vunpack.c.l.b16 %v292
      %v1118 = vunpack.c.h.b16 %v292
      %v1119 = vunpack.c.l.b16 %v293
      %v1120 = vunpack.c.h.b16 %v293
      %v1121 = vunpack.c.l.b16 %v294
      %v1122 = vunpack.c.h.b16 %v294
      %v1123 = vunpack.c.l.b16 %v295
      %v1124 = vunpack.c.h.b16 %v295
      %v1125 = vunpack.c.l.b16 %v296
      %v1126 = vunpack.c.h.b16 %v296
      %v1127 = vunpack.c.l.b16 %v297
      %v1128 = vunpack.c.h.b16 %v297
      %v1129 = vunpack.c.l.b16 %v298
      %v1130 = vunpack.c.h.b16 %v298
      %v1131 = vunpack.c.l.b16 %v299
      %v1132 = vunpack.c.h.b16 %v299
      %v1133 = vunpack.c.l.b16 %v300
      %v1134 = vunpack.c.h.b16 %v300
      %v1135 = vunpack.c.l.b16 %v301
      %v1136 = vunpack.c.h.b16 %v301
      %v1137 = vunpack.c.l.b16 %v302
      %v1138 = vunpack.c.h.b16 %v302
      %v1139 = vunpack.c.l.b16 %v303
      %v1140 = vunpack.c.h.b16 %v303
      %v1141 = vunpack.c.l.b16 %v304
      %v1142 = vunpack.c.h.b16 %v304
      %v1143 = vunpack.c.l.b16 %v305
      %v1144 = vunpack.c.h.b16 %v305
      %v1145 = vunpack.c.l.b16 %v306
      %v1146 = vunpack.c.h.b16 %v306
      %v1147 = vunpack.c.l.b16 %v307
      %v1148 = vunpack.c.h.b16 %v307
      %v1149 = vunpack.c.l.b16 %v308
      %v1150 = vunpack.c.h.b16 %v308
      %v1151 = vunpack.c.l.b16 %v309
      %v1152 = vunpack.c.h.b16 %v309
      %v1153 = vunpack.c.l.b16 %v310
      %v1154 = vunpack.c.h.b16 %v310
      %v1155 = vunpack.c.l.b16 %v311
      %v1156 = vunpack.c.h.b16 %v311
      %v1157 = vunpack.c.l.b16 %v312
      %v1158 = vunpack.c.h.b16 %v312
      %v1159 = vunpack.c.l.b16 %v313
      %v1160 = vunpack.c.h.b16 %v313
      %v1161 = vunpack.c.l.b16 %v314
      %v1162 = vunpack.c.h.b16 %v314
      %v1163 = vunpack.c.l.b16 %v315
      %v1164 = vunpack.c.h.b16 %v315
      %v1165 = vunpack.c.l.b16 %v316
      %v1166 = vunpack.c.h.b16 %v316
      %v1167 = vunpack.c.l.b16 %v317
      %v1168 = vunpack.c.h.b16 %v317
      %v1169 = vunpack.c.l.b16 %v318
      %v1170 = vunpack.c.h.b16 %v318
      %v1171 = vunpack.c.l.b16 %v319
      %v1172 = vunpack.c.h.b16 %v319
      %v1173 = vunpack.c.l.b16 %v320
      %v1174 = vunpack.c.h.b16 %v320
      %v1175 = vunpack.c.l.b16 %v321
      %v1176 = vunpack.c.h.b16 %v321
      %v1177 = vunpack.c.l.b16 %v322
      %v1178 = vunpack.c.h.b16 %v322
      %v1179 = vunpack.c.l.b16 %v323
      %v1180 = vunpack.c.h.b16 %v323
      %v1181 = vunpack.c.l.b16 %v324
      %v1182 = vunpack.c.h.b16 %v324
      %v1183 = vunpack.c.l.b16 %v325
      %v1184 = vunpack.c.h.b16 %v325
      %v1185 = vunpack.c.l.b16 %v326
      %v1186 = vunpack.c.h.b16 %v326
      %v1187 = vunpack.c.l.b16 %v327
      %v1188 = vunpack.c.h.b16 %v327
      %v1189 = vunpack.c.l.b16 %v328
      %v1190 = vunpack.c.h.b16 %v328
      %v1191 = vunpack.c.l.b16 %v329
      %v1192 = vunpack.c.h.b16 %v329
      %v1193 = vunpack.c.l.b16 %v330
      %v1194 = vunpack.c.h.b16 %v330
      %v1195 = vunpack.c.l.b16 %v331
      %v1196 = vunpack.c.h.b16 %v331
      %v1197 = vunpack.c.l.b16 %v332
      %v1198 = vunpack.c.h.b16 %v332
      %v1199 = vunpack.c.l.b16 %v333
      %v1200 = vunpack.c.h.b16 %v333
      %v1201 = vunpack.c.l.b16 %v334
      %v1202 = vunpack.c.h.b16 %v334
      %v1203 = vunpack.c.l.b16 %v335
      %v1204 = vunpack.c.h.b16 %v335
      %v1205 = vunpack.c.l.b16 %v336
      %v1206 = vunpack.c.h.b16 %v336
      %v1207 = vunpack.c.l.b16 %v337
      %v1208 = vunpack.c.h.b16 %v337
      %v1209 = vunpack.c.l.b16 %v338
      %v1210 = vunpack.c.h.b16 %v338
      %v1211 = vunpack.c.l.b16 %v339
      %v1212 = vunpack.c.h.b16 %v339
      %v1213 = vunpack.c.l.b16 %v340
      %v1214 = vunpack.c.h.b16 %v340
      %v1215 = vunpack.c.l.b16 %v341
      %v1216 = vunpack.c.h.b16 %v341
      %v1217 = vunpack.c.l.b16 %v342
      %v1218 = vunpack.c.h.b16 %v342
      %v1219 = vunpack.c.l.b16 %v343
      %v1220 = vunpack.c.h.b16 %v343
      %v1221 = vunpack.c.l.b16 %v344
      %v1222 = vunpack.c.h.b16 %v344
      %v1223 = vunpack.c.l.b16 %v345
      %v1224 = vunpack.c.h.b16 %v345
      %v1225 = vunpack.c.l.b16 %v346
      %v1226 = vunpack.c.h.b16 %v346
      %v1227 = vunpack.c.l.b16 %v347
      %v1228 = vunpack.c.h.b16 %v347
      %v1229 = vunpack.c.l.b16 %v348
      %v1230 = vunpack.c.h.b16 %v348
      %v1231 = vunpack.c.l.b16 %v349
      %v1232 = vunpack.c.h.b16 %v349
      %v1233 = vunpack.c.l.b16 %v350
      %v1234 = vunpack.c.h.b16 %v350
      %v1235 = vunpack.c.l.b16 %v351
      %v1236 = vunpack.c.h.b16 %v351
      %v1237 = vunpack.c.l.b16 %v352
      %v1238 = vunpack.c.h.b16 %v352
      %v1239 = vunpack.c.l.b16 %v353
      %v1240 = vunpack.c.h.b16 %v353
      %v1241 = vunpack.c.l.b16 %v354
      %v1242 = vunpack.c.h.b16 %v354
      %v1243 = vunpack.c.l.b16 %v355
      %v1244 = vunpack.c.h.b16 %v355
      %v1245 = vunpack.c.l.b16 %v356
      %v1246 = vunpack.c.h.b16 %v356
      %v1247 = vunpack.c.l.b16 %v357
      %v1248 = vunpack.c.h.b16 %v357
      %v1249 = vunpack.c.l.b16 %v358
      %v1250 = vunpack.c.h.b16 %v358
      %v1251 = vunpack.c.l.b16 %v359
      %v1252 = vunpack.c.h.b16 %v359
      %v1253 = vunpack.c.l.b16 %v360
      %v1254 = vunpack.c.h.b16 %v360
      %v1255 = vunpack.c.l.b16 %v361
      %v1256 = vunpack.c.h.b16 %v361
      %v1257 = vunpack.c.l.b16 %v362
      %v1258 = vunpack.c.h.b16 %v362
      %v1259 = vunpack.c.l.b16 %v363
      %v1260 = vunpack.c.h.b16 %v363
      %v1261 = vunpack.c.l.b16 %v364
      %v1262 = vunpack.c.h.b16 %v364
      %v1263 = vunpack.c.l.b16 %v365
      %v1264 = vunpack.c.h.b16 %v365
      %v1265 = vunpack.c.l.b16 %v366
      %v1266 = vunpack.c.h.b16 %v366
      %v1267 = vunpack.c.l.b16 %v367
      %v1268 = vunpack.c.h.b16 %v367
      %v1269 = vunpack.c.l.b16 %v368
      %v1270 = vunpack.c.h.b16 %v368
      %v1271 = vunpack.c.l.b16 %v369
      %v1272 = vunpack.c.h.b16 %v369
      %v1273 = vunpack.c.l.b16 %v370
      %v1274 = vunpack.c.h.b16 %v370
      %v1275 = vunpack.c.l.b16 %v371
      %v1276 = vunpack.c.h.b16 %v371
      %v1277 = vunpack.c.l.b16 %v372
      %v1278 = vunpack.c.h.b16 %v372
      %v1279 = vunpack.c.l.b16 %v373
      %v1280 = vunpack.c.h.b16 %v373
      %v1281 = vunpack.c.l.b16 %v374
      %v1282 = vunpack.c.h.b16 %v374
      %v1283 = vunpack.c.l.b16 %v375
      %v1284 = vunpack.c.h.b16 %v375
      %v1285 = vunpack.c.l.b16 %v376
      %v1286 = vunpack.c.h.b16 %v376
      %v1287 = vunpack.c.l.b16 %v377
      %v1288 = vunpack.c.h.b16 %v377
      %v1289 = vunpack.c.l.b16 %v378
      %v1290 = vunpack.c.h.b16 %v378
      %v1291 = vunpack.c.l.b16 %v379
      %v1292 = vunpack.c.h.b16 %v379
      %v1293 = vunpack.c.l.b16 %v380
      %v1294 = vunpack.c.h.b16 %v380
      %v1295 = vunpack.c.l.b16 %v381
      %v1296 = vunpack.c.h.b16 %v381
      %v1297 = vunpack.c.l.b16 %v382
      %v1298 = vunpack.c.h.b16 %v382
      %v1299 = vunpack.c.l.b16 %v383
      %v1300 = vunpack.c.h.b16 %v383
      %v1301 = vunpack.c.l.b16 %v384
      %v1302 = vunpack.c.h.b16 %v384
      %v1303 = vunpack.c.l.b16 %v385
      %v1304 = vunpack.c.h.b16 %v385
      %v1305 = vunpack.c.l.b16 %v386
      %v1306 = vunpack.c.h.b16 %v386
      %v1307 = vunpack.c.l.b16 %v387
      %v1308 = vunpack.c.h.b16 %v387
      %v1309 = vunpack.c.l.b16 %v388
      %v1310 = vunpack.c.h.b16 %v388
      %v1311 = vunpack.c.l.b16 %v389
      %v1312 = vunpack.c.h.b16 %v389
      %v1313 = vunpack.c.l.b16 %v390
      %v1314 = vunpack.c.h.b16 %v390
      %v1315 = vunpack.c.l.b16 %v391
      %v1316 = vunpack.c.h.b16 %v391
      %v1317 = vunpack.c.l.b16 %v392
      %v1318 = vunpack.c.h.b16 %v392
      %v1319 = vunpack.c.l.b16 %v393
      %v1320 = vunpack.c.h.b16 %v393
      %v1321 = vunpack.c.l.b16 %v394
      %v1322 = vunpack.c.h.b16 %v394
      %v1323 = vunpack.c.l.b16 %v395
      %v1324 = vunpack.c.h.b16 %v395
      %v1325 = vunpack.c.l.b16 %v396
      %v1326 = vunpack.c.h.b16 %v396
      %v1327 = vunpack.c.l.b16 %v397
      %v1328 = vunpack.c.h.b16 %v397
      %v1329 = vunpack.c.l.b16 %v398
      %v1330 = vunpack.c.h.b16 %v398
      %v1331 = vunpack.c.l.b16 %v399
      %v1332 = vunpack.c.h.b16 %v399
      %v1333 = vunpack.c.l.b16 %v400
      %v1334 = vunpack.c.h.b16 %v400
      %v1335 = vunpack.c.l.b16 %v401
      %v1336 = vunpack.c.h.b16 %v401
      %v1337 = vunpack.c.l.b16 %v402
      %v1338 = vunpack.c.h.b16 %v402
      %v1339 = vunpack.c.l.b16 %v403
      %v1340 = vunpack.c.h.b16 %v403
      %v1341 = vunpack.c.l.b16 %v404
      %v1342 = vunpack.c.h.b16 %v404
      %v1343 = vunpack.c.l.b16 %v405
      %v1344 = vunpack.c.h.b16 %v405
      %v1345 = vunpack.c.l.b16 %v406
      %v1346 = vunpack.c.h.b16 %v406
      %v1347 = vunpack.c.l.b16 %v407
      %v1348 = vunpack.c.h.b16 %v407
      %v1349 = vunpack.c.l.b16 %v408
      %v1350 = vunpack.c.h.b16 %v408
      %v1351 = vunpack.c.l.b16 %v409
      %v1352 = vunpack.c.h.b16 %v409
      %v1353 = vunpack.c.l.b16 %v410
      %v1354 = vunpack.c.h.b16 %v410
      %v1355 = vunpack.c.l.b16 %v411
      %v1356 = vunpack.c.h.b16 %v411
      %v1357 = vunpack.c.l.b16 %v412
      %v1358 = vunpack.c.h.b16 %v412
      %v1359 = vunpack.c.l.b16 %v413
      %v1360 = vunpack.c.h.b16 %v413
      %v1361 = vunpack.c.l.b16 %v414
      %v1362 = vunpack.c.h.b16 %v414
      %v1363 = vunpack.c.l.b16 %v415
      %v1364 = vunpack.c.h.b16 %v415
      %v1365 = vunpack.c.l.b16 %v416
      %v1366 = vunpack.c.h.b16 %v416
      %v1367 = vunpack.c.l.b16 %v417
      %v1368 = vunpack.c.h.b16 %v417
      %v1369 = vunpack.c.l.b16 %v418
      %v1370 = vunpack.c.h.b16 %v418
      %v1371 = vunpack.c.l.b16 %v419
      %v1372 = vunpack.c.h.b16 %v419
      %v1373 = vunpack.c.l.b16 %v420
      %v1374 = vunpack.c.h.b16 %v420
      %v1375 = vunpack.c.l.b16 %v421
      %v1376 = vunpack.c.h.b16 %v421
      %v1377 = vunpack.c.l.b16 %v422
      %v1378 = vunpack.c.h.b16 %v422
      %v1379 = vunpack.c.l.b16 %v423
      %v1380 = vunpack.c.h.b16 %v423
      %v1381 = vunpack.c.l.b16 %v424
      %v1382 = vunpack.c.h.b16 %v424
      %v1383 = vunpack.c.l.b16 %v425
      %v1384 = vunpack.c.h.b16 %v425
      %v1385 = vunpack.c.l.b16 %v426
      %v1386 = vunpack.c.h.b16 %v426
      %v1387 = vunpack.c.l.b16 %v427
      %v1388 = vunpack.c.h.b16 %v427
      %v1389 = vunpack.c.l.b16 %v428
      %v1390 = vunpack.c.h.b16 %v428
      %v1391 = vunpack.c.l.b16 %v429
      %v1392 = vunpack.c.h.b16 %v429
      %v1393 = vunpack.c.l.b16 %v430
      %v1394 = vunpack.c.h.b16 %v430
      %v1395 = vunpack.c.l.b16 %v431
      %v1396 = vunpack.c.h.b16 %v431
      %v1397 = vunpack.c.l.b16 %v432
      %v1398 = vunpack.c.h.b16 %v432
      %v1399 = vunpack.c.l.b16 %v433
      %v1400 = vunpack.c.h.b16 %v433
      %v1401 = vunpack.c.l.b16 %v434
      %v1402 = vunpack.c.h.b16 %v434
      %v1403 = vunpack.c.l.b16 %v435
      %v1404 = vunpack.c.h.b16 %v435
      %v1405 = vunpack.c.l.b16 %v436
      %v1406 = vunpack.c.h.b16 %v436
      %v1407 = vunpack.c.l.b16 %v437
      %v1408 = vunpack.c.h.b16 %v437
      %v1409 = vunpack.c.l.b16 %v438
      %v1410 = vunpack.c.h.b16 %v438
      %v1411 = vunpack.c.l.b16 %v439
      %v1412 = vunpack.c.h.b16 %v439
      %v1413 = vunpack.c.l.b16 %v440
      %v1414 = vunpack.c.h.b16 %v440
      %v1415 = vunpack.c.l.b16 %v441
      %v1416 = vunpack.c.h.b16 %v441
      %v1417 = vunpack.c.l.b16 %v442
      %v1418 = vunpack.c.h.b16 %v442
      %v1419 = vunpack.c.l.b16 %v443
      %v1420 = vunpack.c.h.b16 %v443
      %v1421 = vunpack.c.l.b16 %v444
      %v1422 = vunpack.c.h.b16 %v444
      %v1423 = vunpack.c.l.b16 %v445
      %v1424 = vunpack.c.h.b16 %v445
      %v1425 = vunpack.c.l.b16 %v446
      %v1426 = vunpack.c.h.b16 %v446
      %v1427 = vunpack.c.l.b16 %v447
      %v1428 = vunpack.c.h.b16 %v447
      %v1429 = vunpack.c.l.b16 %v448
      %v1430 = vunpack.c.h.b16 %v448
      %v1431 = vunpack.c.l.b16 %v449
      %v1432 = vunpack.c.h.b16 %v449
      %v1433 = vunpack.c.l.b16 %v450
      %v1434 = vunpack.c.h.b16 %v450
      %v1435 = vunpack.c.l.b16 %v451
      %v1436 = vunpack.c.h.b16 %v451
      %v1437 = vunpack.c.l.b16 %v452
      %v1438 = vunpack.c.h.b16 %v452
      %v1439 = vunpack.c.l.b16 %v453
      %v1440 = vunpack.c.h.b16 %v453
      %v1441 = vunpack.c.l.b16 %v454
      %v1442 = vunpack.c.h.b16 %v454
      %v1443 = vunpack.c.l.b16 %v455
      %v1444 = vunpack.c.h.b16 %v455
      %v1445 = vunpack.c.l.b16 %v456
      %v1446 = vunpack.c.h.b16 %v456
      %v1447 = vunpack.c.l.b16 %v457
      %v1448 = vunpack.c.h.b16 %v457
      %v1449 = vunpack.c.l.b16 %v458
      %v1450 = vunpack.c.h.b16 %v458
      %v1451 = vunpack.c.l.b16 %v459
      %v1452 = vunpack.c.h.b16 %v459
      %v1453 = vunpack.c.l.b16 %v460
      %v1454 = vunpack.c.h.b16 %v460
      %v1455 = vunpack.c.l.b16 %v461
      %v1456 = vunpack.c.h.b16 %v461
      %v1457 = vunpack.c.l.b16 %v462
      %v1458 = vunpack.c.h.b16 %v462
      %v1459 = vunpack.c.l.b16 %v463
      %v1460 = vunpack.c.h.b16 %v463
      %v1461 = vunpack.c.l.b16 %v464
      %v1462 = vunpack.c.h.b16 %v464
      %v1463 = vunpack.c.l.b16 %v465
      %v1464 = vunpack.c.h.b16 %v465
      %v1465 = vunpack.c.l.b16 %v466
      %v1466 = vunpack.c.h.b16 %v466
      %v1467 = vunpack.c.l.b16 %v467
      %v1468 = vunpack.c.h.b16 %v467
      %v1469 = vunpack.c.l.b16 %v468
      %v1470 = vunpack.c.h.b16 %v468
      %v1471 = vunpack.c.l.b16 %v469
      %v1472 = vunpack.c.h.b16 %v469
      %v1473 = vunpack.c.l.b16 %v470
      %v1474 = vunpack.c.h.b16 %v470
      %v1475 = vunpack.c.l.b16 %v471
      %v1476 = vunpack.c.h.b16 %v471
      %v1477 = vunpack.c.l.b16 %v472
      %v1478 = vunpack.c.h.b16 %v472
      %v1479 = vunpack.c.l.b16 %v473
      %v1480 = vunpack.c.h.b16 %v473
      %v1481 = vunpack.c.l.b16 %v474
      %v1482 = vunpack.c.h.b16 %v474
      %v1483 = vunpack.c.l.b16 %v475
      %v1484 = vunpack.c.h.b16 %v475
      %v1485 = vunpack.c.l.b16 %v476
      %v1486 = vunpack.c.h.b16 %v476
      %v1487 = vunpack.c.l.b16 %v477
      %v1488 = vunpack.c.h.b16 %v477
      %v1489 = vunpack.c.l.b16 %v478
      %v1490 = vunpack.c.h.b16 %v478
      %v1491 = vunpack.c.l.b16 %v479
      %v1492 = vunpack.c.h.b16 %v479
      %v1493 = vunpack.c.l.b16 %v480
      %v1494 = vunpack.c.h.b16 %v480
      %v1495 = vunpack.c.l.b16 %v481
      %v1496 = vunpack.c.h.b16 %v481
      %v1497 = vunpack.c.l.b16 %v482
      %v1498 = vunpack.c.h.b16 %v482
      %v1499 = vunpack.c.l.b16 %v483
      %v1500 = vunpack.c.h.b16 %v483
      %v1501 = vunpack.c.l.b16 %v484
      %v1502 = vunpack.c.h.b16 %v484
      %v1503 = vunpack.c.l.b16 %v485
      %v1504 = vunpack.c.h.b16 %v485
      %v1505 = vunpack.c.l.b16 %v486
      %v1506 = vunpack.c.h.b16 %v486
      %v1507 = vunpack.c.l.b16 %v487
      %v1508 = vunpack.c.h.b16 %v487
      %v1509 = vunpack.c.l.b16 %v488
      %v1510 = vunpack.c.h.b16 %v488
      %v1511 = vunpack.c.l.b16 %v489
      %v1512 = vunpack.c.h.b16 %v489
      %v1513 = vunpack.c.l.b16 %v490
      %v1514 = vunpack.c.h.b16 %v490
      %v1515 = vunpack.c.l.b16 %v491
      %v1516 = vunpack.c.h.b16 %v491
      %v1517 = vunpack.c.l.b16 %v492
      %v1518 = vunpack.c.h.b16 %v492
      %v1519 = vunpack.c.l.b16 %v493
      %v1520 = vunpack.c.h.b16 %v493
      %v1521 = vunpack.c.l.b16 %v494
      %v1522 = vunpack.c.h.b16 %v494
      %v1523 = vunpack.c.l.b16 %v495
      %v1524 = vunpack.c.h.b16 %v495
      %v1525 = vunpack.c.l.b16 %v496
      %v1526 = vunpack.c.h.b16 %v496
      %v1527 = vunpack.c.l.b16 %v497
      %v1528 = vunpack.c.h.b16 %v497
      %v1529 = vunpack.c.l.b16 %v498
      %v1530 = vunpack.c.h.b16 %v498
      %v1531 = vunpack.c.l.b16 %v499
      %v1532 = vunpack.c.h.b16 %v499
      %v1533 = vunpack.c.l.b16 %v500
      %v1534 = vunpack.c.h.b16 %v500
      %v1535 = vunpack.c.l.b16 %v501
      %v1536 = vunpack.c.h.b16 %v501
      %v1537 = vunpack.c.l.b16 %v502
      %v1538 = vunpack.c.h.b16 %v502
      %v1539 = vunpack.c.l.b16 %v503
      %v1540 = vunpack.c.h.b16 %v503
      %v1541 = vunpack.c.l.b16 %v504
      %v1542 = vunpack.c.h.b16 %v504
      %v1543 = vunpack.c.l.b16 %v505
      %v1544 = vunpack.c.h.b16 %v505
      %v1545 = vunpack.c.l.b16 %v506
      %v1546 = vunpack.c.h.b16 %v506
      %v1547 = vunpack.c.l.b16 %v507
      %v1548 = vunpack.c.h.b16 %v507
      %v1549 = vunpack.c.l.b16 %v508
      %v1550 = vunpack.c.h.b16 %v508
      %v1551 = vunpack.c.l.b16 %v509
      %v1552 = vunpack.c.h.b16 %v509
      %v1553 = vunpack.c.l.b16 %v510
      %v1554 = vunpack.c.h.b16 %v510
      %v1555 = vunpack.c.l.b16 %v511
      %v1556 = vunpack.c.h.b16 %v511
      %v1557 = vunpack.c.l.b16 %v512
      %v1558 = vunpack.c.h.b16 %v512
      %v1559 = vunpack.c.l.b16 %v513
      %v1560 = vunpack.c.h.b16 %v513
      %v1561 = vunpack.c.l.b16 %v514
      %v1562 = vunpack.c.h.b16 %v514
      %v1563 = vunpack.c.l.b16 %v515
      %v1564 = vunpack.c.h.b16 %v515
      %v1565 = vunpack.c.l.b16 %v516
      %v1566 = vunpack.c.h.b16 %v516
      %v1567 = vunpack.c.l.b16 %v517
      %v1568 = vunpack.c.h.b16 %v517
      %v1569 = vunpack.c.l.b16 %v518
      %v1570 = vunpack.c.h.b16 %v518
      %v1571 = vunpack.c.l.b16 %v519
      %v1572 = vunpack.c.h.b16 %v519
      %v1573 = vunpack.c.l.b16 %v520
      %v1574 = vunpack.c.h.b16 %v520
      %v1575 = vunpack.c.l.b16 %v521
      %v1576 = vunpack.c.h.b16 %v521
      %v1577 = vunpack.c.l.b16 %v522
      %v1578 = vunpack.c.h.b16 %v522
      %v1579 = vpack.c.b16 %v949, %v879
      %v1580 = vpack.c.b16 %v950, %v880
      %v1581 = vpack.c.b16 %v951, %v881
      %v1582 = vpack.c.b16 %v952, %v882
      %v1583 = vpack.c.b16 %v953, %v883
      %v1584 = vpack.c.b16 %v954, %v884
      %v1585 = vpack.c.b16 %v955, %v885
      %v1586 = vpack.c.b16 %v956, %v886
      %v1587 = vpack.c.b16 %v957, %v887
      %v1588 = vpack.c.b16 %v958, %v888
      %v1589 = vpack.c.b16 %v959, %v889
      %v1590 = vpack.c.b16 %v960, %v890
      %v1591 = vpack.c.b16 %v961, %v891
      %v1592 = vpack.c.b16 %v962, %v892
      %v1593 = vpack.c.b16 %v963, %v893
      %v1594 = vpack.c.b16 %v964, %v894
      %v1595 = vpack.c.b16 %v965, %v895
      %v1596 = vpack.c.b16 %v966, %v896
      %v1597 = vpack.c.b16 %v967, %v897
      %v1598 = vpack.c.b16 %v968, %v898
      %v1599 = vpack.c.b16 %v969, %v899
      %v1600 = vpack.c.b16 %v970, %v900
      %v1601 = vpack.c.b16 %v971, %v901
      %v1602 = vpack.c.b16 %v972, %v902
      %v1603 = vpack.c.b16 %v973, %v903
      %v1604 = vpack.c.b16 %v974, %v904
      %v1605 = vpack.c.b16 %v975, %v905
      %v1606 = vpack.c.b16 %v976, %v906
      %v1607 = vpack.c.b16 %v977, %v907
      %v1608 = vpack.c.b16 %v978, %v908
      %v1609 = vpack.c.b16 %v979, %v909
      %v1610 = vpack.c.b16 %v980, %v910
      %v1611 = vpack.c.b16 %v981, %v911
      %v1612 = vpack.c.b16 %v982, %v912
      %v1613 = vpack.c.b16 %v983, %v913
      %v1614 = vpack.c.b16 %v984, %v914
      %v1615 = vpack.c.b16 %v985, %v915
      %v1616 = vpack.c.b16 %v986, %v916
      %v1617 = vpack.c.b16 %v987, %v917
      %v1618 = vpack.c.b16 %v988, %v918
      %v1619 = vpack.c.b16 %v989, %v919
      %v1620 = vpack.c.b16 %v990, %v920
      %v1621 = vpack.c.b16 %v991, %v921
      %v1622 = vpack.c.b16 %v992, %v922
      %v1623 = vpack.c.b16 %v993, %v923
      %v1624 = vpack.c.b16 %v994, %v924
      %v1625 = vpack.c.b16 %v995, %v925
      %v1626 = vpack.c.b16 %v996, %v926
      %v1627 = vpack.c.b16 %v997, %v927
      %v1628 = vpack.c.b16 %v998, %v928
      %v1629 = vpack.c.b16 %v999, %v929
      %v1630 = vpack.c.b16 %v1000, %v930
      %v1631 = vpack.c.b16 %v1001, %v931
      %v1632 = vpack.c.b16 %v1002, %v932
      %v1633 = vpack.c.b16 %v1003, %v933
      %v1634 = vpack.c.b16 %v1004, %v934
      %v1635 = vpack.c.b16 %v1005, %v935
      %v1636 = vpack.c.b16 %v1006, %v936
      %v1637 = vpack.c.b16 %v1007, %v937
      %v1638 = vpack.c.b16 %v1008, %v938
      %v1639 = vpack.c.b16 %v1009, %v939
      %v1640 = vpack.c.b16 %v1010, %v940
      %v1641 = vpack.c.b16 %v1011, %v941
      %v1642 = vpack.c.b16 %v1012, %v942
      %v1643 = vpack.c.b16 %v1013, %v943
      %v1644 = vpack.c.b16 %v1014, %v944
      %v1645 = vpack.c.b16 %v1015, %v945
      %v1646 = vpack.c.b16 %v1016, %v946
      %v1647 = vpack.c.b16 %v1017, %v947
      %v1648 = vpack.c.b16 %v1018, %v948
      %v1649 = vpack.c.b16 %v1089, %v1019
      %v1650 = vpack.c.b16 %v1090, %v1020
      %v1651 = vpack.c.b16 %v1091, %v1021
      %v1652 = vpack.c.b16 %v1092, %v1022
      %v1653 = vpack.c.b16 %v1093, %v1023
      %v1654 = vpack.c.b16 %v1094, %v1024
      %v1655 = vpack.c.b16 %v1095, %v1025
      %v1656 = vpack.c.b16 %v1096, %v1026
      %v1657 = vpack.c.b16 %v1097, %v1027
      %v1658 = vpack.c.b16 %v1098, %v1028
      %v1659 = vpack.c.b16 %v1099, %v1029
      %v1660 = vpack.c.b16 %v1100, %v1030
      %v1661 = vpack.c.b16 %v1101, %v1031
      %v1662 = vpack.c.b16 %v1102, %v1032
      %v1663 = vpack.c.b16 %v1103, %v1033
      %v1664 = vpack.c.b16 %v1104, %v1034
      %v1665 = vpack.c.b16 %v1105, %v1035
      %v1666 = vpack.c.b16 %v1106, %v1036
      %v1667 = vpack.c.b16 %v1107, %v1037
      %v1668 = vpack.c.b16 %v1108, %v1038
      %v1669 = vpack.c.b16 %v1109, %v1039
      %v1670 = vpack.c.b16 %v1110, %v1040
      %v1671 = vpack.c.b16 %v1111, %v1041
      %v1672 = vpack.c.b16 %v1112, %v1042
      %v1673 = vpack.c.b16 %v1113, %v1043
      %v1674 = vpack.c.b16 %v1114, %v1044
      %v1675 = vpack.c.b16 %v1115, %v1045
      %v1676 = vpack.c.b16 %v1116, %v1046
      %v1677 = vpack.c.b16 %v1117, %v1047
      %v1678 = vpack.c.b16 %v1118, %v1048
      %v1679 = vpack.c.b16 %v1119, %v1049
      %v1680 = vpack.c.b16 %v1120, %v1050
      %v1681 = vpack.c.b16 %v1121, %v1051
      %v1682 = vpack.c.b16 %v1122, %v1052
      %v1683 = vpack.c.b16 %v1123, %v1053
      %v1684 = vpack.c.b16 %v1124, %v1054
      %v1685 = vpack.c.b16 %v1125, %v1055
      %v1686 = vpack.c.b16 %v1126, %v1056
      %v1687 = vpack.c.b16 %v1127, %v1057
      %v1688 = vpack.c.b16 %v1128, %v1058
      %v1689 = vpack.c.b16 %v1129, %v1059
      %v1690 = vpack.c.b16 %v1130, %v1060
      %v1691 = vpack.c.b16 %v1131, %v1061
      %v1692 = vpack.c.b16 %v1132, %v1062
      %v1693 = vpack.c.b16 %v1133, %v1063
      %v1694 = vpack.c.b16 %v1134, %v1064
      %v1695 = vpack.c.b16 %v1135, %v1065
      %v1696 = vpack.c.b16 %v1136, %v1066
      %v1697 = vpack.c.b16 %v1137, %v1067
      %v1698 = vpack.c.b16 %v1138, %v1068
      %v1699 = vpack.c.b16 %v1139, %v1069
      %v1700 = vpack.c.b16 %v1140, %v1070
      %v1701 = vpack.c.b16 %v1141, %v1071
      %v1702 = vpack.c.b16 %v1142, %v1072
      %v1703 = vpack.c.b16 %v1143, %v1073
      %v1704 = vpack.c.b16 %v1144, %v1074
      %v1705 = vpack.c.b16 %v1145, %v1075
      %v1706 = vpack.c.b16 %v1146, %v1076
      %v1707 = vpack.c.b16 %v1147, %v1077
      %v1708 = vpack.c.b16 %v1148, %v1078
      %v1709 = vpack.c.b16 %v1149, %v1079
      %v1710 = vpack.c.b16 %v1150, %v1080
      %v1711 = vpack.c.b16 %v1151, %v1081
      %v1712 = vpack.c.b16 %v1152, %v1082
      %v1713 = vpack.c.b16 %v1153, %v1083
      %v1714 = vpack.c.b16 %v1154, %v1084
      %v1715 = vpack.c.b16 %v1155, %v1085
      %v1716 = vpack.c.b16 %v1156, %v1086
      %v1717 = vpack.c.b16 %v1157, %v1087
      %v1718 = vpack.c.b16 %v1158, %v1088
      %v1719 = vpack.c.b16 %v1229, %v1159
      %v1720 = vpack.c.b16 %v1230, %v1160
      %v1721 = vpack.c.b16 %v1231, %v1161
      %v1722 = vpack.c.b16 %v1232, %v1162
      %v1723 = vpack.c.b16 %v1233, %v1163
      %v1724 = vpack.c.b16 %v1234, %v1164
      %v1725 = vpack.c.b16 %v1235, %v1165
      %v1726 = vpack.c.b16 %v1236, %v1166
      %v1727 = vpack.c.b16 %v1237, %v1167
      %v1728 = vpack.c.b16 %v1238, %v1168
      %v1729 = vpack.c.b16 %v1239, %v1169
      %v1730 = vpack.c.b16 %v1240, %v1170
      %v1731 = vpack.c.b16 %v1241, %v1171
      %v1732 = vpack.c.b16 %v1242, %v1172
      %v1733 = vpack.c.b16 %v1243, %v1173
      %v1734 = vpack.c.b16 %v1244, %v1174
      %v1735 = vpack.c.b16 %v1245, %v1175
      %v1736 = vpack.c.b16 %v1246, %v1176
      %v1737 = vpack.c.b16 %v1247, %v1177
      %v1738 = vpack.c.b16 %v1248, %v1178
      %v1739 = vpack.c.b16 %v1249, %v1179
      %v1740 = vpack.c.b16 %v1250, %v1180
      %v1741 = vpack.c.b16 %v1251, %v1181
      %v1742 = vpack.c.b16 %v1252, %v1182
      %v1743 = vpack.c.b16 %v1253, %v1183
      %v1744 = vpack.c.b16 %v1254, %v1184
      %v1745 = vpack.c.b16 %v1255, %v1185
      %v1746 = vpack.c.b16 %v1256, %v1186
      %v1747 = vpack.c.b16 %v1257, %v1187
      %v1748 = vpack.c.b16 %v1258, %v1188
      %v1749 = vpack.c.b16 %v1259, %v1189
      %v1750 = vpack.c.b16 %v1260, %v1190
      %v1751 = vpack.c.b16 %v1261, %v1191
      %v1752 = vpack.c.b16 %v1262, %v1192
      %v1753 = vpack.c.b16 %v1263, %v1193
      %v1754 = vpack.c.b16 %v1264, %v1194
      %v1755 = vpack.c.b16 %v1265, %v1195
      %v1756 = vpack.c.b16 %v1266, %v1196
      %v1757 = vpack.c.b16 %v1267, %v1197
      %v1758 = vpack.c.b16 %v1268, %v1198
      %v1759 = vpack.c.b16 %v1269, %v1199
      %v1760 = vpack.c.b16 %v1270, %v1200
      %v1761 = vpack.c.b16 %v1271, %v1201
      %v1762 = vpack.c.b16 %v1272, %v1202
      %v1763 = vpack.c.b16 %v1273, %v1203
      %v1764 = vpack.c.b16 %v1274, %v1204
      %v1765 = vpack.c.b16 %v1275, %v1205
      %v1766 = vpack.c.b16 %v1276, %v1206
      %v1767 = vpack.c.b16 %v1277, %v1207
      %v1768 = vpack.c.b16 %v1278, %v1208
      %v1769 = vpack.c.b16 %v1279, %v1209
      %v1770 = vpack.c.b16 %v1280, %v1210
      %v1771 = vpack.c.b16 %v1281, %v1211
      %v1772 = vpack.c.b16 %v1282, %v1212
      %v1773 = vpack.c.b16 %v1283, %v1213
      %v1774 = vpack.c.b16 %v1284, %v1214
      %v1775 = vpack.c.b16 %v1285, %v1215
      %v1776 = vpack.c.b16 %v1286, %v1216
      %v1777 = vpack.c.b16 %v1287, %v1217
      %v1778 = vpack.c.b16 %v1288, %v1218
      %v1779 = vpack.c.b16 %v1289, %v1219
      %v1780 = vpack.c.b16 %v1290, %v1220
      %v1781 = vpack.c.b16 %v1291, %v1221
      %v1782 = vpack.c.b16 %v1292, %v1222
      %v1783 = vpack.c.b16 %v1293, %v1223
      %v1784 = vpack.c.b16 %v1294, %v1224
      %v1785 = vpack.c.b16 %v1295, %v1225
      %v1786 = vpack.c.b16 %v1296, %v1226
      %v1787 = vpack.c.b16 %v1297, %v1227
      %v1788 = vpack.c.b16 %v1298, %v1228
      %v1789 = vpack.c.b16 %v1369, %v1299
      %v1790 = vpack.c.b16 %v1370, %v1300
      %v1791 = vpack.c.b16 %v1371, %v1301
      %v1792 = vpack.c.b16 %v1372, %v1302
      %v1793 = vpack.c.b16 %v1373, %v1303
      %v1794 = vpack.c.b16 %v1374, %v1304
      %v1795 = vpack.c.b16 %v1375, %v1305
      %v1796 = vpack.c.b16 %v1376, %v1306
      %v1797 = vpack.c.b16 %v1377, %v1307
      %v1798 = vpack.c.b16 %v1378, %v1308
      %v1799 = vpack.c.b16 %v1379, %v1309
      %v1800 = vpack.c.b16 %v1380, %v1310
      %v1801 = vpack.c.b16 %v1381, %v1311
      %v1802 = vpack.c.b16 %v1382, %v1312
      %v1803 = vpack.c.b16 %v1383, %v1313
      %v1804 = vpack.c.b16 %v1384, %v1314
      %v1805 = vpack.c.b16 %v1385, %v1315
      %v1806 = vpack.c.b16 %v1386, %v1316
      %v1807 = vpack.c.b16 %v1387, %v1317
      %v1808 = vpack.c.b16 %v1388, %v1318
      %v1809 = vpack.c.b16 %v1389, %v1319
      %v1810 = vpack.c.b16 %v1390, %v1320
      %v1811 = vpack.c.b16 %v1391, %v1321
      %v1812 = vpack.c.b16 %v1392, %v1322
      %v1813 = vpack.c.b16 %v1393, %v1323
      %v1814 = vpack.c.b16 %v1394, %v1324
      %v1815 = vpack.c.b16 %v1395, %v1325
      %v1816 = vpack.c.b16 %v1396, %v1326
      %v1817 = vpack.c.b16 %v1397, %v1327
      %v1818 = vpack.c.b16 %v1398, %v1328
      %v1819 = vpack.c.b16 %v1399, %v1329
      %v1820 = vpack.c.b16 %v1400, %v1330
      %v1821 = vpack.c.b16 %v1401, %v1331
      %v1822 = vpack.c.b16 %v1402, %v1332
      %v1823 = vpack.c.b16 %v1403, %v1333
      %v1824 = vpack.c.b16 %v1404, %v1334
      %v1825 = vpack.c.b16 %v1405, %v1335
      %v1826 = vpack.c.b16 %v1406, %v1336
      %v1827 = vpack.c.b16 %v1407, %v1337
      %v1828 = vpack.c.b16 %v1408, %v1338
      %v1829 = vpack.c.b16 %v1409, %v1339
      %v1830 = vpack.c.b16 %v1410, %v1340
      %v1831 = vpack.c.b16 %v1411, %v1341
      %v1832 = vpack.c.b16 %v1412, %v1342
      %v1833 = vpack.c.b16 %v1413, %v1343
      %v1834 = vpack.c.b16 %v1414, %v1344
      %v1835 = vpack.c.b16 %v1415, %v1345
      %v1836 = vpack.c.b16 %v1416, %v1346
      %v1837 = vpack.c.b16 %v1417, %v1347
      %v1838 = vpack.c.b16 %v1418, %v1348
      %v1839 = vpack.c.b16 %v1419, %v1349
      %v1840 = vpack.c.b16 %v1420, %v1350
      %v1841 = vpack.c.b16 %v1421, %v1351
      %v1842 = vpack.c.b16 %v1422, %v1352
      %v1843 = vpack.c.b16 %v1423, %v1353
      %v1844 = vpack.c.b16 %v1424, %v1354
      %v1845 = vpack.c.b16 %v1425, %v1355
      %v1846 = vpack.c.b16 %v1426, %v1356
      %v1847 = vpack.c.b16 %v1427, %v1357
      %v1848 = vpack.c.b16 %v1428, %v1358
      %v1849 = vpack.c.b16 %v1429, %v1359
      %v1850 = vpack.c.b16 %v1430, %v1360
      %v1851 = vpack.c.b16 %v1431, %v1361
      %v1852 = vpack.c.b16 %v1432, %v1362
      %v1853 = vpack.c.b16 %v1433, %v1363
      %v1854 = vpack.c.b16 %v1434, %v1364
      %v1855 = vpack.c.b16 %v1435, %v1365
      %v1856 = vpack.c.b16 %v1436, %v1366
      %v1857 = vpack.c.b16 %v1437, %v1367
      %v1858 = vpack.c.b16 %v1438, %v1368
      %v1859 = vpack.c.b16 %v1509, %v1439
      %v1860 = vpack.c.b16 %v1510, %v1440
      %v1861 = vpack.c.b16 %v1511, %v1441
      %v1862 = vpack.c.b16 %v1512, %v1442
      %v1863 = vpack.c.b16 %v1513, %v1443
      %v1864 = vpack.c.b16 %v1514, %v1444
      %v1865 = vpack.c.b16 %v1515, %v1445
      %v1866 = vpack.c.b16 %v1516, %v1446
      %v1867 = vpack.c.b16 %v1517, %v1447
      %v1868 = vpack.c.b16 %v1518, %v1448
      %v1869 = vpack.c.b16 %v1519, %v1449
      %v1870 = vpack.c.b16 %v1520, %v1450
      %v1871 = vpack.c.b16 %v1521, %v1451
      %v1872 = vpack.c.b16 %v1522, %v1452
      %v1873 = vpack.c.b16 %v1523, %v1453
      %v1874 = vpack.c.b16 %v1524, %v1454
      %v1875 = vpack.c.b16 %v1525, %v1455
      %v1876 = vpack.c.b16 %v1526, %v1456
      %v1877 = vpack.c.b16 %v1527, %v1457
      %v1878 = vpack.c.b16 %v1528, %v1458
      %v1879 = vpack.c.b16 %v1529, %v1459
      %v1880 = vpack.c.b16 %v1530, %v1460
      %v1881 = vpack.c.b16 %v1531, %v1461
      %v1882 = vpack.c.b16 %v1532, %v1462
      %v1883 = vpack.c.b16 %v1533, %v1463
      %v1884 = vpack.c.b16 %v1534, %v1464
      %v1885 = vpack.c.b16 %v1535, %v1465
      %v1886 = vpack.c.b16 %v1536, %v1466
      %v1887 = vpack.c.b16 %v1537, %v1467
      %v1888 = vpack.c.b16 %v1538, %v1468
      %v1889 = vpack.c.b16 %v1539, %v1469
      %v1890 = vpack.c.b16 %v1540, %v1470
      %v1891 = vpack.c.b16 %v1541, %v1471
      %v1892 = vpack.c.b16 %v1542, %v1472
      %v1893 = vpack.c.b16 %v1543, %v1473
      %v1894 = vpack.c.b16 %v1544, %v1474
      %v1895 = vpack.c.b16 %v1545, %v1475
      %v1896 = vpack.c.b16 %v1546, %v1476
      %v1897 = vpack.c.b16 %v1547, %v1477
      %v1898 = vpack.c.b16 %v1548, %v1478
      %v1899 = vpack.c.b16 %v1549, %v1479
      %v1900 = vpack.c.b16 %v1550, %v1480
      %v1901 = vpack.c.b16 %v1551, %v1481
      %v1902 = vpack.c.b16 %v1552, %v1482
      %v1903 = vpack.c.b16 %v1553, %v1483
      %v1904 = vpack.c.b16 %v1554, %v1484
      %v1905 = vpack.c.b16 %v1555, %v1485
      %v1906 = vpack.c.b16 %v1556, %v1486
      %v1907 = vpack.c.b16 %v1557, %v1487
      %v1908 = vpack.c.b16 %v1558, %v1488
      %v1909 = vpack.c.b16 %v1559, %v1489
      %v1910 = vpack.c.b16 %v1560, %v1490
      %v1911 = vpack.c.b16 %v1561, %v1491
      %v1912 = vpack.c.b16 %v1562, %v1492
      %v1913 = vpack.c.b16 %v1563, %v1493
      %v1914 = vpack.c.b16 %v1564, %v1494
      %v1915 = vpack.c.b16 %v1565, %v1495
      %v1916 = vpack.c.b16 %v1566, %v1496
      %v1917 = vpack.c.b16 %v1567, %v1497
      %v1918 = vpack.c.b16 %v1568, %v1498
      %v1919 = vpack.c.b16 %v1569, %v1499
      %v1920 = vpack.c.b16 %v1570, %v1500
      %v1921 = vpack.c.b16 %v1571, %v1501
      %v1922 = vpack.c.b16 %v1572, %v1502
      %v1923 = vpack.c.b16 %v1573, %v1503
      %v1924 = vpack.c.b16 %v1574, %v1504
      %v1925 = vpack.c.b16 %v1575, %v1505
      %v1926 = vpack.c.b16 %v1576, %v1506
      %v1927 = vpack.c.b16 %v1577, %v1507
      %v1928 = vpack.c.b16 %v1578, %v1508
      %vm2209 = vcmask 613376
      %v2211 = vsel %vm2209, %v172, 0
      %vm2213 = vcmask 1044480
      %vm2214 = vcmask 1045504
      %v2215 = vsel %vm2213, 4294967295, 65535
      %v2216 = vsel %vm2214, %v2215, 0
      %v2218 = vand.u32 %v1859, %v2216
      %v2221 = vand.u32 %v1860, %v2216
      %v2224 = vand.u32 %v1861, %v2216
      %v2227 = vand.u32 %v1862, %v2216
      %v2230 = vand.u32 %v1863, %v2216
      %v2233 = vand.u32 %v1864, %v2216
      %v2236 = vand.u32 %v1865, %v2216
      %v2239 = vand.u32 %v1866, %v2216
      %v2242 = vand.u32 %v1867, %v2216
      %v2245 = vand.u32 %v1868, %v2216
      %v2248 = vand.u32 %v1869, %v2216
      %v2251 = vand.u32 %v1870, %v2216
      %v2254 = vand.u32 %v1871, %v2216
      %v2257 = vand.u32 %v1872, %v2216
      %v2260 = vand.u32 %v1873, %v2216
      %v2263 = vand.u32 %v1874, %v2216
      %v2266 = vand.u32 %v1875, %v2216
      %v2269 = vand.u32 %v1876, %v2216
      %v2272 = vand.u32 %v1877, %v2216
      %v2275 = vand.u32 %v1878, %v2216
      %v2278 = vand.u32 %v1879, %v2216
      %v2281 = vand.u32 %v1880, %v2216
      %v2284 = vand.u32 %v1881, %v2216
      %v2287 = vand.u32 %v1882, %v2216
      %v2290 = vand.u32 %v1883, %v2216
      %v2293 = vand.u32 %v1884, %v2216
      %v2296 = vand.u32 %v1885, %v2216
      %v2299 = vand.u32 %v1886, %v2216
      %v2302 = vand.u32 %v1887, %v2216
      %v2305 = vand.u32 %v1888, %v2216
      %v2308 = vand.u32 %v1889, %v2216
      %v2311 = vand.u32 %v1890, %v2216
      %v2314 = vand.u32 %v1891, %v2216
      %v2317 = vand.u32 %v1892, %v2216
      %v2320 = vand.u32 %v1893, %v2216
      %v2323 = vand.u32 %v1894, %v2216
      %v2326 = vand.u32 %v1895, %v2216
      %v2329 = vand.u32 %v1896, %v2216
      %v2332 = vand.u32 %v1897, %v2216
      %v2335 = vand.u32 %v1898, %v2216
      %v2338 = vand.u32 %v1899, %v2216
      %v2341 = vand.u32 %v1900, %v2216
      %v2344 = vand.u32 %v1901, %v2216
      %v2347 = vand.u32 %v1902, %v2216
      %v2350 = vand.u32 %v1903, %v2216
      %v2353 = vand.u32 %v1904, %v2216
      %v2356 = vand.u32 %v1905, %v2216
      %v2359 = vand.u32 %v1906, %v2216
      %v2362 = vand.u32 %v1907, %v2216
      %v2365 = vand.u32 %v1908, %v2216
      %v2368 = vand.u32 %v1909, %v2216
      %v2371 = vand.u32 %v1910, %v2216
      %v2374 = vand.u32 %v1911, %v2216
      %v2377 = vand.u32 %v1912, %v2216
      %v2380 = vand.u32 %v1913, %v2216
      %v2383 = vand.u32 %v1914, %v2216
      %v2386 = vand.u32 %v1915, %v2216
      %v2389 = vand.u32 %v1916, %v2216
      %v2392 = vand.u32 %v1917, %v2216
      %v2395 = vand.u32 %v1918, %v2216
      %v2398 = vand.u32 %v1919, %v2216
      %v2401 = vand.u32 %v1920, %v2216
      %v2404 = vand.u32 %v1921, %v2216
      %v2407 = vand.u32 %v1922, %v2216
      %v2410 = vand.u32 %v1923, %v2216
      %v2413 = vand.u32 %v1924, %v2216
      %v2416 = vand.u32 %v1925, %v2216
      %v2419 = vand.u32 %v1926, %v2216
      %v2422 = vand.u32 %v1927, %v2216
      %v2425 = vand.u32 %v1928, %v2216
      %2427 = vmatpush.bf16.msra.mxu0 0
      %2428 = vmatpush.bf16.msra.mxu0 0
      %2429 = vmatpush.bf16.msra.mxu0 0
      %2430 = vmatpush.bf16.msra.mxu0 %v2218
      %2431 = vmatpush.bf16.msra.mxu0 %v1789
      %2432 = vmatpush.bf16.msra.mxu0 %v1719
      %2433 = vmatpush.bf16.msra.mxu0 %v1649
      %2434 = vmatpush.bf16.msra.mxu0 %v1579
      %2435 = vmatmul.bf16.gmra.mxu0 %v2211
      %v2436 = vpop.f32.mrf.mxu0
      %v2437 = vadd.f32 %v527, %v2436
      %v2438 = vpop.f32.mrf.mxu0
      %2439 = vdwg.mxu0
      %2440 = vmatpush.bf16.msra.mxu0 0
      %2441 = vmatpush.bf16.msra.mxu0 0
      %2442 = vmatpush.bf16.msra.mxu0 0
      %2443 = vmatpush.bf16.msra.mxu0 %v2221
      %2444 = vmatpush.bf16.msra.mxu0 %v1790
      %2445 = vmatpush.bf16.msra.mxu0 %v1720
      %2446 = vmatpush.bf16.msra.mxu0 %v1650
      %2447 = vmatpush.bf16.msra.mxu0 %v1580
      %2448 = vmatmul.bf16.gmra.mxu0 %v2211
      %v2449 = vpop.f32.mrf.mxu0
      %v2450 = vadd.f32 %v527, %v2449
      %v2451 = vpop.f32.mrf.mxu0
      %2452 = vdwg.mxu0
      %2453 = vmatpush.bf16.msra.mxu0 0
      %2454 = vmatpush.bf16.msra.mxu0 0
      %2455 = vmatpush.bf16.msra.mxu0 0
      %2456 = vmatpush.bf16.msra.mxu0 %v2224
      %2457 = vmatpush.bf16.msra.mxu0 %v1791
      %2458 = vmatpush.bf16.msra.mxu0 %v1721
      %2459 = vmatpush.bf16.msra.mxu0 %v1651
      %2460 = vmatpush.bf16.msra.mxu0 %v1581
      %2461 = vmatmul.bf16.gmra.mxu0 %v2211
      %v2462 = vpop.f32.mrf.mxu0
      %v2463 = vadd.f32 %v527, %v2462
      %v2464 = vpop.f32.mrf.mxu0
      %2465 = vdwg.mxu0
      %2466 = vmatpush.bf16.msra.mxu0 0
      %2467 = vmatpush.bf16.msra.mxu0 0
      %2468 = vmatpush.bf16.msra.mxu0 0
      %2469 = vmatpush.bf16.msra.mxu0 %v2227
      %2470 = vmatpush.bf16.msra.mxu0 %v1792
      %2471 = vmatpush.bf16.msra.mxu0 %v1722
      %2472 = vmatpush.bf16.msra.mxu0 %v1652
      %2473 = vmatpush.bf16.msra.mxu0 %v1582
      %2474 = vmatmul.bf16.gmra.mxu0 %v2211
      %v2475 = vpop.f32.mrf.mxu0
      %v2476 = vadd.f32 %v527, %v2475
      %v2477 = vpop.f32.mrf.mxu0
      %2478 = vdwg.mxu0
      %2479 = vmatpush.bf16.msra.mxu0 0
      %2480 = vmatpush.bf16.msra.mxu0 0
      %2481 = vmatpush.bf16.msra.mxu0 0
      %2482 = vmatpush.bf16.msra.mxu0 %v2230
      %2483 = vmatpush.bf16.msra.mxu0 %v1793
      %2484 = vmatpush.bf16.msra.mxu0 %v1723
      %2485 = vmatpush.bf16.msra.mxu0 %v1653
      %2486 = vmatpush.bf16.msra.mxu0 %v1583
      %2487 = vmatmul.bf16.gmra.mxu0 %v2211
      %v2488 = vpop.f32.mrf.mxu0
      %v2489 = vadd.f32 %v527, %v2488
      %v2490 = vpop.f32.mrf.mxu0
      %2491 = vdwg.mxu0
      %2492 = vmatpush.bf16.msra.mxu0 0
      %2493 = vmatpush.bf16.msra.mxu0 0
      %2494 = vmatpush.bf16.msra.mxu0 0
      %2495 = vmatpush.bf16.msra.mxu0 %v2233
      %2496 = vmatpush.bf16.msra.mxu0 %v1794
      %2497 = vmatpush.bf16.msra.mxu0 %v1724
      %2498 = vmatpush.bf16.msra.mxu0 %v1654
      %2499 = vmatpush.bf16.msra.mxu0 %v1584
      %2500 = vmatmul.bf16.gmra.mxu0 %v2211
      %v2501 = vpop.f32.mrf.mxu0
      %v2502 = vadd.f32 %v527, %v2501
      %v2503 = vpop.f32.mrf.mxu0
      %2504 = vdwg.mxu0
      %2505 = vmatpush.bf16.msra.mxu0 0
      %2506 = vmatpush.bf16.msra.mxu0 0
      %2507 = vmatpush.bf16.msra.mxu0 0
      %2508 = vmatpush.bf16.msra.mxu0 %v2236
      %2509 = vmatpush.bf16.msra.mxu0 %v1795
      %2510 = vmatpush.bf16.msra.mxu0 %v1725
      %2511 = vmatpush.bf16.msra.mxu0 %v1655
      %2512 = vmatpush.bf16.msra.mxu0 %v1585
      %2513 = vmatmul.bf16.gmra.mxu0 %v2211
      %v2514 = vpop.f32.mrf.mxu0
      %v2515 = vadd.f32 %v527, %v2514
      %v2516 = vpop.f32.mrf.mxu0
      %2517 = vdwg.mxu0
      %2518 = vmatpush.bf16.msra.mxu0 0
      %2519 = vmatpush.bf16.msra.mxu0 0
      %2520 = vmatpush.bf16.msra.mxu0 0
      %2521 = vmatpush.bf16.msra.mxu0 %v2239
      %2522 = vmatpush.bf16.msra.mxu0 %v1796
      %2523 = vmatpush.bf16.msra.mxu0 %v1726
      %2524 = vmatpush.bf16.msra.mxu0 %v1656
      %2525 = vmatpush.bf16.msra.mxu0 %v1586
      %2526 = vmatmul.bf16.gmra.mxu0 %v2211
      %v2527 = vpop.f32.mrf.mxu0
      %v2528 = vadd.f32 %v527, %v2527
      %v2529 = vpop.f32.mrf.mxu0
      %2530 = vdwg.mxu0
      %2531 = vmatpush.bf16.msra.mxu0 0
      %2532 = vmatpush.bf16.msra.mxu0 0
      %2533 = vmatpush.bf16.msra.mxu0 0
      %2534 = vmatpush.bf16.msra.mxu0 %v2242
      %2535 = vmatpush.bf16.msra.mxu0 %v1797
      %2536 = vmatpush.bf16.msra.mxu0 %v1727
      %2537 = vmatpush.bf16.msra.mxu0 %v1657
      %2538 = vmatpush.bf16.msra.mxu0 %v1587
      %2539 = vmatmul.bf16.gmra.mxu0 %v2211
      %v2540 = vpop.f32.mrf.mxu0
      %v2541 = vadd.f32 %v527, %v2540
      %v2542 = vpop.f32.mrf.mxu0
      %2543 = vdwg.mxu0
      %2544 = vmatpush.bf16.msra.mxu0 0
      %2545 = vmatpush.bf16.msra.mxu0 0
      %2546 = vmatpush.bf16.msra.mxu0 0
      %2547 = vmatpush.bf16.msra.mxu0 %v2245
      %2548 = vmatpush.bf16.msra.mxu0 %v1798
      %2549 = vmatpush.bf16.msra.mxu0 %v1728
      %2550 = vmatpush.bf16.msra.mxu0 %v1658
      %2551 = vmatpush.bf16.msra.mxu0 %v1588
      %2552 = vmatmul.bf16.gmra.mxu0 %v2211
      %v2553 = vpop.f32.mrf.mxu0
      %v2554 = vadd.f32 %v527, %v2553
      %v2555 = vpop.f32.mrf.mxu0
      %2556 = vdwg.mxu0
      %2557 = vmatpush.bf16.msra.mxu0 0
      %2558 = vmatpush.bf16.msra.mxu0 0
      %2559 = vmatpush.bf16.msra.mxu0 0
      %2560 = vmatpush.bf16.msra.mxu0 %v2248
      %2561 = vmatpush.bf16.msra.mxu0 %v1799
      %2562 = vmatpush.bf16.msra.mxu0 %v1729
      %2563 = vmatpush.bf16.msra.mxu0 %v1659
      %2564 = vmatpush.bf16.msra.mxu0 %v1589
      %2565 = vmatmul.bf16.gmra.mxu0 %v2211
      %v2566 = vpop.f32.mrf.mxu0
      %v2567 = vadd.f32 %v527, %v2566
      %v2568 = vpop.f32.mrf.mxu0
      %2569 = vdwg.mxu0
      %2570 = vmatpush.bf16.msra.mxu0 0
      %2571 = vmatpush.bf16.msra.mxu0 0
      %2572 = vmatpush.bf16.msra.mxu0 0
      %2573 = vmatpush.bf16.msra.mxu0 %v2251
      %2574 = vmatpush.bf16.msra.mxu0 %v1800
      %2575 = vmatpush.bf16.msra.mxu0 %v1730
      %2576 = vmatpush.bf16.msra.mxu0 %v1660
      %2577 = vmatpush.bf16.msra.mxu0 %v1590
      %2578 = vmatmul.bf16.gmra.mxu0 %v2211
      %v2579 = vpop.f32.mrf.mxu0
      %v2580 = vadd.f32 %v527, %v2579
      %v2581 = vpop.f32.mrf.mxu0
      %2582 = vdwg.mxu0
      %2583 = vmatpush.bf16.msra.mxu0 0
      %2584 = vmatpush.bf16.msra.mxu0 0
      %2585 = vmatpush.bf16.msra.mxu0 0
      %2586 = vmatpush.bf16.msra.mxu0 %v2254
      %2587 = vmatpush.bf16.msra.mxu0 %v1801
      %2588 = vmatpush.bf16.msra.mxu0 %v1731
      %2589 = vmatpush.bf16.msra.mxu0 %v1661
      %2590 = vmatpush.bf16.msra.mxu0 %v1591
      %2591 = vmatmul.bf16.gmra.mxu0 %v2211
      %v2592 = vpop.f32.mrf.mxu0
      %v2593 = vadd.f32 %v527, %v2592
      %v2594 = vpop.f32.mrf.mxu0
      %2595 = vdwg.mxu0
      %2596 = vmatpush.bf16.msra.mxu0 0
      %2597 = vmatpush.bf16.msra.mxu0 0
      %2598 = vmatpush.bf16.msra.mxu0 0
      %2599 = vmatpush.bf16.msra.mxu0 %v2257
      %2600 = vmatpush.bf16.msra.mxu0 %v1802
      %2601 = vmatpush.bf16.msra.mxu0 %v1732
      %2602 = vmatpush.bf16.msra.mxu0 %v1662
      %2603 = vmatpush.bf16.msra.mxu0 %v1592
      %2604 = vmatmul.bf16.gmra.mxu0 %v2211
      %v2605 = vpop.f32.mrf.mxu0
      %v2606 = vadd.f32 %v527, %v2605
      %v2607 = vpop.f32.mrf.mxu0
      %2608 = vdwg.mxu0
      %2609 = vmatpush.bf16.msra.mxu0 0
      %2610 = vmatpush.bf16.msra.mxu0 0
      %2611 = vmatpush.bf16.msra.mxu0 0
      %2612 = vmatpush.bf16.msra.mxu0 %v2260
      %2613 = vmatpush.bf16.msra.mxu0 %v1803
      %2614 = vmatpush.bf16.msra.mxu0 %v1733
      %2615 = vmatpush.bf16.msra.mxu0 %v1663
      %2616 = vmatpush.bf16.msra.mxu0 %v1593
      %2617 = vmatmul.bf16.gmra.mxu0 %v2211
      %v2618 = vpop.f32.mrf.mxu0
      %v2619 = vadd.f32 %v527, %v2618
      %v2620 = vpop.f32.mrf.mxu0
      %2621 = vdwg.mxu0
      %2622 = vmatpush.bf16.msra.mxu0 0
      %2623 = vmatpush.bf16.msra.mxu0 0
      %2624 = vmatpush.bf16.msra.mxu0 0
      %2625 = vmatpush.bf16.msra.mxu0 %v2263
      %2626 = vmatpush.bf16.msra.mxu0 %v1804
      %2627 = vmatpush.bf16.msra.mxu0 %v1734
      %2628 = vmatpush.bf16.msra.mxu0 %v1664
      %2629 = vmatpush.bf16.msra.mxu0 %v1594
      %2630 = vmatmul.bf16.gmra.mxu0 %v2211
      %v2631 = vpop.f32.mrf.mxu0
      %v2632 = vadd.f32 %v527, %v2631
      %v2633 = vpop.f32.mrf.mxu0
      %2634 = vdwg.mxu0
      %2635 = vmatpush.bf16.msra.mxu0 0
      %2636 = vmatpush.bf16.msra.mxu0 0
      %2637 = vmatpush.bf16.msra.mxu0 0
      %2638 = vmatpush.bf16.msra.mxu0 %v2266
      %2639 = vmatpush.bf16.msra.mxu0 %v1805
      %2640 = vmatpush.bf16.msra.mxu0 %v1735
      %2641 = vmatpush.bf16.msra.mxu0 %v1665
      %2642 = vmatpush.bf16.msra.mxu0 %v1595
      %2643 = vmatmul.bf16.gmra.mxu0 %v2211
      %v2644 = vpop.f32.mrf.mxu0
      %v2645 = vadd.f32 %v527, %v2644
      %v2646 = vpop.f32.mrf.mxu0
      %2647 = vdwg.mxu0
      %2648 = vmatpush.bf16.msra.mxu0 0
      %2649 = vmatpush.bf16.msra.mxu0 0
      %2650 = vmatpush.bf16.msra.mxu0 0
      %2651 = vmatpush.bf16.msra.mxu0 %v2269
      %2652 = vmatpush.bf16.msra.mxu0 %v1806
      %2653 = vmatpush.bf16.msra.mxu0 %v1736
      %2654 = vmatpush.bf16.msra.mxu0 %v1666
      %2655 = vmatpush.bf16.msra.mxu0 %v1596
      %2656 = vmatmul.bf16.gmra.mxu0 %v2211
      %v2657 = vpop.f32.mrf.mxu0
      %v2658 = vadd.f32 %v527, %v2657
      %v2659 = vpop.f32.mrf.mxu0
      %2660 = vdwg.mxu0
      %2661 = vmatpush.bf16.msra.mxu0 0
      %2662 = vmatpush.bf16.msra.mxu0 0
      %2663 = vmatpush.bf16.msra.mxu0 0
      %2664 = vmatpush.bf16.msra.mxu0 %v2272
      %2665 = vmatpush.bf16.msra.mxu0 %v1807
      %2666 = vmatpush.bf16.msra.mxu0 %v1737
      %2667 = vmatpush.bf16.msra.mxu0 %v1667
      %2668 = vmatpush.bf16.msra.mxu0 %v1597
      %2669 = vmatmul.bf16.gmra.mxu0 %v2211
      %v2670 = vpop.f32.mrf.mxu0
      %v2671 = vadd.f32 %v527, %v2670
      %v2672 = vpop.f32.mrf.mxu0
      %2673 = vdwg.mxu0
      %2674 = vmatpush.bf16.msra.mxu0 0
      %2675 = vmatpush.bf16.msra.mxu0 0
      %2676 = vmatpush.bf16.msra.mxu0 0
      %2677 = vmatpush.bf16.msra.mxu0 %v2275
      %2678 = vmatpush.bf16.msra.mxu0 %v1808
      %2679 = vmatpush.bf16.msra.mxu0 %v1738
      %2680 = vmatpush.bf16.msra.mxu0 %v1668
      %2681 = vmatpush.bf16.msra.mxu0 %v1598
      %2682 = vmatmul.bf16.gmra.mxu0 %v2211
      %v2683 = vpop.f32.mrf.mxu0
      %v2684 = vadd.f32 %v527, %v2683
      %v2685 = vpop.f32.mrf.mxu0
      %2686 = vdwg.mxu0
      %2687 = vmatpush.bf16.msra.mxu0 0
      %2688 = vmatpush.bf16.msra.mxu0 0
      %2689 = vmatpush.bf16.msra.mxu0 0
      %2690 = vmatpush.bf16.msra.mxu0 %v2278
      %2691 = vmatpush.bf16.msra.mxu0 %v1809
      %2692 = vmatpush.bf16.msra.mxu0 %v1739
      %2693 = vmatpush.bf16.msra.mxu0 %v1669
      %2694 = vmatpush.bf16.msra.mxu0 %v1599
      %2695 = vmatmul.bf16.gmra.mxu0 %v2211
      %v2696 = vpop.f32.mrf.mxu0
      %v2697 = vadd.f32 %v527, %v2696
      %v2698 = vpop.f32.mrf.mxu0
      %2699 = vdwg.mxu0
      %2700 = vmatpush.bf16.msra.mxu0 0
      %2701 = vmatpush.bf16.msra.mxu0 0
      %2702 = vmatpush.bf16.msra.mxu0 0
      %2703 = vmatpush.bf16.msra.mxu0 %v2281
      %2704 = vmatpush.bf16.msra.mxu0 %v1810
      %2705 = vmatpush.bf16.msra.mxu0 %v1740
      %2706 = vmatpush.bf16.msra.mxu0 %v1670
      %2707 = vmatpush.bf16.msra.mxu0 %v1600
      %2708 = vmatmul.bf16.gmra.mxu0 %v2211
      %v2709 = vpop.f32.mrf.mxu0
      %v2710 = vadd.f32 %v527, %v2709
      %v2711 = vpop.f32.mrf.mxu0
      %2712 = vdwg.mxu0
      %2713 = vmatpush.bf16.msra.mxu0 0
      %2714 = vmatpush.bf16.msra.mxu0 0
      %2715 = vmatpush.bf16.msra.mxu0 0
      %2716 = vmatpush.bf16.msra.mxu0 %v2284
      %2717 = vmatpush.bf16.msra.mxu0 %v1811
      %2718 = vmatpush.bf16.msra.mxu0 %v1741
      %2719 = vmatpush.bf16.msra.mxu0 %v1671
      %2720 = vmatpush.bf16.msra.mxu0 %v1601
      %2721 = vmatmul.bf16.gmra.mxu0 %v2211
      %v2722 = vpop.f32.mrf.mxu0
      %v2723 = vadd.f32 %v527, %v2722
      %v2724 = vpop.f32.mrf.mxu0
      %2725 = vdwg.mxu0
      %2726 = vmatpush.bf16.msra.mxu0 0
      %2727 = vmatpush.bf16.msra.mxu0 0
      %2728 = vmatpush.bf16.msra.mxu0 0
      %2729 = vmatpush.bf16.msra.mxu0 %v2287
      %2730 = vmatpush.bf16.msra.mxu0 %v1812
      %2731 = vmatpush.bf16.msra.mxu0 %v1742
      %2732 = vmatpush.bf16.msra.mxu0 %v1672
      %2733 = vmatpush.bf16.msra.mxu0 %v1602
      %2734 = vmatmul.bf16.gmra.mxu0 %v2211
      %v2735 = vpop.f32.mrf.mxu0
      %v2736 = vadd.f32 %v527, %v2735
      %v2737 = vpop.f32.mrf.mxu0
      %2738 = vdwg.mxu0
      %2739 = vmatpush.bf16.msra.mxu0 0
      %2740 = vmatpush.bf16.msra.mxu0 0
      %2741 = vmatpush.bf16.msra.mxu0 0
      %2742 = vmatpush.bf16.msra.mxu0 %v2290
      %2743 = vmatpush.bf16.msra.mxu0 %v1813
      %2744 = vmatpush.bf16.msra.mxu0 %v1743
      %2745 = vmatpush.bf16.msra.mxu0 %v1673
      %2746 = vmatpush.bf16.msra.mxu0 %v1603
      %2747 = vmatmul.bf16.gmra.mxu0 %v2211
      %v2748 = vpop.f32.mrf.mxu0
      %v2749 = vadd.f32 %v527, %v2748
      %v2750 = vpop.f32.mrf.mxu0
      %2751 = vdwg.mxu0
      %2752 = vmatpush.bf16.msra.mxu0 0
      %2753 = vmatpush.bf16.msra.mxu0 0
      %2754 = vmatpush.bf16.msra.mxu0 0
      %2755 = vmatpush.bf16.msra.mxu0 %v2293
      %2756 = vmatpush.bf16.msra.mxu0 %v1814
      %2757 = vmatpush.bf16.msra.mxu0 %v1744
      %2758 = vmatpush.bf16.msra.mxu0 %v1674
      %2759 = vmatpush.bf16.msra.mxu0 %v1604
      %2760 = vmatmul.bf16.gmra.mxu0 %v2211
      %v2761 = vpop.f32.mrf.mxu0
      %v2762 = vadd.f32 %v527, %v2761
      %v2763 = vpop.f32.mrf.mxu0
      %2764 = vdwg.mxu0
      %2765 = vmatpush.bf16.msra.mxu0 0
      %2766 = vmatpush.bf16.msra.mxu0 0
      %2767 = vmatpush.bf16.msra.mxu0 0
      %2768 = vmatpush.bf16.msra.mxu0 %v2296
      %2769 = vmatpush.bf16.msra.mxu0 %v1815
      %2770 = vmatpush.bf16.msra.mxu0 %v1745
      %2771 = vmatpush.bf16.msra.mxu0 %v1675
      %2772 = vmatpush.bf16.msra.mxu0 %v1605
      %2773 = vmatmul.bf16.gmra.mxu0 %v2211
      %v2774 = vpop.f32.mrf.mxu0
      %v2775 = vadd.f32 %v527, %v2774
      %v2776 = vpop.f32.mrf.mxu0
      %2777 = vdwg.mxu0
      %2778 = vmatpush.bf16.msra.mxu0 0
      %2779 = vmatpush.bf16.msra.mxu0 0
      %2780 = vmatpush.bf16.msra.mxu0 0
      %2781 = vmatpush.bf16.msra.mxu0 %v2299
      %2782 = vmatpush.bf16.msra.mxu0 %v1816
      %2783 = vmatpush.bf16.msra.mxu0 %v1746
      %2784 = vmatpush.bf16.msra.mxu0 %v1676
      %2785 = vmatpush.bf16.msra.mxu0 %v1606
      %2786 = vmatmul.bf16.gmra.mxu0 %v2211
      %v2787 = vpop.f32.mrf.mxu0
      %v2788 = vadd.f32 %v527, %v2787
      %v2789 = vpop.f32.mrf.mxu0
      %2790 = vdwg.mxu0
      %2791 = vmatpush.bf16.msra.mxu0 0
      %2792 = vmatpush.bf16.msra.mxu0 0
      %2793 = vmatpush.bf16.msra.mxu0 0
      %2794 = vmatpush.bf16.msra.mxu0 %v2302
      %2795 = vmatpush.bf16.msra.mxu0 %v1817
      %2796 = vmatpush.bf16.msra.mxu0 %v1747
      %2797 = vmatpush.bf16.msra.mxu0 %v1677
      %2798 = vmatpush.bf16.msra.mxu0 %v1607
      %2799 = vmatmul.bf16.gmra.mxu0 %v2211
      %v2800 = vpop.f32.mrf.mxu0
      %v2801 = vadd.f32 %v527, %v2800
      %v2802 = vpop.f32.mrf.mxu0
      %2803 = vdwg.mxu0
      %2804 = vmatpush.bf16.msra.mxu0 0
      %2805 = vmatpush.bf16.msra.mxu0 0
      %2806 = vmatpush.bf16.msra.mxu0 0
      %2807 = vmatpush.bf16.msra.mxu0 %v2305
      %2808 = vmatpush.bf16.msra.mxu0 %v1818
      %2809 = vmatpush.bf16.msra.mxu0 %v1748
      %2810 = vmatpush.bf16.msra.mxu0 %v1678
      %2811 = vmatpush.bf16.msra.mxu0 %v1608
      %2812 = vmatmul.bf16.gmra.mxu0 %v2211
      %v2813 = vpop.f32.mrf.mxu0
      %v2814 = vadd.f32 %v527, %v2813
      %v2815 = vpop.f32.mrf.mxu0
      %2816 = vdwg.mxu0
      %2817 = vmatpush.bf16.msra.mxu0 0
      %2818 = vmatpush.bf16.msra.mxu0 0
      %2819 = vmatpush.bf16.msra.mxu0 0
      %2820 = vmatpush.bf16.msra.mxu0 %v2308
      %2821 = vmatpush.bf16.msra.mxu0 %v1819
      %2822 = vmatpush.bf16.msra.mxu0 %v1749
      %2823 = vmatpush.bf16.msra.mxu0 %v1679
      %2824 = vmatpush.bf16.msra.mxu0 %v1609
      %2825 = vmatmul.bf16.gmra.mxu0 %v2211
      %v2826 = vpop.f32.mrf.mxu0
      %v2827 = vadd.f32 %v527, %v2826
      %v2828 = vpop.f32.mrf.mxu0
      %2829 = vdwg.mxu0
      %2830 = vmatpush.bf16.msra.mxu0 0
      %2831 = vmatpush.bf16.msra.mxu0 0
      %2832 = vmatpush.bf16.msra.mxu0 0
      %2833 = vmatpush.bf16.msra.mxu0 %v2311
      %2834 = vmatpush.bf16.msra.mxu0 %v1820
      %2835 = vmatpush.bf16.msra.mxu0 %v1750
      %2836 = vmatpush.bf16.msra.mxu0 %v1680
      %2837 = vmatpush.bf16.msra.mxu0 %v1610
      %2838 = vmatmul.bf16.gmra.mxu0 %v2211
      %v2839 = vpop.f32.mrf.mxu0
      %v2840 = vadd.f32 %v527, %v2839
      %v2841 = vpop.f32.mrf.mxu0
      %2842 = vdwg.mxu0
      %2843 = vmatpush.bf16.msra.mxu0 0
      %2844 = vmatpush.bf16.msra.mxu0 0
      %2845 = vmatpush.bf16.msra.mxu0 0
      %2846 = vmatpush.bf16.msra.mxu0 %v2314
      %2847 = vmatpush.bf16.msra.mxu0 %v1821
      %2848 = vmatpush.bf16.msra.mxu0 %v1751
      %2849 = vmatpush.bf16.msra.mxu0 %v1681
      %2850 = vmatpush.bf16.msra.mxu0 %v1611
      %2851 = vmatmul.bf16.gmra.mxu0 %v2211
      %v2852 = vpop.f32.mrf.mxu0
      %v2853 = vadd.f32 %v527, %v2852
      %v2854 = vpop.f32.mrf.mxu0
      %2855 = vdwg.mxu0
      %2856 = vmatpush.bf16.msra.mxu0 0
      %2857 = vmatpush.bf16.msra.mxu0 0
      %2858 = vmatpush.bf16.msra.mxu0 0
      %2859 = vmatpush.bf16.msra.mxu0 %v2317
      %2860 = vmatpush.bf16.msra.mxu0 %v1822
      %2861 = vmatpush.bf16.msra.mxu0 %v1752
      %2862 = vmatpush.bf16.msra.mxu0 %v1682
      %2863 = vmatpush.bf16.msra.mxu0 %v1612
      %2864 = vmatmul.bf16.gmra.mxu0 %v2211
      %v2865 = vpop.f32.mrf.mxu0
      %v2866 = vadd.f32 %v527, %v2865
      %v2867 = vpop.f32.mrf.mxu0
      %2868 = vdwg.mxu0
      %2869 = vmatpush.bf16.msra.mxu0 0
      %2870 = vmatpush.bf16.msra.mxu0 0
      %2871 = vmatpush.bf16.msra.mxu0 0
      %2872 = vmatpush.bf16.msra.mxu0 %v2320
      %2873 = vmatpush.bf16.msra.mxu0 %v1823
      %2874 = vmatpush.bf16.msra.mxu0 %v1753
      %2875 = vmatpush.bf16.msra.mxu0 %v1683
      %2876 = vmatpush.bf16.msra.mxu0 %v1613
      %2877 = vmatmul.bf16.gmra.mxu0 %v2211
      %v2878 = vpop.f32.mrf.mxu0
      %v2879 = vadd.f32 %v527, %v2878
      %v2880 = vpop.f32.mrf.mxu0
      %2881 = vdwg.mxu0
      %2882 = vmatpush.bf16.msra.mxu0 0
      %2883 = vmatpush.bf16.msra.mxu0 0
      %2884 = vmatpush.bf16.msra.mxu0 0
      %2885 = vmatpush.bf16.msra.mxu0 %v2323
      %2886 = vmatpush.bf16.msra.mxu0 %v1824
      %2887 = vmatpush.bf16.msra.mxu0 %v1754
      %2888 = vmatpush.bf16.msra.mxu0 %v1684
      %2889 = vmatpush.bf16.msra.mxu0 %v1614
      %2890 = vmatmul.bf16.gmra.mxu0 %v2211
      %v2891 = vpop.f32.mrf.mxu0
      %v2892 = vadd.f32 %v527, %v2891
      %v2893 = vpop.f32.mrf.mxu0
      %2894 = vdwg.mxu0
      %2895 = vmatpush.bf16.msra.mxu0 0
      %2896 = vmatpush.bf16.msra.mxu0 0
      %2897 = vmatpush.bf16.msra.mxu0 0
      %2898 = vmatpush.bf16.msra.mxu0 %v2326
      %2899 = vmatpush.bf16.msra.mxu0 %v1825
      %2900 = vmatpush.bf16.msra.mxu0 %v1755
      %2901 = vmatpush.bf16.msra.mxu0 %v1685
      %2902 = vmatpush.bf16.msra.mxu0 %v1615
      %2903 = vmatmul.bf16.gmra.mxu0 %v2211
      %v2904 = vpop.f32.mrf.mxu0
      %v2905 = vadd.f32 %v527, %v2904
      %v2906 = vpop.f32.mrf.mxu0
      %2907 = vdwg.mxu0
      %2908 = vmatpush.bf16.msra.mxu0 0
      %2909 = vmatpush.bf16.msra.mxu0 0
      %2910 = vmatpush.bf16.msra.mxu0 0
      %2911 = vmatpush.bf16.msra.mxu0 %v2329
      %2912 = vmatpush.bf16.msra.mxu0 %v1826
      %2913 = vmatpush.bf16.msra.mxu0 %v1756
      %2914 = vmatpush.bf16.msra.mxu0 %v1686
      %2915 = vmatpush.bf16.msra.mxu0 %v1616
      %2916 = vmatmul.bf16.gmra.mxu0 %v2211
      %v2917 = vpop.f32.mrf.mxu0
      %v2918 = vadd.f32 %v527, %v2917
      %v2919 = vpop.f32.mrf.mxu0
      %2920 = vdwg.mxu0
      %2921 = vmatpush.bf16.msra.mxu0 0
      %2922 = vmatpush.bf16.msra.mxu0 0
      %2923 = vmatpush.bf16.msra.mxu0 0
      %2924 = vmatpush.bf16.msra.mxu0 %v2332
      %2925 = vmatpush.bf16.msra.mxu0 %v1827
      %2926 = vmatpush.bf16.msra.mxu0 %v1757
      %2927 = vmatpush.bf16.msra.mxu0 %v1687
      %2928 = vmatpush.bf16.msra.mxu0 %v1617
      %2929 = vmatmul.bf16.gmra.mxu0 %v2211
      %v2930 = vpop.f32.mrf.mxu0
      %v2931 = vadd.f32 %v527, %v2930
      %v2932 = vpop.f32.mrf.mxu0
      %2933 = vdwg.mxu0
      %2934 = vmatpush.bf16.msra.mxu0 0
      %2935 = vmatpush.bf16.msra.mxu0 0
      %2936 = vmatpush.bf16.msra.mxu0 0
      %2937 = vmatpush.bf16.msra.mxu0 %v2335
      %2938 = vmatpush.bf16.msra.mxu0 %v1828
      %2939 = vmatpush.bf16.msra.mxu0 %v1758
      %2940 = vmatpush.bf16.msra.mxu0 %v1688
      %2941 = vmatpush.bf16.msra.mxu0 %v1618
      %2942 = vmatmul.bf16.gmra.mxu0 %v2211
      %v2943 = vpop.f32.mrf.mxu0
      %v2944 = vadd.f32 %v527, %v2943
      %v2945 = vpop.f32.mrf.mxu0
      %2946 = vdwg.mxu0
      %2947 = vmatpush.bf16.msra.mxu0 0
      %2948 = vmatpush.bf16.msra.mxu0 0
      %2949 = vmatpush.bf16.msra.mxu0 0
      %2950 = vmatpush.bf16.msra.mxu0 %v2338
      %2951 = vmatpush.bf16.msra.mxu0 %v1829
      %2952 = vmatpush.bf16.msra.mxu0 %v1759
      %2953 = vmatpush.bf16.msra.mxu0 %v1689
      %2954 = vmatpush.bf16.msra.mxu0 %v1619
      %2955 = vmatmul.bf16.gmra.mxu0 %v2211
      %v2956 = vpop.f32.mrf.mxu0
      %v2957 = vadd.f32 %v527, %v2956
      %v2958 = vpop.f32.mrf.mxu0
      %2959 = vdwg.mxu0
      %2960 = vmatpush.bf16.msra.mxu0 0
      %2961 = vmatpush.bf16.msra.mxu0 0
      %2962 = vmatpush.bf16.msra.mxu0 0
      %2963 = vmatpush.bf16.msra.mxu0 %v2341
      %2964 = vmatpush.bf16.msra.mxu0 %v1830
      %2965 = vmatpush.bf16.msra.mxu0 %v1760
      %2966 = vmatpush.bf16.msra.mxu0 %v1690
      %2967 = vmatpush.bf16.msra.mxu0 %v1620
      %2968 = vmatmul.bf16.gmra.mxu0 %v2211
      %v2969 = vpop.f32.mrf.mxu0
      %v2970 = vadd.f32 %v527, %v2969
      %v2971 = vpop.f32.mrf.mxu0
      %2972 = vdwg.mxu0
      %2973 = vmatpush.bf16.msra.mxu0 0
      %2974 = vmatpush.bf16.msra.mxu0 0
      %2975 = vmatpush.bf16.msra.mxu0 0
      %2976 = vmatpush.bf16.msra.mxu0 %v2344
      %2977 = vmatpush.bf16.msra.mxu0 %v1831
      %2978 = vmatpush.bf16.msra.mxu0 %v1761
      %2979 = vmatpush.bf16.msra.mxu0 %v1691
      %2980 = vmatpush.bf16.msra.mxu0 %v1621
      %2981 = vmatmul.bf16.gmra.mxu0 %v2211
      %v2982 = vpop.f32.mrf.mxu0
      %v2983 = vadd.f32 %v527, %v2982
      %v2984 = vpop.f32.mrf.mxu0
      %2985 = vdwg.mxu0
      %2986 = vmatpush.bf16.msra.mxu0 0
      %2987 = vmatpush.bf16.msra.mxu0 0
      %2988 = vmatpush.bf16.msra.mxu0 0
      %2989 = vmatpush.bf16.msra.mxu0 %v2347
      %2990 = vmatpush.bf16.msra.mxu0 %v1832
      %2991 = vmatpush.bf16.msra.mxu0 %v1762
      %2992 = vmatpush.bf16.msra.mxu0 %v1692
      %2993 = vmatpush.bf16.msra.mxu0 %v1622
      %2994 = vmatmul.bf16.gmra.mxu0 %v2211
      %v2995 = vpop.f32.mrf.mxu0
      %v2996 = vadd.f32 %v527, %v2995
      %v2997 = vpop.f32.mrf.mxu0
      %2998 = vdwg.mxu0
      %2999 = vmatpush.bf16.msra.mxu0 0
      %3000 = vmatpush.bf16.msra.mxu0 0
      %3001 = vmatpush.bf16.msra.mxu0 0
      %3002 = vmatpush.bf16.msra.mxu0 %v2350
      %3003 = vmatpush.bf16.msra.mxu0 %v1833
      %3004 = vmatpush.bf16.msra.mxu0 %v1763
      %3005 = vmatpush.bf16.msra.mxu0 %v1693
      %3006 = vmatpush.bf16.msra.mxu0 %v1623
      %3007 = vmatmul.bf16.gmra.mxu0 %v2211
      %v3008 = vpop.f32.mrf.mxu0
      %v3009 = vadd.f32 %v527, %v3008
      %v3010 = vpop.f32.mrf.mxu0
      %3011 = vdwg.mxu0
      %3012 = vmatpush.bf16.msra.mxu0 0
      %3013 = vmatpush.bf16.msra.mxu0 0
      %3014 = vmatpush.bf16.msra.mxu0 0
      %3015 = vmatpush.bf16.msra.mxu0 %v2353
      %3016 = vmatpush.bf16.msra.mxu0 %v1834
      %3017 = vmatpush.bf16.msra.mxu0 %v1764
      %3018 = vmatpush.bf16.msra.mxu0 %v1694
      %3019 = vmatpush.bf16.msra.mxu0 %v1624
      %3020 = vmatmul.bf16.gmra.mxu0 %v2211
      %v3021 = vpop.f32.mrf.mxu0
      %v3022 = vadd.f32 %v527, %v3021
      %v3023 = vpop.f32.mrf.mxu0
      %3024 = vdwg.mxu0
      %3025 = vmatpush.bf16.msra.mxu0 0
      %3026 = vmatpush.bf16.msra.mxu0 0
      %3027 = vmatpush.bf16.msra.mxu0 0
      %3028 = vmatpush.bf16.msra.mxu0 %v2356
      %3029 = vmatpush.bf16.msra.mxu0 %v1835
      %3030 = vmatpush.bf16.msra.mxu0 %v1765
      %3031 = vmatpush.bf16.msra.mxu0 %v1695
      %3032 = vmatpush.bf16.msra.mxu0 %v1625
      %3033 = vmatmul.bf16.gmra.mxu0 %v2211
      %v3034 = vpop.f32.mrf.mxu0
      %v3035 = vadd.f32 %v527, %v3034
      %v3036 = vpop.f32.mrf.mxu0
      %3037 = vdwg.mxu0
      %3038 = vmatpush.bf16.msra.mxu0 0
      %3039 = vmatpush.bf16.msra.mxu0 0
      %3040 = vmatpush.bf16.msra.mxu0 0
      %3041 = vmatpush.bf16.msra.mxu0 %v2359
      %3042 = vmatpush.bf16.msra.mxu0 %v1836
      %3043 = vmatpush.bf16.msra.mxu0 %v1766
      %3044 = vmatpush.bf16.msra.mxu0 %v1696
      %3045 = vmatpush.bf16.msra.mxu0 %v1626
      %3046 = vmatmul.bf16.gmra.mxu0 %v2211
      %v3047 = vpop.f32.mrf.mxu0
      %v3048 = vadd.f32 %v527, %v3047
      %v3049 = vpop.f32.mrf.mxu0
      %3050 = vdwg.mxu0
      %3051 = vmatpush.bf16.msra.mxu0 0
      %3052 = vmatpush.bf16.msra.mxu0 0
      %3053 = vmatpush.bf16.msra.mxu0 0
      %3054 = vmatpush.bf16.msra.mxu0 %v2362
      %3055 = vmatpush.bf16.msra.mxu0 %v1837
      %3056 = vmatpush.bf16.msra.mxu0 %v1767
      %3057 = vmatpush.bf16.msra.mxu0 %v1697
      %3058 = vmatpush.bf16.msra.mxu0 %v1627
      %3059 = vmatmul.bf16.gmra.mxu0 %v2211
      %v3060 = vpop.f32.mrf.mxu0
      %v3061 = vadd.f32 %v527, %v3060
      %v3062 = vpop.f32.mrf.mxu0
      %3063 = vdwg.mxu0
      %3064 = vmatpush.bf16.msra.mxu0 0
      %3065 = vmatpush.bf16.msra.mxu0 0
      %3066 = vmatpush.bf16.msra.mxu0 0
      %3067 = vmatpush.bf16.msra.mxu0 %v2365
      %3068 = vmatpush.bf16.msra.mxu0 %v1838
      %3069 = vmatpush.bf16.msra.mxu0 %v1768
      %3070 = vmatpush.bf16.msra.mxu0 %v1698
      %3071 = vmatpush.bf16.msra.mxu0 %v1628
      %3072 = vmatmul.bf16.gmra.mxu0 %v2211
      %v3073 = vpop.f32.mrf.mxu0
      %v3074 = vadd.f32 %v527, %v3073
      %v3075 = vpop.f32.mrf.mxu0
      %3076 = vdwg.mxu0
      %3077 = vmatpush.bf16.msra.mxu0 0
      %3078 = vmatpush.bf16.msra.mxu0 0
      %3079 = vmatpush.bf16.msra.mxu0 0
      %3080 = vmatpush.bf16.msra.mxu0 %v2368
      %3081 = vmatpush.bf16.msra.mxu0 %v1839
      %3082 = vmatpush.bf16.msra.mxu0 %v1769
      %3083 = vmatpush.bf16.msra.mxu0 %v1699
      %3084 = vmatpush.bf16.msra.mxu0 %v1629
      %3085 = vmatmul.bf16.gmra.mxu0 %v2211
      %v3086 = vpop.f32.mrf.mxu0
      %v3087 = vadd.f32 %v527, %v3086
      %v3088 = vpop.f32.mrf.mxu0
      %3089 = vdwg.mxu0
      %3090 = vmatpush.bf16.msra.mxu0 0
      %3091 = vmatpush.bf16.msra.mxu0 0
      %3092 = vmatpush.bf16.msra.mxu0 0
      %3093 = vmatpush.bf16.msra.mxu0 %v2371
      %3094 = vmatpush.bf16.msra.mxu0 %v1840
      %3095 = vmatpush.bf16.msra.mxu0 %v1770
      %3096 = vmatpush.bf16.msra.mxu0 %v1700
      %3097 = vmatpush.bf16.msra.mxu0 %v1630
      %3098 = vmatmul.bf16.gmra.mxu0 %v2211
      %v3099 = vpop.f32.mrf.mxu0
      %v3100 = vadd.f32 %v527, %v3099
      %v3101 = vpop.f32.mrf.mxu0
      %3102 = vdwg.mxu0
      %3103 = vmatpush.bf16.msra.mxu0 0
      %3104 = vmatpush.bf16.msra.mxu0 0
      %3105 = vmatpush.bf16.msra.mxu0 0
      %3106 = vmatpush.bf16.msra.mxu0 %v2374
      %3107 = vmatpush.bf16.msra.mxu0 %v1841
      %3108 = vmatpush.bf16.msra.mxu0 %v1771
      %3109 = vmatpush.bf16.msra.mxu0 %v1701
      %3110 = vmatpush.bf16.msra.mxu0 %v1631
      %3111 = vmatmul.bf16.gmra.mxu0 %v2211
      %v3112 = vpop.f32.mrf.mxu0
      %v3113 = vadd.f32 %v527, %v3112
      %v3114 = vpop.f32.mrf.mxu0
      %3115 = vdwg.mxu0
      %3116 = vmatpush.bf16.msra.mxu0 0
      %3117 = vmatpush.bf16.msra.mxu0 0
      %3118 = vmatpush.bf16.msra.mxu0 0
      %3119 = vmatpush.bf16.msra.mxu0 %v2377
      %3120 = vmatpush.bf16.msra.mxu0 %v1842
      %3121 = vmatpush.bf16.msra.mxu0 %v1772
      %3122 = vmatpush.bf16.msra.mxu0 %v1702
      %3123 = vmatpush.bf16.msra.mxu0 %v1632
      %3124 = vmatmul.bf16.gmra.mxu0 %v2211
      %v3125 = vpop.f32.mrf.mxu0
      %v3126 = vadd.f32 %v527, %v3125
      %v3127 = vpop.f32.mrf.mxu0
      %3128 = vdwg.mxu0
      %3129 = vmatpush.bf16.msra.mxu0 0
      %3130 = vmatpush.bf16.msra.mxu0 0
      %3131 = vmatpush.bf16.msra.mxu0 0
      %3132 = vmatpush.bf16.msra.mxu0 %v2380
      %3133 = vmatpush.bf16.msra.mxu0 %v1843
      %3134 = vmatpush.bf16.msra.mxu0 %v1773
      %3135 = vmatpush.bf16.msra.mxu0 %v1703
      %3136 = vmatpush.bf16.msra.mxu0 %v1633
      %3137 = vmatmul.bf16.gmra.mxu0 %v2211
      %v3138 = vpop.f32.mrf.mxu0
      %v3139 = vadd.f32 %v527, %v3138
      %v3140 = vpop.f32.mrf.mxu0
      %3141 = vdwg.mxu0
      %3142 = vmatpush.bf16.msra.mxu0 0
      %3143 = vmatpush.bf16.msra.mxu0 0
      %3144 = vmatpush.bf16.msra.mxu0 0
      %3145 = vmatpush.bf16.msra.mxu0 %v2383
      %3146 = vmatpush.bf16.msra.mxu0 %v1844
      %3147 = vmatpush.bf16.msra.mxu0 %v1774
      %3148 = vmatpush.bf16.msra.mxu0 %v1704
      %3149 = vmatpush.bf16.msra.mxu0 %v1634
      %3150 = vmatmul.bf16.gmra.mxu0 %v2211
      %v3151 = vpop.f32.mrf.mxu0
      %v3152 = vadd.f32 %v527, %v3151
      %v3153 = vpop.f32.mrf.mxu0
      %3154 = vdwg.mxu0
      %3155 = vmatpush.bf16.msra.mxu0 0
      %3156 = vmatpush.bf16.msra.mxu0 0
      %3157 = vmatpush.bf16.msra.mxu0 0
      %3158 = vmatpush.bf16.msra.mxu0 %v2386
      %3159 = vmatpush.bf16.msra.mxu0 %v1845
      %3160 = vmatpush.bf16.msra.mxu0 %v1775
      %3161 = vmatpush.bf16.msra.mxu0 %v1705
      %3162 = vmatpush.bf16.msra.mxu0 %v1635
      %3163 = vmatmul.bf16.gmra.mxu0 %v2211
      %v3164 = vpop.f32.mrf.mxu0
      %v3165 = vadd.f32 %v527, %v3164
      %v3166 = vpop.f32.mrf.mxu0
      %3167 = vdwg.mxu0
      %3168 = vmatpush.bf16.msra.mxu0 0
      %3169 = vmatpush.bf16.msra.mxu0 0
      %3170 = vmatpush.bf16.msra.mxu0 0
      %3171 = vmatpush.bf16.msra.mxu0 %v2389
      %3172 = vmatpush.bf16.msra.mxu0 %v1846
      %3173 = vmatpush.bf16.msra.mxu0 %v1776
      %3174 = vmatpush.bf16.msra.mxu0 %v1706
      %3175 = vmatpush.bf16.msra.mxu0 %v1636
      %3176 = vmatmul.bf16.gmra.mxu0 %v2211
      %v3177 = vpop.f32.mrf.mxu0
      %v3178 = vadd.f32 %v527, %v3177
      %v3179 = vpop.f32.mrf.mxu0
      %3180 = vdwg.mxu0
      %3181 = vmatpush.bf16.msra.mxu0 0
      %3182 = vmatpush.bf16.msra.mxu0 0
      %3183 = vmatpush.bf16.msra.mxu0 0
      %3184 = vmatpush.bf16.msra.mxu0 %v2392
      %3185 = vmatpush.bf16.msra.mxu0 %v1847
      %3186 = vmatpush.bf16.msra.mxu0 %v1777
      %3187 = vmatpush.bf16.msra.mxu0 %v1707
      %3188 = vmatpush.bf16.msra.mxu0 %v1637
      %3189 = vmatmul.bf16.gmra.mxu0 %v2211
      %v3190 = vpop.f32.mrf.mxu0
      %v3191 = vadd.f32 %v527, %v3190
      %v3192 = vpop.f32.mrf.mxu0
      %3193 = vdwg.mxu0
      %3194 = vmatpush.bf16.msra.mxu0 0
      %3195 = vmatpush.bf16.msra.mxu0 0
      %3196 = vmatpush.bf16.msra.mxu0 0
      %3197 = vmatpush.bf16.msra.mxu0 %v2395
      %3198 = vmatpush.bf16.msra.mxu0 %v1848
      %3199 = vmatpush.bf16.msra.mxu0 %v1778
      %3200 = vmatpush.bf16.msra.mxu0 %v1708
      %3201 = vmatpush.bf16.msra.mxu0 %v1638
      %3202 = vmatmul.bf16.gmra.mxu0 %v2211
      %v3203 = vpop.f32.mrf.mxu0
      %v3204 = vadd.f32 %v527, %v3203
      %v3205 = vpop.f32.mrf.mxu0
      %3206 = vdwg.mxu0
      %3207 = vmatpush.bf16.msra.mxu0 0
      %3208 = vmatpush.bf16.msra.mxu0 0
      %3209 = vmatpush.bf16.msra.mxu0 0
      %3210 = vmatpush.bf16.msra.mxu0 %v2398
      %3211 = vmatpush.bf16.msra.mxu0 %v1849
      %3212 = vmatpush.bf16.msra.mxu0 %v1779
      %3213 = vmatpush.bf16.msra.mxu0 %v1709
      %3214 = vmatpush.bf16.msra.mxu0 %v1639
      %3215 = vmatmul.bf16.gmra.mxu0 %v2211
      %v3216 = vpop.f32.mrf.mxu0
      %v3217 = vadd.f32 %v527, %v3216
      %v3218 = vpop.f32.mrf.mxu0
      %3219 = vdwg.mxu0
      %3220 = vmatpush.bf16.msra.mxu0 0
      %3221 = vmatpush.bf16.msra.mxu0 0
      %3222 = vmatpush.bf16.msra.mxu0 0
      %3223 = vmatpush.bf16.msra.mxu0 %v2401
      %3224 = vmatpush.bf16.msra.mxu0 %v1850
      %3225 = vmatpush.bf16.msra.mxu0 %v1780
      %3226 = vmatpush.bf16.msra.mxu0 %v1710
      %3227 = vmatpush.bf16.msra.mxu0 %v1640
      %3228 = vmatmul.bf16.gmra.mxu0 %v2211
      %v3229 = vpop.f32.mrf.mxu0
      %v3230 = vadd.f32 %v527, %v3229
      %v3231 = vpop.f32.mrf.mxu0
      %3232 = vdwg.mxu0
      %3233 = vmatpush.bf16.msra.mxu0 0
      %3234 = vmatpush.bf16.msra.mxu0 0
      %3235 = vmatpush.bf16.msra.mxu0 0
      %3236 = vmatpush.bf16.msra.mxu0 %v2404
      %3237 = vmatpush.bf16.msra.mxu0 %v1851
      %3238 = vmatpush.bf16.msra.mxu0 %v1781
      %3239 = vmatpush.bf16.msra.mxu0 %v1711
      %3240 = vmatpush.bf16.msra.mxu0 %v1641
      %3241 = vmatmul.bf16.gmra.mxu0 %v2211
      %v3242 = vpop.f32.mrf.mxu0
      %v3243 = vadd.f32 %v527, %v3242
      %v3244 = vpop.f32.mrf.mxu0
      %3245 = vdwg.mxu0
      %3246 = vmatpush.bf16.msra.mxu0 0
      %3247 = vmatpush.bf16.msra.mxu0 0
      %3248 = vmatpush.bf16.msra.mxu0 0
      %3249 = vmatpush.bf16.msra.mxu0 %v2407
      %3250 = vmatpush.bf16.msra.mxu0 %v1852
      %3251 = vmatpush.bf16.msra.mxu0 %v1782
      %3252 = vmatpush.bf16.msra.mxu0 %v1712
      %3253 = vmatpush.bf16.msra.mxu0 %v1642
      %3254 = vmatmul.bf16.gmra.mxu0 %v2211
      %v3255 = vpop.f32.mrf.mxu0
      %v3256 = vadd.f32 %v527, %v3255
      %v3257 = vpop.f32.mrf.mxu0
      %3258 = vdwg.mxu0
      %3259 = vmatpush.bf16.msra.mxu0 0
      %3260 = vmatpush.bf16.msra.mxu0 0
      %3261 = vmatpush.bf16.msra.mxu0 0
      %3262 = vmatpush.bf16.msra.mxu0 %v2410
      %3263 = vmatpush.bf16.msra.mxu0 %v1853
      %3264 = vmatpush.bf16.msra.mxu0 %v1783
      %3265 = vmatpush.bf16.msra.mxu0 %v1713
      %3266 = vmatpush.bf16.msra.mxu0 %v1643
      %3267 = vmatmul.bf16.gmra.mxu0 %v2211
      %v3268 = vpop.f32.mrf.mxu0
      %v3269 = vadd.f32 %v527, %v3268
      %v3270 = vpop.f32.mrf.mxu0
      %3271 = vdwg.mxu0
      %3272 = vmatpush.bf16.msra.mxu0 0
      %3273 = vmatpush.bf16.msra.mxu0 0
      %3274 = vmatpush.bf16.msra.mxu0 0
      %3275 = vmatpush.bf16.msra.mxu0 %v2413
      %3276 = vmatpush.bf16.msra.mxu0 %v1854
      %3277 = vmatpush.bf16.msra.mxu0 %v1784
      %3278 = vmatpush.bf16.msra.mxu0 %v1714
      %3279 = vmatpush.bf16.msra.mxu0 %v1644
      %3280 = vmatmul.bf16.gmra.mxu0 %v2211
      %v3281 = vpop.f32.mrf.mxu0
      %v3282 = vadd.f32 %v527, %v3281
      %v3283 = vpop.f32.mrf.mxu0
      %3284 = vdwg.mxu0
      %3285 = vmatpush.bf16.msra.mxu0 0
      %3286 = vmatpush.bf16.msra.mxu0 0
      %3287 = vmatpush.bf16.msra.mxu0 0
      %3288 = vmatpush.bf16.msra.mxu0 %v2416
      %3289 = vmatpush.bf16.msra.mxu0 %v1855
      %3290 = vmatpush.bf16.msra.mxu0 %v1785
      %3291 = vmatpush.bf16.msra.mxu0 %v1715
      %3292 = vmatpush.bf16.msra.mxu0 %v1645
      %3293 = vmatmul.bf16.gmra.mxu0 %v2211
      %v3294 = vpop.f32.mrf.mxu0
      %v3295 = vadd.f32 %v527, %v3294
      %v3296 = vpop.f32.mrf.mxu0
      %3297 = vdwg.mxu0
      %3298 = vmatpush.bf16.msra.mxu0 0
      %3299 = vmatpush.bf16.msra.mxu0 0
      %3300 = vmatpush.bf16.msra.mxu0 0
      %3301 = vmatpush.bf16.msra.mxu0 %v2419
      %3302 = vmatpush.bf16.msra.mxu0 %v1856
      %3303 = vmatpush.bf16.msra.mxu0 %v1786
      %3304 = vmatpush.bf16.msra.mxu0 %v1716
      %3305 = vmatpush.bf16.msra.mxu0 %v1646
      %3306 = vmatmul.bf16.gmra.mxu0 %v2211
      %v3307 = vpop.f32.mrf.mxu0
      %v3308 = vadd.f32 %v527, %v3307
      %v3309 = vpop.f32.mrf.mxu0
      %3310 = vdwg.mxu0
      %3311 = vmatpush.bf16.msra.mxu0 0
      %3312 = vmatpush.bf16.msra.mxu0 0
      %3313 = vmatpush.bf16.msra.mxu0 0
      %3314 = vmatpush.bf16.msra.mxu0 %v2422
      %3315 = vmatpush.bf16.msra.mxu0 %v1857
      %3316 = vmatpush.bf16.msra.mxu0 %v1787
      %3317 = vmatpush.bf16.msra.mxu0 %v1717
      %3318 = vmatpush.bf16.msra.mxu0 %v1647
      %3319 = vmatmul.bf16.gmra.mxu0 %v2211
      %v3320 = vpop.f32.mrf.mxu0
      %v3321 = vadd.f32 %v527, %v3320
      %v3322 = vpop.f32.mrf.mxu0
      %3323 = vdwg.mxu0
      %3324 = vmatpush.bf16.msra.mxu0 0
      %3325 = vmatpush.bf16.msra.mxu0 0
      %3326 = vmatpush.bf16.msra.mxu0 0
      %3327 = vmatpush.bf16.msra.mxu0 %v2425
      %3328 = vmatpush.bf16.msra.mxu0 %v1858
      %3329 = vmatpush.bf16.msra.mxu0 %v1788
      %3330 = vmatpush.bf16.msra.mxu0 %v1718
      %3331 = vmatpush.bf16.msra.mxu0 %v1648
      %3332 = vmatmul.bf16.gmra.mxu0 %v2211
      %v3333 = vpop.f32.mrf.mxu0
      %v3334 = vadd.f32 %v527, %v3333
      %v3335 = vpop.f32.mrf.mxu0
      %3336 = vdwg.mxu0
      %v3337 = vmax.f32 %v2437, 0.0
      %v3338 = vmax.f32 %v2450, 0.0
      %v3339 = vmax.f32 %v2463, 0.0
      %v3340 = vmax.f32 %v2476, 0.0
      %v3341 = vmax.f32 %v2489, 0.0
      %v3342 = vmax.f32 %v2502, 0.0
      %v3343 = vmax.f32 %v2515, 0.0
      %v3344 = vmax.f32 %v2528, 0.0
      %v3345 = vmax.f32 %v2541, 0.0
      %v3346 = vmax.f32 %v2554, 0.0
      %v3347 = vmax.f32 %v2567, 0.0
      %v3348 = vmax.f32 %v2580, 0.0
      %v3349 = vmax.f32 %v2593, 0.0
      %v3350 = vmax.f32 %v2606, 0.0
      %v3351 = vmax.f32 %v2619, 0.0
      %v3352 = vmax.f32 %v2632, 0.0
      %v3353 = vmax.f32 %v2645, 0.0
      %v3354 = vmax.f32 %v2658, 0.0
      %v3355 = vmax.f32 %v2671, 0.0
      %v3356 = vmax.f32 %v2684, 0.0
      %v3357 = vmax.f32 %v2697, 0.0
      %v3358 = vmax.f32 %v2710, 0.0
      %v3359 = vmax.f32 %v2723, 0.0
      %v3360 = vmax.f32 %v2736, 0.0
      %v3361 = vmax.f32 %v2749, 0.0
      %v3362 = vmax.f32 %v2762, 0.0
      %v3363 = vmax.f32 %v2775, 0.0
      %v3364 = vmax.f32 %v2788, 0.0
      %v3365 = vmax.f32 %v2801, 0.0
      %v3366 = vmax.f32 %v2814, 0.0
      %v3367 = vmax.f32 %v2827, 0.0
      %v3368 = vmax.f32 %v2840, 0.0
      %v3369 = vmax.f32 %v2853, 0.0
      %v3370 = vmax.f32 %v2866, 0.0
      %v3371 = vmax.f32 %v2879, 0.0
      %v3372 = vmax.f32 %v2892, 0.0
      %v3373 = vmax.f32 %v2905, 0.0
      %v3374 = vmax.f32 %v2918, 0.0
      %v3375 = vmax.f32 %v2931, 0.0
      %v3376 = vmax.f32 %v2944, 0.0
      %v3377 = vmax.f32 %v2957, 0.0
      %v3378 = vmax.f32 %v2970, 0.0
      %v3379 = vmax.f32 %v2983, 0.0
      %v3380 = vmax.f32 %v2996, 0.0
      %v3381 = vmax.f32 %v3009, 0.0
      %v3382 = vmax.f32 %v3022, 0.0
      %v3383 = vmax.f32 %v3035, 0.0
      %v3384 = vmax.f32 %v3048, 0.0
      %v3385 = vmax.f32 %v3061, 0.0
      %v3386 = vmax.f32 %v3074, 0.0
      %v3387 = vmax.f32 %v3087, 0.0
      %v3388 = vmax.f32 %v3100, 0.0
      %v3389 = vmax.f32 %v3113, 0.0
      %v3390 = vmax.f32 %v3126, 0.0
      %v3391 = vmax.f32 %v3139, 0.0
      %v3392 = vmax.f32 %v3152, 0.0
      %v3393 = vmax.f32 %v3165, 0.0
      %v3394 = vmax.f32 %v3178, 0.0
      %v3395 = vmax.f32 %v3191, 0.0
      %v3396 = vmax.f32 %v3204, 0.0
      %v3397 = vmax.f32 %v3217, 0.0
      %v3398 = vmax.f32 %v3230, 0.0
      %v3399 = vmax.f32 %v3243, 0.0
      %v3400 = vmax.f32 %v3256, 0.0
      %v3401 = vmax.f32 %v3269, 0.0
      %v3402 = vmax.f32 %v3282, 0.0
      %v3403 = vmax.f32 %v3295, 0.0
      %v3404 = vmax.f32 %v3308, 0.0
      %v3405 = vmax.f32 %v3321, 0.0
      %v3406 = vmax.f32 %v3334, 0.0
      %3477 = vrot.lane.b32.xlu0 %v3337, 64
      %v3478 = vpop.permute.xlu0 %3477
      %3479 = vrot.lane.b32.xlu0 %v3338, 64
      %v3480 = vpop.permute.xlu0 %3479
      %3481 = vrot.lane.b32.xlu0 %v3339, 64
      %v3482 = vpop.permute.xlu0 %3481
      %3483 = vrot.lane.b32.xlu0 %v3340, 64
      %v3484 = vpop.permute.xlu0 %3483
      %3485 = vrot.lane.b32.xlu0 %v3341, 64
      %v3486 = vpop.permute.xlu0 %3485
      %3487 = vrot.lane.b32.xlu0 %v3342, 64
      %v3488 = vpop.permute.xlu0 %3487
      %3489 = vrot.lane.b32.xlu0 %v3343, 64
      %v3490 = vpop.permute.xlu0 %3489
      %3491 = vrot.lane.b32.xlu0 %v3344, 64
      %v3492 = vpop.permute.xlu0 %3491
      %3493 = vrot.lane.b32.xlu0 %v3345, 64
      %v3494 = vpop.permute.xlu0 %3493
      %3495 = vrot.lane.b32.xlu0 %v3346, 64
      %v3496 = vpop.permute.xlu0 %3495
      %3497 = vrot.lane.b32.xlu0 %v3347, 64
      %v3498 = vpop.permute.xlu0 %3497
      %3499 = vrot.lane.b32.xlu0 %v3348, 64
      %v3500 = vpop.permute.xlu0 %3499
      %3501 = vrot.lane.b32.xlu0 %v3349, 64
      %v3502 = vpop.permute.xlu0 %3501
      %3503 = vrot.lane.b32.xlu0 %v3350, 64
      %v3504 = vpop.permute.xlu0 %3503
      %3505 = vrot.lane.b32.xlu0 %v3351, 64
      %v3506 = vpop.permute.xlu0 %3505
      %3507 = vrot.lane.b32.xlu0 %v3352, 64
      %v3508 = vpop.permute.xlu0 %3507
      %3509 = vrot.lane.b32.xlu0 %v3353, 64
      %v3510 = vpop.permute.xlu0 %3509
      %3511 = vrot.lane.b32.xlu0 %v3354, 64
      %v3512 = vpop.permute.xlu0 %3511
      %3513 = vrot.lane.b32.xlu0 %v3355, 64
      %v3514 = vpop.permute.xlu0 %3513
      %3515 = vrot.lane.b32.xlu0 %v3356, 64
      %v3516 = vpop.permute.xlu0 %3515
      %3517 = vrot.lane.b32.xlu0 %v3357, 64
      %v3518 = vpop.permute.xlu0 %3517
      %3519 = vrot.lane.b32.xlu0 %v3358, 64
      %v3520 = vpop.permute.xlu0 %3519
      %3521 = vrot.lane.b32.xlu0 %v3359, 64
      %v3522 = vpop.permute.xlu0 %3521
      %3523 = vrot.lane.b32.xlu0 %v3360, 64
      %v3524 = vpop.permute.xlu0 %3523
      %3525 = vrot.lane.b32.xlu0 %v3361, 64
      %v3526 = vpop.permute.xlu0 %3525
      %3527 = vrot.lane.b32.xlu0 %v3362, 64
      %v3528 = vpop.permute.xlu0 %3527
      %3529 = vrot.lane.b32.xlu0 %v3363, 64
      %v3530 = vpop.permute.xlu0 %3529
      %3531 = vrot.lane.b32.xlu0 %v3364, 64
      %v3532 = vpop.permute.xlu0 %3531
      %3533 = vrot.lane.b32.xlu0 %v3365, 64
      %v3534 = vpop.permute.xlu0 %3533
      %3535 = vrot.lane.b32.xlu0 %v3366, 64
      %v3536 = vpop.permute.xlu0 %3535
      %3537 = vrot.lane.b32.xlu0 %v3367, 64
      %v3538 = vpop.permute.xlu0 %3537
      %3539 = vrot.lane.b32.xlu0 %v3368, 64
      %v3540 = vpop.permute.xlu0 %3539
      %3541 = vrot.lane.b32.xlu0 %v3369, 64
      %v3542 = vpop.permute.xlu0 %3541
      %3543 = vrot.lane.b32.xlu0 %v3370, 64
      %v3544 = vpop.permute.xlu0 %3543
      %3545 = vrot.lane.b32.xlu0 %v3371, 64
      %v3546 = vpop.permute.xlu0 %3545
      %3547 = vrot.lane.b32.xlu0 %v3372, 64
      %v3548 = vpop.permute.xlu0 %3547
      %3549 = vrot.lane.b32.xlu0 %v3373, 64
      %v3550 = vpop.permute.xlu0 %3549
      %3551 = vrot.lane.b32.xlu0 %v3374, 64
      %v3552 = vpop.permute.xlu0 %3551
      %3553 = vrot.lane.b32.xlu0 %v3375, 64
      %v3554 = vpop.permute.xlu0 %3553
      %3555 = vrot.lane.b32.xlu0 %v3376, 64
      %v3556 = vpop.permute.xlu0 %3555
      %3557 = vrot.lane.b32.xlu0 %v3377, 64
      %v3558 = vpop.permute.xlu0 %3557
      %3559 = vrot.lane.b32.xlu0 %v3378, 64
      %v3560 = vpop.permute.xlu0 %3559
      %3561 = vrot.lane.b32.xlu0 %v3379, 64
      %v3562 = vpop.permute.xlu0 %3561
      %3563 = vrot.lane.b32.xlu0 %v3380, 64
      %v3564 = vpop.permute.xlu0 %3563
      %3565 = vrot.lane.b32.xlu0 %v3381, 64
      %v3566 = vpop.permute.xlu0 %3565
      %3567 = vrot.lane.b32.xlu0 %v3382, 64
      %v3568 = vpop.permute.xlu0 %3567
      %3569 = vrot.lane.b32.xlu0 %v3383, 64
      %v3570 = vpop.permute.xlu0 %3569
      %3571 = vrot.lane.b32.xlu0 %v3384, 64
      %v3572 = vpop.permute.xlu0 %3571
      %3573 = vrot.lane.b32.xlu0 %v3385, 64
      %v3574 = vpop.permute.xlu0 %3573
      %3575 = vrot.lane.b32.xlu0 %v3386, 64
      %v3576 = vpop.permute.xlu0 %3575
      %3577 = vrot.lane.b32.xlu0 %v3387, 64
      %v3578 = vpop.permute.xlu0 %3577
      %3579 = vrot.lane.b32.xlu0 %v3388, 64
      %v3580 = vpop.permute.xlu0 %3579
      %3581 = vrot.lane.b32.xlu0 %v3389, 64
      %v3582 = vpop.permute.xlu0 %3581
      %3583 = vrot.lane.b32.xlu0 %v3390, 64
      %v3584 = vpop.permute.xlu0 %3583
      %3585 = vrot.lane.b32.xlu0 %v3391, 64
      %v3586 = vpop.permute.xlu0 %3585
      %3587 = vrot.lane.b32.xlu0 %v3392, 64
      %v3588 = vpop.permute.xlu0 %3587
      %3589 = vrot.lane.b32.xlu0 %v3393, 64
      %v3590 = vpop.permute.xlu0 %3589
      %3591 = vrot.lane.b32.xlu0 %v3394, 64
      %v3592 = vpop.permute.xlu0 %3591
      %3593 = vrot.lane.b32.xlu0 %v3395, 64
      %v3594 = vpop.permute.xlu0 %3593
      %3595 = vrot.lane.b32.xlu0 %v3396, 64
      %v3596 = vpop.permute.xlu0 %3595
      %3597 = vrot.lane.b32.xlu0 %v3397, 64
      %v3598 = vpop.permute.xlu0 %3597
      %3599 = vrot.lane.b32.xlu0 %v3398, 64
      %v3600 = vpop.permute.xlu0 %3599
      %3601 = vrot.lane.b32.xlu0 %v3399, 64
      %v3602 = vpop.permute.xlu0 %3601
      %3603 = vrot.lane.b32.xlu0 %v3400, 64
      %v3604 = vpop.permute.xlu0 %3603
      %3605 = vrot.lane.b32.xlu0 %v3401, 64
      %v3606 = vpop.permute.xlu0 %3605
      %3607 = vrot.lane.b32.xlu0 %v3402, 64
      %v3608 = vpop.permute.xlu0 %3607
      %3609 = vrot.lane.b32.xlu0 %v3403, 64
      %v3610 = vpop.permute.xlu0 %3609
      %3611 = vrot.lane.b32.xlu0 %v3404, 64
      %v3612 = vpop.permute.xlu0 %3611
      %3613 = vrot.lane.b32.xlu0 %v3405, 64
      %v3614 = vpop.permute.xlu0 %3613
      %3615 = vrot.lane.b32.xlu0 %v3406, 64
      %v3616 = vpop.permute.xlu0 %3615
      %vm3617 = vcmask 523264
      %v3618 = vsel %vm3617, %v3478, %v3480
      %v3619 = vsel %vm3617, %v3480, %v3482
      %v3620 = vsel %vm3617, %v3482, %v3484
      %v3621 = vsel %vm3617, %v3484, %v3486
      %v3622 = vsel %vm3617, %v3486, %v3488
      %v3623 = vsel %vm3617, %v3488, %v3490
      %v3624 = vsel %vm3617, %v3490, %v3492
      %v3625 = vsel %vm3617, %v3492, %v3494
      %v3626 = vsel %vm3617, %v3494, %v3496
      %v3627 = vsel %vm3617, %v3496, %v3498
      %v3628 = vsel %vm3617, %v3498, %v3500
      %v3629 = vsel %vm3617, %v3500, %v3502
      %v3630 = vsel %vm3617, %v3502, %v3504
      %v3631 = vsel %vm3617, %v3504, %v3506
      %v3632 = vsel %vm3617, %v3506, %v3508
      %v3633 = vsel %vm3617, %v3508, %v3510
      %v3634 = vsel %vm3617, %v3510, %v3512
      %v3635 = vsel %vm3617, %v3512, %v3514
      %v3636 = vsel %vm3617, %v3514, %v3516
      %v3637 = vsel %vm3617, %v3516, %v3518
      %v3638 = vsel %vm3617, %v3518, %v3520
      %v3639 = vsel %vm3617, %v3520, %v3522
      %v3640 = vsel %vm3617, %v3522, %v3524
      %v3641 = vsel %vm3617, %v3524, %v3526
      %v3642 = vsel %vm3617, %v3526, %v3528
      %v3643 = vsel %vm3617, %v3528, %v3530
      %v3644 = vsel %vm3617, %v3530, %v3532
      %v3645 = vsel %vm3617, %v3532, %v3534
      %v3646 = vsel %vm3617, %v3534, %v3536
      %v3647 = vsel %vm3617, %v3536, %v3538
      %v3648 = vsel %vm3617, %v3538, %v3540
      %v3649 = vsel %vm3617, %v3540, %v3542
      %v3650 = vsel %vm3617, %v3542, %v3544
      %v3651 = vsel %vm3617, %v3544, %v3546
      %v3652 = vsel %vm3617, %v3546, %v3548
      %v3653 = vsel %vm3617, %v3548, %v3550
      %v3654 = vsel %vm3617, %v3550, %v3552
      %v3655 = vsel %vm3617, %v3552, %v3554
      %v3656 = vsel %vm3617, %v3554, %v3556
      %v3657 = vsel %vm3617, %v3556, %v3558
      %v3658 = vsel %vm3617, %v3558, %v3560
      %v3659 = vsel %vm3617, %v3560, %v3562
      %v3660 = vsel %vm3617, %v3562, %v3564
      %v3661 = vsel %vm3617, %v3564, %v3566
      %v3662 = vsel %vm3617, %v3566, %v3568
      %v3663 = vsel %vm3617, %v3568, %v3570
      %v3664 = vsel %vm3617, %v3570, %v3572
      %v3665 = vsel %vm3617, %v3572, %v3574
      %v3666 = vsel %vm3617, %v3574, %v3576
      %v3667 = vsel %vm3617, %v3576, %v3578
      %v3668 = vsel %vm3617, %v3578, %v3580
      %v3669 = vsel %vm3617, %v3580, %v3582
      %v3670 = vsel %vm3617, %v3582, %v3584
      %v3671 = vsel %vm3617, %v3584, %v3586
      %v3672 = vsel %vm3617, %v3586, %v3588
      %v3673 = vsel %vm3617, %v3588, %v3590
      %v3674 = vsel %vm3617, %v3590, %v3592
      %v3675 = vsel %vm3617, %v3592, %v3594
      %v3676 = vsel %vm3617, %v3594, %v3596
      %v3677 = vsel %vm3617, %v3596, %v3598
      %v3678 = vsel %vm3617, %v3598, %v3600
      %v3679 = vsel %vm3617, %v3600, %v3602
      %v3680 = vsel %vm3617, %v3602, %v3604
      %v3681 = vsel %vm3617, %v3604, %v3606
      %v3682 = vsel %vm3617, %v3606, %v3608
      %v3683 = vsel %vm3617, %v3608, %v3610
      %v3684 = vsel %vm3617, %v3610, %v3612
      %v3685 = vsel %vm3617, %v3612, %v3614
      %v3686 = vsel %vm3617, %v3614, %v3616
      %v3756 = vmax.f32 %v3337, %v3618
      %v3757 = vmax.f32 %v3338, %v3619
      %v3758 = vmax.f32 %v3339, %v3620
      %v3759 = vmax.f32 %v3340, %v3621
      %v3760 = vmax.f32 %v3341, %v3622
      %v3761 = vmax.f32 %v3342, %v3623
      %v3762 = vmax.f32 %v3343, %v3624
      %v3763 = vmax.f32 %v3344, %v3625
      %v3764 = vmax.f32 %v3345, %v3626
      %v3765 = vmax.f32 %v3346, %v3627
      %v3766 = vmax.f32 %v3347, %v3628
      %v3767 = vmax.f32 %v3348, %v3629
      %v3768 = vmax.f32 %v3349, %v3630
      %v3769 = vmax.f32 %v3350, %v3631
      %v3770 = vmax.f32 %v3351, %v3632
      %v3771 = vmax.f32 %v3352, %v3633
      %v3772 = vmax.f32 %v3353, %v3634
      %v3773 = vmax.f32 %v3354, %v3635
      %v3774 = vmax.f32 %v3355, %v3636
      %v3775 = vmax.f32 %v3356, %v3637
      %v3776 = vmax.f32 %v3357, %v3638
      %v3777 = vmax.f32 %v3358, %v3639
      %v3778 = vmax.f32 %v3359, %v3640
      %v3779 = vmax.f32 %v3360, %v3641
      %v3780 = vmax.f32 %v3361, %v3642
      %v3781 = vmax.f32 %v3362, %v3643
      %v3782 = vmax.f32 %v3363, %v3644
      %v3783 = vmax.f32 %v3364, %v3645
      %v3784 = vmax.f32 %v3365, %v3646
      %v3785 = vmax.f32 %v3366, %v3647
      %v3786 = vmax.f32 %v3367, %v3648
      %v3787 = vmax.f32 %v3368, %v3649
      %v3788 = vmax.f32 %v3369, %v3650
      %v3789 = vmax.f32 %v3370, %v3651
      %v3790 = vmax.f32 %v3371, %v3652
      %v3791 = vmax.f32 %v3372, %v3653
      %v3792 = vmax.f32 %v3373, %v3654
      %v3793 = vmax.f32 %v3374, %v3655
      %v3794 = vmax.f32 %v3375, %v3656
      %v3795 = vmax.f32 %v3376, %v3657
      %v3796 = vmax.f32 %v3377, %v3658
      %v3797 = vmax.f32 %v3378, %v3659
      %v3798 = vmax.f32 %v3379, %v3660
      %v3799 = vmax.f32 %v3380, %v3661
      %v3800 = vmax.f32 %v3381, %v3662
      %v3801 = vmax.f32 %v3382, %v3663
      %v3802 = vmax.f32 %v3383, %v3664
      %v3803 = vmax.f32 %v3384, %v3665
      %v3804 = vmax.f32 %v3385, %v3666
      %v3805 = vmax.f32 %v3386, %v3667
      %v3806 = vmax.f32 %v3387, %v3668
      %v3807 = vmax.f32 %v3388, %v3669
      %v3808 = vmax.f32 %v3389, %v3670
      %v3809 = vmax.f32 %v3390, %v3671
      %v3810 = vmax.f32 %v3391, %v3672
      %v3811 = vmax.f32 %v3392, %v3673
      %v3812 = vmax.f32 %v3393, %v3674
      %v3813 = vmax.f32 %v3394, %v3675
      %v3814 = vmax.f32 %v3395, %v3676
      %v3815 = vmax.f32 %v3396, %v3677
      %v3816 = vmax.f32 %v3397, %v3678
      %v3817 = vmax.f32 %v3398, %v3679
      %v3818 = vmax.f32 %v3399, %v3680
      %v3819 = vmax.f32 %v3400, %v3681
      %v3820 = vmax.f32 %v3401, %v3682
      %v3821 = vmax.f32 %v3402, %v3683
      %v3822 = vmax.f32 %v3403, %v3684
      %v3823 = vmax.f32 %v3404, %v3685
      %v3824 = vmax.f32 %v3405, %v3686
      %3825 = vrot.lane.b32.xlu0 %v3337, 127
      %v3826 = vpop.permute.xlu0 %3825
      %3827 = vrot.lane.b32.xlu0 %v3338, 127
      %v3828 = vpop.permute.xlu0 %3827
      %3829 = vrot.lane.b32.xlu0 %v3339, 127
      %v3830 = vpop.permute.xlu0 %3829
      %3831 = vrot.lane.b32.xlu0 %v3340, 127
      %v3832 = vpop.permute.xlu0 %3831
      %3833 = vrot.lane.b32.xlu0 %v3341, 127
      %v3834 = vpop.permute.xlu0 %3833
      %3835 = vrot.lane.b32.xlu0 %v3342, 127
      %v3836 = vpop.permute.xlu0 %3835
      %3837 = vrot.lane.b32.xlu0 %v3343, 127
      %v3838 = vpop.permute.xlu0 %3837
      %3839 = vrot.lane.b32.xlu0 %v3344, 127
      %v3840 = vpop.permute.xlu0 %3839
      %3841 = vrot.lane.b32.xlu0 %v3345, 127
      %v3842 = vpop.permute.xlu0 %3841
      %3843 = vrot.lane.b32.xlu0 %v3346, 127
      %v3844 = vpop.permute.xlu0 %3843
      %3845 = vrot.lane.b32.xlu0 %v3347, 127
      %v3846 = vpop.permute.xlu0 %3845
      %3847 = vrot.lane.b32.xlu0 %v3348, 127
      %v3848 = vpop.permute.xlu0 %3847
      %3849 = vrot.lane.b32.xlu0 %v3349, 127
      %v3850 = vpop.permute.xlu0 %3849
      %3851 = vrot.lane.b32.xlu0 %v3350, 127
      %v3852 = vpop.permute.xlu0 %3851
      %3853 = vrot.lane.b32.xlu0 %v3351, 127
      %v3854 = vpop.permute.xlu0 %3853
      %3855 = vrot.lane.b32.xlu0 %v3352, 127
      %v3856 = vpop.permute.xlu0 %3855
      %3857 = vrot.lane.b32.xlu0 %v3353, 127
      %v3858 = vpop.permute.xlu0 %3857
      %3859 = vrot.lane.b32.xlu0 %v3354, 127
      %v3860 = vpop.permute.xlu0 %3859
      %3861 = vrot.lane.b32.xlu0 %v3355, 127
      %v3862 = vpop.permute.xlu0 %3861
      %3863 = vrot.lane.b32.xlu0 %v3356, 127
      %v3864 = vpop.permute.xlu0 %3863
      %3865 = vrot.lane.b32.xlu0 %v3357, 127
      %v3866 = vpop.permute.xlu0 %3865
      %3867 = vrot.lane.b32.xlu0 %v3358, 127
      %v3868 = vpop.permute.xlu0 %3867
      %3869 = vrot.lane.b32.xlu0 %v3359, 127
      %v3870 = vpop.permute.xlu0 %3869
      %3871 = vrot.lane.b32.xlu0 %v3360, 127
      %v3872 = vpop.permute.xlu0 %3871
      %3873 = vrot.lane.b32.xlu0 %v3361, 127
      %v3874 = vpop.permute.xlu0 %3873
      %3875 = vrot.lane.b32.xlu0 %v3362, 127
      %v3876 = vpop.permute.xlu0 %3875
      %3877 = vrot.lane.b32.xlu0 %v3363, 127
      %v3878 = vpop.permute.xlu0 %3877
      %3879 = vrot.lane.b32.xlu0 %v3364, 127
      %v3880 = vpop.permute.xlu0 %3879
      %3881 = vrot.lane.b32.xlu0 %v3365, 127
      %v3882 = vpop.permute.xlu0 %3881
      %3883 = vrot.lane.b32.xlu0 %v3366, 127
      %v3884 = vpop.permute.xlu0 %3883
      %3885 = vrot.lane.b32.xlu0 %v3367, 127
      %v3886 = vpop.permute.xlu0 %3885
      %3887 = vrot.lane.b32.xlu0 %v3368, 127
      %v3888 = vpop.permute.xlu0 %3887
      %3889 = vrot.lane.b32.xlu0 %v3369, 127
      %v3890 = vpop.permute.xlu0 %3889
      %3891 = vrot.lane.b32.xlu0 %v3370, 127
      %v3892 = vpop.permute.xlu0 %3891
      %3893 = vrot.lane.b32.xlu0 %v3371, 127
      %v3894 = vpop.permute.xlu0 %3893
      %3895 = vrot.lane.b32.xlu0 %v3372, 127
      %v3896 = vpop.permute.xlu0 %3895
      %3897 = vrot.lane.b32.xlu0 %v3373, 127
      %v3898 = vpop.permute.xlu0 %3897
      %3899 = vrot.lane.b32.xlu0 %v3374, 127
      %v3900 = vpop.permute.xlu0 %3899
      %3901 = vrot.lane.b32.xlu0 %v3375, 127
      %v3902 = vpop.permute.xlu0 %3901
      %3903 = vrot.lane.b32.xlu0 %v3376, 127
      %v3904 = vpop.permute.xlu0 %3903
      %3905 = vrot.lane.b32.xlu0 %v3377, 127
      %v3906 = vpop.permute.xlu0 %3905
      %3907 = vrot.lane.b32.xlu0 %v3378, 127
      %v3908 = vpop.permute.xlu0 %3907
      %3909 = vrot.lane.b32.xlu0 %v3379, 127
      %v3910 = vpop.permute.xlu0 %3909
      %3911 = vrot.lane.b32.xlu0 %v3380, 127
      %v3912 = vpop.permute.xlu0 %3911
      %3913 = vrot.lane.b32.xlu0 %v3381, 127
      %v3914 = vpop.permute.xlu0 %3913
      %3915 = vrot.lane.b32.xlu0 %v3382, 127
      %v3916 = vpop.permute.xlu0 %3915
      %3917 = vrot.lane.b32.xlu0 %v3383, 127
      %v3918 = vpop.permute.xlu0 %3917
      %3919 = vrot.lane.b32.xlu0 %v3384, 127
      %v3920 = vpop.permute.xlu0 %3919
      %3921 = vrot.lane.b32.xlu0 %v3385, 127
      %v3922 = vpop.permute.xlu0 %3921
      %3923 = vrot.lane.b32.xlu0 %v3386, 127
      %v3924 = vpop.permute.xlu0 %3923
      %3925 = vrot.lane.b32.xlu0 %v3387, 127
      %v3926 = vpop.permute.xlu0 %3925
      %3927 = vrot.lane.b32.xlu0 %v3388, 127
      %v3928 = vpop.permute.xlu0 %3927
      %3929 = vrot.lane.b32.xlu0 %v3389, 127
      %v3930 = vpop.permute.xlu0 %3929
      %3931 = vrot.lane.b32.xlu0 %v3390, 127
      %v3932 = vpop.permute.xlu0 %3931
      %3933 = vrot.lane.b32.xlu0 %v3391, 127
      %v3934 = vpop.permute.xlu0 %3933
      %3935 = vrot.lane.b32.xlu0 %v3392, 127
      %v3936 = vpop.permute.xlu0 %3935
      %3937 = vrot.lane.b32.xlu0 %v3393, 127
      %v3938 = vpop.permute.xlu0 %3937
      %3939 = vrot.lane.b32.xlu0 %v3394, 127
      %v3940 = vpop.permute.xlu0 %3939
      %3941 = vrot.lane.b32.xlu0 %v3395, 127
      %v3942 = vpop.permute.xlu0 %3941
      %3943 = vrot.lane.b32.xlu0 %v3396, 127
      %v3944 = vpop.permute.xlu0 %3943
      %3945 = vrot.lane.b32.xlu0 %v3397, 127
      %v3946 = vpop.permute.xlu0 %3945
      %3947 = vrot.lane.b32.xlu0 %v3398, 127
      %v3948 = vpop.permute.xlu0 %3947
      %3949 = vrot.lane.b32.xlu0 %v3399, 127
      %v3950 = vpop.permute.xlu0 %3949
      %3951 = vrot.lane.b32.xlu0 %v3400, 127
      %v3952 = vpop.permute.xlu0 %3951
      %3953 = vrot.lane.b32.xlu0 %v3401, 127
      %v3954 = vpop.permute.xlu0 %3953
      %3955 = vrot.lane.b32.xlu0 %v3402, 127
      %v3956 = vpop.permute.xlu0 %3955
      %3957 = vrot.lane.b32.xlu0 %v3403, 127
      %v3958 = vpop.permute.xlu0 %3957
      %3959 = vrot.lane.b32.xlu0 %v3404, 127
      %v3960 = vpop.permute.xlu0 %3959
      %3961 = vrot.lane.b32.xlu0 %v3405, 127
      %v3962 = vpop.permute.xlu0 %3961
      %3963 = vrot.lane.b32.xlu0 %v3406, 127
      %v3964 = vpop.permute.xlu0 %3963
      %vm3965 = vcmask 1039360
      %v3966 = vsel %vm3965, %v3826, %v3828
      %v3967 = vsel %vm3965, %v3828, %v3830
      %v3968 = vsel %vm3965, %v3830, %v3832
      %v3969 = vsel %vm3965, %v3832, %v3834
      %v3970 = vsel %vm3965, %v3834, %v3836
      %v3971 = vsel %vm3965, %v3836, %v3838
      %v3972 = vsel %vm3965, %v3838, %v3840
      %v3973 = vsel %vm3965, %v3840, %v3842
      %v3974 = vsel %vm3965, %v3842, %v3844
      %v3975 = vsel %vm3965, %v3844, %v3846
      %v3976 = vsel %vm3965, %v3846, %v3848
      %v3977 = vsel %vm3965, %v3848, %v3850
      %v3978 = vsel %vm3965, %v3850, %v3852
      %v3979 = vsel %vm3965, %v3852, %v3854
      %v3980 = vsel %vm3965, %v3854, %v3856
      %v3981 = vsel %vm3965, %v3856, %v3858
      %v3982 = vsel %vm3965, %v3858, %v3860
      %v3983 = vsel %vm3965, %v3860, %v3862
      %v3984 = vsel %vm3965, %v3862, %v3864
      %v3985 = vsel %vm3965, %v3864, %v3866
      %v3986 = vsel %vm3965, %v3866, %v3868
      %v3987 = vsel %vm3965, %v3868, %v3870
      %v3988 = vsel %vm3965, %v3870, %v3872
      %v3989 = vsel %vm3965, %v3872, %v3874
      %v3990 = vsel %vm3965, %v3874, %v3876
      %v3991 = vsel %vm3965, %v3876, %v3878
      %v3992 = vsel %vm3965, %v3878, %v3880
      %v3993 = vsel %vm3965, %v3880, %v3882
      %v3994 = vsel %vm3965, %v3882, %v3884
      %v3995 = vsel %vm3965, %v3884, %v3886
      %v3996 = vsel %vm3965, %v3886, %v3888
      %v3997 = vsel %vm3965, %v3888, %v3890
      %v3998 = vsel %vm3965, %v3890, %v3892
      %v3999 = vsel %vm3965, %v3892, %v3894
      %v4000 = vsel %vm3965, %v3894, %v3896
      %v4001 = vsel %vm3965, %v3896, %v3898
      %v4002 = vsel %vm3965, %v3898, %v3900
      %v4003 = vsel %vm3965, %v3900, %v3902
      %v4004 = vsel %vm3965, %v3902, %v3904
      %v4005 = vsel %vm3965, %v3904, %v3906
      %v4006 = vsel %vm3965, %v3906, %v3908
      %v4007 = vsel %vm3965, %v3908, %v3910
      %v4008 = vsel %vm3965, %v3910, %v3912
      %v4009 = vsel %vm3965, %v3912, %v3914
      %v4010 = vsel %vm3965, %v3914, %v3916
      %v4011 = vsel %vm3965, %v3916, %v3918
      %v4012 = vsel %vm3965, %v3918, %v3920
      %v4013 = vsel %vm3965, %v3920, %v3922
      %v4014 = vsel %vm3965, %v3922, %v3924
      %v4015 = vsel %vm3965, %v3924, %v3926
      %v4016 = vsel %vm3965, %v3926, %v3928
      %v4017 = vsel %vm3965, %v3928, %v3930
      %v4018 = vsel %vm3965, %v3930, %v3932
      %v4019 = vsel %vm3965, %v3932, %v3934
      %v4020 = vsel %vm3965, %v3934, %v3936
      %v4021 = vsel %vm3965, %v3936, %v3938
      %v4022 = vsel %vm3965, %v3938, %v3940
      %v4023 = vsel %vm3965, %v3940, %v3942
      %v4024 = vsel %vm3965, %v3942, %v3944
      %v4025 = vsel %vm3965, %v3944, %v3946
      %v4026 = vsel %vm3965, %v3946, %v3948
      %v4027 = vsel %vm3965, %v3948, %v3950
      %v4028 = vsel %vm3965, %v3950, %v3952
      %v4029 = vsel %vm3965, %v3952, %v3954
      %v4030 = vsel %vm3965, %v3954, %v3956
      %v4031 = vsel %vm3965, %v3956, %v3958
      %v4032 = vsel %vm3965, %v3958, %v3960
      %v4033 = vsel %vm3965, %v3960, %v3962
      %v4034 = vsel %vm3965, %v3962, %v3964
      %v4104 = vmax.f32 %v3756, %v3966
      %v4105 = vmax.f32 %v3757, %v3967
      %v4106 = vmax.f32 %v3758, %v3968
      %v4107 = vmax.f32 %v3759, %v3969
      %v4108 = vmax.f32 %v3760, %v3970
      %v4109 = vmax.f32 %v3761, %v3971
      %v4110 = vmax.f32 %v3762, %v3972
      %v4111 = vmax.f32 %v3763, %v3973
      %v4112 = vmax.f32 %v3764, %v3974
      %v4113 = vmax.f32 %v3765, %v3975
      %v4114 = vmax.f32 %v3766, %v3976
      %v4115 = vmax.f32 %v3767, %v3977
      %v4116 = vmax.f32 %v3768, %v3978
      %v4117 = vmax.f32 %v3769, %v3979
      %v4118 = vmax.f32 %v3770, %v3980
      %v4119 = vmax.f32 %v3771, %v3981
      %v4120 = vmax.f32 %v3772, %v3982
      %v4121 = vmax.f32 %v3773, %v3983
      %v4122 = vmax.f32 %v3774, %v3984
      %v4123 = vmax.f32 %v3775, %v3985
      %v4124 = vmax.f32 %v3776, %v3986
      %v4125 = vmax.f32 %v3777, %v3987
      %v4126 = vmax.f32 %v3778, %v3988
      %v4127 = vmax.f32 %v3779, %v3989
      %v4128 = vmax.f32 %v3780, %v3990
      %v4129 = vmax.f32 %v3781, %v3991
      %v4130 = vmax.f32 %v3782, %v3992
      %v4131 = vmax.f32 %v3783, %v3993
      %v4132 = vmax.f32 %v3784, %v3994
      %v4133 = vmax.f32 %v3785, %v3995
      %v4134 = vmax.f32 %v3786, %v3996
      %v4135 = vmax.f32 %v3787, %v3997
      %v4136 = vmax.f32 %v3788, %v3998
      %v4137 = vmax.f32 %v3789, %v3999
      %v4138 = vmax.f32 %v3790, %v4000
      %v4139 = vmax.f32 %v3791, %v4001
      %v4140 = vmax.f32 %v3792, %v4002
      %v4141 = vmax.f32 %v3793, %v4003
      %v4142 = vmax.f32 %v3794, %v4004
      %v4143 = vmax.f32 %v3795, %v4005
      %v4144 = vmax.f32 %v3796, %v4006
      %v4145 = vmax.f32 %v3797, %v4007
      %v4146 = vmax.f32 %v3798, %v4008
      %v4147 = vmax.f32 %v3799, %v4009
      %v4148 = vmax.f32 %v3800, %v4010
      %v4149 = vmax.f32 %v3801, %v4011
      %v4150 = vmax.f32 %v3802, %v4012
      %v4151 = vmax.f32 %v3803, %v4013
      %v4152 = vmax.f32 %v3804, %v4014
      %v4153 = vmax.f32 %v3805, %v4015
      %v4154 = vmax.f32 %v3806, %v4016
      %v4155 = vmax.f32 %v3807, %v4017
      %v4156 = vmax.f32 %v3808, %v4018
      %v4157 = vmax.f32 %v3809, %v4019
      %v4158 = vmax.f32 %v3810, %v4020
      %v4159 = vmax.f32 %v3811, %v4021
      %v4160 = vmax.f32 %v3812, %v4022
      %v4161 = vmax.f32 %v3813, %v4023
      %v4162 = vmax.f32 %v3814, %v4024
      %v4163 = vmax.f32 %v3815, %v4025
      %v4164 = vmax.f32 %v3816, %v4026
      %v4165 = vmax.f32 %v3817, %v4027
      %v4166 = vmax.f32 %v3818, %v4028
      %v4167 = vmax.f32 %v3819, %v4029
      %v4168 = vmax.f32 %v3820, %v4030
      %v4169 = vmax.f32 %v3821, %v4031
      %v4170 = vmax.f32 %v3822, %v4032
      %v4171 = vmax.f32 %v3823, %v4033
      %v4172 = vmax.f32 %v3824, %v4034
      %4173 = vrot.lane.b32.xlu0 %v3337, 63
      %v4174 = vpop.permute.xlu0 %4173
      %4175 = vrot.lane.b32.xlu0 %v3338, 63
      %v4176 = vpop.permute.xlu0 %4175
      %4177 = vrot.lane.b32.xlu0 %v3339, 63
      %v4178 = vpop.permute.xlu0 %4177
      %4179 = vrot.lane.b32.xlu0 %v3340, 63
      %v4180 = vpop.permute.xlu0 %4179
      %4181 = vrot.lane.b32.xlu0 %v3341, 63
      %v4182 = vpop.permute.xlu0 %4181
      %4183 = vrot.lane.b32.xlu0 %v3342, 63
      %v4184 = vpop.permute.xlu0 %4183
      %4185 = vrot.lane.b32.xlu0 %v3343, 63
      %v4186 = vpop.permute.xlu0 %4185
      %4187 = vrot.lane.b32.xlu0 %v3344, 63
      %v4188 = vpop.permute.xlu0 %4187
      %4189 = vrot.lane.b32.xlu0 %v3345, 63
      %v4190 = vpop.permute.xlu0 %4189
      %4191 = vrot.lane.b32.xlu0 %v3346, 63
      %v4192 = vpop.permute.xlu0 %4191
      %4193 = vrot.lane.b32.xlu0 %v3347, 63
      %v4194 = vpop.permute.xlu0 %4193
      %4195 = vrot.lane.b32.xlu0 %v3348, 63
      %v4196 = vpop.permute.xlu0 %4195
      %4197 = vrot.lane.b32.xlu0 %v3349, 63
      %v4198 = vpop.permute.xlu0 %4197
      %4199 = vrot.lane.b32.xlu0 %v3350, 63
      %v4200 = vpop.permute.xlu0 %4199
      %4201 = vrot.lane.b32.xlu0 %v3351, 63
      %v4202 = vpop.permute.xlu0 %4201
      %4203 = vrot.lane.b32.xlu0 %v3352, 63
      %v4204 = vpop.permute.xlu0 %4203
      %4205 = vrot.lane.b32.xlu0 %v3353, 63
      %v4206 = vpop.permute.xlu0 %4205
      %4207 = vrot.lane.b32.xlu0 %v3354, 63
      %v4208 = vpop.permute.xlu0 %4207
      %4209 = vrot.lane.b32.xlu0 %v3355, 63
      %v4210 = vpop.permute.xlu0 %4209
      %4211 = vrot.lane.b32.xlu0 %v3356, 63
      %v4212 = vpop.permute.xlu0 %4211
      %4213 = vrot.lane.b32.xlu0 %v3357, 63
      %v4214 = vpop.permute.xlu0 %4213
      %4215 = vrot.lane.b32.xlu0 %v3358, 63
      %v4216 = vpop.permute.xlu0 %4215
      %4217 = vrot.lane.b32.xlu0 %v3359, 63
      %v4218 = vpop.permute.xlu0 %4217
      %4219 = vrot.lane.b32.xlu0 %v3360, 63
      %v4220 = vpop.permute.xlu0 %4219
      %4221 = vrot.lane.b32.xlu0 %v3361, 63
      %v4222 = vpop.permute.xlu0 %4221
      %4223 = vrot.lane.b32.xlu0 %v3362, 63
      %v4224 = vpop.permute.xlu0 %4223
      %4225 = vrot.lane.b32.xlu0 %v3363, 63
      %v4226 = vpop.permute.xlu0 %4225
      %4227 = vrot.lane.b32.xlu0 %v3364, 63
      %v4228 = vpop.permute.xlu0 %4227
      %4229 = vrot.lane.b32.xlu0 %v3365, 63
      %v4230 = vpop.permute.xlu0 %4229
      %4231 = vrot.lane.b32.xlu0 %v3366, 63
      %v4232 = vpop.permute.xlu0 %4231
      %4233 = vrot.lane.b32.xlu0 %v3367, 63
      %v4234 = vpop.permute.xlu0 %4233
      %4235 = vrot.lane.b32.xlu0 %v3368, 63
      %v4236 = vpop.permute.xlu0 %4235
      %4237 = vrot.lane.b32.xlu0 %v3369, 63
      %v4238 = vpop.permute.xlu0 %4237
      %4239 = vrot.lane.b32.xlu0 %v3370, 63
      %v4240 = vpop.permute.xlu0 %4239
      %4241 = vrot.lane.b32.xlu0 %v3371, 63
      %v4242 = vpop.permute.xlu0 %4241
      %4243 = vrot.lane.b32.xlu0 %v3372, 63
      %v4244 = vpop.permute.xlu0 %4243
      %4245 = vrot.lane.b32.xlu0 %v3373, 63
      %v4246 = vpop.permute.xlu0 %4245
      %4247 = vrot.lane.b32.xlu0 %v3374, 63
      %v4248 = vpop.permute.xlu0 %4247
      %4249 = vrot.lane.b32.xlu0 %v3375, 63
      %v4250 = vpop.permute.xlu0 %4249
      %4251 = vrot.lane.b32.xlu0 %v3376, 63
      %v4252 = vpop.permute.xlu0 %4251
      %4253 = vrot.lane.b32.xlu0 %v3377, 63
      %v4254 = vpop.permute.xlu0 %4253
      %4255 = vrot.lane.b32.xlu0 %v3378, 63
      %v4256 = vpop.permute.xlu0 %4255
      %4257 = vrot.lane.b32.xlu0 %v3379, 63
      %v4258 = vpop.permute.xlu0 %4257
      %4259 = vrot.lane.b32.xlu0 %v3380, 63
      %v4260 = vpop.permute.xlu0 %4259
      %4261 = vrot.lane.b32.xlu0 %v3381, 63
      %v4262 = vpop.permute.xlu0 %4261
      %4263 = vrot.lane.b32.xlu0 %v3382, 63
      %v4264 = vpop.permute.xlu0 %4263
      %4265 = vrot.lane.b32.xlu0 %v3383, 63
      %v4266 = vpop.permute.xlu0 %4265
      %4267 = vrot.lane.b32.xlu0 %v3384, 63
      %v4268 = vpop.permute.xlu0 %4267
      %4269 = vrot.lane.b32.xlu0 %v3385, 63
      %v4270 = vpop.permute.xlu0 %4269
      %4271 = vrot.lane.b32.xlu0 %v3386, 63
      %v4272 = vpop.permute.xlu0 %4271
      %4273 = vrot.lane.b32.xlu0 %v3387, 63
      %v4274 = vpop.permute.xlu0 %4273
      %4275 = vrot.lane.b32.xlu0 %v3388, 63
      %v4276 = vpop.permute.xlu0 %4275
      %4277 = vrot.lane.b32.xlu0 %v3389, 63
      %v4278 = vpop.permute.xlu0 %4277
      %4279 = vrot.lane.b32.xlu0 %v3390, 63
      %v4280 = vpop.permute.xlu0 %4279
      %4281 = vrot.lane.b32.xlu0 %v3391, 63
      %v4282 = vpop.permute.xlu0 %4281
      %4283 = vrot.lane.b32.xlu0 %v3392, 63
      %v4284 = vpop.permute.xlu0 %4283
      %4285 = vrot.lane.b32.xlu0 %v3393, 63
      %v4286 = vpop.permute.xlu0 %4285
      %4287 = vrot.lane.b32.xlu0 %v3394, 63
      %v4288 = vpop.permute.xlu0 %4287
      %4289 = vrot.lane.b32.xlu0 %v3395, 63
      %v4290 = vpop.permute.xlu0 %4289
      %4291 = vrot.lane.b32.xlu0 %v3396, 63
      %v4292 = vpop.permute.xlu0 %4291
      %4293 = vrot.lane.b32.xlu0 %v3397, 63
      %v4294 = vpop.permute.xlu0 %4293
      %4295 = vrot.lane.b32.xlu0 %v3398, 63
      %v4296 = vpop.permute.xlu0 %4295
      %4297 = vrot.lane.b32.xlu0 %v3399, 63
      %v4298 = vpop.permute.xlu0 %4297
      %4299 = vrot.lane.b32.xlu0 %v3400, 63
      %v4300 = vpop.permute.xlu0 %4299
      %4301 = vrot.lane.b32.xlu0 %v3401, 63
      %v4302 = vpop.permute.xlu0 %4301
      %4303 = vrot.lane.b32.xlu0 %v3402, 63
      %v4304 = vpop.permute.xlu0 %4303
      %4305 = vrot.lane.b32.xlu0 %v3403, 63
      %v4306 = vpop.permute.xlu0 %4305
      %4307 = vrot.lane.b32.xlu0 %v3404, 63
      %v4308 = vpop.permute.xlu0 %4307
      %4309 = vrot.lane.b32.xlu0 %v3405, 63
      %v4310 = vpop.permute.xlu0 %4309
      %4311 = vrot.lane.b32.xlu0 %v3406, 63
      %v4312 = vpop.permute.xlu0 %4311
      %vm4313 = vcmask 515072
      %v4314 = vsel %vm4313, %v4174, %v4176
      %v4315 = vsel %vm4313, %v4176, %v4178
      %v4316 = vsel %vm4313, %v4178, %v4180
      %v4317 = vsel %vm4313, %v4180, %v4182
      %v4318 = vsel %vm4313, %v4182, %v4184
      %v4319 = vsel %vm4313, %v4184, %v4186
      %v4320 = vsel %vm4313, %v4186, %v4188
      %v4321 = vsel %vm4313, %v4188, %v4190
      %v4322 = vsel %vm4313, %v4190, %v4192
      %v4323 = vsel %vm4313, %v4192, %v4194
      %v4324 = vsel %vm4313, %v4194, %v4196
      %v4325 = vsel %vm4313, %v4196, %v4198
      %v4326 = vsel %vm4313, %v4198, %v4200
      %v4327 = vsel %vm4313, %v4200, %v4202
      %v4328 = vsel %vm4313, %v4202, %v4204
      %v4329 = vsel %vm4313, %v4204, %v4206
      %v4330 = vsel %vm4313, %v4206, %v4208
      %v4331 = vsel %vm4313, %v4208, %v4210
      %v4332 = vsel %vm4313, %v4210, %v4212
      %v4333 = vsel %vm4313, %v4212, %v4214
      %v4334 = vsel %vm4313, %v4214, %v4216
      %v4335 = vsel %vm4313, %v4216, %v4218
      %v4336 = vsel %vm4313, %v4218, %v4220
      %v4337 = vsel %vm4313, %v4220, %v4222
      %v4338 = vsel %vm4313, %v4222, %v4224
      %v4339 = vsel %vm4313, %v4224, %v4226
      %v4340 = vsel %vm4313, %v4226, %v4228
      %v4341 = vsel %vm4313, %v4228, %v4230
      %v4342 = vsel %vm4313, %v4230, %v4232
      %v4343 = vsel %vm4313, %v4232, %v4234
      %v4344 = vsel %vm4313, %v4234, %v4236
      %v4345 = vsel %vm4313, %v4236, %v4238
      %v4346 = vsel %vm4313, %v4238, %v4240
      %v4347 = vsel %vm4313, %v4240, %v4242
      %v4348 = vsel %vm4313, %v4242, %v4244
      %v4349 = vsel %vm4313, %v4244, %v4246
      %v4350 = vsel %vm4313, %v4246, %v4248
      %v4351 = vsel %vm4313, %v4248, %v4250
      %v4352 = vsel %vm4313, %v4250, %v4252
      %v4353 = vsel %vm4313, %v4252, %v4254
      %v4354 = vsel %vm4313, %v4254, %v4256
      %v4355 = vsel %vm4313, %v4256, %v4258
      %v4356 = vsel %vm4313, %v4258, %v4260
      %v4357 = vsel %vm4313, %v4260, %v4262
      %v4358 = vsel %vm4313, %v4262, %v4264
      %v4359 = vsel %vm4313, %v4264, %v4266
      %v4360 = vsel %vm4313, %v4266, %v4268
      %v4361 = vsel %vm4313, %v4268, %v4270
      %v4362 = vsel %vm4313, %v4270, %v4272
      %v4363 = vsel %vm4313, %v4272, %v4274
      %v4364 = vsel %vm4313, %v4274, %v4276
      %v4365 = vsel %vm4313, %v4276, %v4278
      %v4366 = vsel %vm4313, %v4278, %v4280
      %v4367 = vsel %vm4313, %v4280, %v4282
      %v4368 = vsel %vm4313, %v4282, %v4284
      %v4369 = vsel %vm4313, %v4284, %v4286
      %v4370 = vsel %vm4313, %v4286, %v4288
      %v4371 = vsel %vm4313, %v4288, %v4290
      %v4372 = vsel %vm4313, %v4290, %v4292
      %v4373 = vsel %vm4313, %v4292, %v4294
      %v4374 = vsel %vm4313, %v4294, %v4296
      %v4375 = vsel %vm4313, %v4296, %v4298
      %v4376 = vsel %vm4313, %v4298, %v4300
      %v4377 = vsel %vm4313, %v4300, %v4302
      %v4378 = vsel %vm4313, %v4302, %v4304
      %v4379 = vsel %vm4313, %v4304, %v4306
      %v4380 = vsel %vm4313, %v4306, %v4308
      %v4381 = vsel %vm4313, %v4308, %v4310
      %v4382 = vsel %vm4313, %v4310, %v4312
      %v4452 = vmax.f32 %v4104, %v4314
      %v4453 = vmax.f32 %v4105, %v4315
      %v4454 = vmax.f32 %v4106, %v4316
      %v4455 = vmax.f32 %v4107, %v4317
      %v4456 = vmax.f32 %v4108, %v4318
      %v4457 = vmax.f32 %v4109, %v4319
      %v4458 = vmax.f32 %v4110, %v4320
      %v4459 = vmax.f32 %v4111, %v4321
      %v4460 = vmax.f32 %v4112, %v4322
      %v4461 = vmax.f32 %v4113, %v4323
      %v4462 = vmax.f32 %v4114, %v4324
      %v4463 = vmax.f32 %v4115, %v4325
      %v4464 = vmax.f32 %v4116, %v4326
      %v4465 = vmax.f32 %v4117, %v4327
      %v4466 = vmax.f32 %v4118, %v4328
      %v4467 = vmax.f32 %v4119, %v4329
      %v4468 = vmax.f32 %v4120, %v4330
      %v4469 = vmax.f32 %v4121, %v4331
      %v4470 = vmax.f32 %v4122, %v4332
      %v4471 = vmax.f32 %v4123, %v4333
      %v4472 = vmax.f32 %v4124, %v4334
      %v4473 = vmax.f32 %v4125, %v4335
      %v4474 = vmax.f32 %v4126, %v4336
      %v4475 = vmax.f32 %v4127, %v4337
      %v4476 = vmax.f32 %v4128, %v4338
      %v4477 = vmax.f32 %v4129, %v4339
      %v4478 = vmax.f32 %v4130, %v4340
      %v4479 = vmax.f32 %v4131, %v4341
      %v4480 = vmax.f32 %v4132, %v4342
      %v4481 = vmax.f32 %v4133, %v4343
      %v4482 = vmax.f32 %v4134, %v4344
      %v4483 = vmax.f32 %v4135, %v4345
      %v4484 = vmax.f32 %v4136, %v4346
      %v4485 = vmax.f32 %v4137, %v4347
      %v4486 = vmax.f32 %v4138, %v4348
      %v4487 = vmax.f32 %v4139, %v4349
      %v4488 = vmax.f32 %v4140, %v4350
      %v4489 = vmax.f32 %v4141, %v4351
      %v4490 = vmax.f32 %v4142, %v4352
      %v4491 = vmax.f32 %v4143, %v4353
      %v4492 = vmax.f32 %v4144, %v4354
      %v4493 = vmax.f32 %v4145, %v4355
      %v4494 = vmax.f32 %v4146, %v4356
      %v4495 = vmax.f32 %v4147, %v4357
      %v4496 = vmax.f32 %v4148, %v4358
      %v4497 = vmax.f32 %v4149, %v4359
      %v4498 = vmax.f32 %v4150, %v4360
      %v4499 = vmax.f32 %v4151, %v4361
      %v4500 = vmax.f32 %v4152, %v4362
      %v4501 = vmax.f32 %v4153, %v4363
      %v4502 = vmax.f32 %v4154, %v4364
      %v4503 = vmax.f32 %v4155, %v4365
      %v4504 = vmax.f32 %v4156, %v4366
      %v4505 = vmax.f32 %v4157, %v4367
      %v4506 = vmax.f32 %v4158, %v4368
      %v4507 = vmax.f32 %v4159, %v4369
      %v4508 = vmax.f32 %v4160, %v4370
      %v4509 = vmax.f32 %v4161, %v4371
      %v4510 = vmax.f32 %v4162, %v4372
      %v4511 = vmax.f32 %v4163, %v4373
      %v4512 = vmax.f32 %v4164, %v4374
      %v4513 = vmax.f32 %v4165, %v4375
      %v4514 = vmax.f32 %v4166, %v4376
      %v4515 = vmax.f32 %v4167, %v4377
      %v4516 = vmax.f32 %v4168, %v4378
      %v4517 = vmax.f32 %v4169, %v4379
      %v4518 = vmax.f32 %v4170, %v4380
      %v4519 = vmax.f32 %v4171, %v4381
      %v4520 = vmax.f32 %v4172, %v4382
      %4521 = vrot.lane.b32.xlu0 %v3337, 126
      %v4522 = vpop.permute.xlu0 %4521
      %4523 = vrot.lane.b32.xlu0 %v3338, 126
      %v4524 = vpop.permute.xlu0 %4523
      %4525 = vrot.lane.b32.xlu0 %v3339, 126
      %v4526 = vpop.permute.xlu0 %4525
      %4527 = vrot.lane.b32.xlu0 %v3340, 126
      %v4528 = vpop.permute.xlu0 %4527
      %4529 = vrot.lane.b32.xlu0 %v3341, 126
      %v4530 = vpop.permute.xlu0 %4529
      %4531 = vrot.lane.b32.xlu0 %v3342, 126
      %v4532 = vpop.permute.xlu0 %4531
      %4533 = vrot.lane.b32.xlu0 %v3343, 126
      %v4534 = vpop.permute.xlu0 %4533
      %4535 = vrot.lane.b32.xlu0 %v3344, 126
      %v4536 = vpop.permute.xlu0 %4535
      %4537 = vrot.lane.b32.xlu0 %v3345, 126
      %v4538 = vpop.permute.xlu0 %4537
      %4539 = vrot.lane.b32.xlu0 %v3346, 126
      %v4540 = vpop.permute.xlu0 %4539
      %4541 = vrot.lane.b32.xlu0 %v3347, 126
      %v4542 = vpop.permute.xlu0 %4541
      %4543 = vrot.lane.b32.xlu0 %v3348, 126
      %v4544 = vpop.permute.xlu0 %4543
      %4545 = vrot.lane.b32.xlu0 %v3349, 126
      %v4546 = vpop.permute.xlu0 %4545
      %4547 = vrot.lane.b32.xlu0 %v3350, 126
      %v4548 = vpop.permute.xlu0 %4547
      %4549 = vrot.lane.b32.xlu0 %v3351, 126
      %v4550 = vpop.permute.xlu0 %4549
      %4551 = vrot.lane.b32.xlu0 %v3352, 126
      %v4552 = vpop.permute.xlu0 %4551
      %4553 = vrot.lane.b32.xlu0 %v3353, 126
      %v4554 = vpop.permute.xlu0 %4553
      %4555 = vrot.lane.b32.xlu0 %v3354, 126
      %v4556 = vpop.permute.xlu0 %4555
      %4557 = vrot.lane.b32.xlu0 %v3355, 126
      %v4558 = vpop.permute.xlu0 %4557
      %4559 = vrot.lane.b32.xlu0 %v3356, 126
      %v4560 = vpop.permute.xlu0 %4559
      %4561 = vrot.lane.b32.xlu0 %v3357, 126
      %v4562 = vpop.permute.xlu0 %4561
      %4563 = vrot.lane.b32.xlu0 %v3358, 126
      %v4564 = vpop.permute.xlu0 %4563
      %4565 = vrot.lane.b32.xlu0 %v3359, 126
      %v4566 = vpop.permute.xlu0 %4565
      %4567 = vrot.lane.b32.xlu0 %v3360, 126
      %v4568 = vpop.permute.xlu0 %4567
      %4569 = vrot.lane.b32.xlu0 %v3361, 126
      %v4570 = vpop.permute.xlu0 %4569
      %4571 = vrot.lane.b32.xlu0 %v3362, 126
      %v4572 = vpop.permute.xlu0 %4571
      %4573 = vrot.lane.b32.xlu0 %v3363, 126
      %v4574 = vpop.permute.xlu0 %4573
      %4575 = vrot.lane.b32.xlu0 %v3364, 126
      %v4576 = vpop.permute.xlu0 %4575
      %4577 = vrot.lane.b32.xlu0 %v3365, 126
      %v4578 = vpop.permute.xlu0 %4577
      %4579 = vrot.lane.b32.xlu0 %v3366, 126
      %v4580 = vpop.permute.xlu0 %4579
      %4581 = vrot.lane.b32.xlu0 %v3367, 126
      %v4582 = vpop.permute.xlu0 %4581
      %4583 = vrot.lane.b32.xlu0 %v3368, 126
      %v4584 = vpop.permute.xlu0 %4583
      %4585 = vrot.lane.b32.xlu0 %v3369, 126
      %v4586 = vpop.permute.xlu0 %4585
      %4587 = vrot.lane.b32.xlu0 %v3370, 126
      %v4588 = vpop.permute.xlu0 %4587
      %4589 = vrot.lane.b32.xlu0 %v3371, 126
      %v4590 = vpop.permute.xlu0 %4589
      %4591 = vrot.lane.b32.xlu0 %v3372, 126
      %v4592 = vpop.permute.xlu0 %4591
      %4593 = vrot.lane.b32.xlu0 %v3373, 126
      %v4594 = vpop.permute.xlu0 %4593
      %4595 = vrot.lane.b32.xlu0 %v3374, 126
      %v4596 = vpop.permute.xlu0 %4595
      %4597 = vrot.lane.b32.xlu0 %v3375, 126
      %v4598 = vpop.permute.xlu0 %4597
      %4599 = vrot.lane.b32.xlu0 %v3376, 126
      %v4600 = vpop.permute.xlu0 %4599
      %4601 = vrot.lane.b32.xlu0 %v3377, 126
      %v4602 = vpop.permute.xlu0 %4601
      %4603 = vrot.lane.b32.xlu0 %v3378, 126
      %v4604 = vpop.permute.xlu0 %4603
      %4605 = vrot.lane.b32.xlu0 %v3379, 126
      %v4606 = vpop.permute.xlu0 %4605
      %4607 = vrot.lane.b32.xlu0 %v3380, 126
      %v4608 = vpop.permute.xlu0 %4607
      %4609 = vrot.lane.b32.xlu0 %v3381, 126
      %v4610 = vpop.permute.xlu0 %4609
      %4611 = vrot.lane.b32.xlu0 %v3382, 126
      %v4612 = vpop.permute.xlu0 %4611
      %4613 = vrot.lane.b32.xlu0 %v3383, 126
      %v4614 = vpop.permute.xlu0 %4613
      %4615 = vrot.lane.b32.xlu0 %v3384, 126
      %v4616 = vpop.permute.xlu0 %4615
      %4617 = vrot.lane.b32.xlu0 %v3385, 126
      %v4618 = vpop.permute.xlu0 %4617
      %4619 = vrot.lane.b32.xlu0 %v3386, 126
      %v4620 = vpop.permute.xlu0 %4619
      %4621 = vrot.lane.b32.xlu0 %v3387, 126
      %v4622 = vpop.permute.xlu0 %4621
      %4623 = vrot.lane.b32.xlu0 %v3388, 126
      %v4624 = vpop.permute.xlu0 %4623
      %4625 = vrot.lane.b32.xlu0 %v3389, 126
      %v4626 = vpop.permute.xlu0 %4625
      %4627 = vrot.lane.b32.xlu0 %v3390, 126
      %v4628 = vpop.permute.xlu0 %4627
      %4629 = vrot.lane.b32.xlu0 %v3391, 126
      %v4630 = vpop.permute.xlu0 %4629
      %4631 = vrot.lane.b32.xlu0 %v3392, 126
      %v4632 = vpop.permute.xlu0 %4631
      %4633 = vrot.lane.b32.xlu0 %v3393, 126
      %v4634 = vpop.permute.xlu0 %4633
      %4635 = vrot.lane.b32.xlu0 %v3394, 126
      %v4636 = vpop.permute.xlu0 %4635
      %4637 = vrot.lane.b32.xlu0 %v3395, 126
      %v4638 = vpop.permute.xlu0 %4637
      %4639 = vrot.lane.b32.xlu0 %v3396, 126
      %v4640 = vpop.permute.xlu0 %4639
      %4641 = vrot.lane.b32.xlu0 %v3397, 126
      %v4642 = vpop.permute.xlu0 %4641
      %4643 = vrot.lane.b32.xlu0 %v3398, 126
      %v4644 = vpop.permute.xlu0 %4643
      %4645 = vrot.lane.b32.xlu0 %v3399, 126
      %v4646 = vpop.permute.xlu0 %4645
      %4647 = vrot.lane.b32.xlu0 %v3400, 126
      %v4648 = vpop.permute.xlu0 %4647
      %4649 = vrot.lane.b32.xlu0 %v3401, 126
      %v4650 = vpop.permute.xlu0 %4649
      %4651 = vrot.lane.b32.xlu0 %v3402, 126
      %v4652 = vpop.permute.xlu0 %4651
      %4653 = vrot.lane.b32.xlu0 %v3403, 126
      %v4654 = vpop.permute.xlu0 %4653
      %4655 = vrot.lane.b32.xlu0 %v3404, 126
      %v4656 = vpop.permute.xlu0 %4655
      %4657 = vrot.lane.b32.xlu0 %v3405, 126
      %v4658 = vpop.permute.xlu0 %4657
      %4659 = vrot.lane.b32.xlu0 %v3406, 126
      %v4660 = vpop.permute.xlu0 %4659
      %vm4661 = vcmask 1031168
      %v4662 = vsel %vm4661, %v4522, %v4524
      %v4663 = vsel %vm4661, %v4524, %v4526
      %v4664 = vsel %vm4661, %v4526, %v4528
      %v4665 = vsel %vm4661, %v4528, %v4530
      %v4666 = vsel %vm4661, %v4530, %v4532
      %v4667 = vsel %vm4661, %v4532, %v4534
      %v4668 = vsel %vm4661, %v4534, %v4536
      %v4669 = vsel %vm4661, %v4536, %v4538
      %v4670 = vsel %vm4661, %v4538, %v4540
      %v4671 = vsel %vm4661, %v4540, %v4542
      %v4672 = vsel %vm4661, %v4542, %v4544
      %v4673 = vsel %vm4661, %v4544, %v4546
      %v4674 = vsel %vm4661, %v4546, %v4548
      %v4675 = vsel %vm4661, %v4548, %v4550
      %v4676 = vsel %vm4661, %v4550, %v4552
      %v4677 = vsel %vm4661, %v4552, %v4554
      %v4678 = vsel %vm4661, %v4554, %v4556
      %v4679 = vsel %vm4661, %v4556, %v4558
      %v4680 = vsel %vm4661, %v4558, %v4560
      %v4681 = vsel %vm4661, %v4560, %v4562
      %v4682 = vsel %vm4661, %v4562, %v4564
      %v4683 = vsel %vm4661, %v4564, %v4566
      %v4684 = vsel %vm4661, %v4566, %v4568
      %v4685 = vsel %vm4661, %v4568, %v4570
      %v4686 = vsel %vm4661, %v4570, %v4572
      %v4687 = vsel %vm4661, %v4572, %v4574
      %v4688 = vsel %vm4661, %v4574, %v4576
      %v4689 = vsel %vm4661, %v4576, %v4578
      %v4690 = vsel %vm4661, %v4578, %v4580
      %v4691 = vsel %vm4661, %v4580, %v4582
      %v4692 = vsel %vm4661, %v4582, %v4584
      %v4693 = vsel %vm4661, %v4584, %v4586
      %v4694 = vsel %vm4661, %v4586, %v4588
      %v4695 = vsel %vm4661, %v4588, %v4590
      %v4696 = vsel %vm4661, %v4590, %v4592
      %v4697 = vsel %vm4661, %v4592, %v4594
      %v4698 = vsel %vm4661, %v4594, %v4596
      %v4699 = vsel %vm4661, %v4596, %v4598
      %v4700 = vsel %vm4661, %v4598, %v4600
      %v4701 = vsel %vm4661, %v4600, %v4602
      %v4702 = vsel %vm4661, %v4602, %v4604
      %v4703 = vsel %vm4661, %v4604, %v4606
      %v4704 = vsel %vm4661, %v4606, %v4608
      %v4705 = vsel %vm4661, %v4608, %v4610
      %v4706 = vsel %vm4661, %v4610, %v4612
      %v4707 = vsel %vm4661, %v4612, %v4614
      %v4708 = vsel %vm4661, %v4614, %v4616
      %v4709 = vsel %vm4661, %v4616, %v4618
      %v4710 = vsel %vm4661, %v4618, %v4620
      %v4711 = vsel %vm4661, %v4620, %v4622
      %v4712 = vsel %vm4661, %v4622, %v4624
      %v4713 = vsel %vm4661, %v4624, %v4626
      %v4714 = vsel %vm4661, %v4626, %v4628
      %v4715 = vsel %vm4661, %v4628, %v4630
      %v4716 = vsel %vm4661, %v4630, %v4632
      %v4717 = vsel %vm4661, %v4632, %v4634
      %v4718 = vsel %vm4661, %v4634, %v4636
      %v4719 = vsel %vm4661, %v4636, %v4638
      %v4720 = vsel %vm4661, %v4638, %v4640
      %v4721 = vsel %vm4661, %v4640, %v4642
      %v4722 = vsel %vm4661, %v4642, %v4644
      %v4723 = vsel %vm4661, %v4644, %v4646
      %v4724 = vsel %vm4661, %v4646, %v4648
      %v4725 = vsel %vm4661, %v4648, %v4650
      %v4726 = vsel %vm4661, %v4650, %v4652
      %v4727 = vsel %vm4661, %v4652, %v4654
      %v4728 = vsel %vm4661, %v4654, %v4656
      %v4729 = vsel %vm4661, %v4656, %v4658
      %v4730 = vsel %vm4661, %v4658, %v4660
      %v4800 = vmax.f32 %v4452, %v4662
      %v4801 = vmax.f32 %v4453, %v4663
      %v4802 = vmax.f32 %v4454, %v4664
      %v4803 = vmax.f32 %v4455, %v4665
      %v4804 = vmax.f32 %v4456, %v4666
      %v4805 = vmax.f32 %v4457, %v4667
      %v4806 = vmax.f32 %v4458, %v4668
      %v4807 = vmax.f32 %v4459, %v4669
      %v4808 = vmax.f32 %v4460, %v4670
      %v4809 = vmax.f32 %v4461, %v4671
      %v4810 = vmax.f32 %v4462, %v4672
      %v4811 = vmax.f32 %v4463, %v4673
      %v4812 = vmax.f32 %v4464, %v4674
      %v4813 = vmax.f32 %v4465, %v4675
      %v4814 = vmax.f32 %v4466, %v4676
      %v4815 = vmax.f32 %v4467, %v4677
      %v4816 = vmax.f32 %v4468, %v4678
      %v4817 = vmax.f32 %v4469, %v4679
      %v4818 = vmax.f32 %v4470, %v4680
      %v4819 = vmax.f32 %v4471, %v4681
      %v4820 = vmax.f32 %v4472, %v4682
      %v4821 = vmax.f32 %v4473, %v4683
      %v4822 = vmax.f32 %v4474, %v4684
      %v4823 = vmax.f32 %v4475, %v4685
      %v4824 = vmax.f32 %v4476, %v4686
      %v4825 = vmax.f32 %v4477, %v4687
      %v4826 = vmax.f32 %v4478, %v4688
      %v4827 = vmax.f32 %v4479, %v4689
      %v4828 = vmax.f32 %v4480, %v4690
      %v4829 = vmax.f32 %v4481, %v4691
      %v4830 = vmax.f32 %v4482, %v4692
      %v4831 = vmax.f32 %v4483, %v4693
      %v4832 = vmax.f32 %v4484, %v4694
      %v4833 = vmax.f32 %v4485, %v4695
      %v4834 = vmax.f32 %v4486, %v4696
      %v4835 = vmax.f32 %v4487, %v4697
      %v4836 = vmax.f32 %v4488, %v4698
      %v4837 = vmax.f32 %v4489, %v4699
      %v4838 = vmax.f32 %v4490, %v4700
      %v4839 = vmax.f32 %v4491, %v4701
      %v4840 = vmax.f32 %v4492, %v4702
      %v4841 = vmax.f32 %v4493, %v4703
      %v4842 = vmax.f32 %v4494, %v4704
      %v4843 = vmax.f32 %v4495, %v4705
      %v4844 = vmax.f32 %v4496, %v4706
      %v4845 = vmax.f32 %v4497, %v4707
      %v4846 = vmax.f32 %v4498, %v4708
      %v4847 = vmax.f32 %v4499, %v4709
      %v4848 = vmax.f32 %v4500, %v4710
      %v4849 = vmax.f32 %v4501, %v4711
      %v4850 = vmax.f32 %v4502, %v4712
      %v4851 = vmax.f32 %v4503, %v4713
      %v4852 = vmax.f32 %v4504, %v4714
      %v4853 = vmax.f32 %v4505, %v4715
      %v4854 = vmax.f32 %v4506, %v4716
      %v4855 = vmax.f32 %v4507, %v4717
      %v4856 = vmax.f32 %v4508, %v4718
      %v4857 = vmax.f32 %v4509, %v4719
      %v4858 = vmax.f32 %v4510, %v4720
      %v4859 = vmax.f32 %v4511, %v4721
      %v4860 = vmax.f32 %v4512, %v4722
      %v4861 = vmax.f32 %v4513, %v4723
      %v4862 = vmax.f32 %v4514, %v4724
      %v4863 = vmax.f32 %v4515, %v4725
      %v4864 = vmax.f32 %v4516, %v4726
      %v4865 = vmax.f32 %v4517, %v4727
      %v4866 = vmax.f32 %v4518, %v4728
      %v4867 = vmax.f32 %v4519, %v4729
      %v4868 = vmax.f32 %v4520, %v4730
      %v4869 = vmax.f32 %v4800, %v4835
      %v4870 = vmax.f32 %v4801, %v4836
      %v4871 = vmax.f32 %v4802, %v4837
      %v4872 = vmax.f32 %v4803, %v4838
      %v4873 = vmax.f32 %v4804, %v4839
      %v4874 = vmax.f32 %v4805, %v4840
      %v4875 = vmax.f32 %v4806, %v4841
      %v4876 = vmax.f32 %v4807, %v4842
      %v4877 = vmax.f32 %v4808, %v4843
      %v4878 = vmax.f32 %v4809, %v4844
      %v4879 = vmax.f32 %v4810, %v4845
      %v4880 = vmax.f32 %v4811, %v4846
      %v4881 = vmax.f32 %v4812, %v4847
      %v4882 = vmax.f32 %v4813, %v4848
      %v4883 = vmax.f32 %v4814, %v4849
      %v4884 = vmax.f32 %v4815, %v4850
      %v4885 = vmax.f32 %v4816, %v4851
      %v4886 = vmax.f32 %v4817, %v4852
      %v4887 = vmax.f32 %v4818, %v4853
      %v4888 = vmax.f32 %v4819, %v4854
      %v4889 = vmax.f32 %v4820, %v4855
      %v4890 = vmax.f32 %v4821, %v4856
      %v4891 = vmax.f32 %v4822, %v4857
      %v4892 = vmax.f32 %v4823, %v4858
      %v4893 = vmax.f32 %v4824, %v4859
      %v4894 = vmax.f32 %v4825, %v4860
      %v4895 = vmax.f32 %v4826, %v4861
      %v4896 = vmax.f32 %v4827, %v4862
      %v4897 = vmax.f32 %v4828, %v4863
      %v4898 = vmax.f32 %v4829, %v4864
      %v4899 = vmax.f32 %v4830, %v4865
      %v4900 = vmax.f32 %v4831, %v4866
      %v4901 = vmax.f32 %v4832, %v4867
      %v4902 = vmax.f32 %v4869, %v4801
      %v4903 = vmax.f32 %v4870, %v4802
      %v4904 = vmax.f32 %v4871, %v4803
      %v4905 = vmax.f32 %v4872, %v4804
      %v4906 = vmax.f32 %v4873, %v4805
      %v4907 = vmax.f32 %v4874, %v4806
      %v4908 = vmax.f32 %v4875, %v4807
      %v4909 = vmax.f32 %v4876, %v4808
      %v4910 = vmax.f32 %v4877, %v4809
      %v4911 = vmax.f32 %v4878, %v4810
      %v4912 = vmax.f32 %v4879, %v4811
      %v4913 = vmax.f32 %v4880, %v4812
      %v4914 = vmax.f32 %v4881, %v4813
      %v4915 = vmax.f32 %v4882, %v4814
      %v4916 = vmax.f32 %v4883, %v4815
      %v4917 = vmax.f32 %v4884, %v4816
      %v4918 = vmax.f32 %v4885, %v4817
      %v4919 = vmax.f32 %v4886, %v4818
      %v4920 = vmax.f32 %v4887, %v4819
      %v4921 = vmax.f32 %v4888, %v4820
      %v4922 = vmax.f32 %v4889, %v4821
      %v4923 = vmax.f32 %v4890, %v4822
      %v4924 = vmax.f32 %v4891, %v4823
      %v4925 = vmax.f32 %v4892, %v4824
      %v4926 = vmax.f32 %v4893, %v4825
      %v4927 = vmax.f32 %v4894, %v4826
      %v4928 = vmax.f32 %v4895, %v4827
      %v4929 = vmax.f32 %v4896, %v4828
      %v4930 = vmax.f32 %v4897, %v4829
      %v4931 = vmax.f32 %v4898, %v4830
      %v4932 = vmax.f32 %v4899, %v4831
      %v4933 = vmax.f32 %v4900, %v4832
      %v4934 = vmax.f32 %v4901, %v4833
      %v4935 = vmax.f32 %v4902, %v4836
      %v4936 = vmax.f32 %v4903, %v4837
      %v4937 = vmax.f32 %v4904, %v4838
      %v4938 = vmax.f32 %v4905, %v4839
      %v4939 = vmax.f32 %v4906, %v4840
      %v4940 = vmax.f32 %v4907, %v4841
      %v4941 = vmax.f32 %v4908, %v4842
      %v4942 = vmax.f32 %v4909, %v4843
      %v4943 = vmax.f32 %v4910, %v4844
      %v4944 = vmax.f32 %v4911, %v4845
      %v4945 = vmax.f32 %v4912, %v4846
      %v4946 = vmax.f32 %v4913, %v4847
      %v4947 = vmax.f32 %v4914, %v4848
      %v4948 = vmax.f32 %v4915, %v4849
      %v4949 = vmax.f32 %v4916, %v4850
      %v4950 = vmax.f32 %v4917, %v4851
      %v4951 = vmax.f32 %v4918, %v4852
      %v4952 = vmax.f32 %v4919, %v4853
      %v4953 = vmax.f32 %v4920, %v4854
      %v4954 = vmax.f32 %v4921, %v4855
      %v4955 = vmax.f32 %v4922, %v4856
      %v4956 = vmax.f32 %v4923, %v4857
      %v4957 = vmax.f32 %v4924, %v4858
      %v4958 = vmax.f32 %v4925, %v4859
      %v4959 = vmax.f32 %v4926, %v4860
      %v4960 = vmax.f32 %v4927, %v4861
      %v4961 = vmax.f32 %v4928, %v4862
      %v4962 = vmax.f32 %v4929, %v4863
      %v4963 = vmax.f32 %v4930, %v4864
      %v4964 = vmax.f32 %v4931, %v4865
      %v4965 = vmax.f32 %v4932, %v4866
      %v4966 = vmax.f32 %v4933, %v4867
      %v4967 = vmax.f32 %v4934, %v4868
      %v4968 = vmax.f32 %v4935, %v4802
      %v4969 = vmax.f32 %v4936, %v4803
      %v4970 = vmax.f32 %v4937, %v4804
      %v4971 = vmax.f32 %v4938, %v4805
      %v4972 = vmax.f32 %v4939, %v4806
      %v4973 = vmax.f32 %v4940, %v4807
      %v4974 = vmax.f32 %v4941, %v4808
      %v4975 = vmax.f32 %v4942, %v4809
      %v4976 = vmax.f32 %v4943, %v4810
      %v4977 = vmax.f32 %v4944, %v4811
      %v4978 = vmax.f32 %v4945, %v4812
      %v4979 = vmax.f32 %v4946, %v4813
      %v4980 = vmax.f32 %v4947, %v4814
      %v4981 = vmax.f32 %v4948, %v4815
      %v4982 = vmax.f32 %v4949, %v4816
      %v4983 = vmax.f32 %v4950, %v4817
      %v4984 = vmax.f32 %v4951, %v4818
      %v4985 = vmax.f32 %v4952, %v4819
      %v4986 = vmax.f32 %v4953, %v4820
      %v4987 = vmax.f32 %v4954, %v4821
      %v4988 = vmax.f32 %v4955, %v4822
      %v4989 = vmax.f32 %v4956, %v4823
      %v4990 = vmax.f32 %v4957, %v4824
      %v4991 = vmax.f32 %v4958, %v4825
      %v4992 = vmax.f32 %v4959, %v4826
      %v4993 = vmax.f32 %v4960, %v4827
      %v4994 = vmax.f32 %v4961, %v4828
      %v4995 = vmax.f32 %v4962, %v4829
      %v4996 = vmax.f32 %v4963, %v4830
      %v4997 = vmax.f32 %v4964, %v4831
      %v4998 = vmax.f32 %v4965, %v4832
      %v4999 = vmax.f32 %v4966, %v4833
      %v5000 = vmax.f32 %v4967, %v4834
      %v5001 = vpack.c.bf16 %v4969, %v4968
      %v5002 = vpack.c.bf16 %v4971, %v4970
      %v5003 = vpack.c.bf16 %v4973, %v4972
      %v5004 = vpack.c.bf16 %v4975, %v4974
      %v5005 = vpack.c.bf16 %v4977, %v4976
      %v5006 = vpack.c.bf16 %v4979, %v4978
      %v5007 = vpack.c.bf16 %v4981, %v4980
      %v5008 = vpack.c.bf16 %v4983, %v4982
      %v5009 = vpack.c.bf16 %v4985, %v4984
      %v5010 = vpack.c.bf16 %v4987, %v4986
      %v5011 = vpack.c.bf16 %v4989, %v4988
      %v5012 = vpack.c.bf16 %v4991, %v4990
      %v5013 = vpack.c.bf16 %v4993, %v4992
      %v5014 = vpack.c.bf16 %v4995, %v4994
      %v5015 = vpack.c.bf16 %v4997, %v4996
      %v5016 = vpack.c.bf16 %v4999, %v4998
      %v5017 = vpack.c.bf16 %v5000, %v5000
      %5018 = vst [vmem:[%s170] sm:$0xff] %v5001
      %5019 = vst [vmem:[%s170 + $0x8] sm:$0xff] %v5002
      %5020 = vst [vmem:[%s170 + $0x10] sm:$0xff] %v5003
      %5021 = vst [vmem:[%s170 + $0x18] sm:$0xff] %v5004
      %5022 = vst [vmem:[%s170 + $0x20] sm:$0xff] %v5005
      %5023 = vst [vmem:[%s170 + $0x28] sm:$0xff] %v5006
      %5024 = vst [vmem:[%s170 + $0x30] sm:$0xff] %v5007
      %5025 = vst [vmem:[%s170 + $0x38] sm:$0xff] %v5008
      %5026 = vst [vmem:[%s170 + $0x40] sm:$0xff] %v5009
      %5027 = vst [vmem:[%s170 + $0x48] sm:$0xff] %v5010
      %5028 = vst [vmem:[%s170 + $0x50] sm:$0xff] %v5011
      %5029 = vst [vmem:[%s170 + $0x58] sm:$0xff] %v5012
      %5030 = vst [vmem:[%s170 + $0x60] sm:$0xff] %v5013
      %5031 = vst [vmem:[%s170 + $0x68] sm:$0xff] %v5014
      %5032 = vst [vmem:[%s170 + $0x70] sm:$0xff] %v5015
      %5033 = vst [vmem:[%s170 + $0x78] sm:$0xff] %v5016
      %5034 = vst [vmem:[%s170 + $0x80] sm:$0xf] %v5017
      %p5035 = scmp.lt.s32.totalorder %s14, 1
      %s5036 = scalar_select %p5035, %s14, 1
      %s5037 = smul.addr %s5036, 33
      %s5038 = smul.addr %s5037, 4
      %s5039 = scalar_lea.vmem %s3, %s5038
      // Predicated region
      $region33: #{actor_cnn_forward.2} parent=31 // pred_check
        %p5040 = pneg %p100
      $region34: #{actor_cnn_forward.2} parent=31 // pred_check_branch
        %5042 = sbr.rel (%p5040) target = $region36
      $region35: #{actor_cnn_forward.2} parent=31 // pred_region
        _
      $region36: #{actor_cnn_forward.2} parent=31 // pred_fallthru
        _
    $region32: #{actor_cnn_forward.2} parent=5 // pred_fallthru
      _
    %p5043 = scmp.le.s32.totalorder 2, %s9
    // Predicated region
    $region37: #{actor_cnn_forward.2} parent=5 // pred_check
      %p5044 = pneg %p5043
    $region38: #{actor_cnn_forward.2} parent=5 // pred_check_branch
      %5046 = sbr.rel (%p5044) target = $region40
    $region39: #{actor_cnn_forward.2} parent=5 // pred_region
      %s5047 = ssub.s32 %s9, 2
      // Predicated region
      $region41: #{actor_cnn_forward.2} parent=39 // pred_check
        %p5048 = pneg %p106
      $region42: #{actor_cnn_forward.2} parent=39 // pred_check_branch
        %5050 = sbr.rel (%p5048) target = $region44
      $region43: #{actor_cnn_forward.2} parent=39 // pred_region
        %p5051 = scmp.lt.s32.totalorder %s15, 1
        %s5052 = scalar_select %p5051, %s15, 1
        %s5053 = smul.addr %s5052, 33
        %s5054 = smul.addr %s5053, 4
        %s5055 = scalar_lea.vmem %s3, %s5054
      $region44: #{actor_cnn_forward.2} parent=39 // pred_fallthru
        _
    $region40: #{actor_cnn_forward.2} parent=5 // pred_fallthru
      _
  $region6: #{actor_cnn_forward.2} parent=0 // loop_footer
    %s13 = sadd.s32 1, %s9
  $region7: #{actor_cnn_forward.2} parent=0 // loop_footer_branch
    %8 = sbr.rel target = $region3
  $region8: #{actor_cnn_forward.2} parent=0 // loop_exit
    _

// kernel: actor_cnn_forward.3
$region0: #{actor_cnn_forward.3}
  #allocation0 [shape = 'u32[]', space=smem, size = 0x4, offset = 0x4, fixed_abs, tag = 'smem constant byte address 0x4 - core index']
  #allocation1 [shape = 'u32[72,128]{1,0:T(1,128)}', space=vmem, size = 0x9000, scoped, tag = 'internal scratch']
  #allocation2 [shape = 'f32[2,256]{1,0:T(2,128)}', space=vmem, size = 0x800, scoped, tag = 'scratch operand']
  %s0 = inlined_call_operand.vmem [shape: bf16[2,200,512], index: 0, kind: input, shape index: {}]
  %s1 = inlined_call_operand.vmem [shape: bf16[16,200], index: 1, kind: input, shape index: {}]
  %s2 = inlined_call_operand.vmem [shape: f32[16,1], index: 2, kind: input, shape index: {}]
  %s3 = inlined_call_operand.vmem [shape: f32[2,8], index: 3, kind: input, shape index: {}]
  %s4 = inlined_call_operand.vmem [shape: f32[8,16], index: 4, kind: input, shape index: {}]
  %s5 = inlined_call_operand.vmem [shape: f32[1,16], index: 5, kind: input, shape index: {}]
  %s6 = inlined_call_operand.vmem [shape: bf16[16,256], index: 6, kind: input, shape index: {}]
  %s7 = inlined_call_operand.vmem [shape: bf16[16,192,256], index: 7, kind: input, shape index: {}]
  %s8 = inlined_call_operand.vmem [shape: f32[1,256], index: 8, kind: input, shape index: {}]
  %s9 = inlined_call_operand.vmem [shape: bf16[256,128], index: 9, kind: input, shape index: {}]
  %s10 = inlined_call_operand.vmem [shape: f32[1,128], index: 10, kind: input, shape index: {}]
  %s11 = inlined_call_operand.hbm [shape: f32[2,128], index: 11, kind: output, shape index: {}]
  %s12 = sld [smem:[#allocation0]]
  $region54: #{actor_cnn_forward.3} parent=0
    _
  %s14 = ssub.s32 1, %s12
  %s15 = scalar_select 0, %s14, %s12
  $region1: #{actor_cnn_forward.3} parent=0
    #allocation3 [shape = 'u8[1024]{0}', space=vmem, size = 0x400, scoped, tag = 'output window, operand 0, single buffered']
    #allocation4 [shape = 's32[1]{0}', space=sflag, size = 0x4, scoped, tag = 'scoped memory for actor_cnn_forward.3']
    %16 = vsyncpa [#allocation4], 0
    // Predicated region
    $region2: #{actor_cnn_forward.3} parent=1 // pred_check
      _
    $region3: #{actor_cnn_forward.3} parent=1 // pred_check_branch
      %18 = sbr.rel (0) target = $region5
    $region4: #{actor_cnn_forward.3} parent=1 // pred_region
      _
    $region5: #{actor_cnn_forward.3} parent=1 // pred_fallthru
      _
    // Predicated region
    $region6: #{actor_cnn_forward.3} parent=1 // pred_check
      _
    $region7: #{actor_cnn_forward.3} parent=1 // pred_check_branch
      %20 = sbr.rel (0) target = $region9
    $region8: #{actor_cnn_forward.3} parent=1 // pred_region
      _
    $region9: #{actor_cnn_forward.3} parent=1 // pred_fallthru
      _
    // Predicated region
    $region10: #{actor_cnn_forward.3} parent=1 // pred_check
      _
    $region11: #{actor_cnn_forward.3} parent=1 // pred_check_branch
      %22 = sbr.rel (0) target = $region13
    $region12: #{actor_cnn_forward.3} parent=1 // pred_region
      _
    $region13: #{actor_cnn_forward.3} parent=1 // pred_fallthru
      _
    // Predicated region
    $region14: #{actor_cnn_forward.3} parent=1 // pred_check
      _
    $region15: #{actor_cnn_forward.3} parent=1 // pred_check_branch
      %24 = sbr.rel (0) target = $region17
    $region16: #{actor_cnn_forward.3} parent=1 // pred_region
      _
    $region17: #{actor_cnn_forward.3} parent=1 // pred_fallthru
      _
    // Predicated region
    $region18: #{actor_cnn_forward.3} parent=1 // pred_check
      _
    $region19: #{actor_cnn_forward.3} parent=1 // pred_check_branch
      %26 = sbr.rel (0) target = $region21
    $region20: #{actor_cnn_forward.3} parent=1 // pred_region
      _
    $region21: #{actor_cnn_forward.3} parent=1 // pred_fallthru
      _
    // Predicated region
    $region22: #{actor_cnn_forward.3} parent=1 // pred_check
      _
    $region23: #{actor_cnn_forward.3} parent=1 // pred_check_branch
      %28 = sbr.rel (0) target = $region25
    $region24: #{actor_cnn_forward.3} parent=1 // pred_region
      _
    $region25: #{actor_cnn_forward.3} parent=1 // pred_fallthru
      _
    // Predicated region
    $region26: #{actor_cnn_forward.3} parent=1 // pred_check
      _
    $region27: #{actor_cnn_forward.3} parent=1 // pred_check_branch
      %30 = sbr.rel (0) target = $region29
    $region28: #{actor_cnn_forward.3} parent=1 // pred_region
      _
    $region29: #{actor_cnn_forward.3} parent=1 // pred_fallthru
      _
    // Predicated region
    $region30: #{actor_cnn_forward.3} parent=1 // pred_check
      _
    $region31: #{actor_cnn_forward.3} parent=1 // pred_check_branch
      %32 = sbr.rel (0) target = $region33
    $region32: #{actor_cnn_forward.3} parent=1 // pred_region
      _
    $region33: #{actor_cnn_forward.3} parent=1 // pred_fallthru
      _
    // Predicated region
    $region34: #{actor_cnn_forward.3} parent=1 // pred_check
      _
    $region35: #{actor_cnn_forward.3} parent=1 // pred_check_branch
      %34 = sbr.rel (0) target = $region37
    $region36: #{actor_cnn_forward.3} parent=1 // pred_region
      _
    $region37: #{actor_cnn_forward.3} parent=1 // pred_fallthru
      _
    // Predicated region
    $region38: #{actor_cnn_forward.3} parent=1 // pred_check
      _
    $region39: #{actor_cnn_forward.3} parent=1 // pred_check_branch
      %36 = sbr.rel (0) target = $region41
    $region40: #{actor_cnn_forward.3} parent=1 // pred_region
      _
    $region41: #{actor_cnn_forward.3} parent=1 // pred_fallthru
      _
    // Predicated region
    $region42: #{actor_cnn_forward.3} parent=1 // pred_check
      _
    $region43: #{actor_cnn_forward.3} parent=1 // pred_check_branch
      %38 = sbr.rel (0) target = $region45
    $region44: #{actor_cnn_forward.3} parent=1 // pred_region
      _
    $region45: #{actor_cnn_forward.3} parent=1 // pred_fallthru
      _
    %v40 = vld [vmem:[%s1] sm:$0xff]
    %v41 = vld [vmem:[%s1 + $0x8] sm:$0xff]
    %v42 = vld [vmem:[%s0] sm:$0xff]
    %v43 = vld [vmem:[%s0 + $0x8] sm:$0xff]
    %v44 = vld [vmem:[%s0 + $0x10] sm:$0xff]
    %v45 = vld [vmem:[%s0 + $0x18] sm:$0xff]
    %v46 = vld [vmem:[%s0 + $0x20] sm:$0xff]
    %v47 = vld [vmem:[%s0 + $0x28] sm:$0xff]
    %v48 = vld [vmem:[%s0 + $0x30] sm:$0xff]
    %v49 = vld [vmem:[%s0 + $0x38] sm:$0xff]
    %v50 = vld [vmem:[%s0 + $0x40] sm:$0xff]
    %v51 = vld [vmem:[%s0 + $0x48] sm:$0xff]
    %v52 = vld [vmem:[%s0 + $0x50] sm:$0xff]
    %v53 = vld [vmem:[%s0 + $0x58] sm:$0xff]
    %v54 = vld [vmem:[%s0 + $0x60] sm:$0xff]
    %v55 = vld [vmem:[%s0 + $0x68] sm:$0xff]
    %v56 = vld [vmem:[%s0 + $0x70] sm:$0xff]
    %v57 = vld [vmem:[%s0 + $0x78] sm:$0xff]
    %v58 = vld [vmem:[%s0 + $0x80] sm:$0xff]
    %v59 = vld [vmem:[%s0 + $0x88] sm:$0xff]
    %v60 = vld [vmem:[%s0 + $0x90] sm:$0xff]
    %v61 = vld [vmem:[%s0 + $0x98] sm:$0xff]
    %v62 = vld [vmem:[%s0 + $0xa0] sm:$0xff]
    %v63 = vld [vmem:[%s0 + $0xa8] sm:$0xff]
    %v64 = vld [vmem:[%s0 + $0xb0] sm:$0xff]
    %v65 = vld [vmem:[%s0 + $0xb8] sm:$0xff]
    %v66 = vld [vmem:[%s0 + $0xc0] sm:$0xff]
    %v67 = vld [vmem:[%s0 + $0xc8] sm:$0xff]
    %v68 = vld [vmem:[%s0 + $0xd0] sm:$0xff]
    %v69 = vld [vmem:[%s0 + $0xd8] sm:$0xff]
    %v70 = vld [vmem:[%s0 + $0xe0] sm:$0xff]
    %v71 = vld [vmem:[%s0 + $0xe8] sm:$0xff]
    %v72 = vld [vmem:[%s0 + $0xf0] sm:$0xff]
    %v73 = vld [vmem:[%s0 + $0xf8] sm:$0xff]
    %v74 = vld [vmem:[%s0 + $0x100] sm:$0xff]
    %v75 = vld [vmem:[%s0 + $0x108] sm:$0xff]
    %v76 = vld [vmem:[%s0 + $0x110] sm:$0xff]
    %v77 = vld [vmem:[%s0 + $0x118] sm:$0xff]
    %v78 = vld [vmem:[%s0 + $0x120] sm:$0xff]
    %v79 = vld [vmem:[%s0 + $0x128] sm:$0xff]
    %v80 = vld [vmem:[%s0 + $0x130] sm:$0xff]
    %v81 = vld [vmem:[%s0 + $0x138] sm:$0xff]
    %v82 = vld [vmem:[%s0 + $0x140] sm:$0xff]
    %v83 = vld [vmem:[%s0 + $0x148] sm:$0xff]
    %v84 = vld [vmem:[%s0 + $0x150] sm:$0xff]
    %v85 = vld [vmem:[%s0 + $0x158] sm:$0xff]
    %v86 = vld [vmem:[%s0 + $0x160] sm:$0xff]
    %v87 = vld [vmem:[%s0 + $0x168] sm:$0xff]
    %v88 = vld [vmem:[%s0 + $0x170] sm:$0xff]
    %v89 = vld [vmem:[%s0 + $0x178] sm:$0xff]
    %v90 = vld [vmem:[%s0 + $0x180] sm:$0xff]
    %v91 = vld [vmem:[%s0 + $0x188] sm:$0xff]
    %v92 = vld [vmem:[%s2] sm:$0xff]
    %v93 = vld [vmem:[%s2 + $0x8] sm:$0xff]
    %95 = vset.pattern.permute.xlu0 0
    %96 = vperm.xlu0 %95, %v92
    %v97 = vpop.permute.xlu0 %96
    %100 = vset.pattern.permute.xlu0 0
    %101 = vperm.xlu0 %100, %v93
    %v102 = vpop.permute.xlu0 %101
    %v106 = vunpack.c.l.b16 %v40
    %v107 = vunpack.c.h.b16 %v40
    %v108 = vunpack.c.l.b16 %v41
    %v109 = vunpack.c.h.b16 %v41
    %v110 = vpack.c.b16 %v108, %v106
    %v111 = vpack.c.b16 %v109, %v107
    %v163 = vunpack.c.l.b16 %v42
    %v164 = vunpack.c.h.b16 %v42
    %v165 = vunpack.c.l.b16 %v43
    %v166 = vunpack.c.h.b16 %v43
    %v167 = vunpack.c.l.b16 %v44
    %v168 = vunpack.c.h.b16 %v44
    %v169 = vunpack.c.l.b16 %v45
    %v170 = vunpack.c.h.b16 %v45
    %v171 = vunpack.c.l.b16 %v46
    %v172 = vunpack.c.h.b16 %v46
    %v173 = vunpack.c.l.b16 %v47
    %v174 = vunpack.c.h.b16 %v47
    %v175 = vunpack.c.l.b16 %v48
    %v176 = vunpack.c.h.b16 %v48
    %v177 = vunpack.c.l.b16 %v49
    %v178 = vunpack.c.h.b16 %v49
    %v179 = vunpack.c.l.b16 %v50
    %v180 = vunpack.c.h.b16 %v50
    %v181 = vunpack.c.l.b16 %v51
    %v182 = vunpack.c.h.b16 %v51
    %v183 = vunpack.c.l.b16 %v52
    %v184 = vunpack.c.h.b16 %v52
    %v185 = vunpack.c.l.b16 %v53
    %v186 = vunpack.c.h.b16 %v53
    %v187 = vunpack.c.l.b16 %v54
    %v188 = vunpack.c.h.b16 %v54
    %v189 = vunpack.c.l.b16 %v55
    %v190 = vunpack.c.h.b16 %v55
    %v191 = vunpack.c.l.b16 %v56
    %v192 = vunpack.c.h.b16 %v56
    %v193 = vunpack.c.l.b16 %v57
    %v194 = vunpack.c.h.b16 %v57
    %v195 = vunpack.c.l.b16 %v58
    %v196 = vunpack.c.h.b16 %v58
    %v197 = vunpack.c.l.b16 %v59
    %v198 = vunpack.c.h.b16 %v59
    %v199 = vunpack.c.l.b16 %v60
    %v200 = vunpack.c.h.b16 %v60
    %v201 = vunpack.c.l.b16 %v61
    %v202 = vunpack.c.h.b16 %v61
    %v203 = vunpack.c.l.b16 %v62
    %v204 = vunpack.c.h.b16 %v62
    %v205 = vunpack.c.l.b16 %v63
    %v206 = vunpack.c.h.b16 %v63
    %v207 = vunpack.c.l.b16 %v64
    %v208 = vunpack.c.h.b16 %v64
    %v209 = vunpack.c.l.b16 %v65
    %v210 = vunpack.c.h.b16 %v65
    %v211 = vunpack.c.l.b16 %v66
    %v212 = vunpack.c.h.b16 %v66
    %v213 = vunpack.c.l.b16 %v67
    %v214 = vunpack.c.h.b16 %v67
    %v215 = vunpack.c.l.b16 %v68
    %v216 = vunpack.c.h.b16 %v68
    %v217 = vunpack.c.l.b16 %v69
    %v218 = vunpack.c.h.b16 %v69
    %v219 = vunpack.c.l.b16 %v70
    %v220 = vunpack.c.h.b16 %v70
    %v221 = vunpack.c.l.b16 %v71
    %v222 = vunpack.c.h.b16 %v71
    %v223 = vunpack.c.l.b16 %v72
    %v224 = vunpack.c.h.b16 %v72
    %v225 = vunpack.c.l.b16 %v73
    %v226 = vunpack.c.h.b16 %v73
    %v227 = vunpack.c.l.b16 %v74
    %v228 = vunpack.c.h.b16 %v74
    %v229 = vunpack.c.l.b16 %v75
    %v230 = vunpack.c.h.b16 %v75
    %v231 = vunpack.c.l.b16 %v76
    %v232 = vunpack.c.h.b16 %v76
    %v233 = vunpack.c.l.b16 %v77
    %v234 = vunpack.c.h.b16 %v77
    %v235 = vunpack.c.l.b16 %v78
    %v236 = vunpack.c.h.b16 %v78
    %v237 = vunpack.c.l.b16 %v79
    %v238 = vunpack.c.h.b16 %v79
    %v239 = vunpack.c.l.b16 %v80
    %v240 = vunpack.c.h.b16 %v80
    %v241 = vunpack.c.l.b16 %v81
    %v242 = vunpack.c.h.b16 %v81
    %v243 = vunpack.c.l.b16 %v82
    %v244 = vunpack.c.h.b16 %v82
    %v245 = vunpack.c.l.b16 %v83
    %v246 = vunpack.c.h.b16 %v83
    %v247 = vunpack.c.l.b16 %v84
    %v248 = vunpack.c.h.b16 %v84
    %v249 = vunpack.c.l.b16 %v85
    %v250 = vunpack.c.h.b16 %v85
    %v251 = vunpack.c.l.b16 %v86
    %v252 = vunpack.c.h.b16 %v86
    %v253 = vunpack.c.l.b16 %v87
    %v254 = vunpack.c.h.b16 %v87
    %v255 = vunpack.c.l.b16 %v88
    %v256 = vunpack.c.h.b16 %v88
    %v257 = vunpack.c.l.b16 %v89
    %v258 = vunpack.c.h.b16 %v89
    %v259 = vunpack.c.l.b16 %v90
    %v260 = vunpack.c.h.b16 %v90
    %v261 = vunpack.c.l.b16 %v91
    %v262 = vunpack.c.h.b16 %v91
    %v263 = vpack.c.b16 %v167, %v163
    %v264 = vpack.c.b16 %v168, %v164
    %v265 = vpack.c.b16 %v169, %v165
    %v266 = vpack.c.b16 %v170, %v166
    %v267 = vpack.c.b16 %v175, %v171
    %v268 = vpack.c.b16 %v176, %v172
    %v269 = vpack.c.b16 %v177, %v173
    %v270 = vpack.c.b16 %v178, %v174
    %v271 = vpack.c.b16 %v183, %v179
    %v272 = vpack.c.b16 %v184, %v180
    %v273 = vpack.c.b16 %v185, %v181
    %v274 = vpack.c.b16 %v186, %v182
    %v275 = vpack.c.b16 %v191, %v187
    %v276 = vpack.c.b16 %v192, %v188
    %v277 = vpack.c.b16 %v193, %v189
    %v278 = vpack.c.b16 %v194, %v190
    %v279 = vpack.c.b16 %v199, %v195
    %v280 = vpack.c.b16 %v200, %v196
    %v281 = vpack.c.b16 %v201, %v197
    %v282 = vpack.c.b16 %v202, %v198
    %v283 = vpack.c.b16 %v207, %v203
    %v284 = vpack.c.b16 %v208, %v204
    %v285 = vpack.c.b16 %v209, %v205
    %v286 = vpack.c.b16 %v210, %v206
    %v287 = vpack.c.b16 %v215, %v211
    %v288 = vpack.c.b16 %v216, %v212
    %v289 = vpack.c.b16 %v217, %v213
    %v290 = vpack.c.b16 %v218, %v214
    %v291 = vpack.c.b16 %v223, %v219
    %v292 = vpack.c.b16 %v224, %v220
    %v293 = vpack.c.b16 %v225, %v221
    %v294 = vpack.c.b16 %v226, %v222
    %v295 = vpack.c.b16 %v231, %v227
    %v296 = vpack.c.b16 %v232, %v228
    %v297 = vpack.c.b16 %v233, %v229
    %v298 = vpack.c.b16 %v234, %v230
    %v299 = vpack.c.b16 %v239, %v235
    %v300 = vpack.c.b16 %v240, %v236
    %v301 = vpack.c.b16 %v241, %v237
    %v302 = vpack.c.b16 %v242, %v238
    %v303 = vpack.c.b16 %v247, %v243
    %v304 = vpack.c.b16 %v248, %v244
    %v305 = vpack.c.b16 %v249, %v245
    %v306 = vpack.c.b16 %v250, %v246
    %v307 = vpack.c.b16 %v255, %v251
    %v308 = vpack.c.b16 %v256, %v252
    %v309 = vpack.c.b16 %v257, %v253
    %v310 = vpack.c.b16 %v258, %v254
    %v311 = vpack.c.b16 %v259, %v259
    %v312 = vpack.c.b16 %v260, %v260
    %v313 = vpack.c.b16 %v261, %v261
    %v314 = vpack.c.b16 %v262, %v262
    %vm363 = vcmask 588800
    %v365 = vsel %vm363, %v111, 0
    %vm367 = vcmask 1043456
    %v369 = vsel %vm367, %v311, 0
    %v372 = vsel %vm367, %v312, 0
    %v375 = vsel %vm367, %v313, 0
    %v378 = vsel %vm367, %v314, 0
    %380 = vmatpush.bf16.msra.mxu0 %v291
    %381 = vmatpush.bf16.msra.mxu0 %v287
    %382 = vmatpush.bf16.msra.mxu0 %v283
    %383 = vmatpush.bf16.msra.mxu0 %v279
    %384 = vmatpush.bf16.msra.mxu0 %v275
    %385 = vmatpush.bf16.msra.mxu0 %v271
    %386 = vmatpush.bf16.msra.mxu0 %v267
    %387 = vmatpush.bf16.msra.mxu0 %v263
    %388 = vmatmul.bf16.gmra.mxu0 %v110
    %v389 = vpop.f32.mrf.mxu0
    %v390 = vadd.f32 %v97, %v389
    %v391 = vpop.f32.mrf.mxu0
    %v392 = vadd.f32 %v102, %v391
    %393 = vdwg.mxu0
    %394 = vmatpush.bf16.msra.mxu0 0
    %395 = vmatpush.bf16.msra.mxu0 0
    %396 = vmatpush.bf16.msra.mxu0 0
    %397 = vmatpush.bf16.msra.mxu0 %v369
    %398 = vmatpush.bf16.msra.mxu0 %v307
    %399 = vmatpush.bf16.msra.mxu0 %v303
    %400 = vmatpush.bf16.msra.mxu0 %v299
    %401 = vmatpush.bf16.msra.mxu0 %v295
    %402 = vmatmul.bf16.gmra.mxu0 %v365
    %v403 = vpop.f32.mrf.mxu0
    %v404 = vadd.f32 %v390, %v403
    %v405 = vpop.f32.mrf.mxu0
    %v406 = vadd.f32 %v392, %v405
    %407 = vdwg.mxu0
    %408 = vmatpush.bf16.msra.mxu0 %v292
    %409 = vmatpush.bf16.msra.mxu0 %v288
    %410 = vmatpush.bf16.msra.mxu0 %v284
    %411 = vmatpush.bf16.msra.mxu0 %v280
    %412 = vmatpush.bf16.msra.mxu0 %v276
    %413 = vmatpush.bf16.msra.mxu0 %v272
    %414 = vmatpush.bf16.msra.mxu0 %v268
    %415 = vmatpush.bf16.msra.mxu0 %v264
    %416 = vmatmul.bf16.gmra.mxu0 %v110
    %v417 = vpop.f32.mrf.mxu0
    %v418 = vadd.f32 %v97, %v417
    %v419 = vpop.f32.mrf.mxu0
    %v420 = vadd.f32 %v102, %v419
    %421 = vdwg.mxu0
    %422 = vmatpush.bf16.msra.mxu0 0
    %423 = vmatpush.bf16.msra.mxu0 0
    %424 = vmatpush.bf16.msra.mxu0 0
    %425 = vmatpush.bf16.msra.mxu0 %v372
    %426 = vmatpush.bf16.msra.mxu0 %v308
    %427 = vmatpush.bf16.msra.mxu0 %v304
    %428 = vmatpush.bf16.msra.mxu0 %v300
    %429 = vmatpush.bf16.msra.mxu0 %v296
    %430 = vmatmul.bf16.gmra.mxu0 %v365
    %v431 = vpop.f32.mrf.mxu0
    %v432 = vadd.f32 %v418, %v431
    %v433 = vpop.f32.mrf.mxu0
    %v434 = vadd.f32 %v420, %v433
    %435 = vdwg.mxu0
    %436 = vmatpush.bf16.msra.mxu0 %v293
    %437 = vmatpush.bf16.msra.mxu0 %v289
    %438 = vmatpush.bf16.msra.mxu0 %v285
    %439 = vmatpush.bf16.msra.mxu0 %v281
    %440 = vmatpush.bf16.msra.mxu0 %v277
    %441 = vmatpush.bf16.msra.mxu0 %v273
    %442 = vmatpush.bf16.msra.mxu0 %v269
    %443 = vmatpush.bf16.msra.mxu0 %v265
    %444 = vmatmul.bf16.gmra.mxu0 %v110
    %v445 = vpop.f32.mrf.mxu0
    %v446 = vadd.f32 %v97, %v445
    %v447 = vpop.f32.mrf.mxu0
    %v448 = vadd.f32 %v102, %v447
    %449 = vdwg.mxu0
    %450 = vmatpush.bf16.msra.mxu0 0
    %451 = vmatpush.bf16.msra.mxu0 0
    %452 = vmatpush.bf16.msra.mxu0 0
    %453 = vmatpush.bf16.msra.mxu0 %v375
    %454 = vmatpush.bf16.msra.mxu0 %v309
    %455 = vmatpush.bf16.msra.mxu0 %v305
    %456 = vmatpush.bf16.msra.mxu0 %v301
    %457 = vmatpush.bf16.msra.mxu0 %v297
    %458 = vmatmul.bf16.gmra.mxu0 %v365
    %v459 = vpop.f32.mrf.mxu0
    %v460 = vadd.f32 %v446, %v459
    %v461 = vpop.f32.mrf.mxu0
    %v462 = vadd.f32 %v448, %v461
    %463 = vdwg.mxu0
    %464 = vmatpush.bf16.msra.mxu0 %v294
    %465 = vmatpush.bf16.msra.mxu0 %v290
    %466 = vmatpush.bf16.msra.mxu0 %v286
    %467 = vmatpush.bf16.msra.mxu0 %v282
    %468 = vmatpush.bf16.msra.mxu0 %v278
    %469 = vmatpush.bf16.msra.mxu0 %v274
    %470 = vmatpush.bf16.msra.mxu0 %v270
    %471 = vmatpush.bf16.msra.mxu0 %v266
    %472 = vmatmul.bf16.gmra.mxu0 %v110
    %v473 = vpop.f32.mrf.mxu0
    %v474 = vadd.f32 %v97, %v473
    %v475 = vpop.f32.mrf.mxu0
    %v476 = vadd.f32 %v102, %v475
    %477 = vdwg.mxu0
    %478 = vmatpush.bf16.msra.mxu0 0
    %479 = vmatpush.bf16.msra.mxu0 0
    %480 = vmatpush.bf16.msra.mxu0 0
    %481 = vmatpush.bf16.msra.mxu0 %v378
    %482 = vmatpush.bf16.msra.mxu0 %v310
    %483 = vmatpush.bf16.msra.mxu0 %v306
    %484 = vmatpush.bf16.msra.mxu0 %v302
    %485 = vmatpush.bf16.msra.mxu0 %v298
    %486 = vmatmul.bf16.gmra.mxu0 %v365
    %v487 = vpop.f32.mrf.mxu0
    %v488 = vadd.f32 %v474, %v487
    %v489 = vpop.f32.mrf.mxu0
    %v490 = vadd.f32 %v476, %v489
    %491 = vdwg.mxu0
    %v492 = vmax.f32 %v404, 0.0
    %v493 = vmax.f32 %v432, 0.0
    %v494 = vmax.f32 %v460, 0.0
    %v495 = vmax.f32 %v488, 0.0
    %v496 = vmax.f32 %v406, 0.0
    %v497 = vmax.f32 %v434, 0.0
    %v498 = vmax.f32 %v462, 0.0
    %v499 = vmax.f32 %v490, 0.0
    %508 = vrot.lane.b32.xlu0 %v492, 112
    %v509 = vpop.permute.xlu0 %508
    %510 = vrot.lane.b32.xlu0 %v493, 112
    %v511 = vpop.permute.xlu0 %510
    %512 = vrot.lane.b32.xlu0 %v494, 112
    %v513 = vpop.permute.xlu0 %512
    %514 = vrot.lane.b32.xlu0 %v495, 112
    %v515 = vpop.permute.xlu0 %514
    %516 = vrot.lane.b32.xlu0 %v496, 112
    %v517 = vpop.permute.xlu0 %516
    %518 = vrot.lane.b32.xlu0 %v497, 112
    %v519 = vpop.permute.xlu0 %518
    %520 = vrot.lane.b32.xlu0 %v498, 112
    %v521 = vpop.permute.xlu0 %520
    %522 = vrot.lane.b32.xlu0 %v499, 112
    %v523 = vpop.permute.xlu0 %522
    %vm524 = vcmask 916480
    %v525 = vsel %vm524, %v509, %v511
    %v526 = vsel %vm524, %v511, %v513
    %v527 = vsel %vm524, %v513, %v515
    %v528 = vsel %vm524, %v517, %v519
    %v529 = vsel %vm524, %v519, %v521
    %v530 = vsel %vm524, %v521, %v523
    %v539 = vmax.f32 %v492, %v525
    %v540 = vmax.f32 %v493, %v526
    %v541 = vmax.f32 %v494, %v527
    %v542 = vmax.f32 %v495, %v515
    %v543 = vmax.f32 %v496, %v528
    %v544 = vmax.f32 %v497, %v529
    %v545 = vmax.f32 %v498, %v530
    %v546 = vmax.f32 %v499, %v523
    %547 = vrot.lane.b32.xlu0 %v492, 127
    %v548 = vpop.permute.xlu0 %547
    %549 = vrot.lane.b32.xlu0 %v493, 127
    %v550 = vpop.permute.xlu0 %549
    %551 = vrot.lane.b32.xlu0 %v494, 127
    %v552 = vpop.permute.xlu0 %551
    %553 = vrot.lane.b32.xlu0 %v495, 127
    %v554 = vpop.permute.xlu0 %553
    %555 = vrot.lane.b32.xlu0 %v496, 127
    %v556 = vpop.permute.xlu0 %555
    %557 = vrot.lane.b32.xlu0 %v497, 127
    %v558 = vpop.permute.xlu0 %557
    %559 = vrot.lane.b32.xlu0 %v498, 127
    %v560 = vpop.permute.xlu0 %559
    %561 = vrot.lane.b32.xlu0 %v499, 127
    %v562 = vpop.permute.xlu0 %561
    %vm563 = vcmask 1039360
    %v564 = vsel %vm563, %v548, %v550
    %v565 = vsel %vm563, %v550, %v552
    %v566 = vsel %vm563, %v552, %v554
    %v567 = vsel %vm563, %v556, %v558
    %v568 = vsel %vm563, %v558, %v560
    %v569 = vsel %vm563, %v560, %v562
    %v578 = vmax.f32 %v539, %v564
    %v579 = vmax.f32 %v540, %v565
    %v580 = vmax.f32 %v541, %v566
    %v581 = vmax.f32 %v542, %v554
    %v582 = vmax.f32 %v543, %v567
    %v583 = vmax.f32 %v544, %v568
    %v584 = vmax.f32 %v545, %v569
    %v585 = vmax.f32 %v546, %v562
    %586 = vrot.lane.b32.xlu0 %v492, 111
    %v587 = vpop.permute.xlu0 %586
    %588 = vrot.lane.b32.xlu0 %v493, 111
    %v589 = vpop.permute.xlu0 %588
    %590 = vrot.lane.b32.xlu0 %v494, 111
    %v591 = vpop.permute.xlu0 %590
    %592 = vrot.lane.b32.xlu0 %v495, 111
    %v593 = vpop.permute.xlu0 %592
    %594 = vrot.lane.b32.xlu0 %v496, 111
    %v595 = vpop.permute.xlu0 %594
    %596 = vrot.lane.b32.xlu0 %v497, 111
    %v597 = vpop.permute.xlu0 %596
    %598 = vrot.lane.b32.xlu0 %v498, 111
    %v599 = vpop.permute.xlu0 %598
    %600 = vrot.lane.b32.xlu0 %v499, 111
    %v601 = vpop.permute.xlu0 %600
    %vm602 = vcmask 908288
    %v603 = vsel %vm602, %v587, %v589
    %v604 = vsel %vm602, %v589, %v591
    %v605 = vsel %vm602, %v591, %v593
    %v606 = vsel %vm602, %v595, %v597
    %v607 = vsel %vm602, %v597, %v599
    %v608 = vsel %vm602, %v599, %v601
    %v617 = vmax.f32 %v578, %v603
    %v618 = vmax.f32 %v579, %v604
    %v619 = vmax.f32 %v580, %v605
    %v620 = vmax.f32 %v581, %v593
    %v621 = vmax.f32 %v582, %v606
    %v622 = vmax.f32 %v583, %v607
    %v623 = vmax.f32 %v584, %v608
    %v624 = vmax.f32 %v585, %v601
    %625 = vrot.lane.b32.xlu0 %v492, 126
    %v626 = vpop.permute.xlu0 %625
    %627 = vrot.lane.b32.xlu0 %v493, 126
    %v628 = vpop.permute.xlu0 %627
    %629 = vrot.lane.b32.xlu0 %v494, 126
    %v630 = vpop.permute.xlu0 %629
    %631 = vrot.lane.b32.xlu0 %v495, 126
    %v632 = vpop.permute.xlu0 %631
    %633 = vrot.lane.b32.xlu0 %v496, 126
    %v634 = vpop.permute.xlu0 %633
    %635 = vrot.lane.b32.xlu0 %v497, 126
    %v636 = vpop.permute.xlu0 %635
    %637 = vrot.lane.b32.xlu0 %v498, 126
    %v638 = vpop.permute.xlu0 %637
    %639 = vrot.lane.b32.xlu0 %v499, 126
    %v640 = vpop.permute.xlu0 %639
    %vm641 = vcmask 1031168
    %v642 = vsel %vm641, %v626, %v628
    %v643 = vsel %vm641, %v628, %v630
    %v644 = vsel %vm641, %v630, %v632
    %v645 = vsel %vm641, %v634, %v636
    %v646 = vsel %vm641, %v636, %v638
    %v647 = vsel %vm641, %v638, %v640
    %v656 = vmax.f32 %v617, %v642
    %v657 = vmax.f32 %v618, %v643
    %v658 = vmax.f32 %v619, %v644
    %v659 = vmax.f32 %v620, %v632
    %v660 = vmax.f32 %v621, %v645
    %v661 = vmax.f32 %v622, %v646
    %v662 = vmax.f32 %v623, %v647
    %v663 = vmax.f32 %v624, %v640
    %v664 = vmax.f32 %v656, %v658
    %v665 = vmax.f32 %v657, %v659
    %v666 = vmax.f32 %v660, %v662
    %v667 = vmax.f32 %v661, %v663
    %672 = vrot.lane.b32.xlu0 %v656, 96
    %v673 = vpop.permute.xlu0 %672
    %674 = vrot.lane.b32.xlu0 %v657, 96
    %v675 = vpop.permute.xlu0 %674
    %676 = vrot.lane.b32.xlu0 %v660, 96
    %v677 = vpop.permute.xlu0 %676
    %678 = vrot.lane.b32.xlu0 %v661, 96
    %v679 = vpop.permute.xlu0 %678
    %vm680 = vcmask 785408
    %v681 = vsel %vm680, %v673, %v675
    %v682 = vsel %vm680, %v677, %v679
    %v687 = vmax.f32 %v664, %v681
    %v688 = vmax.f32 %v665, %v675
    %v689 = vmax.f32 %v666, %v682
    %v690 = vmax.f32 %v667, %v679
    %695 = vrot.lane.b32.xlu0 %v658, 96
    %v696 = vpop.permute.xlu0 %695
    %697 = vrot.lane.b32.xlu0 %v659, 96
    %v698 = vpop.permute.xlu0 %697
    %699 = vrot.lane.b32.xlu0 %v662, 96
    %v700 = vpop.permute.xlu0 %699
    %701 = vrot.lane.b32.xlu0 %v663, 96
    %v702 = vpop.permute.xlu0 %701
    %v703 = vsel %vm680, %v696, %v698
    %v704 = vsel %vm680, %v700, %v702
    %v709 = vmax.f32 %v687, %v703
    %v710 = vmax.f32 %v688, %v698
    %v711 = vmax.f32 %v689, %v704
    %v712 = vmax.f32 %v690, %v702
    %713 = vrot.lane.b32.xlu0 %v656, 64
    %v714 = vpop.permute.xlu0 %713
    %715 = vrot.lane.b32.xlu0 %v657, 64
    %v716 = vpop.permute.xlu0 %715
    %717 = vrot.lane.b32.xlu0 %v660, 64
    %v718 = vpop.permute.xlu0 %717
    %719 = vrot.lane.b32.xlu0 %v661, 64
    %v720 = vpop.permute.xlu0 %719
    %vm721 = vcmask 523264
    %v722 = vsel %vm721, %v714, %v716
    %v723 = vsel %vm721, %v718, %v720
    %v728 = vmax.f32 %v709, %v722
    %v729 = vmax.f32 %v710, %v716
    %v730 = vmax.f32 %v711, %v723
    %v731 = vmax.f32 %v712, %v720
    %v732 = vpack.c.bf16 %v729, %v728
    %v733 = vpack.c.bf16 %v731, %v730
    %v734 = vld [vmem:[%s7] sm:$0xff]
    %v735 = vld [vmem:[%s7 + $0x8] sm:$0xff]
    %v736 = vld [vmem:[%s7 + $0x10] sm:$0xff]
    %v737 = vld [vmem:[%s7 + $0x18] sm:$0xff]
    %v738 = vld [vmem:[%s7 + $0x20] sm:$0xff]
    %v739 = vld [vmem:[%s7 + $0x28] sm:$0xff]
    %v740 = vld [vmem:[%s7 + $0x30] sm:$0xff]
    %v741 = vld [vmem:[%s7 + $0x38] sm:$0xff]
    %v742 = vld [vmem:[%s7 + $0x40] sm:$0xff]
    %v743 = vld [vmem:[%s7 + $0x48] sm:$0xff]
    %v744 = vld [vmem:[%s7 + $0x50] sm:$0xff]
    %v745 = vld [vmem:[%s7 + $0x58] sm:$0xff]
    %v746 = vld [vmem:[%s7 + $0x60] sm:$0xff]
    %v747 = vld [vmem:[%s7 + $0x68] sm:$0xff]
    %v748 = vld [vmem:[%s7 + $0x70] sm:$0xff]
    %v749 = vld [vmem:[%s7 + $0x78] sm:$0xff]
    %v750 = vld [vmem:[%s7 + $0x80] sm:$0xff]
    %v751 = vld [vmem:[%s7 + $0x88] sm:$0xff]
    %v752 = vld [vmem:[%s7 + $0x90] sm:$0xff]
    %v753 = vld [vmem:[%s7 + $0x98] sm:$0xff]
    %v754 = vld [vmem:[%s7 + $0xa0] sm:$0xff]
    %v755 = vld [vmem:[%s7 + $0xa8] sm:$0xff]
    %v756 = vld [vmem:[%s7 + $0xb0] sm:$0xff]
    %v757 = vld [vmem:[%s7 + $0xb8] sm:$0xff]
    %s758 = scalar_lea.vmem %s7, 192
    %v759 = vld [vmem:[%s758] sm:$0xff]
    %v760 = vld [vmem:[%s758 + $0x8] sm:$0xff]
    %v761 = vld [vmem:[%s758 + $0x10] sm:$0xff]
    %v762 = vld [vmem:[%s758 + $0x18] sm:$0xff]
    %v763 = vld [vmem:[%s758 + $0x20] sm:$0xff]
    %v764 = vld [vmem:[%s758 + $0x28] sm:$0xff]
    %v765 = vld [vmem:[%s758 + $0x30] sm:$0xff]
    %v766 = vld [vmem:[%s758 + $0x38] sm:$0xff]
    %v767 = vld [vmem:[%s758 + $0x40] sm:$0xff]
    %v768 = vld [vmem:[%s758 + $0x48] sm:$0xff]
    %v769 = vld [vmem:[%s758 + $0x50] sm:$0xff]
    %v770 = vld [vmem:[%s758 + $0x58] sm:$0xff]
    %v771 = vld [vmem:[%s758 + $0x60] sm:$0xff]
    %v772 = vld [vmem:[%s758 + $0x68] sm:$0xff]
    %v773 = vld [vmem:[%s758 + $0x70] sm:$0xff]
    %v774 = vld [vmem:[%s758 + $0x78] sm:$0xff]
    %v775 = vld [vmem:[%s758 + $0x80] sm:$0xff]
    %v776 = vld [vmem:[%s758 + $0x88] sm:$0xff]
    %v777 = vld [vmem:[%s758 + $0x90] sm:$0xff]
    %v778 = vld [vmem:[%s758 + $0x98] sm:$0xff]
    %v779 = vld [vmem:[%s758 + $0xa0] sm:$0xff]
    %v780 = vld [vmem:[%s758 + $0xa8] sm:$0xff]
    %v781 = vld [vmem:[%s758 + $0xb0] sm:$0xff]
    %v782 = vld [vmem:[%s758 + $0xb8] sm:$0xff]
    %v784 = vunpack.c.l.b16 %v732
    %v785 = vunpack.c.h.b16 %v732
    %v786 = vpack.c.b16 %v784, %v784
    %v787 = vpack.c.b16 %v785, %v785
    %v789 = vshrl.u32 %v786, 16
    %v792 = vshrl.u32 %v787, 16
    %v819 = vunpack.c.l.b16 %v759
    %v820 = vunpack.c.h.b16 %v759
    %v821 = vunpack.c.l.b16 %v760
    %v822 = vunpack.c.h.b16 %v760
    %v823 = vunpack.c.l.b16 %v761
    %v824 = vunpack.c.h.b16 %v761
    %v825 = vunpack.c.l.b16 %v762
    %v826 = vunpack.c.h.b16 %v762
    %v827 = vunpack.c.l.b16 %v763
    %v828 = vunpack.c.h.b16 %v763
    %v829 = vunpack.c.l.b16 %v764
    %v830 = vunpack.c.h.b16 %v764
    %v831 = vunpack.c.l.b16 %v765
    %v832 = vunpack.c.h.b16 %v765
    %v833 = vunpack.c.l.b16 %v766
    %v834 = vunpack.c.h.b16 %v766
    %v835 = vunpack.c.l.b16 %v767
    %v836 = vunpack.c.h.b16 %v767
    %v837 = vunpack.c.l.b16 %v768
    %v838 = vunpack.c.h.b16 %v768
    %v839 = vunpack.c.l.b16 %v769
    %v840 = vunpack.c.h.b16 %v769
    %v841 = vunpack.c.l.b16 %v770
    %v842 = vunpack.c.h.b16 %v770
    %v843 = vunpack.c.l.b16 %v771
    %v844 = vunpack.c.h.b16 %v771
    %v845 = vunpack.c.l.b16 %v772
    %v846 = vunpack.c.h.b16 %v772
    %v847 = vunpack.c.l.b16 %v773
    %v848 = vunpack.c.h.b16 %v773
    %v849 = vunpack.c.l.b16 %v774
    %v850 = vunpack.c.h.b16 %v774
    %v851 = vunpack.c.l.b16 %v775
    %v852 = vunpack.c.h.b16 %v775
    %v853 = vunpack.c.l.b16 %v776
    %v854 = vunpack.c.h.b16 %v776
    %v855 = vunpack.c.l.b16 %v777
    %v856 = vunpack.c.h.b16 %v777
    %v857 = vunpack.c.l.b16 %v778
    %v858 = vunpack.c.h.b16 %v778
    %v859 = vunpack.c.l.b16 %v779
    %v860 = vunpack.c.h.b16 %v779
    %v861 = vunpack.c.l.b16 %v780
    %v862 = vunpack.c.h.b16 %v780
    %v863 = vunpack.c.l.b16 %v781
    %v864 = vunpack.c.h.b16 %v781
    %v865 = vunpack.c.l.b16 %v782
    %v866 = vunpack.c.h.b16 %v782
    %v867 = vpack.c.b16 %v821, %v819
    %v868 = vpack.c.b16 %v822, %v820
    %v869 = vpack.c.b16 %v825, %v823
    %v870 = vpack.c.b16 %v826, %v824
    %v871 = vpack.c.b16 %v829, %v827
    %v872 = vpack.c.b16 %v830, %v828
    %v873 = vpack.c.b16 %v833, %v831
    %v874 = vpack.c.b16 %v834, %v832
    %v875 = vpack.c.b16 %v837, %v835
    %v876 = vpack.c.b16 %v838, %v836
    %v877 = vpack.c.b16 %v841, %v839
    %v878 = vpack.c.b16 %v842, %v840
    %v879 = vpack.c.b16 %v845, %v843
    %v880 = vpack.c.b16 %v846, %v844
    %v881 = vpack.c.b16 %v849, %v847
    %v882 = vpack.c.b16 %v850, %v848
    %v883 = vpack.c.b16 %v853, %v851
    %v884 = vpack.c.b16 %v854, %v852
    %v885 = vpack.c.b16 %v857, %v855
    %v886 = vpack.c.b16 %v858, %v856
    %v887 = vpack.c.b16 %v861, %v859
    %v888 = vpack.c.b16 %v862, %v860
    %v889 = vpack.c.b16 %v865, %v863
    %v890 = vpack.c.b16 %v866, %v864
    %v916 = vsel %vm721, %v792, 0
    %918 = vmatpush.bf16.msra.mxu0 %v881
    %919 = vmatpush.bf16.msra.mxu0 %v879
    %920 = vmatpush.bf16.msra.mxu0 %v877
    %921 = vmatpush.bf16.msra.mxu0 %v875
    %922 = vmatpush.bf16.msra.mxu0 %v873
    %923 = vmatpush.bf16.msra.mxu0 %v871
    %924 = vmatpush.bf16.msra.mxu0 %v869
    %925 = vmatpush.bf16.msra.mxu0 %v867
    %926 = vmatmul.bf16.gmra.mxu0 %v789
    %v927 = vpop.f32.mrf.mxu0
    %v928 = vadd.f32 0.0, %v927
    %v929 = vpop.f32.mrf.mxu0
    %930 = vdwg.mxu0
    %931 = vmatpush.bf16.msra.mxu0 0
    %932 = vmatpush.bf16.msra.mxu0 0
    %933 = vmatpush.bf16.msra.mxu0 0
    %934 = vmatpush.bf16.msra.mxu0 0
    %935 = vmatpush.bf16.msra.mxu0 %v889
    %936 = vmatpush.bf16.msra.mxu0 %v887
    %937 = vmatpush.bf16.msra.mxu0 %v885
    %938 = vmatpush.bf16.msra.mxu0 %v883
    %939 = vmatmul.bf16.gmra.mxu0 %v916
    %v940 = vpop.f32.mrf.mxu0
    %v941 = vadd.f32 %v928, %v940
    %v942 = vpop.f32.mrf.mxu0
    %943 = vdwg.mxu0
    %944 = vmatpush.bf16.msra.mxu0 %v882
    %945 = vmatpush.bf16.msra.mxu0 %v880
    %946 = vmatpush.bf16.msra.mxu0 %v878
    %947 = vmatpush.bf16.msra.mxu0 %v876
    %948 = vmatpush.bf16.msra.mxu0 %v874
    %949 = vmatpush.bf16.msra.mxu0 %v872
    %950 = vmatpush.bf16.msra.mxu0 %v870
    %951 = vmatpush.bf16.msra.mxu0 %v868
    %952 = vmatmul.bf16.gmra.mxu0 %v789
    %v953 = vpop.f32.mrf.mxu0
    %v954 = vadd.f32 0.0, %v953
    %v955 = vpop.f32.mrf.mxu0
    %956 = vdwg.mxu0
    %957 = vmatpush.bf16.msra.mxu0 0
    %958 = vmatpush.bf16.msra.mxu0 0
    %959 = vmatpush.bf16.msra.mxu0 0
    %960 = vmatpush.bf16.msra.mxu0 0
    %961 = vmatpush.bf16.msra.mxu0 %v890
    %962 = vmatpush.bf16.msra.mxu0 %v888
    %963 = vmatpush.bf16.msra.mxu0 %v886
    %964 = vmatpush.bf16.msra.mxu0 %v884
    %965 = vmatmul.bf16.gmra.mxu0 %v916
    %v966 = vpop.f32.mrf.mxu0
    %v967 = vadd.f32 %v954, %v966
    %v968 = vpop.f32.mrf.mxu0
    %969 = vdwg.mxu0
    %v995 = vunpack.c.l.b16 %v734
    %v996 = vunpack.c.h.b16 %v734
    %v997 = vunpack.c.l.b16 %v735
    %v998 = vunpack.c.h.b16 %v735
    %v999 = vunpack.c.l.b16 %v736
    %v1000 = vunpack.c.h.b16 %v736
    %v1001 = vunpack.c.l.b16 %v737
    %v1002 = vunpack.c.h.b16 %v737
    %v1003 = vunpack.c.l.b16 %v738
    %v1004 = vunpack.c.h.b16 %v738
    %v1005 = vunpack.c.l.b16 %v739
    %v1006 = vunpack.c.h.b16 %v739
    %v1007 = vunpack.c.l.b16 %v740
    %v1008 = vunpack.c.h.b16 %v740
    %v1009 = vunpack.c.l.b16 %v741
    %v1010 = vunpack.c.h.b16 %v741
    %v1011 = vunpack.c.l.b16 %v742
    %v1012 = vunpack.c.h.b16 %v742
    %v1013 = vunpack.c.l.b16 %v743
    %v1014 = vunpack.c.h.b16 %v743
    %v1015 = vunpack.c.l.b16 %v744
    %v1016 = vunpack.c.h.b16 %v744
    %v1017 = vunpack.c.l.b16 %v745
    %v1018 = vunpack.c.h.b16 %v745
    %v1019 = vunpack.c.l.b16 %v746
    %v1020 = vunpack.c.h.b16 %v746
    %v1021 = vunpack.c.l.b16 %v747
    %v1022 = vunpack.c.h.b16 %v747
    %v1023 = vunpack.c.l.b16 %v748
    %v1024 = vunpack.c.h.b16 %v748
    %v1025 = vunpack.c.l.b16 %v749
    %v1026 = vunpack.c.h.b16 %v749
    %v1027 = vunpack.c.l.b16 %v750
    %v1028 = vunpack.c.h.b16 %v750
    %v1029 = vunpack.c.l.b16 %v751
    %v1030 = vunpack.c.h.b16 %v751
    %v1031 = vunpack.c.l.b16 %v752
    %v1032 = vunpack.c.h.b16 %v752
    %v1033 = vunpack.c.l.b16 %v753
    %v1034 = vunpack.c.h.b16 %v753
    %v1035 = vunpack.c.l.b16 %v754
    %v1036 = vunpack.c.h.b16 %v754
    %v1037 = vunpack.c.l.b16 %v755
    %v1038 = vunpack.c.h.b16 %v755
    %v1039 = vunpack.c.l.b16 %v756
    %v1040 = vunpack.c.h.b16 %v756
    %v1041 = vunpack.c.l.b16 %v757
    %v1042 = vunpack.c.h.b16 %v757
    %v1043 = vpack.c.b16 %v997, %v995
    %v1044 = vpack.c.b16 %v998, %v996
    %v1045 = vpack.c.b16 %v1001, %v999
    %v1046 = vpack.c.b16 %v1002, %v1000
    %v1047 = vpack.c.b16 %v1005, %v1003
    %v1048 = vpack.c.b16 %v1006, %v1004
    %v1049 = vpack.c.b16 %v1009, %v1007
    %v1050 = vpack.c.b16 %v1010, %v1008
    %v1051 = vpack.c.b16 %v1013, %v1011
    %v1052 = vpack.c.b16 %v1014, %v1012
    %v1053 = vpack.c.b16 %v1017, %v1015
    %v1054 = vpack.c.b16 %v1018, %v1016
    %v1055 = vpack.c.b16 %v1021, %v1019
    %v1056 = vpack.c.b16 %v1022, %v1020
    %v1057 = vpack.c.b16 %v1025, %v1023
    %v1058 = vpack.c.b16 %v1026, %v1024
    %v1059 = vpack.c.b16 %v1029, %v1027
    %v1060 = vpack.c.b16 %v1030, %v1028
    %v1061 = vpack.c.b16 %v1033, %v1031
    %v1062 = vpack.c.b16 %v1034, %v1032
    %v1063 = vpack.c.b16 %v1037, %v1035
    %v1064 = vpack.c.b16 %v1038, %v1036
    %v1065 = vpack.c.b16 %v1041, %v1039
    %v1066 = vpack.c.b16 %v1042, %v1040
    %v1091 = vsel %vm721, %v787, 0
    %1093 = vmatpush.bf16.msra.mxu0 %v1057
    %1094 = vmatpush.bf16.msra.mxu0 %v1055
    %1095 = vmatpush.bf16.msra.mxu0 %v1053
    %1096 = vmatpush.bf16.msra.mxu0 %v1051
    %1097 = vmatpush.bf16.msra.mxu0 %v1049
    %1098 = vmatpush.bf16.msra.mxu0 %v1047
    %1099 = vmatpush.bf16.msra.mxu0 %v1045
    %1100 = vmatpush.bf16.msra.mxu0 %v1043
    %1101 = vmatmul.bf16.gmra.mxu0 %v786
    %v1102 = vpop.f32.mrf.mxu0
    %v1103 = vadd.f32 %v941, %v1102
    %v1104 = vpop.f32.mrf.mxu0
    %1105 = vdwg.mxu0
    %1106 = vmatpush.bf16.msra.mxu0 0
    %1107 = vmatpush.bf16.msra.mxu0 0
    %1108 = vmatpush.bf16.msra.mxu0 0
    %1109 = vmatpush.bf16.msra.mxu0 0
    %1110 = vmatpush.bf16.msra.mxu0 %v1065
    %1111 = vmatpush.bf16.msra.mxu0 %v1063
    %1112 = vmatpush.bf16.msra.mxu0 %v1061
    %1113 = vmatpush.bf16.msra.mxu0 %v1059
    %1114 = vmatmul.bf16.gmra.mxu0 %v1091
    %v1115 = vpop.f32.mrf.mxu0
    %v1116 = vadd.f32 %v1103, %v1115
    %v1117 = vpop.f32.mrf.mxu0
    %1118 = vdwg.mxu0
    %1119 = vmatpush.bf16.msra.mxu0 %v1058
    %1120 = vmatpush.bf16.msra.mxu0 %v1056
    %1121 = vmatpush.bf16.msra.mxu0 %v1054
    %1122 = vmatpush.bf16.msra.mxu0 %v1052
    %1123 = vmatpush.bf16.msra.mxu0 %v1050
    %1124 = vmatpush.bf16.msra.mxu0 %v1048
    %1125 = vmatpush.bf16.msra.mxu0 %v1046
    %1126 = vmatpush.bf16.msra.mxu0 %v1044
    %1127 = vmatmul.bf16.gmra.mxu0 %v786
    %v1128 = vpop.f32.mrf.mxu0
    %v1129 = vadd.f32 %v967, %v1128
    %v1130 = vpop.f32.mrf.mxu0
    %1131 = vdwg.mxu0
    %1132 = vmatpush.bf16.msra.mxu0 0
    %1133 = vmatpush.bf16.msra.mxu0 0
    %1134 = vmatpush.bf16.msra.mxu0 0
    %1135 = vmatpush.bf16.msra.mxu0 0
    %1136 = vmatpush.bf16.msra.mxu0 %v1066
    %1137 = vmatpush.bf16.msra.mxu0 %v1064
    %1138 = vmatpush.bf16.msra.mxu0 %v1062
    %1139 = vmatpush.bf16.msra.mxu0 %v1060
    %1140 = vmatmul.bf16.gmra.mxu0 %v1091
    %v1141 = vpop.f32.mrf.mxu0
    %v1142 = vadd.f32 %v1129, %v1141
    %v1143 = vpop.f32.mrf.mxu0
    %1144 = vdwg.mxu0
    %s1145 = scalar_lea.vmem %s7, 384
    %v1146 = vld [vmem:[%s1145] sm:$0xff]
    %v1147 = vld [vmem:[%s1145 + $0x8] sm:$0xff]
    %v1148 = vld [vmem:[%s1145 + $0x10] sm:$0xff]
    %v1149 = vld [vmem:[%s1145 + $0x18] sm:$0xff]
    %v1150 = vld [vmem:[%s1145 + $0x20] sm:$0xff]
    %v1151 = vld [vmem:[%s1145 + $0x28] sm:$0xff]
    %v1152 = vld [vmem:[%s1145 + $0x30] sm:$0xff]
    %v1153 = vld [vmem:[%s1145 + $0x38] sm:$0xff]
    %v1154 = vld [vmem:[%s1145 + $0x40] sm:$0xff]
    %v1155 = vld [vmem:[%s1145 + $0x48] sm:$0xff]
    %v1156 = vld [vmem:[%s1145 + $0x50] sm:$0xff]
    %v1157 = vld [vmem:[%s1145 + $0x58] sm:$0xff]
    %v1158 = vld [vmem:[%s1145 + $0x60] sm:$0xff]
    %v1159 = vld [vmem:[%s1145 + $0x68] sm:$0xff]
    %v1160 = vld [vmem:[%s1145 + $0x70] sm:$0xff]
    %v1161 = vld [vmem:[%s1145 + $0x78] sm:$0xff]
    %v1162 = vld [vmem:[%s1145 + $0x80] sm:$0xff]
    %v1163 = vld [vmem:[%s1145 + $0x88] sm:$0xff]
    %v1164 = vld [vmem:[%s1145 + $0x90] sm:$0xff]
    %v1165 = vld [vmem:[%s1145 + $0x98] sm:$0xff]
    %v1166 = vld [vmem:[%s1145 + $0xa0] sm:$0xff]
    %v1167 = vld [vmem:[%s1145 + $0xa8] sm:$0xff]
    %v1168 = vld [vmem:[%s1145 + $0xb0] sm:$0xff]
    %v1169 = vld [vmem:[%s1145 + $0xb8] sm:$0xff]
    %v1170 = vrot.slane %v786, 1
    %v1171 = vrot.slane %v787, 1
    %v1197 = vunpack.c.l.b16 %v1146
    %v1198 = vunpack.c.h.b16 %v1146
    %v1199 = vunpack.c.l.b16 %v1147
    %v1200 = vunpack.c.h.b16 %v1147
    %v1201 = vunpack.c.l.b16 %v1148
    %v1202 = vunpack.c.h.b16 %v1148
    %v1203 = vunpack.c.l.b16 %v1149
    %v1204 = vunpack.c.h.b16 %v1149
    %v1205 = vunpack.c.l.b16 %v1150
    %v1206 = vunpack.c.h.b16 %v1150
    %v1207 = vunpack.c.l.b16 %v1151
    %v1208 = vunpack.c.h.b16 %v1151
    %v1209 = vunpack.c.l.b16 %v1152
    %v1210 = vunpack.c.h.b16 %v1152
    %v1211 = vunpack.c.l.b16 %v1153
    %v1212 = vunpack.c.h.b16 %v1153
    %v1213 = vunpack.c.l.b16 %v1154
    %v1214 = vunpack.c.h.b16 %v1154
    %v1215 = vunpack.c.l.b16 %v1155
    %v1216 = vunpack.c.h.b16 %v1155
    %v1217 = vunpack.c.l.b16 %v1156
    %v1218 = vunpack.c.h.b16 %v1156
    %v1219 = vunpack.c.l.b16 %v1157
    %v1220 = vunpack.c.h.b16 %v1157
    %v1221 = vunpack.c.l.b16 %v1158
    %v1222 = vunpack.c.h.b16 %v1158
    %v1223 = vunpack.c.l.b16 %v1159
    %v1224 = vunpack.c.h.b16 %v1159
    %v1225 = vunpack.c.l.b16 %v1160
    %v1226 = vunpack.c.h.b16 %v1160
    %v1227 = vunpack.c.l.b16 %v1161
    %v1228 = vunpack.c.h.b16 %v1161
    %v1229 = vunpack.c.l.b16 %v1162
    %v1230 = vunpack.c.h.b16 %v1162
    %v1231 = vunpack.c.l.b16 %v1163
    %v1232 = vunpack.c.h.b16 %v1163
    %v1233 = vunpack.c.l.b16 %v1164
    %v1234 = vunpack.c.h.b16 %v1164
    %v1235 = vunpack.c.l.b16 %v1165
    %v1236 = vunpack.c.h.b16 %v1165
    %v1237 = vunpack.c.l.b16 %v1166
    %v1238 = vunpack.c.h.b16 %v1166
    %v1239 = vunpack.c.l.b16 %v1167
    %v1240 = vunpack.c.h.b16 %v1167
    %v1241 = vunpack.c.l.b16 %v1168
    %v1242 = vunpack.c.h.b16 %v1168
    %v1243 = vunpack.c.l.b16 %v1169
    %v1244 = vunpack.c.h.b16 %v1169
    %v1245 = vpack.c.b16 %v1199, %v1197
    %v1246 = vpack.c.b16 %v1200, %v1198
    %v1247 = vpack.c.b16 %v1203, %v1201
    %v1248 = vpack.c.b16 %v1204, %v1202
    %v1249 = vpack.c.b16 %v1207, %v1205
    %v1250 = vpack.c.b16 %v1208, %v1206
    %v1251 = vpack.c.b16 %v1211, %v1209
    %v1252 = vpack.c.b16 %v1212, %v1210
    %v1253 = vpack.c.b16 %v1215, %v1213
    %v1254 = vpack.c.b16 %v1216, %v1214
    %v1255 = vpack.c.b16 %v1219, %v1217
    %v1256 = vpack.c.b16 %v1220, %v1218
    %v1257 = vpack.c.b16 %v1223, %v1221
    %v1258 = vpack.c.b16 %v1224, %v1222
    %v1259 = vpack.c.b16 %v1227, %v1225
    %v1260 = vpack.c.b16 %v1228, %v1226
    %v1261 = vpack.c.b16 %v1231, %v1229
    %v1262 = vpack.c.b16 %v1232, %v1230
    %v1263 = vpack.c.b16 %v1235, %v1233
    %v1264 = vpack.c.b16 %v1236, %v1234
    %v1265 = vpack.c.b16 %v1239, %v1237
    %v1266 = vpack.c.b16 %v1240, %v1238
    %v1267 = vpack.c.b16 %v1243, %v1241
    %v1268 = vpack.c.b16 %v1244, %v1242
    %v1294 = vsel %vm721, %v1171, 0
    %1296 = vmatpush.bf16.msra.mxu0 %v1259
    %1297 = vmatpush.bf16.msra.mxu0 %v1257
    %1298 = vmatpush.bf16.msra.mxu0 %v1255
    %1299 = vmatpush.bf16.msra.mxu0 %v1253
    %1300 = vmatpush.bf16.msra.mxu0 %v1251
    %1301 = vmatpush.bf16.msra.mxu0 %v1249
    %1302 = vmatpush.bf16.msra.mxu0 %v1247
    %1303 = vmatpush.bf16.msra.mxu0 %v1245
    %1304 = vmatmul.bf16.gmra.mxu0 %v1170
    %v1305 = vpop.f32.mrf.mxu0
    %v1306 = vadd.f32 0.0, %v1305
    %v1307 = vpop.f32.mrf.mxu0
    %1308 = vdwg.mxu0
    %1309 = vmatpush.bf16.msra.mxu0 0
    %1310 = vmatpush.bf16.msra.mxu0 0
    %1311 = vmatpush.bf16.msra.mxu0 0
    %1312 = vmatpush.bf16.msra.mxu0 0
    %1313 = vmatpush.bf16.msra.mxu0 %v1267
    %1314 = vmatpush.bf16.msra.mxu0 %v1265
    %1315 = vmatpush.bf16.msra.mxu0 %v1263
    %1316 = vmatpush.bf16.msra.mxu0 %v1261
    %1317 = vmatmul.bf16.gmra.mxu0 %v1294
    %v1318 = vpop.f32.mrf.mxu0
    %v1319 = vadd.f32 %v1306, %v1318
    %v1320 = vpop.f32.mrf.mxu0
    %1321 = vdwg.mxu0
    %1322 = vmatpush.bf16.msra.mxu0 %v1260
    %1323 = vmatpush.bf16.msra.mxu0 %v1258
    %1324 = vmatpush.bf16.msra.mxu0 %v1256
    %1325 = vmatpush.bf16.msra.mxu0 %v1254
    %1326 = vmatpush.bf16.msra.mxu0 %v1252
    %1327 = vmatpush.bf16.msra.mxu0 %v1250
    %1328 = vmatpush.bf16.msra.mxu0 %v1248
    %1329 = vmatpush.bf16.msra.mxu0 %v1246
    %1330 = vmatmul.bf16.gmra.mxu0 %v1170
    %v1331 = vpop.f32.mrf.mxu0
    %v1332 = vadd.f32 0.0, %v1331
    %v1333 = vpop.f32.mrf.mxu0
    %1334 = vdwg.mxu0
    %1335 = vmatpush.bf16.msra.mxu0 0
    %1336 = vmatpush.bf16.msra.mxu0 0
    %1337 = vmatpush.bf16.msra.mxu0 0
    %1338 = vmatpush.bf16.msra.mxu0 0
    %1339 = vmatpush.bf16.msra.mxu0 %v1268
    %1340 = vmatpush.bf16.msra.mxu0 %v1266
    %1341 = vmatpush.bf16.msra.mxu0 %v1264
    %1342 = vmatpush.bf16.msra.mxu0 %v1262
    %1343 = vmatmul.bf16.gmra.mxu0 %v1294
    %v1344 = vpop.f32.mrf.mxu0
    %v1345 = vadd.f32 %v1332, %v1344
    %v1346 = vpop.f32.mrf.mxu0
    %1347 = vdwg.mxu0
    %v1348 = vadd.f32 %v1116, %v1319
    %v1349 = vadd.f32 %v1142, %v1345
    %s1350 = scalar_lea.vmem %s7, 576
    %v1351 = vld [vmem:[%s1350] sm:$0xff]
    %v1352 = vld [vmem:[%s1350 + $0x8] sm:$0xff]
    %v1353 = vld [vmem:[%s1350 + $0x10] sm:$0xff]
    %v1354 = vld [vmem:[%s1350 + $0x18] sm:$0xff]
    %v1355 = vld [vmem:[%s1350 + $0x20] sm:$0xff]
    %v1356 = vld [vmem:[%s1350 + $0x28] sm:$0xff]
    %v1357 = vld [vmem:[%s1350 + $0x30] sm:$0xff]
    %v1358 = vld [vmem:[%s1350 + $0x38] sm:$0xff]
    %v1359 = vld [vmem:[%s1350 + $0x40] sm:$0xff]
    %v1360 = vld [vmem:[%s1350 + $0x48] sm:$0xff]
    %v1361 = vld [vmem:[%s1350 + $0x50] sm:$0xff]
    %v1362 = vld [vmem:[%s1350 + $0x58] sm:$0xff]
    %v1363 = vld [vmem:[%s1350 + $0x60] sm:$0xff]
    %v1364 = vld [vmem:[%s1350 + $0x68] sm:$0xff]
    %v1365 = vld [vmem:[%s1350 + $0x70] sm:$0xff]
    %v1366 = vld [vmem:[%s1350 + $0x78] sm:$0xff]
    %v1367 = vld [vmem:[%s1350 + $0x80] sm:$0xff]
    %v1368 = vld [vmem:[%s1350 + $0x88] sm:$0xff]
    %v1369 = vld [vmem:[%s1350 + $0x90] sm:$0xff]
    %v1370 = vld [vmem:[%s1350 + $0x98] sm:$0xff]
    %v1371 = vld [vmem:[%s1350 + $0xa0] sm:$0xff]
    %v1372 = vld [vmem:[%s1350 + $0xa8] sm:$0xff]
    %v1373 = vld [vmem:[%s1350 + $0xb0] sm:$0xff]
    %v1374 = vld [vmem:[%s1350 + $0xb8] sm:$0xff]
    %v1375 = vrot.slane %v789, 1
    %v1376 = vrot.slane %v792, 1
    %v1402 = vunpack.c.l.b16 %v1351
    %v1403 = vunpack.c.h.b16 %v1351
    %v1404 = vunpack.c.l.b16 %v1352
    %v1405 = vunpack.c.h.b16 %v1352
    %v1406 = vunpack.c.l.b16 %v1353
    %v1407 = vunpack.c.h.b16 %v1353
    %v1408 = vunpack.c.l.b16 %v1354
    %v1409 = vunpack.c.h.b16 %v1354
    %v1410 = vunpack.c.l.b16 %v1355
    %v1411 = vunpack.c.h.b16 %v1355
    %v1412 = vunpack.c.l.b16 %v1356
    %v1413 = vunpack.c.h.b16 %v1356
    %v1414 = vunpack.c.l.b16 %v1357
    %v1415 = vunpack.c.h.b16 %v1357
    %v1416 = vunpack.c.l.b16 %v1358
    %v1417 = vunpack.c.h.b16 %v1358
    %v1418 = vunpack.c.l.b16 %v1359
    %v1419 = vunpack.c.h.b16 %v1359
    %v1420 = vunpack.c.l.b16 %v1360
    %v1421 = vunpack.c.h.b16 %v1360
    %v1422 = vunpack.c.l.b16 %v1361
    %v1423 = vunpack.c.h.b16 %v1361
    %v1424 = vunpack.c.l.b16 %v1362
    %v1425 = vunpack.c.h.b16 %v1362
    %v1426 = vunpack.c.l.b16 %v1363
    %v1427 = vunpack.c.h.b16 %v1363
    %v1428 = vunpack.c.l.b16 %v1364
    %v1429 = vunpack.c.h.b16 %v1364
    %v1430 = vunpack.c.l.b16 %v1365
    %v1431 = vunpack.c.h.b16 %v1365
    %v1432 = vunpack.c.l.b16 %v1366
    %v1433 = vunpack.c.h.b16 %v1366
    %v1434 = vunpack.c.l.b16 %v1367
    %v1435 = vunpack.c.h.b16 %v1367
    %v1436 = vunpack.c.l.b16 %v1368
    %v1437 = vunpack.c.h.b16 %v1368
    %v1438 = vunpack.c.l.b16 %v1369
    %v1439 = vunpack.c.h.b16 %v1369
    %v1440 = vunpack.c.l.b16 %v1370
    %v1441 = vunpack.c.h.b16 %v1370
    %v1442 = vunpack.c.l.b16 %v1371
    %v1443 = vunpack.c.h.b16 %v1371
    %v1444 = vunpack.c.l.b16 %v1372
    %v1445 = vunpack.c.h.b16 %v1372
    %v1446 = vunpack.c.l.b16 %v1373
    %v1447 = vunpack.c.h.b16 %v1373
    %v1448 = vunpack.c.l.b16 %v1374
    %v1449 = vunpack.c.h.b16 %v1374
    %v1450 = vpack.c.b16 %v1404, %v1402
    %v1451 = vpack.c.b16 %v1405, %v1403
    %v1452 = vpack.c.b16 %v1408, %v1406
    %v1453 = vpack.c.b16 %v1409, %v1407
    %v1454 = vpack.c.b16 %v1412, %v1410
    %v1455 = vpack.c.b16 %v1413, %v1411
    %v1456 = vpack.c.b16 %v1416, %v1414
    %v1457 = vpack.c.b16 %v1417, %v1415
    %v1458 = vpack.c.b16 %v1420, %v1418
    %v1459 = vpack.c.b16 %v1421, %v1419
    %v1460 = vpack.c.b16 %v1424, %v1422
    %v1461 = vpack.c.b16 %v1425, %v1423
    %v1462 = vpack.c.b16 %v1428, %v1426
    %v1463 = vpack.c.b16 %v1429, %v1427
    %v1464 = vpack.c.b16 %v1432, %v1430
    %v1465 = vpack.c.b16 %v1433, %v1431
    %v1466 = vpack.c.b16 %v1436, %v1434
    %v1467 = vpack.c.b16 %v1437, %v1435
    %v1468 = vpack.c.b16 %v1440, %v1438
    %v1469 = vpack.c.b16 %v1441, %v1439
    %v1470 = vpack.c.b16 %v1444, %v1442
    %v1471 = vpack.c.b16 %v1445, %v1443
    %v1472 = vpack.c.b16 %v1448, %v1446
    %v1473 = vpack.c.b16 %v1449, %v1447
    %v1499 = vsel %vm721, %v1376, 0
    %1501 = vmatpush.bf16.msra.mxu0 %v1464
    %1502 = vmatpush.bf16.msra.mxu0 %v1462
    %1503 = vmatpush.bf16.msra.mxu0 %v1460
    %1504 = vmatpush.bf16.msra.mxu0 %v1458
    %1505 = vmatpush.bf16.msra.mxu0 %v1456
    %1506 = vmatpush.bf16.msra.mxu0 %v1454
    %1507 = vmatpush.bf16.msra.mxu0 %v1452
    %1508 = vmatpush.bf16.msra.mxu0 %v1450
    %1509 = vmatmul.bf16.gmra.mxu0 %v1375
    %v1510 = vpop.f32.mrf.mxu0
    %v1511 = vadd.f32 0.0, %v1510
    %v1512 = vpop.f32.mrf.mxu0
    %1513 = vdwg.mxu0
    %1514 = vmatpush.bf16.msra.mxu0 0
    %1515 = vmatpush.bf16.msra.mxu0 0
    %1516 = vmatpush.bf16.msra.mxu0 0
    %1517 = vmatpush.bf16.msra.mxu0 0
    %1518 = vmatpush.bf16.msra.mxu0 %v1472
    %1519 = vmatpush.bf16.msra.mxu0 %v1470
    %1520 = vmatpush.bf16.msra.mxu0 %v1468
    %1521 = vmatpush.bf16.msra.mxu0 %v1466
    %1522 = vmatmul.bf16.gmra.mxu0 %v1499
    %v1523 = vpop.f32.mrf.mxu0
    %v1524 = vadd.f32 %v1511, %v1523
    %v1525 = vpop.f32.mrf.mxu0
    %1526 = vdwg.mxu0
    %1527 = vmatpush.bf16.msra.mxu0 %v1465
    %1528 = vmatpush.bf16.msra.mxu0 %v1463
    %1529 = vmatpush.bf16.msra.mxu0 %v1461
    %1530 = vmatpush.bf16.msra.mxu0 %v1459
    %1531 = vmatpush.bf16.msra.mxu0 %v1457
    %1532 = vmatpush.bf16.msra.mxu0 %v1455
    %1533 = vmatpush.bf16.msra.mxu0 %v1453
    %1534 = vmatpush.bf16.msra.mxu0 %v1451
    %1535 = vmatmul.bf16.gmra.mxu0 %v1375
    %v1536 = vpop.f32.mrf.mxu0
    %v1537 = vadd.f32 0.0, %v1536
    %v1538 = vpop.f32.mrf.mxu0
    %1539 = vdwg.mxu0
    %1540 = vmatpush.bf16.msra.mxu0 0
    %1541 = vmatpush.bf16.msra.mxu0 0
    %1542 = vmatpush.bf16.msra.mxu0 0
    %1543 = vmatpush.bf16.msra.mxu0 0
    %1544 = vmatpush.bf16.msra.mxu0 %v1473
    %1545 = vmatpush.bf16.msra.mxu0 %v1471
    %1546 = vmatpush.bf16.msra.mxu0 %v1469
    %1547 = vmatpush.bf16.msra.mxu0 %v1467
    %1548 = vmatmul.bf16.gmra.mxu0 %v1499
    %v1549 = vpop.f32.mrf.mxu0
    %v1550 = vadd.f32 %v1537, %v1549
    %v1551 = vpop.f32.mrf.mxu0
    %1552 = vdwg.mxu0
    %v1553 = vadd.f32 %v1348, %v1524
    %v1554 = vadd.f32 %v1349, %v1550
    %s1555 = scalar_lea.vmem %s7, 768
    %v1556 = vld [vmem:[%s1555] sm:$0xff]
    %v1557 = vld [vmem:[%s1555 + $0x8] sm:$0xff]
    %v1558 = vld [vmem:[%s1555 + $0x10] sm:$0xff]
    %v1559 = vld [vmem:[%s1555 + $0x18] sm:$0xff]
    %v1560 = vld [vmem:[%s1555 + $0x20] sm:$0xff]
    %v1561 = vld [vmem:[%s1555 + $0x28] sm:$0xff]
    %v1562 = vld [vmem:[%s1555 + $0x30] sm:$0xff]
    %v1563 = vld [vmem:[%s1555 + $0x38] sm:$0xff]
    %v1564 = vld [vmem:[%s1555 + $0x40] sm:$0xff]
    %v1565 = vld [vmem:[%s1555 + $0x48] sm:$0xff]
    %v1566 = vld [vmem:[%s1555 + $0x50] sm:$0xff]
    %v1567 = vld [vmem:[%s1555 + $0x58] sm:$0xff]
    %v1568 = vld [vmem:[%s1555 + $0x60] sm:$0xff]
    %v1569 = vld [vmem:[%s1555 + $0x68] sm:$0xff]
    %v1570 = vld [vmem:[%s1555 + $0x70] sm:$0xff]
    %v1571 = vld [vmem:[%s1555 + $0x78] sm:$0xff]
    %v1572 = vld [vmem:[%s1555 + $0x80] sm:$0xff]
    %v1573 = vld [vmem:[%s1555 + $0x88] sm:$0xff]
    %v1574 = vld [vmem:[%s1555 + $0x90] sm:$0xff]
    %v1575 = vld [vmem:[%s1555 + $0x98] sm:$0xff]
    %v1576 = vld [vmem:[%s1555 + $0xa0] sm:$0xff]
    %v1577 = vld [vmem:[%s1555 + $0xa8] sm:$0xff]
    %v1578 = vld [vmem:[%s1555 + $0xb0] sm:$0xff]
    %v1579 = vld [vmem:[%s1555 + $0xb8] sm:$0xff]
    %v1580 = vrot.slane %v786, 2
    %v1581 = vrot.slane %v787, 2
    %v1607 = vunpack.c.l.b16 %v1556
    %v1608 = vunpack.c.h.b16 %v1556
    %v1609 = vunpack.c.l.b16 %v1557
    %v1610 = vunpack.c.h.b16 %v1557
    %v1611 = vunpack.c.l.b16 %v1558
    %v1612 = vunpack.c.h.b16 %v1558
    %v1613 = vunpack.c.l.b16 %v1559
    %v1614 = vunpack.c.h.b16 %v1559
    %v1615 = vunpack.c.l.b16 %v1560
    %v1616 = vunpack.c.h.b16 %v1560
    %v1617 = vunpack.c.l.b16 %v1561
    %v1618 = vunpack.c.h.b16 %v1561
    %v1619 = vunpack.c.l.b16 %v1562
    %v1620 = vunpack.c.h.b16 %v1562
    %v1621 = vunpack.c.l.b16 %v1563
    %v1622 = vunpack.c.h.b16 %v1563
    %v1623 = vunpack.c.l.b16 %v1564
    %v1624 = vunpack.c.h.b16 %v1564
    %v1625 = vunpack.c.l.b16 %v1565
    %v1626 = vunpack.c.h.b16 %v1565
    %v1627 = vunpack.c.l.b16 %v1566
    %v1628 = vunpack.c.h.b16 %v1566
    %v1629 = vunpack.c.l.b16 %v1567
    %v1630 = vunpack.c.h.b16 %v1567
    %v1631 = vunpack.c.l.b16 %v1568
    %v1632 = vunpack.c.h.b16 %v1568
    %v1633 = vunpack.c.l.b16 %v1569
    %v1634 = vunpack.c.h.b16 %v1569
    %v1635 = vunpack.c.l.b16 %v1570
    %v1636 = vunpack.c.h.b16 %v1570
    %v1637 = vunpack.c.l.b16 %v1571
    %v1638 = vunpack.c.h.b16 %v1571
    %v1639 = vunpack.c.l.b16 %v1572
    %v1640 = vunpack.c.h.b16 %v1572
    %v1641 = vunpack.c.l.b16 %v1573
    %v1642 = vunpack.c.h.b16 %v1573
    %v1643 = vunpack.c.l.b16 %v1574
    %v1644 = vunpack.c.h.b16 %v1574
    %v1645 = vunpack.c.l.b16 %v1575
    %v1646 = vunpack.c.h.b16 %v1575
    %v1647 = vunpack.c.l.b16 %v1576
    %v1648 = vunpack.c.h.b16 %v1576
    %v1649 = vunpack.c.l.b16 %v1577
    %v1650 = vunpack.c.h.b16 %v1577
    %v1651 = vunpack.c.l.b16 %v1578
    %v1652 = vunpack.c.h.b16 %v1578
    %v1653 = vunpack.c.l.b16 %v1579
    %v1654 = vunpack.c.h.b16 %v1579
    %v1655 = vpack.c.b16 %v1609, %v1607
    %v1656 = vpack.c.b16 %v1610, %v1608
    %v1657 = vpack.c.b16 %v1613, %v1611
    %v1658 = vpack.c.b16 %v1614, %v1612
    %v1659 = vpack.c.b16 %v1617, %v1615
    %v1660 = vpack.c.b16 %v1618, %v1616
    %v1661 = vpack.c.b16 %v1621, %v1619
    %v1662 = vpack.c.b16 %v1622, %v1620
    %v1663 = vpack.c.b16 %v1625, %v1623
    %v1664 = vpack.c.b16 %v1626, %v1624
    %v1665 = vpack.c.b16 %v1629, %v1627
    %v1666 = vpack.c.b16 %v1630, %v1628
    %v1667 = vpack.c.b16 %v1633, %v1631
    %v1668 = vpack.c.b16 %v1634, %v1632
    %v1669 = vpack.c.b16 %v1637, %v1635
    %v1670 = vpack.c.b16 %v1638, %v1636
    %v1671 = vpack.c.b16 %v1641, %v1639
    %v1672 = vpack.c.b16 %v1642, %v1640
    %v1673 = vpack.c.b16 %v1645, %v1643
    %v1674 = vpack.c.b16 %v1646, %v1644
    %v1675 = vpack.c.b16 %v1649, %v1647
    %v1676 = vpack.c.b16 %v1650, %v1648
    %v1677 = vpack.c.b16 %v1653, %v1651
    %v1678 = vpack.c.b16 %v1654, %v1652
    %v1704 = vsel %vm721, %v1581, 0
    %1706 = vmatpush.bf16.msra.mxu0 %v1669
    %1707 = vmatpush.bf16.msra.mxu0 %v1667
    %1708 = vmatpush.bf16.msra.mxu0 %v1665
    %1709 = vmatpush.bf16.msra.mxu0 %v1663
    %1710 = vmatpush.bf16.msra.mxu0 %v1661
    %1711 = vmatpush.bf16.msra.mxu0 %v1659
    %1712 = vmatpush.bf16.msra.mxu0 %v1657
    %1713 = vmatpush.bf16.msra.mxu0 %v1655
    %1714 = vmatmul.bf16.gmra.mxu0 %v1580
    %v1715 = vpop.f32.mrf.mxu0
    %v1716 = vadd.f32 0.0, %v1715
    %v1717 = vpop.f32.mrf.mxu0
    %1718 = vdwg.mxu0
    %1719 = vmatpush.bf16.msra.mxu0 0
    %1720 = vmatpush.bf16.msra.mxu0 0
    %1721 = vmatpush.bf16.msra.mxu0 0
    %1722 = vmatpush.bf16.msra.mxu0 0
    %1723 = vmatpush.bf16.msra.mxu0 %v1677
    %1724 = vmatpush.bf16.msra.mxu0 %v1675
    %1725 = vmatpush.bf16.msra.mxu0 %v1673
    %1726 = vmatpush.bf16.msra.mxu0 %v1671
    %1727 = vmatmul.bf16.gmra.mxu0 %v1704
    %v1728 = vpop.f32.mrf.mxu0
    %v1729 = vadd.f32 %v1716, %v1728
    %v1730 = vpop.f32.mrf.mxu0
    %1731 = vdwg.mxu0
    %1732 = vmatpush.bf16.msra.mxu0 %v1670
    %1733 = vmatpush.bf16.msra.mxu0 %v1668
    %1734 = vmatpush.bf16.msra.mxu0 %v1666
    %1735 = vmatpush.bf16.msra.mxu0 %v1664
    %1736 = vmatpush.bf16.msra.mxu0 %v1662
    %1737 = vmatpush.bf16.msra.mxu0 %v1660
    %1738 = vmatpush.bf16.msra.mxu0 %v1658
    %1739 = vmatpush.bf16.msra.mxu0 %v1656
    %1740 = vmatmul.bf16.gmra.mxu0 %v1580
    %v1741 = vpop.f32.mrf.mxu0
    %v1742 = vadd.f32 0.0, %v1741
    %v1743 = vpop.f32.mrf.mxu0
    %1744 = vdwg.mxu0
    %1745 = vmatpush.bf16.msra.mxu0 0
    %1746 = vmatpush.bf16.msra.mxu0 0
    %1747 = vmatpush.bf16.msra.mxu0 0
    %1748 = vmatpush.bf16.msra.mxu0 0
    %1749 = vmatpush.bf16.msra.mxu0 %v1678
    %1750 = vmatpush.bf16.msra.mxu0 %v1676
    %1751 = vmatpush.bf16.msra.mxu0 %v1674
    %1752 = vmatpush.bf16.msra.mxu0 %v1672
    %1753 = vmatmul.bf16.gmra.mxu0 %v1704
    %v1754 = vpop.f32.mrf.mxu0
    %v1755 = vadd.f32 %v1742, %v1754
    %v1756 = vpop.f32.mrf.mxu0
    %1757 = vdwg.mxu0
    %v1758 = vadd.f32 %v1553, %v1729
    %v1759 = vadd.f32 %v1554, %v1755
    %s1760 = scalar_lea.vmem %s7, 960
    %v1761 = vld [vmem:[%s1760] sm:$0xff]
    %v1762 = vld [vmem:[%s1760 + $0x8] sm:$0xff]
    %v1763 = vld [vmem:[%s1760 + $0x10] sm:$0xff]
    %v1764 = vld [vmem:[%s1760 + $0x18] sm:$0xff]
    %v1765 = vld [vmem:[%s1760 + $0x20] sm:$0xff]
    %v1766 = vld [vmem:[%s1760 + $0x28] sm:$0xff]
    %v1767 = vld [vmem:[%s1760 + $0x30] sm:$0xff]
    %v1768 = vld [vmem:[%s1760 + $0x38] sm:$0xff]
    %v1769 = vld [vmem:[%s1760 + $0x40] sm:$0xff]
    %v1770 = vld [vmem:[%s1760 + $0x48] sm:$0xff]
    %v1771 = vld [vmem:[%s1760 + $0x50] sm:$0xff]
    %v1772 = vld [vmem:[%s1760 + $0x58] sm:$0xff]
    %v1773 = vld [vmem:[%s1760 + $0x60] sm:$0xff]
    %v1774 = vld [vmem:[%s1760 + $0x68] sm:$0xff]
    %v1775 = vld [vmem:[%s1760 + $0x70] sm:$0xff]
    %v1776 = vld [vmem:[%s1760 + $0x78] sm:$0xff]
    %v1777 = vld [vmem:[%s1760 + $0x80] sm:$0xff]
    %v1778 = vld [vmem:[%s1760 + $0x88] sm:$0xff]
    %v1779 = vld [vmem:[%s1760 + $0x90] sm:$0xff]
    %v1780 = vld [vmem:[%s1760 + $0x98] sm:$0xff]
    %v1781 = vld [vmem:[%s1760 + $0xa0] sm:$0xff]
    %v1782 = vld [vmem:[%s1760 + $0xa8] sm:$0xff]
    %v1783 = vld [vmem:[%s1760 + $0xb0] sm:$0xff]
    %v1784 = vld [vmem:[%s1760 + $0xb8] sm:$0xff]
    %v1785 = vrot.slane %v789, 2
    %v1786 = vrot.slane %v792, 2
    %v1812 = vunpack.c.l.b16 %v1761
    %v1813 = vunpack.c.h.b16 %v1761
    %v1814 = vunpack.c.l.b16 %v1762
    %v1815 = vunpack.c.h.b16 %v1762
    %v1816 = vunpack.c.l.b16 %v1763
    %v1817 = vunpack.c.h.b16 %v1763
    %v1818 = vunpack.c.l.b16 %v1764
    %v1819 = vunpack.c.h.b16 %v1764
    %v1820 = vunpack.c.l.b16 %v1765
    %v1821 = vunpack.c.h.b16 %v1765
    %v1822 = vunpack.c.l.b16 %v1766
    %v1823 = vunpack.c.h.b16 %v1766
    %v1824 = vunpack.c.l.b16 %v1767
    %v1825 = vunpack.c.h.b16 %v1767
    %v1826 = vunpack.c.l.b16 %v1768
    %v1827 = vunpack.c.h.b16 %v1768
    %v1828 = vunpack.c.l.b16 %v1769
    %v1829 = vunpack.c.h.b16 %v1769
    %v1830 = vunpack.c.l.b16 %v1770
    %v1831 = vunpack.c.h.b16 %v1770
    %v1832 = vunpack.c.l.b16 %v1771
    %v1833 = vunpack.c.h.b16 %v1771
    %v1834 = vunpack.c.l.b16 %v1772
    %v1835 = vunpack.c.h.b16 %v1772
    %v1836 = vunpack.c.l.b16 %v1773
    %v1837 = vunpack.c.h.b16 %v1773
    %v1838 = vunpack.c.l.b16 %v1774
    %v1839 = vunpack.c.h.b16 %v1774
    %v1840 = vunpack.c.l.b16 %v1775
    %v1841 = vunpack.c.h.b16 %v1775
    %v1842 = vunpack.c.l.b16 %v1776
    %v1843 = vunpack.c.h.b16 %v1776
    %v1844 = vunpack.c.l.b16 %v1777
    %v1845 = vunpack.c.h.b16 %v1777
    %v1846 = vunpack.c.l.b16 %v1778
    %v1847 = vunpack.c.h.b16 %v1778
    %v1848 = vunpack.c.l.b16 %v1779
    %v1849 = vunpack.c.h.b16 %v1779
    %v1850 = vunpack.c.l.b16 %v1780
    %v1851 = vunpack.c.h.b16 %v1780
    %v1852 = vunpack.c.l.b16 %v1781
    %v1853 = vunpack.c.h.b16 %v1781
    %v1854 = vunpack.c.l.b16 %v1782
    %v1855 = vunpack.c.h.b16 %v1782
    %v1856 = vunpack.c.l.b16 %v1783
    %v1857 = vunpack.c.h.b16 %v1783
    %v1858 = vunpack.c.l.b16 %v1784
    %v1859 = vunpack.c.h.b16 %v1784
    %v1860 = vpack.c.b16 %v1814, %v1812
    %v1861 = vpack.c.b16 %v1815, %v1813
    %v1862 = vpack.c.b16 %v1818, %v1816
    %v1863 = vpack.c.b16 %v1819, %v1817
    %v1864 = vpack.c.b16 %v1822, %v1820
    %v1865 = vpack.c.b16 %v1823, %v1821
    %v1866 = vpack.c.b16 %v1826, %v1824
    %v1867 = vpack.c.b16 %v1827, %v1825
    %v1868 = vpack.c.b16 %v1830, %v1828
    %v1869 = vpack.c.b16 %v1831, %v1829
    %v1870 = vpack.c.b16 %v1834, %v1832
    %v1871 = vpack.c.b16 %v1835, %v1833
    %v1872 = vpack.c.b16 %v1838, %v1836
    %v1873 = vpack.c.b16 %v1839, %v1837
    %v1874 = vpack.c.b16 %v1842, %v1840
    %v1875 = vpack.c.b16 %v1843, %v1841
    %v1876 = vpack.c.b16 %v1846, %v1844
    %v1877 = vpack.c.b16 %v1847, %v1845
    %v1878 = vpack.c.b16 %v1850, %v1848
    %v1879 = vpack.c.b16 %v1851, %v1849
    %v1880 = vpack.c.b16 %v1854, %v1852
    %v1881 = vpack.c.b16 %v1855, %v1853
    %v1882 = vpack.c.b16 %v1858, %v1856
    %v1883 = vpack.c.b16 %v1859, %v1857
    %v1909 = vsel %vm721, %v1786, 0
    %1911 = vmatpush.bf16.msra.mxu0 %v1874
    %1912 = vmatpush.bf16.msra.mxu0 %v1872
    %1913 = vmatpush.bf16.msra.mxu0 %v1870
    %1914 = vmatpush.bf16.msra.mxu0 %v1868
    %1915 = vmatpush.bf16.msra.mxu0 %v1866
    %1916 = vmatpush.bf16.msra.mxu0 %v1864
    %1917 = vmatpush.bf16.msra.mxu0 %v1862
    %1918 = vmatpush.bf16.msra.mxu0 %v1860
    %1919 = vmatmul.bf16.gmra.mxu0 %v1785
    %v1920 = vpop.f32.mrf.mxu0
    %v1921 = vadd.f32 0.0, %v1920
    %v1922 = vpop.f32.mrf.mxu0
    %1923 = vdwg.mxu0
    %1924 = vmatpush.bf16.msra.mxu0 0
    %1925 = vmatpush.bf16.msra.mxu0 0
    %1926 = vmatpush.bf16.msra.mxu0 0
    %1927 = vmatpush.bf16.msra.mxu0 0
    %1928 = vmatpush.bf16.msra.mxu0 %v1882
    %1929 = vmatpush.bf16.msra.mxu0 %v1880
    %1930 = vmatpush.bf16.msra.mxu0 %v1878
    %1931 = vmatpush.bf16.msra.mxu0 %v1876
    %1932 = vmatmul.bf16.gmra.mxu0 %v1909
    %v1933 = vpop.f32.mrf.mxu0
    %v1934 = vadd.f32 %v1921, %v1933
    %v1935 = vpop.f32.mrf.mxu0
    %1936 = vdwg.mxu0
    %1937 = vmatpush.bf16.msra.mxu0 %v1875
    %1938 = vmatpush.bf16.msra.mxu0 %v1873
    %1939 = vmatpush.bf16.msra.mxu0 %v1871
    %1940 = vmatpush.bf16.msra.mxu0 %v1869
    %1941 = vmatpush.bf16.msra.mxu0 %v1867
    %1942 = vmatpush.bf16.msra.mxu0 %v1865
    %1943 = vmatpush.bf16.msra.mxu0 %v1863
    %1944 = vmatpush.bf16.msra.mxu0 %v1861
    %1945 = vmatmul.bf16.gmra.mxu0 %v1785
    %v1946 = vpop.f32.mrf.mxu0
    %v1947 = vadd.f32 0.0, %v1946
    %v1948 = vpop.f32.mrf.mxu0
    %1949 = vdwg.mxu0
    %1950 = vmatpush.bf16.msra.mxu0 0
    %1951 = vmatpush.bf16.msra.mxu0 0
    %1952 = vmatpush.bf16.msra.mxu0 0
    %1953 = vmatpush.bf16.msra.mxu0 0
    %1954 = vmatpush.bf16.msra.mxu0 %v1883
    %1955 = vmatpush.bf16.msra.mxu0 %v1881
    %1956 = vmatpush.bf16.msra.mxu0 %v1879
    %1957 = vmatpush.bf16.msra.mxu0 %v1877
    %1958 = vmatmul.bf16.gmra.mxu0 %v1909
    %v1959 = vpop.f32.mrf.mxu0
    %v1960 = vadd.f32 %v1947, %v1959
    %v1961 = vpop.f32.mrf.mxu0
    %1962 = vdwg.mxu0
    %v1963 = vadd.f32 %v1758, %v1934
    %v1964 = vadd.f32 %v1759, %v1960
    %s1965 = scalar_lea.vmem %s7, 1152
    %v1966 = vld [vmem:[%s1965] sm:$0xff]
    %v1967 = vld [vmem:[%s1965 + $0x8] sm:$0xff]
    %v1968 = vld [vmem:[%s1965 + $0x10] sm:$0xff]
    %v1969 = vld [vmem:[%s1965 + $0x18] sm:$0xff]
    %v1970 = vld [vmem:[%s1965 + $0x20] sm:$0xff]
    %v1971 = vld [vmem:[%s1965 + $0x28] sm:$0xff]
    %v1972 = vld [vmem:[%s1965 + $0x30] sm:$0xff]
    %v1973 = vld [vmem:[%s1965 + $0x38] sm:$0xff]
    %v1974 = vld [vmem:[%s1965 + $0x40] sm:$0xff]
    %v1975 = vld [vmem:[%s1965 + $0x48] sm:$0xff]
    %v1976 = vld [vmem:[%s1965 + $0x50] sm:$0xff]
    %v1977 = vld [vmem:[%s1965 + $0x58] sm:$0xff]
    %v1978 = vld [vmem:[%s1965 + $0x60] sm:$0xff]
    %v1979 = vld [vmem:[%s1965 + $0x68] sm:$0xff]
    %v1980 = vld [vmem:[%s1965 + $0x70] sm:$0xff]
    %v1981 = vld [vmem:[%s1965 + $0x78] sm:$0xff]
    %v1982 = vld [vmem:[%s1965 + $0x80] sm:$0xff]
    %v1983 = vld [vmem:[%s1965 + $0x88] sm:$0xff]
    %v1984 = vld [vmem:[%s1965 + $0x90] sm:$0xff]
    %v1985 = vld [vmem:[%s1965 + $0x98] sm:$0xff]
    %v1986 = vld [vmem:[%s1965 + $0xa0] sm:$0xff]
    %v1987 = vld [vmem:[%s1965 + $0xa8] sm:$0xff]
    %v1988 = vld [vmem:[%s1965 + $0xb0] sm:$0xff]
    %v1989 = vld [vmem:[%s1965 + $0xb8] sm:$0xff]
    %v1990 = vrot.slane %v786, 3
    %v1991 = vrot.slane %v787, 3
    %v2017 = vunpack.c.l.b16 %v1966
    %v2018 = vunpack.c.h.b16 %v1966
    %v2019 = vunpack.c.l.b16 %v1967
    %v2020 = vunpack.c.h.b16 %v1967
    %v2021 = vunpack.c.l.b16 %v1968
    %v2022 = vunpack.c.h.b16 %v1968
    %v2023 = vunpack.c.l.b16 %v1969
    %v2024 = vunpack.c.h.b16 %v1969
    %v2025 = vunpack.c.l.b16 %v1970
    %v2026 = vunpack.c.h.b16 %v1970
    %v2027 = vunpack.c.l.b16 %v1971
    %v2028 = vunpack.c.h.b16 %v1971
    %v2029 = vunpack.c.l.b16 %v1972
    %v2030 = vunpack.c.h.b16 %v1972
    %v2031 = vunpack.c.l.b16 %v1973
    %v2032 = vunpack.c.h.b16 %v1973
    %v2033 = vunpack.c.l.b16 %v1974
    %v2034 = vunpack.c.h.b16 %v1974
    %v2035 = vunpack.c.l.b16 %v1975
    %v2036 = vunpack.c.h.b16 %v1975
    %v2037 = vunpack.c.l.b16 %v1976
    %v2038 = vunpack.c.h.b16 %v1976
    %v2039 = vunpack.c.l.b16 %v1977
    %v2040 = vunpack.c.h.b16 %v1977
    %v2041 = vunpack.c.l.b16 %v1978
    %v2042 = vunpack.c.h.b16 %v1978
    %v2043 = vunpack.c.l.b16 %v1979
    %v2044 = vunpack.c.h.b16 %v1979
    %v2045 = vunpack.c.l.b16 %v1980
    %v2046 = vunpack.c.h.b16 %v1980
    %v2047 = vunpack.c.l.b16 %v1981
    %v2048 = vunpack.c.h.b16 %v1981
    %v2049 = vunpack.c.l.b16 %v1982
    %v2050 = vunpack.c.h.b16 %v1982
    %v2051 = vunpack.c.l.b16 %v1983
    %v2052 = vunpack.c.h.b16 %v1983
    %v2053 = vunpack.c.l.b16 %v1984
    %v2054 = vunpack.c.h.b16 %v1984
    %v2055 = vunpack.c.l.b16 %v1985
    %v2056 = vunpack.c.h.b16 %v1985
    %v2057 = vunpack.c.l.b16 %v1986
    %v2058 = vunpack.c.h.b16 %v1986
    %v2059 = vunpack.c.l.b16 %v1987
    %v2060 = vunpack.c.h.b16 %v1987
    %v2061 = vunpack.c.l.b16 %v1988
    %v2062 = vunpack.c.h.b16 %v1988
    %v2063 = vunpack.c.l.b16 %v1989
    %v2064 = vunpack.c.h.b16 %v1989
    %v2065 = vpack.c.b16 %v2019, %v2017
    %v2066 = vpack.c.b16 %v2020, %v2018
    %v2067 = vpack.c.b16 %v2023, %v2021
    %v2068 = vpack.c.b16 %v2024, %v2022
    %v2069 = vpack.c.b16 %v2027, %v2025
    %v2070 = vpack.c.b16 %v2028, %v2026
    %v2071 = vpack.c.b16 %v2031, %v2029
    %v2072 = vpack.c.b16 %v2032, %v2030
    %v2073 = vpack.c.b16 %v2035, %v2033
    %v2074 = vpack.c.b16 %v2036, %v2034
    %v2075 = vpack.c.b16 %v2039, %v2037
    %v2076 = vpack.c.b16 %v2040, %v2038
    %v2077 = vpack.c.b16 %v2043, %v2041
    %v2078 = vpack.c.b16 %v2044, %v2042
    %v2079 = vpack.c.b16 %v2047, %v2045
    %v2080 = vpack.c.b16 %v2048, %v2046
    %v2081 = vpack.c.b16 %v2051, %v2049
    %v2082 = vpack.c.b16 %v2052, %v2050
    %v2083 = vpack.c.b16 %v2055, %v2053
    %v2084 = vpack.c.b16 %v2056, %v2054
    %v2085 = vpack.c.b16 %v2059, %v2057
    %v2086 = vpack.c.b16 %v2060, %v2058
    %v2087 = vpack.c.b16 %v2063, %v2061
    %v2088 = vpack.c.b16 %v2064, %v2062
    %v2114 = vsel %vm721, %v1991, 0
    %2116 = vmatpush.bf16.msra.mxu0 %v2079
    %2117 = vmatpush.bf16.msra.mxu0 %v2077
    %2118 = vmatpush.bf16.msra.mxu0 %v2075
    %2119 = vmatpush.bf16.msra.mxu0 %v2073
    %2120 = vmatpush.bf16.msra.mxu0 %v2071
    %2121 = vmatpush.bf16.msra.mxu0 %v2069
    %2122 = vmatpush.bf16.msra.mxu0 %v2067
    %2123 = vmatpush.bf16.msra.mxu0 %v2065
    %2124 = vmatmul.bf16.gmra.mxu0 %v1990
    %v2125 = vpop.f32.mrf.mxu0
    %v2126 = vadd.f32 0.0, %v2125
    %v2127 = vpop.f32.mrf.mxu0
    %2128 = vdwg.mxu0
    %2129 = vmatpush.bf16.msra.mxu0 0
    %2130 = vmatpush.bf16.msra.mxu0 0
    %2131 = vmatpush.bf16.msra.mxu0 0
    %2132 = vmatpush.bf16.msra.mxu0 0
    %2133 = vmatpush.bf16.msra.mxu0 %v2087
    %2134 = vmatpush.bf16.msra.mxu0 %v2085
    %2135 = vmatpush.bf16.msra.mxu0 %v2083
    %2136 = vmatpush.bf16.msra.mxu0 %v2081
    %2137 = vmatmul.bf16.gmra.mxu0 %v2114
    %v2138 = vpop.f32.mrf.mxu0
    %v2139 = vadd.f32 %v2126, %v2138
    %v2140 = vpop.f32.mrf.mxu0
    %2141 = vdwg.mxu0
    %2142 = vmatpush.bf16.msra.mxu0 %v2080
    %2143 = vmatpush.bf16.msra.mxu0 %v2078
    %2144 = vmatpush.bf16.msra.mxu0 %v2076
    %2145 = vmatpush.bf16.msra.mxu0 %v2074
    %2146 = vmatpush.bf16.msra.mxu0 %v2072
    %2147 = vmatpush.bf16.msra.mxu0 %v2070
    %2148 = vmatpush.bf16.msra.mxu0 %v2068
    %2149 = vmatpush.bf16.msra.mxu0 %v2066
    %2150 = vmatmul.bf16.gmra.mxu0 %v1990
    %v2151 = vpop.f32.mrf.mxu0
    %v2152 = vadd.f32 0.0, %v2151
    %v2153 = vpop.f32.mrf.mxu0
    %2154 = vdwg.mxu0
    %2155 = vmatpush.bf16.msra.mxu0 0
    %2156 = vmatpush.bf16.msra.mxu0 0
    %2157 = vmatpush.bf16.msra.mxu0 0
    %2158 = vmatpush.bf16.msra.mxu0 0
    %2159 = vmatpush.bf16.msra.mxu0 %v2088
    %2160 = vmatpush.bf16.msra.mxu0 %v2086
    %2161 = vmatpush.bf16.msra.mxu0 %v2084
    %2162 = vmatpush.bf16.msra.mxu0 %v2082
    %2163 = vmatmul.bf16.gmra.mxu0 %v2114
    %v2164 = vpop.f32.mrf.mxu0
    %v2165 = vadd.f32 %v2152, %v2164
    %v2166 = vpop.f32.mrf.mxu0
    %2167 = vdwg.mxu0
    %v2168 = vadd.f32 %v1963, %v2139
    %v2169 = vadd.f32 %v1964, %v2165
    %s2170 = scalar_lea.vmem %s7, 1344
    %v2171 = vld [vmem:[%s2170] sm:$0xff]
    %v2172 = vld [vmem:[%s2170 + $0x8] sm:$0xff]
    %v2173 = vld [vmem:[%s2170 + $0x10] sm:$0xff]
    %v2174 = vld [vmem:[%s2170 + $0x18] sm:$0xff]
    %v2175 = vld [vmem:[%s2170 + $0x20] sm:$0xff]
    %v2176 = vld [vmem:[%s2170 + $0x28] sm:$0xff]
    %v2177 = vld [vmem:[%s2170 + $0x30] sm:$0xff]
    %v2178 = vld [vmem:[%s2170 + $0x38] sm:$0xff]
    %v2179 = vld [vmem:[%s2170 + $0x40] sm:$0xff]
    %v2180 = vld [vmem:[%s2170 + $0x48] sm:$0xff]
    %v2181 = vld [vmem:[%s2170 + $0x50] sm:$0xff]
    %v2182 = vld [vmem:[%s2170 + $0x58] sm:$0xff]
    %v2183 = vld [vmem:[%s2170 + $0x60] sm:$0xff]
    %v2184 = vld [vmem:[%s2170 + $0x68] sm:$0xff]
    %v2185 = vld [vmem:[%s2170 + $0x70] sm:$0xff]
    %v2186 = vld [vmem:[%s2170 + $0x78] sm:$0xff]
    %v2187 = vld [vmem:[%s2170 + $0x80] sm:$0xff]
    %v2188 = vld [vmem:[%s2170 + $0x88] sm:$0xff]
    %v2189 = vld [vmem:[%s2170 + $0x90] sm:$0xff]
    %v2190 = vld [vmem:[%s2170 + $0x98] sm:$0xff]
    %v2191 = vld [vmem:[%s2170 + $0xa0] sm:$0xff]
    %v2192 = vld [vmem:[%s2170 + $0xa8] sm:$0xff]
    %v2193 = vld [vmem:[%s2170 + $0xb0] sm:$0xff]
    %v2194 = vld [vmem:[%s2170 + $0xb8] sm:$0xff]
    %v2195 = vrot.slane %v789, 3
    %v2196 = vrot.slane %v792, 3
    %v2222 = vunpack.c.l.b16 %v2171
    %v2223 = vunpack.c.h.b16 %v2171
    %v2224 = vunpack.c.l.b16 %v2172
    %v2225 = vunpack.c.h.b16 %v2172
    %v2226 = vunpack.c.l.b16 %v2173
    %v2227 = vunpack.c.h.b16 %v2173
    %v2228 = vunpack.c.l.b16 %v2174
    %v2229 = vunpack.c.h.b16 %v2174
    %v2230 = vunpack.c.l.b16 %v2175
    %v2231 = vunpack.c.h.b16 %v2175
    %v2232 = vunpack.c.l.b16 %v2176
    %v2233 = vunpack.c.h.b16 %v2176
    %v2234 = vunpack.c.l.b16 %v2177
    %v2235 = vunpack.c.h.b16 %v2177
    %v2236 = vunpack.c.l.b16 %v2178
    %v2237 = vunpack.c.h.b16 %v2178
    %v2238 = vunpack.c.l.b16 %v2179
    %v2239 = vunpack.c.h.b16 %v2179
    %v2240 = vunpack.c.l.b16 %v2180
    %v2241 = vunpack.c.h.b16 %v2180
    %v2242 = vunpack.c.l.b16 %v2181
    %v2243 = vunpack.c.h.b16 %v2181
    %v2244 = vunpack.c.l.b16 %v2182
    %v2245 = vunpack.c.h.b16 %v2182
    %v2246 = vunpack.c.l.b16 %v2183
    %v2247 = vunpack.c.h.b16 %v2183
    %v2248 = vunpack.c.l.b16 %v2184
    %v2249 = vunpack.c.h.b16 %v2184
    %v2250 = vunpack.c.l.b16 %v2185
    %v2251 = vunpack.c.h.b16 %v2185
    %v2252 = vunpack.c.l.b16 %v2186
    %v2253 = vunpack.c.h.b16 %v2186
    %v2254 = vunpack.c.l.b16 %v2187
    %v2255 = vunpack.c.h.b16 %v2187
    %v2256 = vunpack.c.l.b16 %v2188
    %v2257 = vunpack.c.h.b16 %v2188
    %v2258 = vunpack.c.l.b16 %v2189
    %v2259 = vunpack.c.h.b16 %v2189
    %v2260 = vunpack.c.l.b16 %v2190
    %v2261 = vunpack.c.h.b16 %v2190
    %v2262 = vunpack.c.l.b16 %v2191
    %v2263 = vunpack.c.h.b16 %v2191
    %v2264 = vunpack.c.l.b16 %v2192
    %v2265 = vunpack.c.h.b16 %v2192
    %v2266 = vunpack.c.l.b16 %v2193
    %v2267 = vunpack.c.h.b16 %v2193
    %v2268 = vunpack.c.l.b16 %v2194
    %v2269 = vunpack.c.h.b16 %v2194
    %v2270 = vpack.c.b16 %v2224, %v2222
    %v2271 = vpack.c.b16 %v2225, %v2223
    %v2272 = vpack.c.b16 %v2228, %v2226
    %v2273 = vpack.c.b16 %v2229, %v2227
    %v2274 = vpack.c.b16 %v2232, %v2230
    %v2275 = vpack.c.b16 %v2233, %v2231
    %v2276 = vpack.c.b16 %v2236, %v2234
    %v2277 = vpack.c.b16 %v2237, %v2235
    %v2278 = vpack.c.b16 %v2240, %v2238
    %v2279 = vpack.c.b16 %v2241, %v2239
    %v2280 = vpack.c.b16 %v2244, %v2242
    %v2281 = vpack.c.b16 %v2245, %v2243
    %v2282 = vpack.c.b16 %v2248, %v2246
    %v2283 = vpack.c.b16 %v2249, %v2247
    %v2284 = vpack.c.b16 %v2252, %v2250
    %v2285 = vpack.c.b16 %v2253, %v2251
    %v2286 = vpack.c.b16 %v2256, %v2254
    %v2287 = vpack.c.b16 %v2257, %v2255
    %v2288 = vpack.c.b16 %v2260, %v2258
    %v2289 = vpack.c.b16 %v2261, %v2259
    %v2290 = vpack.c.b16 %v2264, %v2262
    %v2291 = vpack.c.b16 %v2265, %v2263
    %v2292 = vpack.c.b16 %v2268, %v2266
    %v2293 = vpack.c.b16 %v2269, %v2267
    %v2319 = vsel %vm721, %v2196, 0
    %2321 = vmatpush.bf16.msra.mxu0 %v2284
    %2322 = vmatpush.bf16.msra.mxu0 %v2282
    %2323 = vmatpush.bf16.msra.mxu0 %v2280
    %2324 = vmatpush.bf16.msra.mxu0 %v2278
    %2325 = vmatpush.bf16.msra.mxu0 %v2276
    %2326 = vmatpush.bf16.msra.mxu0 %v2274
    %2327 = vmatpush.bf16.msra.mxu0 %v2272
    %2328 = vmatpush.bf16.msra.mxu0 %v2270
    %2329 = vmatmul.bf16.gmra.mxu0 %v2195
    %v2330 = vpop.f32.mrf.mxu0
    %v2331 = vadd.f32 0.0, %v2330
    %v2332 = vpop.f32.mrf.mxu0
    %2333 = vdwg.mxu0
    %2334 = vmatpush.bf16.msra.mxu0 0
    %2335 = vmatpush.bf16.msra.mxu0 0
    %2336 = vmatpush.bf16.msra.mxu0 0
    %2337 = vmatpush.bf16.msra.mxu0 0
    %2338 = vmatpush.bf16.msra.mxu0 %v2292
    %2339 = vmatpush.bf16.msra.mxu0 %v2290
    %2340 = vmatpush.bf16.msra.mxu0 %v2288
    %2341 = vmatpush.bf16.msra.mxu0 %v2286
    %2342 = vmatmul.bf16.gmra.mxu0 %v2319
    %v2343 = vpop.f32.mrf.mxu0
    %v2344 = vadd.f32 %v2331, %v2343
    %v2345 = vpop.f32.mrf.mxu0
    %2346 = vdwg.mxu0
    %2347 = vmatpush.bf16.msra.mxu0 %v2285
    %2348 = vmatpush.bf16.msra.mxu0 %v2283
    %2349 = vmatpush.bf16.msra.mxu0 %v2281
    %2350 = vmatpush.bf16.msra.mxu0 %v2279
    %2351 = vmatpush.bf16.msra.mxu0 %v2277
    %2352 = vmatpush.bf16.msra.mxu0 %v2275
    %2353 = vmatpush.bf16.msra.mxu0 %v2273
    %2354 = vmatpush.bf16.msra.mxu0 %v2271
    %2355 = vmatmul.bf16.gmra.mxu0 %v2195
    %v2356 = vpop.f32.mrf.mxu0
    %v2357 = vadd.f32 0.0, %v2356
    %v2358 = vpop.f32.mrf.mxu0
    %2359 = vdwg.mxu0
    %2360 = vmatpush.bf16.msra.mxu0 0
    %2361 = vmatpush.bf16.msra.mxu0 0
    %2362 = vmatpush.bf16.msra.mxu0 0
    %2363 = vmatpush.bf16.msra.mxu0 0
    %2364 = vmatpush.bf16.msra.mxu0 %v2293
    %2365 = vmatpush.bf16.msra.mxu0 %v2291
    %2366 = vmatpush.bf16.msra.mxu0 %v2289
    %2367 = vmatpush.bf16.msra.mxu0 %v2287
    %2368 = vmatmul.bf16.gmra.mxu0 %v2319
    %v2369 = vpop.f32.mrf.mxu0
    %v2370 = vadd.f32 %v2357, %v2369
    %v2371 = vpop.f32.mrf.mxu0
    %2372 = vdwg.mxu0
    %v2373 = vadd.f32 %v2168, %v2344
    %v2374 = vadd.f32 %v2169, %v2370
    %s2375 = scalar_lea.vmem %s7, 1536
    %v2376 = vld [vmem:[%s2375] sm:$0xff]
    %v2377 = vld [vmem:[%s2375 + $0x8] sm:$0xff]
    %v2378 = vld [vmem:[%s2375 + $0x10] sm:$0xff]
    %v2379 = vld [vmem:[%s2375 + $0x18] sm:$0xff]
    %v2380 = vld [vmem:[%s2375 + $0x20] sm:$0xff]
    %v2381 = vld [vmem:[%s2375 + $0x28] sm:$0xff]
    %v2382 = vld [vmem:[%s2375 + $0x30] sm:$0xff]
    %v2383 = vld [vmem:[%s2375 + $0x38] sm:$0xff]
    %v2384 = vld [vmem:[%s2375 + $0x40] sm:$0xff]
    %v2385 = vld [vmem:[%s2375 + $0x48] sm:$0xff]
    %v2386 = vld [vmem:[%s2375 + $0x50] sm:$0xff]
    %v2387 = vld [vmem:[%s2375 + $0x58] sm:$0xff]
    %v2388 = vld [vmem:[%s2375 + $0x60] sm:$0xff]
    %v2389 = vld [vmem:[%s2375 + $0x68] sm:$0xff]
    %v2390 = vld [vmem:[%s2375 + $0x70] sm:$0xff]
    %v2391 = vld [vmem:[%s2375 + $0x78] sm:$0xff]
    %v2392 = vld [vmem:[%s2375 + $0x80] sm:$0xff]
    %v2393 = vld [vmem:[%s2375 + $0x88] sm:$0xff]
    %v2394 = vld [vmem:[%s2375 + $0x90] sm:$0xff]
    %v2395 = vld [vmem:[%s2375 + $0x98] sm:$0xff]
    %v2396 = vld [vmem:[%s2375 + $0xa0] sm:$0xff]
    %v2397 = vld [vmem:[%s2375 + $0xa8] sm:$0xff]
    %v2398 = vld [vmem:[%s2375 + $0xb0] sm:$0xff]
    %v2399 = vld [vmem:[%s2375 + $0xb8] sm:$0xff]
    %v2401 = vunpack.c.l.b16 %v733
    %v2402 = vunpack.c.h.b16 %v733
    %v2403 = vpack.c.b16 %v2401, %v2401
    %v2404 = vpack.c.b16 %v2402, %v2402
    %v2430 = vunpack.c.l.b16 %v2376
    %v2431 = vunpack.c.h.b16 %v2376
    %v2432 = vunpack.c.l.b16 %v2377
    %v2433 = vunpack.c.h.b16 %v2377
    %v2434 = vunpack.c.l.b16 %v2378
    %v2435 = vunpack.c.h.b16 %v2378
    %v2436 = vunpack.c.l.b16 %v2379
    %v2437 = vunpack.c.h.b16 %v2379
    %v2438 = vunpack.c.l.b16 %v2380
    %v2439 = vunpack.c.h.b16 %v2380
    %v2440 = vunpack.c.l.b16 %v2381
    %v2441 = vunpack.c.h.b16 %v2381
    %v2442 = vunpack.c.l.b16 %v2382
    %v2443 = vunpack.c.h.b16 %v2382
    %v2444 = vunpack.c.l.b16 %v2383
    %v2445 = vunpack.c.h.b16 %v2383
    %v2446 = vunpack.c.l.b16 %v2384
    %v2447 = vunpack.c.h.b16 %v2384
    %v2448 = vunpack.c.l.b16 %v2385
    %v2449 = vunpack.c.h.b16 %v2385
    %v2450 = vunpack.c.l.b16 %v2386
    %v2451 = vunpack.c.h.b16 %v2386
    %v2452 = vunpack.c.l.b16 %v2387
    %v2453 = vunpack.c.h.b16 %v2387
    %v2454 = vunpack.c.l.b16 %v2388
    %v2455 = vunpack.c.h.b16 %v2388
    %v2456 = vunpack.c.l.b16 %v2389
    %v2457 = vunpack.c.h.b16 %v2389
    %v2458 = vunpack.c.l.b16 %v2390
    %v2459 = vunpack.c.h.b16 %v2390
    %v2460 = vunpack.c.l.b16 %v2391
    %v2461 = vunpack.c.h.b16 %v2391
    %v2462 = vunpack.c.l.b16 %v2392
    %v2463 = vunpack.c.h.b16 %v2392
    %v2464 = vunpack.c.l.b16 %v2393
    %v2465 = vunpack.c.h.b16 %v2393
    %v2466 = vunpack.c.l.b16 %v2394
    %v2467 = vunpack.c.h.b16 %v2394
    %v2468 = vunpack.c.l.b16 %v2395
    %v2469 = vunpack.c.h.b16 %v2395
    %v2470 = vunpack.c.l.b16 %v2396
    %v2471 = vunpack.c.h.b16 %v2396
    %v2472 = vunpack.c.l.b16 %v2397
    %v2473 = vunpack.c.h.b16 %v2397
    %v2474 = vunpack.c.l.b16 %v2398
    %v2475 = vunpack.c.h.b16 %v2398
    %v2476 = vunpack.c.l.b16 %v2399
    %v2477 = vunpack.c.h.b16 %v2399
    %v2478 = vpack.c.b16 %v2432, %v2430
    %v2479 = vpack.c.b16 %v2433, %v2431
    %v2480 = vpack.c.b16 %v2436, %v2434
    %v2481 = vpack.c.b16 %v2437, %v2435
    %v2482 = vpack.c.b16 %v2440, %v2438
    %v2483 = vpack.c.b16 %v2441, %v2439
    %v2484 = vpack.c.b16 %v2444, %v2442
    %v2485 = vpack.c.b16 %v2445, %v2443
    %v2486 = vpack.c.b16 %v2448, %v2446
    %v2487 = vpack.c.b16 %v2449, %v2447
    %v2488 = vpack.c.b16 %v2452, %v2450
    %v2489 = vpack.c.b16 %v2453, %v2451
    %v2490 = vpack.c.b16 %v2456, %v2454
    %v2491 = vpack.c.b16 %v2457, %v2455
    %v2492 = vpack.c.b16 %v2460, %v2458
    %v2493 = vpack.c.b16 %v2461, %v2459
    %v2494 = vpack.c.b16 %v2464, %v2462
    %v2495 = vpack.c.b16 %v2465, %v2463
    %v2496 = vpack.c.b16 %v2468, %v2466
    %v2497 = vpack.c.b16 %v2469, %v2467
    %v2498 = vpack.c.b16 %v2472, %v2470
    %v2499 = vpack.c.b16 %v2473, %v2471
    %v2500 = vpack.c.b16 %v2476, %v2474
    %v2501 = vpack.c.b16 %v2477, %v2475
    %v2527 = vsel %vm721, %v2404, 0
    %2529 = vmatpush.bf16.msra.mxu0 %v2492
    %2530 = vmatpush.bf16.msra.mxu0 %v2490
    %2531 = vmatpush.bf16.msra.mxu0 %v2488
    %2532 = vmatpush.bf16.msra.mxu0 %v2486
    %2533 = vmatpush.bf16.msra.mxu0 %v2484
    %2534 = vmatpush.bf16.msra.mxu0 %v2482
    %2535 = vmatpush.bf16.msra.mxu0 %v2480
    %2536 = vmatpush.bf16.msra.mxu0 %v2478
    %2537 = vmatmul.bf16.gmra.mxu0 %v2403
    %v2538 = vpop.f32.mrf.mxu0
    %v2539 = vadd.f32 0.0, %v2538
    %v2540 = vpop.f32.mrf.mxu0
    %2541 = vdwg.mxu0
    %2542 = vmatpush.bf16.msra.mxu0 0
    %2543 = vmatpush.bf16.msra.mxu0 0
    %2544 = vmatpush.bf16.msra.mxu0 0
    %2545 = vmatpush.bf16.msra.mxu0 0
    %2546 = vmatpush.bf16.msra.mxu0 %v2500
    %2547 = vmatpush.bf16.msra.mxu0 %v2498
    %2548 = vmatpush.bf16.msra.mxu0 %v2496
    %2549 = vmatpush.bf16.msra.mxu0 %v2494
    %2550 = vmatmul.bf16.gmra.mxu0 %v2527
    %v2551 = vpop.f32.mrf.mxu0
    %v2552 = vadd.f32 %v2539, %v2551
    %v2553 = vpop.f32.mrf.mxu0
    %2554 = vdwg.mxu0
    %2555 = vmatpush.bf16.msra.mxu0 %v2493
    %2556 = vmatpush.bf16.msra.mxu0 %v2491
    %2557 = vmatpush.bf16.msra.mxu0 %v2489
    %2558 = vmatpush.bf16.msra.mxu0 %v2487
    %2559 = vmatpush.bf16.msra.mxu0 %v2485
    %2560 = vmatpush.bf16.msra.mxu0 %v2483
    %2561 = vmatpush.bf16.msra.mxu0 %v2481
    %2562 = vmatpush.bf16.msra.mxu0 %v2479
    %2563 = vmatmul.bf16.gmra.mxu0 %v2403
    %v2564 = vpop.f32.mrf.mxu0
    %v2565 = vadd.f32 0.0, %v2564
    %v2566 = vpop.f32.mrf.mxu0
    %2567 = vdwg.mxu0
    %2568 = vmatpush.bf16.msra.mxu0 0
    %2569 = vmatpush.bf16.msra.mxu0 0
    %2570 = vmatpush.bf16.msra.mxu0 0
    %2571 = vmatpush.bf16.msra.mxu0 0
    %2572 = vmatpush.bf16.msra.mxu0 %v2501
    %2573 = vmatpush.bf16.msra.mxu0 %v2499
    %2574 = vmatpush.bf16.msra.mxu0 %v2497
    %2575 = vmatpush.bf16.msra.mxu0 %v2495
    %2576 = vmatmul.bf16.gmra.mxu0 %v2527
    %v2577 = vpop.f32.mrf.mxu0
    %v2578 = vadd.f32 %v2565, %v2577
    %v2579 = vpop.f32.mrf.mxu0
    %2580 = vdwg.mxu0
    %v2581 = vadd.f32 %v2373, %v2552
    %v2582 = vadd.f32 %v2374, %v2578
    %s2583 = scalar_lea.vmem %s7, 1728
    %v2584 = vld [vmem:[%s2583] sm:$0xff]
    %v2585 = vld [vmem:[%s2583 + $0x8] sm:$0xff]
    %v2586 = vld [vmem:[%s2583 + $0x10] sm:$0xff]
    %v2587 = vld [vmem:[%s2583 + $0x18] sm:$0xff]
    %v2588 = vld [vmem:[%s2583 + $0x20] sm:$0xff]
    %v2589 = vld [vmem:[%s2583 + $0x28] sm:$0xff]
    %v2590 = vld [vmem:[%s2583 + $0x30] sm:$0xff]
    %v2591 = vld [vmem:[%s2583 + $0x38] sm:$0xff]
    %v2592 = vld [vmem:[%s2583 + $0x40] sm:$0xff]
    %v2593 = vld [vmem:[%s2583 + $0x48] sm:$0xff]
    %v2594 = vld [vmem:[%s2583 + $0x50] sm:$0xff]
    %v2595 = vld [vmem:[%s2583 + $0x58] sm:$0xff]
    %v2596 = vld [vmem:[%s2583 + $0x60] sm:$0xff]
    %v2597 = vld [vmem:[%s2583 + $0x68] sm:$0xff]
    %v2598 = vld [vmem:[%s2583 + $0x70] sm:$0xff]
    %v2599 = vld [vmem:[%s2583 + $0x78] sm:$0xff]
    %v2600 = vld [vmem:[%s2583 + $0x80] sm:$0xff]
    %v2601 = vld [vmem:[%s2583 + $0x88] sm:$0xff]
    %v2602 = vld [vmem:[%s2583 + $0x90] sm:$0xff]
    %v2603 = vld [vmem:[%s2583 + $0x98] sm:$0xff]
    %v2604 = vld [vmem:[%s2583 + $0xa0] sm:$0xff]
    %v2605 = vld [vmem:[%s2583 + $0xa8] sm:$0xff]
    %v2606 = vld [vmem:[%s2583 + $0xb0] sm:$0xff]
    %v2607 = vld [vmem:[%s2583 + $0xb8] sm:$0xff]
    %v2609 = vshrl.u32 %v2403, 16
    %v2611 = vshrl.u32 %v2404, 16
    %v2638 = vunpack.c.l.b16 %v2584
    %v2639 = vunpack.c.h.b16 %v2584
    %v2640 = vunpack.c.l.b16 %v2585
    %v2641 = vunpack.c.h.b16 %v2585
    %v2642 = vunpack.c.l.b16 %v2586
    %v2643 = vunpack.c.h.b16 %v2586
    %v2644 = vunpack.c.l.b16 %v2587
    %v2645 = vunpack.c.h.b16 %v2587
    %v2646 = vunpack.c.l.b16 %v2588
    %v2647 = vunpack.c.h.b16 %v2588
    %v2648 = vunpack.c.l.b16 %v2589
    %v2649 = vunpack.c.h.b16 %v2589
    %v2650 = vunpack.c.l.b16 %v2590
    %v2651 = vunpack.c.h.b16 %v2590
    %v2652 = vunpack.c.l.b16 %v2591
    %v2653 = vunpack.c.h.b16 %v2591
    %v2654 = vunpack.c.l.b16 %v2592
    %v2655 = vunpack.c.h.b16 %v2592
    %v2656 = vunpack.c.l.b16 %v2593
    %v2657 = vunpack.c.h.b16 %v2593
    %v2658 = vunpack.c.l.b16 %v2594
    %v2659 = vunpack.c.h.b16 %v2594
    %v2660 = vunpack.c.l.b16 %v2595
    %v2661 = vunpack.c.h.b16 %v2595
    %v2662 = vunpack.c.l.b16 %v2596
    %v2663 = vunpack.c.h.b16 %v2596
    %v2664 = vunpack.c.l.b16 %v2597
    %v2665 = vunpack.c.h.b16 %v2597
    %v2666 = vunpack.c.l.b16 %v2598
    %v2667 = vunpack.c.h.b16 %v2598
    %v2668 = vunpack.c.l.b16 %v2599
    %v2669 = vunpack.c.h.b16 %v2599
    %v2670 = vunpack.c.l.b16 %v2600
    %v2671 = vunpack.c.h.b16 %v2600
    %v2672 = vunpack.c.l.b16 %v2601
    %v2673 = vunpack.c.h.b16 %v2601
    %v2674 = vunpack.c.l.b16 %v2602
    %v2675 = vunpack.c.h.b16 %v2602
    %v2676 = vunpack.c.l.b16 %v2603
    %v2677 = vunpack.c.h.b16 %v2603
    %v2678 = vunpack.c.l.b16 %v2604
    %v2679 = vunpack.c.h.b16 %v2604
    %v2680 = vunpack.c.l.b16 %v2605
    %v2681 = vunpack.c.h.b16 %v2605
    %v2682 = vunpack.c.l.b16 %v2606
    %v2683 = vunpack.c.h.b16 %v2606
    %v2684 = vunpack.c.l.b16 %v2607
    %v2685 = vunpack.c.h.b16 %v2607
    %v2686 = vpack.c.b16 %v2640, %v2638
    %v2687 = vpack.c.b16 %v2641, %v2639
    %v2688 = vpack.c.b16 %v2644, %v2642
    %v2689 = vpack.c.b16 %v2645, %v2643
    %v2690 = vpack.c.b16 %v2648, %v2646
    %v2691 = vpack.c.b16 %v2649, %v2647
    %v2692 = vpack.c.b16 %v2652, %v2650
    %v2693 = vpack.c.b16 %v2653, %v2651
    %v2694 = vpack.c.b16 %v2656, %v2654
    %v2695 = vpack.c.b16 %v2657, %v2655
    %v2696 = vpack.c.b16 %v2660, %v2658
    %v2697 = vpack.c.b16 %v2661, %v2659
    %v2698 = vpack.c.b16 %v2664, %v2662
    %v2699 = vpack.c.b16 %v2665, %v2663
    %v2700 = vpack.c.b16 %v2668, %v2666
    %v2701 = vpack.c.b16 %v2669, %v2667
    %v2702 = vpack.c.b16 %v2672, %v2670
    %v2703 = vpack.c.b16 %v2673, %v2671
    %v2704 = vpack.c.b16 %v2676, %v2674
    %v2705 = vpack.c.b16 %v2677, %v2675
    %v2706 = vpack.c.b16 %v2680, %v2678
    %v2707 = vpack.c.b16 %v2681, %v2679
    %v2708 = vpack.c.b16 %v2684, %v2682
    %v2709 = vpack.c.b16 %v2685, %v2683
    %v2735 = vsel %vm721, %v2611, 0
    %2737 = vmatpush.bf16.msra.mxu0 %v2700
    %2738 = vmatpush.bf16.msra.mxu0 %v2698
    %2739 = vmatpush.bf16.msra.mxu0 %v2696
    %2740 = vmatpush.bf16.msra.mxu0 %v2694
    %2741 = vmatpush.bf16.msra.mxu0 %v2692
    %2742 = vmatpush.bf16.msra.mxu0 %v2690
    %2743 = vmatpush.bf16.msra.mxu0 %v2688
    %2744 = vmatpush.bf16.msra.mxu0 %v2686
    %2745 = vmatmul.bf16.gmra.mxu0 %v2609
    %v2746 = vpop.f32.mrf.mxu0
    %v2747 = vadd.f32 0.0, %v2746
    %v2748 = vpop.f32.mrf.mxu0
    %2749 = vdwg.mxu0
    %2750 = vmatpush.bf16.msra.mxu0 0
    %2751 = vmatpush.bf16.msra.mxu0 0
    %2752 = vmatpush.bf16.msra.mxu0 0
    %2753 = vmatpush.bf16.msra.mxu0 0
    %2754 = vmatpush.bf16.msra.mxu0 %v2708
    %2755 = vmatpush.bf16.msra.mxu0 %v2706
    %2756 = vmatpush.bf16.msra.mxu0 %v2704
    %2757 = vmatpush.bf16.msra.mxu0 %v2702
    %2758 = vmatmul.bf16.gmra.mxu0 %v2735
    %v2759 = vpop.f32.mrf.mxu0
    %v2760 = vadd.f32 %v2747, %v2759
    %v2761 = vpop.f32.mrf.mxu0
    %2762 = vdwg.mxu0
    %2763 = vmatpush.bf16.msra.mxu0 %v2701
    %2764 = vmatpush.bf16.msra.mxu0 %v2699
    %2765 = vmatpush.bf16.msra.mxu0 %v2697
    %2766 = vmatpush.bf16.msra.mxu0 %v2695
    %2767 = vmatpush.bf16.msra.mxu0 %v2693
    %2768 = vmatpush.bf16.msra.mxu0 %v2691
    %2769 = vmatpush.bf16.msra.mxu0 %v2689
    %2770 = vmatpush.bf16.msra.mxu0 %v2687
    %2771 = vmatmul.bf16.gmra.mxu0 %v2609
    %v2772 = vpop.f32.mrf.mxu0
    %v2773 = vadd.f32 0.0, %v2772
    %v2774 = vpop.f32.mrf.mxu0
    %2775 = vdwg.mxu0
    %2776 = vmatpush.bf16.msra.mxu0 0
    %2777 = vmatpush.bf16.msra.mxu0 0
    %2778 = vmatpush.bf16.msra.mxu0 0
    %2779 = vmatpush.bf16.msra.mxu0 0
    %2780 = vmatpush.bf16.msra.mxu0 %v2709
    %2781 = vmatpush.bf16.msra.mxu0 %v2707
    %2782 = vmatpush.bf16.msra.mxu0 %v2705
    %2783 = vmatpush.bf16.msra.mxu0 %v2703
    %2784 = vmatmul.bf16.gmra.mxu0 %v2735
    %v2785 = vpop.f32.mrf.mxu0
    %v2786 = vadd.f32 %v2773, %v2785
    %v2787 = vpop.f32.mrf.mxu0
    %2788 = vdwg.mxu0
    %v2789 = vadd.f32 %v2581, %v2760
    %v2790 = vadd.f32 %v2582, %v2786
    %s2791 = scalar_lea.vmem %s7, 1920
    %v2792 = vld [vmem:[%s2791] sm:$0xff]
    %v2793 = vld [vmem:[%s2791 + $0x8] sm:$0xff]
    %v2794 = vld [vmem:[%s2791 + $0x10] sm:$0xff]
    %v2795 = vld [vmem:[%s2791 + $0x18] sm:$0xff]
    %v2796 = vld [vmem:[%s2791 + $0x20] sm:$0xff]
    %v2797 = vld [vmem:[%s2791 + $0x28] sm:$0xff]
    %v2798 = vld [vmem:[%s2791 + $0x30] sm:$0xff]
    %v2799 = vld [vmem:[%s2791 + $0x38] sm:$0xff]
    %v2800 = vld [vmem:[%s2791 + $0x40] sm:$0xff]
    %v2801 = vld [vmem:[%s2791 + $0x48] sm:$0xff]
    %v2802 = vld [vmem:[%s2791 + $0x50] sm:$0xff]
    %v2803 = vld [vmem:[%s2791 + $0x58] sm:$0xff]
    %v2804 = vld [vmem:[%s2791 + $0x60] sm:$0xff]
    %v2805 = vld [vmem:[%s2791 + $0x68] sm:$0xff]
    %v2806 = vld [vmem:[%s2791 + $0x70] sm:$0xff]
    %v2807 = vld [vmem:[%s2791 + $0x78] sm:$0xff]
    %v2808 = vld [vmem:[%s2791 + $0x80] sm:$0xff]
    %v2809 = vld [vmem:[%s2791 + $0x88] sm:$0xff]
    %v2810 = vld [vmem:[%s2791 + $0x90] sm:$0xff]
    %v2811 = vld [vmem:[%s2791 + $0x98] sm:$0xff]
    %v2812 = vld [vmem:[%s2791 + $0xa0] sm:$0xff]
    %v2813 = vld [vmem:[%s2791 + $0xa8] sm:$0xff]
    %v2814 = vld [vmem:[%s2791 + $0xb0] sm:$0xff]
    %v2815 = vld [vmem:[%s2791 + $0xb8] sm:$0xff]
    %v2816 = vrot.slane %v2403, 1
    %v2817 = vrot.slane %v2404, 1
    %v2843 = vunpack.c.l.b16 %v2792
    %v2844 = vunpack.c.h.b16 %v2792
    %v2845 = vunpack.c.l.b16 %v2793
    %v2846 = vunpack.c.h.b16 %v2793
    %v2847 = vunpack.c.l.b16 %v2794
    %v2848 = vunpack.c.h.b16 %v2794
    %v2849 = vunpack.c.l.b16 %v2795
    %v2850 = vunpack.c.h.b16 %v2795
    %v2851 = vunpack.c.l.b16 %v2796
    %v2852 = vunpack.c.h.b16 %v2796
    %v2853 = vunpack.c.l.b16 %v2797
    %v2854 = vunpack.c.h.b16 %v2797
    %v2855 = vunpack.c.l.b16 %v2798
    %v2856 = vunpack.c.h.b16 %v2798
    %v2857 = vunpack.c.l.b16 %v2799
    %v2858 = vunpack.c.h.b16 %v2799
    %v2859 = vunpack.c.l.b16 %v2800
    %v2860 = vunpack.c.h.b16 %v2800
    %v2861 = vunpack.c.l.b16 %v2801
    %v2862 = vunpack.c.h.b16 %v2801
    %v2863 = vunpack.c.l.b16 %v2802
    %v2864 = vunpack.c.h.b16 %v2802
    %v2865 = vunpack.c.l.b16 %v2803
    %v2866 = vunpack.c.h.b16 %v2803
    %v2867 = vunpack.c.l.b16 %v2804
    %v2868 = vunpack.c.h.b16 %v2804
    %v2869 = vunpack.c.l.b16 %v2805
    %v2870 = vunpack.c.h.b16 %v2805
    %v2871 = vunpack.c.l.b16 %v2806
    %v2872 = vunpack.c.h.b16 %v2806
    %v2873 = vunpack.c.l.b16 %v2807
    %v2874 = vunpack.c.h.b16 %v2807
    %v2875 = vunpack.c.l.b16 %v2808
    %v2876 = vunpack.c.h.b16 %v2808
    %v2877 = vunpack.c.l.b16 %v2809
    %v2878 = vunpack.c.h.b16 %v2809
    %v2879 = vunpack.c.l.b16 %v2810
    %v2880 = vunpack.c.h.b16 %v2810
    %v2881 = vunpack.c.l.b16 %v2811
    %v2882 = vunpack.c.h.b16 %v2811
    %v2883 = vunpack.c.l.b16 %v2812
    %v2884 = vunpack.c.h.b16 %v2812
    %v2885 = vunpack.c.l.b16 %v2813
    %v2886 = vunpack.c.h.b16 %v2813
    %v2887 = vunpack.c.l.b16 %v2814
    %v2888 = vunpack.c.h.b16 %v2814
    %v2889 = vunpack.c.l.b16 %v2815
    %v2890 = vunpack.c.h.b16 %v2815
    %v2891 = vpack.c.b16 %v2845, %v2843
    %v2892 = vpack.c.b16 %v2846, %v2844
    %v2893 = vpack.c.b16 %v2849, %v2847
    %v2894 = vpack.c.b16 %v2850, %v2848
    %v2895 = vpack.c.b16 %v2853, %v2851
    %v2896 = vpack.c.b16 %v2854, %v2852
    %v2897 = vpack.c.b16 %v2857, %v2855
    %v2898 = vpack.c.b16 %v2858, %v2856
    %v2899 = vpack.c.b16 %v2861, %v2859
    %v2900 = vpack.c.b16 %v2862, %v2860
    %v2901 = vpack.c.b16 %v2865, %v2863
    %v2902 = vpack.c.b16 %v2866, %v2864
    %v2903 = vpack.c.b16 %v2869, %v2867
    %v2904 = vpack.c.b16 %v2870, %v2868
    %v2905 = vpack.c.b16 %v2873, %v2871
    %v2906 = vpack.c.b16 %v2874, %v2872
    %v2907 = vpack.c.b16 %v2877, %v2875
    %v2908 = vpack.c.b16 %v2878, %v2876
    %v2909 = vpack.c.b16 %v2881, %v2879
    %v2910 = vpack.c.b16 %v2882, %v2880
    %v2911 = vpack.c.b16 %v2885, %v2883
    %v2912 = vpack.c.b16 %v2886, %v2884
    %v2913 = vpack.c.b16 %v2889, %v2887
    %v2914 = vpack.c.b16 %v2890, %v2888
    %v2940 = vsel %vm721, %v2817, 0
    %2942 = vmatpush.bf16.msra.mxu0 %v2905
    %2943 = vmatpush.bf16.msra.mxu0 %v2903
    %2944 = vmatpush.bf16.msra.mxu0 %v2901
    %2945 = vmatpush.bf16.msra.mxu0 %v2899
    %2946 = vmatpush.bf16.msra.mxu0 %v2897
    %2947 = vmatpush.bf16.msra.mxu0 %v2895
    %2948 = vmatpush.bf16.msra.mxu0 %v2893
    %2949 = vmatpush.bf16.msra.mxu0 %v2891
    %2950 = vmatmul.bf16.gmra.mxu0 %v2816
    %v2951 = vpop.f32.mrf.mxu0
    %v2952 = vadd.f32 0.0, %v2951
    %v2953 = vpop.f32.mrf.mxu0
    %2954 = vdwg.mxu0
    %2955 = vmatpush.bf16.msra.mxu0 0
    %2956 = vmatpush.bf16.msra.mxu0 0
    %2957 = vmatpush.bf16.msra.mxu0 0
    %2958 = vmatpush.bf16.msra.mxu0 0
    %2959 = vmatpush.bf16.msra.mxu0 %v2913
    %2960 = vmatpush.bf16.msra.mxu0 %v2911
    %2961 = vmatpush.bf16.msra.mxu0 %v2909
    %2962 = vmatpush.bf16.msra.mxu0 %v2907
    %2963 = vmatmul.bf16.gmra.mxu0 %v2940
    %v2964 = vpop.f32.mrf.mxu0
    %v2965 = vadd.f32 %v2952, %v2964
    %v2966 = vpop.f32.mrf.mxu0
    %2967 = vdwg.mxu0
    %2968 = vmatpush.bf16.msra.mxu0 %v2906
    %2969 = vmatpush.bf16.msra.mxu0 %v2904
    %2970 = vmatpush.bf16.msra.mxu0 %v2902
    %2971 = vmatpush.bf16.msra.mxu0 %v2900
    %2972 = vmatpush.bf16.msra.mxu0 %v2898
    %2973 = vmatpush.bf16.msra.mxu0 %v2896
    %2974 = vmatpush.bf16.msra.mxu0 %v2894
    %2975 = vmatpush.bf16.msra.mxu0 %v2892
    %2976 = vmatmul.bf16.gmra.mxu0 %v2816
    %v2977 = vpop.f32.mrf.mxu0
    %v2978 = vadd.f32 0.0, %v2977
    %v2979 = vpop.f32.mrf.mxu0
    %2980 = vdwg.mxu0
    %2981 = vmatpush.bf16.msra.mxu0 0
    %2982 = vmatpush.bf16.msra.mxu0 0
    %2983 = vmatpush.bf16.msra.mxu0 0
    %2984 = vmatpush.bf16.msra.mxu0 0
    %2985 = vmatpush.bf16.msra.mxu0 %v2914
    %2986 = vmatpush.bf16.msra.mxu0 %v2912
    %2987 = vmatpush.bf16.msra.mxu0 %v2910
    %2988 = vmatpush.bf16.msra.mxu0 %v2908
    %2989 = vmatmul.bf16.gmra.mxu0 %v2940
    %v2990 = vpop.f32.mrf.mxu0
    %v2991 = vadd.f32 %v2978, %v2990
    %v2992 = vpop.f32.mrf.mxu0
    %2993 = vdwg.mxu0
    %v2994 = vadd.f32 %v2789, %v2965
    %v2995 = vadd.f32 %v2790, %v2991
    %s2996 = scalar_lea.vmem %s7, 2112
    %v2997 = vld [vmem:[%s2996] sm:$0xff]
    %v2998 = vld [vmem:[%s2996 + $0x8] sm:$0xff]
    %v2999 = vld [vmem:[%s2996 + $0x10] sm:$0xff]
    %v3000 = vld [vmem:[%s2996 + $0x18] sm:$0xff]
    %v3001 = vld [vmem:[%s2996 + $0x20] sm:$0xff]
    %v3002 = vld [vmem:[%s2996 + $0x28] sm:$0xff]
    %v3003 = vld [vmem:[%s2996 + $0x30] sm:$0xff]
    %v3004 = vld [vmem:[%s2996 + $0x38] sm:$0xff]
    %v3005 = vld [vmem:[%s2996 + $0x40] sm:$0xff]
    %v3006 = vld [vmem:[%s2996 + $0x48] sm:$0xff]
    %v3007 = vld [vmem:[%s2996 + $0x50] sm:$0xff]
    %v3008 = vld [vmem:[%s2996 + $0x58] sm:$0xff]
    %v3009 = vld [vmem:[%s2996 + $0x60] sm:$0xff]
    %v3010 = vld [vmem:[%s2996 + $0x68] sm:$0xff]
    %v3011 = vld [vmem:[%s2996 + $0x70] sm:$0xff]
    %v3012 = vld [vmem:[%s2996 + $0x78] sm:$0xff]
    %v3013 = vld [vmem:[%s2996 + $0x80] sm:$0xff]
    %v3014 = vld [vmem:[%s2996 + $0x88] sm:$0xff]
    %v3015 = vld [vmem:[%s2996 + $0x90] sm:$0xff]
    %v3016 = vld [vmem:[%s2996 + $0x98] sm:$0xff]
    %v3017 = vld [vmem:[%s2996 + $0xa0] sm:$0xff]
    %v3018 = vld [vmem:[%s2996 + $0xa8] sm:$0xff]
    %v3019 = vld [vmem:[%s2996 + $0xb0] sm:$0xff]
    %v3020 = vld [vmem:[%s2996 + $0xb8] sm:$0xff]
    %v3021 = vrot.slane %v2609, 1
    %v3022 = vrot.slane %v2611, 1
    %v3048 = vunpack.c.l.b16 %v2997
    %v3049 = vunpack.c.h.b16 %v2997
    %v3050 = vunpack.c.l.b16 %v2998
    %v3051 = vunpack.c.h.b16 %v2998
    %v3052 = vunpack.c.l.b16 %v2999
    %v3053 = vunpack.c.h.b16 %v2999
    %v3054 = vunpack.c.l.b16 %v3000
    %v3055 = vunpack.c.h.b16 %v3000
    %v3056 = vunpack.c.l.b16 %v3001
    %v3057 = vunpack.c.h.b16 %v3001
    %v3058 = vunpack.c.l.b16 %v3002
    %v3059 = vunpack.c.h.b16 %v3002
    %v3060 = vunpack.c.l.b16 %v3003
    %v3061 = vunpack.c.h.b16 %v3003
    %v3062 = vunpack.c.l.b16 %v3004
    %v3063 = vunpack.c.h.b16 %v3004
    %v3064 = vunpack.c.l.b16 %v3005
    %v3065 = vunpack.c.h.b16 %v3005
    %v3066 = vunpack.c.l.b16 %v3006
    %v3067 = vunpack.c.h.b16 %v3006
    %v3068 = vunpack.c.l.b16 %v3007
    %v3069 = vunpack.c.h.b16 %v3007
    %v3070 = vunpack.c.l.b16 %v3008
    %v3071 = vunpack.c.h.b16 %v3008
    %v3072 = vunpack.c.l.b16 %v3009
    %v3073 = vunpack.c.h.b16 %v3009
    %v3074 = vunpack.c.l.b16 %v3010
    %v3075 = vunpack.c.h.b16 %v3010
    %v3076 = vunpack.c.l.b16 %v3011
    %v3077 = vunpack.c.h.b16 %v3011
    %v3078 = vunpack.c.l.b16 %v3012
    %v3079 = vunpack.c.h.b16 %v3012
    %v3080 = vunpack.c.l.b16 %v3013
    %v3081 = vunpack.c.h.b16 %v3013
    %v3082 = vunpack.c.l.b16 %v3014
    %v3083 = vunpack.c.h.b16 %v3014
    %v3084 = vunpack.c.l.b16 %v3015
    %v3085 = vunpack.c.h.b16 %v3015
    %v3086 = vunpack.c.l.b16 %v3016
    %v3087 = vunpack.c.h.b16 %v3016
    %v3088 = vunpack.c.l.b16 %v3017
    %v3089 = vunpack.c.h.b16 %v3017
    %v3090 = vunpack.c.l.b16 %v3018
    %v3091 = vunpack.c.h.b16 %v3018
    %v3092 = vunpack.c.l.b16 %v3019
    %v3093 = vunpack.c.h.b16 %v3019
    %v3094 = vunpack.c.l.b16 %v3020
    %v3095 = vunpack.c.h.b16 %v3020
    %v3096 = vpack.c.b16 %v3050, %v3048
    %v3097 = vpack.c.b16 %v3051, %v3049
    %v3098 = vpack.c.b16 %v3054, %v3052
    %v3099 = vpack.c.b16 %v3055, %v3053
    %v3100 = vpack.c.b16 %v3058, %v3056
    %v3101 = vpack.c.b16 %v3059, %v3057
    %v3102 = vpack.c.b16 %v3062, %v3060
    %v3103 = vpack.c.b16 %v3063, %v3061
    %v3104 = vpack.c.b16 %v3066, %v3064
    %v3105 = vpack.c.b16 %v3067, %v3065
    %v3106 = vpack.c.b16 %v3070, %v3068
    %v3107 = vpack.c.b16 %v3071, %v3069
    %v3108 = vpack.c.b16 %v3074, %v3072
    %v3109 = vpack.c.b16 %v3075, %v3073
    %v3110 = vpack.c.b16 %v3078, %v3076
    %v3111 = vpack.c.b16 %v3079, %v3077
    %v3112 = vpack.c.b16 %v3082, %v3080
    %v3113 = vpack.c.b16 %v3083, %v3081
    %v3114 = vpack.c.b16 %v3086, %v3084
    %v3115 = vpack.c.b16 %v3087, %v3085
    %v3116 = vpack.c.b16 %v3090, %v3088
    %v3117 = vpack.c.b16 %v3091, %v3089
    %v3118 = vpack.c.b16 %v3094, %v3092
    %v3119 = vpack.c.b16 %v3095, %v3093
    %v3145 = vsel %vm721, %v3022, 0
    %3147 = vmatpush.bf16.msra.mxu0 %v3110
    %3148 = vmatpush.bf16.msra.mxu0 %v3108
    %3149 = vmatpush.bf16.msra.mxu0 %v3106
    %3150 = vmatpush.bf16.msra.mxu0 %v3104
    %3151 = vmatpush.bf16.msra.mxu0 %v3102
    %3152 = vmatpush.bf16.msra.mxu0 %v3100
    %3153 = vmatpush.bf16.msra.mxu0 %v3098
    %3154 = vmatpush.bf16.msra.mxu0 %v3096
    %3155 = vmatmul.bf16.gmra.mxu0 %v3021
    %v3156 = vpop.f32.mrf.mxu0
    %v3157 = vadd.f32 0.0, %v3156
    %v3158 = vpop.f32.mrf.mxu0
    %3159 = vdwg.mxu0
    %3160 = vmatpush.bf16.msra.mxu0 0
    %3161 = vmatpush.bf16.msra.mxu0 0
    %3162 = vmatpush.bf16.msra.mxu0 0
    %3163 = vmatpush.bf16.msra.mxu0 0
    %3164 = vmatpush.bf16.msra.mxu0 %v3118
    %3165 = vmatpush.bf16.msra.mxu0 %v3116
    %3166 = vmatpush.bf16.msra.mxu0 %v3114
    %3167 = vmatpush.bf16.msra.mxu0 %v3112
    %3168 = vmatmul.bf16.gmra.mxu0 %v3145
    %v3169 = vpop.f32.mrf.mxu0
    %v3170 = vadd.f32 %v3157, %v3169
    %v3171 = vpop.f32.mrf.mxu0
    %3172 = vdwg.mxu0
    %3173 = vmatpush.bf16.msra.mxu0 %v3111
    %3174 = vmatpush.bf16.msra.mxu0 %v3109
    %3175 = vmatpush.bf16.msra.mxu0 %v3107
    %3176 = vmatpush.bf16.msra.mxu0 %v3105
    %3177 = vmatpush.bf16.msra.mxu0 %v3103
    %3178 = vmatpush.bf16.msra.mxu0 %v3101
    %3179 = vmatpush.bf16.msra.mxu0 %v3099
    %3180 = vmatpush.bf16.msra.mxu0 %v3097
    %3181 = vmatmul.bf16.gmra.mxu0 %v3021
    %v3182 = vpop.f32.mrf.mxu0
    %v3183 = vadd.f32 0.0, %v3182
    %v3184 = vpop.f32.mrf.mxu0
    %3185 = vdwg.mxu0
    %3186 = vmatpush.bf16.msra.mxu0 0
    %3187 = vmatpush.bf16.msra.mxu0 0
    %3188 = vmatpush.bf16.msra.mxu0 0
    %3189 = vmatpush.bf16.msra.mxu0 0
    %3190 = vmatpush.bf16.msra.mxu0 %v3119
    %3191 = vmatpush.bf16.msra.mxu0 %v3117
    %3192 = vmatpush.bf16.msra.mxu0 %v3115
    %3193 = vmatpush.bf16.msra.mxu0 %v3113
    %3194 = vmatmul.bf16.gmra.mxu0 %v3145
    %v3195 = vpop.f32.mrf.mxu0
    %v3196 = vadd.f32 %v3183, %v3195
    %v3197 = vpop.f32.mrf.mxu0
    %3198 = vdwg.mxu0
    %v3199 = vadd.f32 %v2994, %v3170
    %v3200 = vadd.f32 %v2995, %v3196
    %s3201 = scalar_lea.vmem %s7, 2304
    %v3202 = vld [vmem:[%s3201] sm:$0xff]
    %v3203 = vld [vmem:[%s3201 + $0x8] sm:$0xff]
    %v3204 = vld [vmem:[%s3201 + $0x10] sm:$0xff]
    %v3205 = vld [vmem:[%s3201 + $0x18] sm:$0xff]
    %v3206 = vld [vmem:[%s3201 + $0x20] sm:$0xff]
    %v3207 = vld [vmem:[%s3201 + $0x28] sm:$0xff]
    %v3208 = vld [vmem:[%s3201 + $0x30] sm:$0xff]
    %v3209 = vld [vmem:[%s3201 + $0x38] sm:$0xff]
    %v3210 = vld [vmem:[%s3201 + $0x40] sm:$0xff]
    %v3211 = vld [vmem:[%s3201 + $0x48] sm:$0xff]
    %v3212 = vld [vmem:[%s3201 + $0x50] sm:$0xff]
    %v3213 = vld [vmem:[%s3201 + $0x58] sm:$0xff]
    %v3214 = vld [vmem:[%s3201 + $0x60] sm:$0xff]
    %v3215 = vld [vmem:[%s3201 + $0x68] sm:$0xff]
    %v3216 = vld [vmem:[%s3201 + $0x70] sm:$0xff]
    %v3217 = vld [vmem:[%s3201 + $0x78] sm:$0xff]
    %v3218 = vld [vmem:[%s3201 + $0x80] sm:$0xff]
    %v3219 = vld [vmem:[%s3201 + $0x88] sm:$0xff]
    %v3220 = vld [vmem:[%s3201 + $0x90] sm:$0xff]
    %v3221 = vld [vmem:[%s3201 + $0x98] sm:$0xff]
    %v3222 = vld [vmem:[%s3201 + $0xa0] sm:$0xff]
    %v3223 = vld [vmem:[%s3201 + $0xa8] sm:$0xff]
    %v3224 = vld [vmem:[%s3201 + $0xb0] sm:$0xff]
    %v3225 = vld [vmem:[%s3201 + $0xb8] sm:$0xff]
    %v3226 = vrot.slane %v2403, 2
    %v3227 = vrot.slane %v2404, 2
    %v3253 = vunpack.c.l.b16 %v3202
    %v3254 = vunpack.c.h.b16 %v3202
    %v3255 = vunpack.c.l.b16 %v3203
    %v3256 = vunpack.c.h.b16 %v3203
    %v3257 = vunpack.c.l.b16 %v3204
    %v3258 = vunpack.c.h.b16 %v3204
    %v3259 = vunpack.c.l.b16 %v3205
    %v3260 = vunpack.c.h.b16 %v3205
    %v3261 = vunpack.c.l.b16 %v3206
    %v3262 = vunpack.c.h.b16 %v3206
    %v3263 = vunpack.c.l.b16 %v3207
    %v3264 = vunpack.c.h.b16 %v3207
    %v3265 = vunpack.c.l.b16 %v3208
    %v3266 = vunpack.c.h.b16 %v3208
    %v3267 = vunpack.c.l.b16 %v3209
    %v3268 = vunpack.c.h.b16 %v3209
    %v3269 = vunpack.c.l.b16 %v3210
    %v3270 = vunpack.c.h.b16 %v3210
    %v3271 = vunpack.c.l.b16 %v3211
    %v3272 = vunpack.c.h.b16 %v3211
    %v3273 = vunpack.c.l.b16 %v3212
    %v3274 = vunpack.c.h.b16 %v3212
    %v3275 = vunpack.c.l.b16 %v3213
    %v3276 = vunpack.c.h.b16 %v3213
    %v3277 = vunpack.c.l.b16 %v3214
    %v3278 = vunpack.c.h.b16 %v3214
    %v3279 = vunpack.c.l.b16 %v3215
    %v3280 = vunpack.c.h.b16 %v3215
    %v3281 = vunpack.c.l.b16 %v3216
    %v3282 = vunpack.c.h.b16 %v3216
    %v3283 = vunpack.c.l.b16 %v3217
    %v3284 = vunpack.c.h.b16 %v3217
    %v3285 = vunpack.c.l.b16 %v3218
    %v3286 = vunpack.c.h.b16 %v3218
    %v3287 = vunpack.c.l.b16 %v3219
    %v3288 = vunpack.c.h.b16 %v3219
    %v3289 = vunpack.c.l.b16 %v3220
    %v3290 = vunpack.c.h.b16 %v3220
    %v3291 = vunpack.c.l.b16 %v3221
    %v3292 = vunpack.c.h.b16 %v3221
    %v3293 = vunpack.c.l.b16 %v3222
    %v3294 = vunpack.c.h.b16 %v3222
    %v3295 = vunpack.c.l.b16 %v3223
    %v3296 = vunpack.c.h.b16 %v3223
    %v3297 = vunpack.c.l.b16 %v3224
    %v3298 = vunpack.c.h.b16 %v3224
    %v3299 = vunpack.c.l.b16 %v3225
    %v3300 = vunpack.c.h.b16 %v3225
    %v3301 = vpack.c.b16 %v3255, %v3253
    %v3302 = vpack.c.b16 %v3256, %v3254
    %v3303 = vpack.c.b16 %v3259, %v3257
    %v3304 = vpack.c.b16 %v3260, %v3258
    %v3305 = vpack.c.b16 %v3263, %v3261
    %v3306 = vpack.c.b16 %v3264, %v3262
    %v3307 = vpack.c.b16 %v3267, %v3265
    %v3308 = vpack.c.b16 %v3268, %v3266
    %v3309 = vpack.c.b16 %v3271, %v3269
    %v3310 = vpack.c.b16 %v3272, %v3270
    %v3311 = vpack.c.b16 %v3275, %v3273
    %v3312 = vpack.c.b16 %v3276, %v3274
    %v3313 = vpack.c.b16 %v3279, %v3277
    %v3314 = vpack.c.b16 %v3280, %v3278
    %v3315 = vpack.c.b16 %v3283, %v3281
    %v3316 = vpack.c.b16 %v3284, %v3282
    %v3317 = vpack.c.b16 %v3287, %v3285
    %v3318 = vpack.c.b16 %v3288, %v3286
    %v3319 = vpack.c.b16 %v3291, %v3289
    %v3320 = vpack.c.b16 %v3292, %v3290
    %v3321 = vpack.c.b16 %v3295, %v3293
    %v3322 = vpack.c.b16 %v3296, %v3294
    %v3323 = vpack.c.b16 %v3299, %v3297
    %v3324 = vpack.c.b16 %v3300, %v3298
    %v3350 = vsel %vm721, %v3227, 0
    %3352 = vmatpush.bf16.msra.mxu0 %v3315
    %3353 = vmatpush.bf16.msra.mxu0 %v3313
    %3354 = vmatpush.bf16.msra.mxu0 %v3311
    %3355 = vmatpush.bf16.msra.mxu0 %v3309
    %3356 = vmatpush.bf16.msra.mxu0 %v3307
    %3357 = vmatpush.bf16.msra.mxu0 %v3305
    %3358 = vmatpush.bf16.msra.mxu0 %v3303
    %3359 = vmatpush.bf16.msra.mxu0 %v3301
    %3360 = vmatmul.bf16.gmra.mxu0 %v3226
    %v3361 = vpop.f32.mrf.mxu0
    %v3362 = vadd.f32 0.0, %v3361
    %v3363 = vpop.f32.mrf.mxu0
    %3364 = vdwg.mxu0
    %3365 = vmatpush.bf16.msra.mxu0 0
    %3366 = vmatpush.bf16.msra.mxu0 0
    %3367 = vmatpush.bf16.msra.mxu0 0
    %3368 = vmatpush.bf16.msra.mxu0 0
    %3369 = vmatpush.bf16.msra.mxu0 %v3323
    %3370 = vmatpush.bf16.msra.mxu0 %v3321
    %3371 = vmatpush.bf16.msra.mxu0 %v3319
    %3372 = vmatpush.bf16.msra.mxu0 %v3317
    %3373 = vmatmul.bf16.gmra.mxu0 %v3350
    %v3374 = vpop.f32.mrf.mxu0
    %v3375 = vadd.f32 %v3362, %v3374
    %v3376 = vpop.f32.mrf.mxu0
    %3377 = vdwg.mxu0
    %3378 = vmatpush.bf16.msra.mxu0 %v3316
    %3379 = vmatpush.bf16.msra.mxu0 %v3314
    %3380 = vmatpush.bf16.msra.mxu0 %v3312
    %3381 = vmatpush.bf16.msra.mxu0 %v3310
    %3382 = vmatpush.bf16.msra.mxu0 %v3308
    %3383 = vmatpush.bf16.msra.mxu0 %v3306
    %3384 = vmatpush.bf16.msra.mxu0 %v3304
    %3385 = vmatpush.bf16.msra.mxu0 %v3302
    %3386 = vmatmul.bf16.gmra.mxu0 %v3226
    %v3387 = vpop.f32.mrf.mxu0
    %v3388 = vadd.f32 0.0, %v3387
    %v3389 = vpop.f32.mrf.mxu0
    %3390 = vdwg.mxu0
    %3391 = vmatpush.bf16.msra.mxu0 0
    %3392 = vmatpush.bf16.msra.mxu0 0
    %3393 = vmatpush.bf16.msra.mxu0 0
    %3394 = vmatpush.bf16.msra.mxu0 0
    %3395 = vmatpush.bf16.msra.mxu0 %v3324
    %3396 = vmatpush.bf16.msra.mxu0 %v3322
    %3397 = vmatpush.bf16.msra.mxu0 %v3320
    %3398 = vmatpush.bf16.msra.mxu0 %v3318
    %3399 = vmatmul.bf16.gmra.mxu0 %v3350
    %v3400 = vpop.f32.mrf.mxu0
    %v3401 = vadd.f32 %v3388, %v3400
    %v3402 = vpop.f32.mrf.mxu0
    %3403 = vdwg.mxu0
    %v3404 = vadd.f32 %v3199, %v3375
    %v3405 = vadd.f32 %v3200, %v3401
    %s3406 = scalar_lea.vmem %s7, 2496
    %v3407 = vld [vmem:[%s3406] sm:$0xff]
    %v3408 = vld [vmem:[%s3406 + $0x8] sm:$0xff]
    %v3409 = vld [vmem:[%s3406 + $0x10] sm:$0xff]
    %v3410 = vld [vmem:[%s3406 + $0x18] sm:$0xff]
    %v3411 = vld [vmem:[%s3406 + $0x20] sm:$0xff]
    %v3412 = vld [vmem:[%s3406 + $0x28] sm:$0xff]
    %v3413 = vld [vmem:[%s3406 + $0x30] sm:$0xff]
    %v3414 = vld [vmem:[%s3406 + $0x38] sm:$0xff]
    %v3415 = vld [vmem:[%s3406 + $0x40] sm:$0xff]
    %v3416 = vld [vmem:[%s3406 + $0x48] sm:$0xff]
    %v3417 = vld [vmem:[%s3406 + $0x50] sm:$0xff]
    %v3418 = vld [vmem:[%s3406 + $0x58] sm:$0xff]
    %v3419 = vld [vmem:[%s3406 + $0x60] sm:$0xff]
    %v3420 = vld [vmem:[%s3406 + $0x68] sm:$0xff]
    %v3421 = vld [vmem:[%s3406 + $0x70] sm:$0xff]
    %v3422 = vld [vmem:[%s3406 + $0x78] sm:$0xff]
    %v3423 = vld [vmem:[%s3406 + $0x80] sm:$0xff]
    %v3424 = vld [vmem:[%s3406 + $0x88] sm:$0xff]
    %v3425 = vld [vmem:[%s3406 + $0x90] sm:$0xff]
    %v3426 = vld [vmem:[%s3406 + $0x98] sm:$0xff]
    %v3427 = vld [vmem:[%s3406 + $0xa0] sm:$0xff]
    %v3428 = vld [vmem:[%s3406 + $0xa8] sm:$0xff]
    %v3429 = vld [vmem:[%s3406 + $0xb0] sm:$0xff]
    %v3430 = vld [vmem:[%s3406 + $0xb8] sm:$0xff]
    %v3431 = vrot.slane %v2609, 2
    %v3432 = vrot.slane %v2611, 2
    %v3458 = vunpack.c.l.b16 %v3407
    %v3459 = vunpack.c.h.b16 %v3407
    %v3460 = vunpack.c.l.b16 %v3408
    %v3461 = vunpack.c.h.b16 %v3408
    %v3462 = vunpack.c.l.b16 %v3409
    %v3463 = vunpack.c.h.b16 %v3409
    %v3464 = vunpack.c.l.b16 %v3410
    %v3465 = vunpack.c.h.b16 %v3410
    %v3466 = vunpack.c.l.b16 %v3411
    %v3467 = vunpack.c.h.b16 %v3411
    %v3468 = vunpack.c.l.b16 %v3412
    %v3469 = vunpack.c.h.b16 %v3412
    %v3470 = vunpack.c.l.b16 %v3413
    %v3471 = vunpack.c.h.b16 %v3413
    %v3472 = vunpack.c.l.b16 %v3414
    %v3473 = vunpack.c.h.b16 %v3414
    %v3474 = vunpack.c.l.b16 %v3415
    %v3475 = vunpack.c.h.b16 %v3415
    %v3476 = vunpack.c.l.b16 %v3416
    %v3477 = vunpack.c.h.b16 %v3416
    %v3478 = vunpack.c.l.b16 %v3417
    %v3479 = vunpack.c.h.b16 %v3417
    %v3480 = vunpack.c.l.b16 %v3418
    %v3481 = vunpack.c.h.b16 %v3418
    %v3482 = vunpack.c.l.b16 %v3419
    %v3483 = vunpack.c.h.b16 %v3419
    %v3484 = vunpack.c.l.b16 %v3420
    %v3485 = vunpack.c.h.b16 %v3420
    %v3486 = vunpack.c.l.b16 %v3421
    %v3487 = vunpack.c.h.b16 %v3421
    %v3488 = vunpack.c.l.b16 %v3422
    %v3489 = vunpack.c.h.b16 %v3422
    %v3490 = vunpack.c.l.b16 %v3423
    %v3491 = vunpack.c.h.b16 %v3423
    %v3492 = vunpack.c.l.b16 %v3424
    %v3493 = vunpack.c.h.b16 %v3424
    %v3494 = vunpack.c.l.b16 %v3425
    %v3495 = vunpack.c.h.b16 %v3425
    %v3496 = vunpack.c.l.b16 %v3426
    %v3497 = vunpack.c.h.b16 %v3426
    %v3498 = vunpack.c.l.b16 %v3427
    %v3499 = vunpack.c.h.b16 %v3427
    %v3500 = vunpack.c.l.b16 %v3428
    %v3501 = vunpack.c.h.b16 %v3428
    %v3502 = vunpack.c.l.b16 %v3429
    %v3503 = vunpack.c.h.b16 %v3429
    %v3504 = vunpack.c.l.b16 %v3430
    %v3505 = vunpack.c.h.b16 %v3430
    %v3506 = vpack.c.b16 %v3460, %v3458
    %v3507 = vpack.c.b16 %v3461, %v3459
    %v3508 = vpack.c.b16 %v3464, %v3462
    %v3509 = vpack.c.b16 %v3465, %v3463
    %v3510 = vpack.c.b16 %v3468, %v3466
    %v3511 = vpack.c.b16 %v3469, %v3467
    %v3512 = vpack.c.b16 %v3472, %v3470
    %v3513 = vpack.c.b16 %v3473, %v3471
    %v3514 = vpack.c.b16 %v3476, %v3474
    %v3515 = vpack.c.b16 %v3477, %v3475
    %v3516 = vpack.c.b16 %v3480, %v3478
    %v3517 = vpack.c.b16 %v3481, %v3479
    %v3518 = vpack.c.b16 %v3484, %v3482
    %v3519 = vpack.c.b16 %v3485, %v3483
    %v3520 = vpack.c.b16 %v3488, %v3486
    %v3521 = vpack.c.b16 %v3489, %v3487
    %v3522 = vpack.c.b16 %v3492, %v3490
    %v3523 = vpack.c.b16 %v3493, %v3491
    %v3524 = vpack.c.b16 %v3496, %v3494
    %v3525 = vpack.c.b16 %v3497, %v3495
    %v3526 = vpack.c.b16 %v3500, %v3498
    %v3527 = vpack.c.b16 %v3501, %v3499
    %v3528 = vpack.c.b16 %v3504, %v3502
    %v3529 = vpack.c.b16 %v3505, %v3503
    %v3555 = vsel %vm721, %v3432, 0
    %3557 = vmatpush.bf16.msra.mxu0 %v3520
    %3558 = vmatpush.bf16.msra.mxu0 %v3518
    %3559 = vmatpush.bf16.msra.mxu0 %v3516
    %3560 = vmatpush.bf16.msra.mxu0 %v3514
    %3561 = vmatpush.bf16.msra.mxu0 %v3512
    %3562 = vmatpush.bf16.msra.mxu0 %v3510
    %3563 = vmatpush.bf16.msra.mxu0 %v3508
    %3564 = vmatpush.bf16.msra.mxu0 %v3506
    %3565 = vmatmul.bf16.gmra.mxu0 %v3431
    %v3566 = vpop.f32.mrf.mxu0
    %v3567 = vadd.f32 0.0, %v3566
    %v3568 = vpop.f32.mrf.mxu0
    %3569 = vdwg.mxu0
    %3570 = vmatpush.bf16.msra.mxu0 0
    %3571 = vmatpush.bf16.msra.mxu0 0
    %3572 = vmatpush.bf16.msra.mxu0 0
    %3573 = vmatpush.bf16.msra.mxu0 0
    %3574 = vmatpush.bf16.msra.mxu0 %v3528
    %3575 = vmatpush.bf16.msra.mxu0 %v3526
    %3576 = vmatpush.bf16.msra.mxu0 %v3524
    %3577 = vmatpush.bf16.msra.mxu0 %v3522
    %3578 = vmatmul.bf16.gmra.mxu0 %v3555
    %v3579 = vpop.f32.mrf.mxu0
    %v3580 = vadd.f32 %v3567, %v3579
    %v3581 = vpop.f32.mrf.mxu0
    %3582 = vdwg.mxu0
    %3583 = vmatpush.bf16.msra.mxu0 %v3521
    %3584 = vmatpush.bf16.msra.mxu0 %v3519
    %3585 = vmatpush.bf16.msra.mxu0 %v3517
    %3586 = vmatpush.bf16.msra.mxu0 %v3515
    %3587 = vmatpush.bf16.msra.mxu0 %v3513
    %3588 = vmatpush.bf16.msra.mxu0 %v3511
    %3589 = vmatpush.bf16.msra.mxu0 %v3509
    %3590 = vmatpush.bf16.msra.mxu0 %v3507
    %3591 = vmatmul.bf16.gmra.mxu0 %v3431
    %v3592 = vpop.f32.mrf.mxu0
    %v3593 = vadd.f32 0.0, %v3592
    %v3594 = vpop.f32.mrf.mxu0
    %3595 = vdwg.mxu0
    %3596 = vmatpush.bf16.msra.mxu0 0
    %3597 = vmatpush.bf16.msra.mxu0 0
    %3598 = vmatpush.bf16.msra.mxu0 0
    %3599 = vmatpush.bf16.msra.mxu0 0
    %3600 = vmatpush.bf16.msra.mxu0 %v3529
    %3601 = vmatpush.bf16.msra.mxu0 %v3527
    %3602 = vmatpush.bf16.msra.mxu0 %v3525
    %3603 = vmatpush.bf16.msra.mxu0 %v3523
    %3604 = vmatmul.bf16.gmra.mxu0 %v3555
    %v3605 = vpop.f32.mrf.mxu0
    %v3606 = vadd.f32 %v3593, %v3605
    %v3607 = vpop.f32.mrf.mxu0
    %3608 = vdwg.mxu0
    %v3609 = vadd.f32 %v3404, %v3580
    %v3610 = vadd.f32 %v3405, %v3606
    %s3611 = scalar_lea.vmem %s7, 2688
    %v3612 = vld [vmem:[%s3611] sm:$0xff]
    %v3613 = vld [vmem:[%s3611 + $0x8] sm:$0xff]
    %v3614 = vld [vmem:[%s3611 + $0x10] sm:$0xff]
    %v3615 = vld [vmem:[%s3611 + $0x18] sm:$0xff]
    %v3616 = vld [vmem:[%s3611 + $0x20] sm:$0xff]
    %v3617 = vld [vmem:[%s3611 + $0x28] sm:$0xff]
    %v3618 = vld [vmem:[%s3611 + $0x30] sm:$0xff]
    %v3619 = vld [vmem:[%s3611 + $0x38] sm:$0xff]
    %v3620 = vld [vmem:[%s3611 + $0x40] sm:$0xff]
    %v3621 = vld [vmem:[%s3611 + $0x48] sm:$0xff]
    %v3622 = vld [vmem:[%s3611 + $0x50] sm:$0xff]
    %v3623 = vld [vmem:[%s3611 + $0x58] sm:$0xff]
    %v3624 = vld [vmem:[%s3611 + $0x60] sm:$0xff]
    %v3625 = vld [vmem:[%s3611 + $0x68] sm:$0xff]
    %v3626 = vld [vmem:[%s3611 + $0x70] sm:$0xff]
    %v3627 = vld [vmem:[%s3611 + $0x78] sm:$0xff]
    %v3628 = vld [vmem:[%s3611 + $0x80] sm:$0xff]
    %v3629 = vld [vmem:[%s3611 + $0x88] sm:$0xff]
    %v3630 = vld [vmem:[%s3611 + $0x90] sm:$0xff]
    %v3631 = vld [vmem:[%s3611 + $0x98] sm:$0xff]
    %v3632 = vld [vmem:[%s3611 + $0xa0] sm:$0xff]
    %v3633 = vld [vmem:[%s3611 + $0xa8] sm:$0xff]
    %v3634 = vld [vmem:[%s3611 + $0xb0] sm:$0xff]
    %v3635 = vld [vmem:[%s3611 + $0xb8] sm:$0xff]
    %v3636 = vrot.slane %v2403, 3
    %v3637 = vrot.slane %v2404, 3
    %v3663 = vunpack.c.l.b16 %v3612
    %v3664 = vunpack.c.h.b16 %v3612
    %v3665 = vunpack.c.l.b16 %v3613
    %v3666 = vunpack.c.h.b16 %v3613
    %v3667 = vunpack.c.l.b16 %v3614
    %v3668 = vunpack.c.h.b16 %v3614
    %v3669 = vunpack.c.l.b16 %v3615
    %v3670 = vunpack.c.h.b16 %v3615
    %v3671 = vunpack.c.l.b16 %v3616
    %v3672 = vunpack.c.h.b16 %v3616
    %v3673 = vunpack.c.l.b16 %v3617
    %v3674 = vunpack.c.h.b16 %v3617
    %v3675 = vunpack.c.l.b16 %v3618
    %v3676 = vunpack.c.h.b16 %v3618
    %v3677 = vunpack.c.l.b16 %v3619
    %v3678 = vunpack.c.h.b16 %v3619
    %v3679 = vunpack.c.l.b16 %v3620
    %v3680 = vunpack.c.h.b16 %v3620
    %v3681 = vunpack.c.l.b16 %v3621
    %v3682 = vunpack.c.h.b16 %v3621
    %v3683 = vunpack.c.l.b16 %v3622
    %v3684 = vunpack.c.h.b16 %v3622
    %v3685 = vunpack.c.l.b16 %v3623
    %v3686 = vunpack.c.h.b16 %v3623
    %v3687 = vunpack.c.l.b16 %v3624
    %v3688 = vunpack.c.h.b16 %v3624
    %v3689 = vunpack.c.l.b16 %v3625
    %v3690 = vunpack.c.h.b16 %v3625
    %v3691 = vunpack.c.l.b16 %v3626
    %v3692 = vunpack.c.h.b16 %v3626
    %v3693 = vunpack.c.l.b16 %v3627
    %v3694 = vunpack.c.h.b16 %v3627
    %v3695 = vunpack.c.l.b16 %v3628
    %v3696 = vunpack.c.h.b16 %v3628
    %v3697 = vunpack.c.l.b16 %v3629
    %v3698 = vunpack.c.h.b16 %v3629
    %v3699 = vunpack.c.l.b16 %v3630
    %v3700 = vunpack.c.h.b16 %v3630
    %v3701 = vunpack.c.l.b16 %v3631
    %v3702 = vunpack.c.h.b16 %v3631
    %v3703 = vunpack.c.l.b16 %v3632
    %v3704 = vunpack.c.h.b16 %v3632
    %v3705 = vunpack.c.l.b16 %v3633
    %v3706 = vunpack.c.h.b16 %v3633
    %v3707 = vunpack.c.l.b16 %v3634
    %v3708 = vunpack.c.h.b16 %v3634
    %v3709 = vunpack.c.l.b16 %v3635
    %v3710 = vunpack.c.h.b16 %v3635
    %v3711 = vpack.c.b16 %v3665, %v3663
    %v3712 = vpack.c.b16 %v3666, %v3664
    %v3713 = vpack.c.b16 %v3669, %v3667
    %v3714 = vpack.c.b16 %v3670, %v3668
    %v3715 = vpack.c.b16 %v3673, %v3671
    %v3716 = vpack.c.b16 %v3674, %v3672
    %v3717 = vpack.c.b16 %v3677, %v3675
    %v3718 = vpack.c.b16 %v3678, %v3676
    %v3719 = vpack.c.b16 %v3681, %v3679
    %v3720 = vpack.c.b16 %v3682, %v3680
    %v3721 = vpack.c.b16 %v3685, %v3683
    %v3722 = vpack.c.b16 %v3686, %v3684
    %v3723 = vpack.c.b16 %v3689, %v3687
    %v3724 = vpack.c.b16 %v3690, %v3688
    %v3725 = vpack.c.b16 %v3693, %v3691
    %v3726 = vpack.c.b16 %v3694, %v3692
    %v3727 = vpack.c.b16 %v3697, %v3695
    %v3728 = vpack.c.b16 %v3698, %v3696
    %v3729 = vpack.c.b16 %v3701, %v3699
    %v3730 = vpack.c.b16 %v3702, %v3700
    %v3731 = vpack.c.b16 %v3705, %v3703
    %v3732 = vpack.c.b16 %v3706, %v3704
    %v3733 = vpack.c.b16 %v3709, %v3707
    %v3734 = vpack.c.b16 %v3710, %v3708
    %v3760 = vsel %vm721, %v3637, 0
    %3762 = vmatpush.bf16.msra.mxu0 %v3725
    %3763 = vmatpush.bf16.msra.mxu0 %v3723
    %3764 = vmatpush.bf16.msra.mxu0 %v3721
    %3765 = vmatpush.bf16.msra.mxu0 %v3719
    %3766 = vmatpush.bf16.msra.mxu0 %v3717
    %3767 = vmatpush.bf16.msra.mxu0 %v3715
    %3768 = vmatpush.bf16.msra.mxu0 %v3713
    %3769 = vmatpush.bf16.msra.mxu0 %v3711
    %3770 = vmatmul.bf16.gmra.mxu0 %v3636
    %v3771 = vpop.f32.mrf.mxu0
    %v3772 = vadd.f32 0.0, %v3771
    %v3773 = vpop.f32.mrf.mxu0
    %3774 = vdwg.mxu0
    %3775 = vmatpush.bf16.msra.mxu0 0
    %3776 = vmatpush.bf16.msra.mxu0 0
    %3777 = vmatpush.bf16.msra.mxu0 0
    %3778 = vmatpush.bf16.msra.mxu0 0
    %3779 = vmatpush.bf16.msra.mxu0 %v3733
    %3780 = vmatpush.bf16.msra.mxu0 %v3731
    %3781 = vmatpush.bf16.msra.mxu0 %v3729
    %3782 = vmatpush.bf16.msra.mxu0 %v3727
    %3783 = vmatmul.bf16.gmra.mxu0 %v3760
    %v3784 = vpop.f32.mrf.mxu0
    %v3785 = vadd.f32 %v3772, %v3784
    %v3786 = vpop.f32.mrf.mxu0
    %3787 = vdwg.mxu0
    %3788 = vmatpush.bf16.msra.mxu0 %v3726
    %3789 = vmatpush.bf16.msra.mxu0 %v3724
    %3790 = vmatpush.bf16.msra.mxu0 %v3722
    %3791 = vmatpush.bf16.msra.mxu0 %v3720
    %3792 = vmatpush.bf16.msra.mxu0 %v3718
    %3793 = vmatpush.bf16.msra.mxu0 %v3716
    %3794 = vmatpush.bf16.msra.mxu0 %v3714
    %3795 = vmatpush.bf16.msra.mxu0 %v3712
    %3796 = vmatmul.bf16.gmra.mxu0 %v3636
    %v3797 = vpop.f32.mrf.mxu0
    %v3798 = vadd.f32 0.0, %v3797
    %v3799 = vpop.f32.mrf.mxu0
    %3800 = vdwg.mxu0
    %3801 = vmatpush.bf16.msra.mxu0 0
    %3802 = vmatpush.bf16.msra.mxu0 0
    %3803 = vmatpush.bf16.msra.mxu0 0
    %3804 = vmatpush.bf16.msra.mxu0 0
    %3805 = vmatpush.bf16.msra.mxu0 %v3734
    %3806 = vmatpush.bf16.msra.mxu0 %v3732
    %3807 = vmatpush.bf16.msra.mxu0 %v3730
    %3808 = vmatpush.bf16.msra.mxu0 %v3728
    %3809 = vmatmul.bf16.gmra.mxu0 %v3760
    %v3810 = vpop.f32.mrf.mxu0
    %v3811 = vadd.f32 %v3798, %v3810
    %v3812 = vpop.f32.mrf.mxu0
    %3813 = vdwg.mxu0
    %v3814 = vadd.f32 %v3609, %v3785
    %v3815 = vadd.f32 %v3610, %v3811
    %s3816 = scalar_lea.vmem %s7, 2880
    %v3817 = vld [vmem:[%s3816] sm:$0xff]
    %v3818 = vld [vmem:[%s3816 + $0x8] sm:$0xff]
    %v3819 = vld [vmem:[%s3816 + $0x10] sm:$0xff]
    %v3820 = vld [vmem:[%s3816 + $0x18] sm:$0xff]
    %v3821 = vld [vmem:[%s3816 + $0x20] sm:$0xff]
    %v3822 = vld [vmem:[%s3816 + $0x28] sm:$0xff]
    %v3823 = vld [vmem:[%s3816 + $0x30] sm:$0xff]
    %v3824 = vld [vmem:[%s3816 + $0x38] sm:$0xff]
    %v3825 = vld [vmem:[%s3816 + $0x40] sm:$0xff]
    %v3826 = vld [vmem:[%s3816 + $0x48] sm:$0xff]
    %v3827 = vld [vmem:[%s3816 + $0x50] sm:$0xff]
    %v3828 = vld [vmem:[%s3816 + $0x58] sm:$0xff]
    %v3829 = vld [vmem:[%s3816 + $0x60] sm:$0xff]
    %v3830 = vld [vmem:[%s3816 + $0x68] sm:$0xff]
    %v3831 = vld [vmem:[%s3816 + $0x70] sm:$0xff]
    %v3832 = vld [vmem:[%s3816 + $0x78] sm:$0xff]
    %v3833 = vld [vmem:[%s3816 + $0x80] sm:$0xff]
    %v3834 = vld [vmem:[%s3816 + $0x88] sm:$0xff]
    %v3835 = vld [vmem:[%s3816 + $0x90] sm:$0xff]
    %v3836 = vld [vmem:[%s3816 + $0x98] sm:$0xff]
    %v3837 = vld [vmem:[%s3816 + $0xa0] sm:$0xff]
    %v3838 = vld [vmem:[%s3816 + $0xa8] sm:$0xff]
    %v3839 = vld [vmem:[%s3816 + $0xb0] sm:$0xff]
    %v3840 = vld [vmem:[%s3816 + $0xb8] sm:$0xff]
    %v3841 = vrot.slane %v2609, 3
    %v3842 = vrot.slane %v2611, 3
    %v3868 = vunpack.c.l.b16 %v3817
    %v3869 = vunpack.c.h.b16 %v3817
    %v3870 = vunpack.c.l.b16 %v3818
    %v3871 = vunpack.c.h.b16 %v3818
    %v3872 = vunpack.c.l.b16 %v3819
    %v3873 = vunpack.c.h.b16 %v3819
    %v3874 = vunpack.c.l.b16 %v3820
    %v3875 = vunpack.c.h.b16 %v3820
    %v3876 = vunpack.c.l.b16 %v3821
    %v3877 = vunpack.c.h.b16 %v3821
    %v3878 = vunpack.c.l.b16 %v3822
    %v3879 = vunpack.c.h.b16 %v3822
    %v3880 = vunpack.c.l.b16 %v3823
    %v3881 = vunpack.c.h.b16 %v3823
    %v3882 = vunpack.c.l.b16 %v3824
    %v3883 = vunpack.c.h.b16 %v3824
    %v3884 = vunpack.c.l.b16 %v3825
    %v3885 = vunpack.c.h.b16 %v3825
    %v3886 = vunpack.c.l.b16 %v3826
    %v3887 = vunpack.c.h.b16 %v3826
    %v3888 = vunpack.c.l.b16 %v3827
    %v3889 = vunpack.c.h.b16 %v3827
    %v3890 = vunpack.c.l.b16 %v3828
    %v3891 = vunpack.c.h.b16 %v3828
    %v3892 = vunpack.c.l.b16 %v3829
    %v3893 = vunpack.c.h.b16 %v3829
    %v3894 = vunpack.c.l.b16 %v3830
    %v3895 = vunpack.c.h.b16 %v3830
    %v3896 = vunpack.c.l.b16 %v3831
    %v3897 = vunpack.c.h.b16 %v3831
    %v3898 = vunpack.c.l.b16 %v3832
    %v3899 = vunpack.c.h.b16 %v3832
    %v3900 = vunpack.c.l.b16 %v3833
    %v3901 = vunpack.c.h.b16 %v3833
    %v3902 = vunpack.c.l.b16 %v3834
    %v3903 = vunpack.c.h.b16 %v3834
    %v3904 = vunpack.c.l.b16 %v3835
    %v3905 = vunpack.c.h.b16 %v3835
    %v3906 = vunpack.c.l.b16 %v3836
    %v3907 = vunpack.c.h.b16 %v3836
    %v3908 = vunpack.c.l.b16 %v3837
    %v3909 = vunpack.c.h.b16 %v3837
    %v3910 = vunpack.c.l.b16 %v3838
    %v3911 = vunpack.c.h.b16 %v3838
    %v3912 = vunpack.c.l.b16 %v3839
    %v3913 = vunpack.c.h.b16 %v3839
    %v3914 = vunpack.c.l.b16 %v3840
    %v3915 = vunpack.c.h.b16 %v3840
    %v3916 = vpack.c.b16 %v3870, %v3868
    %v3917 = vpack.c.b16 %v3871, %v3869
    %v3918 = vpack.c.b16 %v3874, %v3872
    %v3919 = vpack.c.b16 %v3875, %v3873
    %v3920 = vpack.c.b16 %v3878, %v3876
    %v3921 = vpack.c.b16 %v3879, %v3877
    %v3922 = vpack.c.b16 %v3882, %v3880
    %v3923 = vpack.c.b16 %v3883, %v3881
    %v3924 = vpack.c.b16 %v3886, %v3884
    %v3925 = vpack.c.b16 %v3887, %v3885
    %v3926 = vpack.c.b16 %v3890, %v3888
    %v3927 = vpack.c.b16 %v3891, %v3889
    %v3928 = vpack.c.b16 %v3894, %v3892
    %v3929 = vpack.c.b16 %v3895, %v3893
    %v3930 = vpack.c.b16 %v3898, %v3896
    %v3931 = vpack.c.b16 %v3899, %v3897
    %v3932 = vpack.c.b16 %v3902, %v3900
    %v3933 = vpack.c.b16 %v3903, %v3901
    %v3934 = vpack.c.b16 %v3906, %v3904
    %v3935 = vpack.c.b16 %v3907, %v3905
    %v3936 = vpack.c.b16 %v3910, %v3908
    %v3937 = vpack.c.b16 %v3911, %v3909
    %v3938 = vpack.c.b16 %v3914, %v3912
    %v3939 = vpack.c.b16 %v3915, %v3913
    %v3965 = vsel %vm721, %v3842, 0
    %3967 = vmatpush.bf16.msra.mxu0 %v3930
    %3968 = vmatpush.bf16.msra.mxu0 %v3928
    %3969 = vmatpush.bf16.msra.mxu0 %v3926
    %3970 = vmatpush.bf16.msra.mxu0 %v3924
    %3971 = vmatpush.bf16.msra.mxu0 %v3922
    %3972 = vmatpush.bf16.msra.mxu0 %v3920
    %3973 = vmatpush.bf16.msra.mxu0 %v3918
    %3974 = vmatpush.bf16.msra.mxu0 %v3916
    %3975 = vmatmul.bf16.gmra.mxu0 %v3841
    %v3976 = vpop.f32.mrf.mxu0
    %v3977 = vadd.f32 0.0, %v3976
    %v3978 = vpop.f32.mrf.mxu0
    %3979 = vdwg.mxu0
    %3980 = vmatpush.bf16.msra.mxu0 0
    %3981 = vmatpush.bf16.msra.mxu0 0
    %3982 = vmatpush.bf16.msra.mxu0 0
    %3983 = vmatpush.bf16.msra.mxu0 0
    %3984 = vmatpush.bf16.msra.mxu0 %v3938
    %3985 = vmatpush.bf16.msra.mxu0 %v3936
    %3986 = vmatpush.bf16.msra.mxu0 %v3934
    %3987 = vmatpush.bf16.msra.mxu0 %v3932
    %3988 = vmatmul.bf16.gmra.mxu0 %v3965
    %v3989 = vpop.f32.mrf.mxu0
    %v3990 = vadd.f32 %v3977, %v3989
    %v3991 = vpop.f32.mrf.mxu0
    %3992 = vdwg.mxu0
    %3993 = vmatpush.bf16.msra.mxu0 %v3931
    %3994 = vmatpush.bf16.msra.mxu0 %v3929
    %3995 = vmatpush.bf16.msra.mxu0 %v3927
    %3996 = vmatpush.bf16.msra.mxu0 %v3925
    %3997 = vmatpush.bf16.msra.mxu0 %v3923
    %3998 = vmatpush.bf16.msra.mxu0 %v3921
    %3999 = vmatpush.bf16.msra.mxu0 %v3919
    %4000 = vmatpush.bf16.msra.mxu0 %v3917
    %4001 = vmatmul.bf16.gmra.mxu0 %v3841
    %v4002 = vpop.f32.mrf.mxu0
    %v4003 = vadd.f32 0.0, %v4002
    %v4004 = vpop.f32.mrf.mxu0
    %4005 = vdwg.mxu0
    %4006 = vmatpush.bf16.msra.mxu0 0
    %4007 = vmatpush.bf16.msra.mxu0 0
    %4008 = vmatpush.bf16.msra.mxu0 0
    %4009 = vmatpush.bf16.msra.mxu0 0
    %4010 = vmatpush.bf16.msra.mxu0 %v3939
    %4011 = vmatpush.bf16.msra.mxu0 %v3937
    %4012 = vmatpush.bf16.msra.mxu0 %v3935
    %4013 = vmatpush.bf16.msra.mxu0 %v3933
    %4014 = vmatmul.bf16.gmra.mxu0 %v3965
    %v4015 = vpop.f32.mrf.mxu0
    %v4016 = vadd.f32 %v4003, %v4015
    %v4017 = vpop.f32.mrf.mxu0
    %4018 = vdwg.mxu0
    %v4019 = vadd.f32 %v3814, %v3990
    %v4020 = vadd.f32 %v3815, %v4016
    %v4023 = vrot.slane %v4020, 7
    %vm4024 = vcmask 1040384
    %v4025 = vsel %vm4024, %v4019, %v4023
    %v4027 = vlaneseq
    %vm4028 = vcmp.ge.s32.totalorder %v4027, 0
    %vm4029 = vcmp.lt.s32.totalorder %v4027, 256
    %vm4030 = vmand %vm4028, %vm4029
    %4031 = vst.msk [vmem:[#allocation2] ss:$2 sm:$0x3] %vm4030, %v4025
    %v4032 = vld [vmem:[%s1] sm:$0xff]
    %v4033 = vld [vmem:[%s1 + $0x8] sm:$0xff]
    %s4034 = scalar_lea.vmem %s0, 400
    %v4035 = vld [vmem:[%s4034] sm:$0xff]
    %v4036 = vld [vmem:[%s4034 + $0x8] sm:$0xff]
    %v4037 = vld [vmem:[%s4034 + $0x10] sm:$0xff]
    %v4038 = vld [vmem:[%s4034 + $0x18] sm:$0xff]
    %v4039 = vld [vmem:[%s4034 + $0x20] sm:$0xff]
    %v4040 = vld [vmem:[%s4034 + $0x28] sm:$0xff]
    %v4041 = vld [vmem:[%s4034 + $0x30] sm:$0xff]
    %v4042 = vld [vmem:[%s4034 + $0x38] sm:$0xff]
    %v4043 = vld [vmem:[%s4034 + $0x40] sm:$0xff]
    %v4044 = vld [vmem:[%s4034 + $0x48] sm:$0xff]
    %v4045 = vld [vmem:[%s4034 + $0x50] sm:$0xff]
    %v4046 = vld [vmem:[%s4034 + $0x58] sm:$0xff]
    %v4047 = vld [vmem:[%s4034 + $0x60] sm:$0xff]
    %v4048 = vld [vmem:[%s4034 + $0x68] sm:$0xff]
    %v4049 = vld [vmem:[%s4034 + $0x70] sm:$0xff]
    %v4050 = vld [vmem:[%s4034 + $0x78] sm:$0xff]
    %v4051 = vld [vmem:[%s4034 + $0x80] sm:$0xff]
    %v4052 = vld [vmem:[%s4034 + $0x88] sm:$0xff]
    %v4053 = vld [vmem:[%s4034 + $0x90] sm:$0xff]
    %v4054 = vld [vmem:[%s4034 + $0x98] sm:$0xff]
    %v4055 = vld [vmem:[%s4034 + $0xa0] sm:$0xff]
    %v4056 = vld [vmem:[%s4034 + $0xa8] sm:$0xff]
    %v4057 = vld [vmem:[%s4034 + $0xb0] sm:$0xff]
    %v4058 = vld [vmem:[%s4034 + $0xb8] sm:$0xff]
    %v4059 = vld [vmem:[%s4034 + $0xc0] sm:$0xff]
    %v4060 = vld [vmem:[%s4034 + $0xc8] sm:$0xff]
    %v4061 = vld [vmem:[%s4034 + $0xd0] sm:$0xff]
    %v4062 = vld [vmem:[%s4034 + $0xd8] sm:$0xff]
    %v4063 = vld [vmem:[%s4034 + $0xe0] sm:$0xff]
    %v4064 = vld [vmem:[%s4034 + $0xe8] sm:$0xff]
    %v4065 = vld [vmem:[%s4034 + $0xf0] sm:$0xff]
    %v4066 = vld [vmem:[%s4034 + $0xf8] sm:$0xff]
    %v4067 = vld [vmem:[%s4034 + $0x100] sm:$0xff]
    %v4068 = vld [vmem:[%s4034 + $0x108] sm:$0xff]
    %v4069 = vld [vmem:[%s4034 + $0x110] sm:$0xff]
    %v4070 = vld [vmem:[%s4034 + $0x118] sm:$0xff]
    %v4071 = vld [vmem:[%s4034 + $0x120] sm:$0xff]
    %v4072 = vld [vmem:[%s4034 + $0x128] sm:$0xff]
    %v4073 = vld [vmem:[%s4034 + $0x130] sm:$0xff]
    %v4074 = vld [vmem:[%s4034 + $0x138] sm:$0xff]
    %v4075 = vld [vmem:[%s4034 + $0x140] sm:$0xff]
    %v4076 = vld [vmem:[%s4034 + $0x148] sm:$0xff]
    %v4077 = vld [vmem:[%s4034 + $0x150] sm:$0xff]
    %v4078 = vld [vmem:[%s4034 + $0x158] sm:$0xff]
    %v4079 = vld [vmem:[%s4034 + $0x160] sm:$0xff]
    %v4080 = vld [vmem:[%s4034 + $0x168] sm:$0xff]
    %v4081 = vld [vmem:[%s4034 + $0x170] sm:$0xff]
    %v4082 = vld [vmem:[%s4034 + $0x178] sm:$0xff]
    %v4083 = vld [vmem:[%s4034 + $0x180] sm:$0xff]
    %v4084 = vld [vmem:[%s4034 + $0x188] sm:$0xff]
    %v4085 = vld [vmem:[%s2] sm:$0xff]
    %v4086 = vld [vmem:[%s2 + $0x8] sm:$0xff]
    %4088 = vset.pattern.permute.xlu0 0
    %4089 = vperm.xlu0 %4088, %v4085
    %v4090 = vpop.permute.xlu0 %4089
    %4093 = vset.pattern.permute.xlu0 0
    %4094 = vperm.xlu0 %4093, %v4086
    %v4095 = vpop.permute.xlu0 %4094
    %v4099 = vunpack.c.l.b16 %v4032
    %v4100 = vunpack.c.h.b16 %v4032
    %v4101 = vunpack.c.l.b16 %v4033
    %v4102 = vunpack.c.h.b16 %v4033
    %v4103 = vpack.c.b16 %v4101, %v4099
    %v4104 = vpack.c.b16 %v4102, %v4100
    %v4156 = vunpack.c.l.b16 %v4035
    %v4157 = vunpack.c.h.b16 %v4035
    %v4158 = vunpack.c.l.b16 %v4036
    %v4159 = vunpack.c.h.b16 %v4036
    %v4160 = vunpack.c.l.b16 %v4037
    %v4161 = vunpack.c.h.b16 %v4037
    %v4162 = vunpack.c.l.b16 %v4038
    %v4163 = vunpack.c.h.b16 %v4038
    %v4164 = vunpack.c.l.b16 %v4039
    %v4165 = vunpack.c.h.b16 %v4039
    %v4166 = vunpack.c.l.b16 %v4040
    %v4167 = vunpack.c.h.b16 %v4040
    %v4168 = vunpack.c.l.b16 %v4041
    %v4169 = vunpack.c.h.b16 %v4041
    %v4170 = vunpack.c.l.b16 %v4042
    %v4171 = vunpack.c.h.b16 %v4042
    %v4172 = vunpack.c.l.b16 %v4043
    %v4173 = vunpack.c.h.b16 %v4043
    %v4174 = vunpack.c.l.b16 %v4044
    %v4175 = vunpack.c.h.b16 %v4044
    %v4176 = vunpack.c.l.b16 %v4045
    %v4177 = vunpack.c.h.b16 %v4045
    %v4178 = vunpack.c.l.b16 %v4046
    %v4179 = vunpack.c.h.b16 %v4046
    %v4180 = vunpack.c.l.b16 %v4047
    %v4181 = vunpack.c.h.b16 %v4047
    %v4182 = vunpack.c.l.b16 %v4048
    %v4183 = vunpack.c.h.b16 %v4048
    %v4184 = vunpack.c.l.b16 %v4049
    %v4185 = vunpack.c.h.b16 %v4049
    %v4186 = vunpack.c.l.b16 %v4050
    %v4187 = vunpack.c.h.b16 %v4050
    %v4188 = vunpack.c.l.b16 %v4051
    %v4189 = vunpack.c.h.b16 %v4051
    %v4190 = vunpack.c.l.b16 %v4052
    %v4191 = vunpack.c.h.b16 %v4052
    %v4192 = vunpack.c.l.b16 %v4053
    %v4193 = vunpack.c.h.b16 %v4053
    %v4194 = vunpack.c.l.b16 %v4054
    %v4195 = vunpack.c.h.b16 %v4054
    %v4196 = vunpack.c.l.b16 %v4055
    %v4197 = vunpack.c.h.b16 %v4055
    %v4198 = vunpack.c.l.b16 %v4056
    %v4199 = vunpack.c.h.b16 %v4056
    %v4200 = vunpack.c.l.b16 %v4057
    %v4201 = vunpack.c.h.b16 %v4057
    %v4202 = vunpack.c.l.b16 %v4058
    %v4203 = vunpack.c.h.b16 %v4058
    %v4204 = vunpack.c.l.b16 %v4059
    %v4205 = vunpack.c.h.b16 %v4059
    %v4206 = vunpack.c.l.b16 %v4060
    %v4207 = vunpack.c.h.b16 %v4060
    %v4208 = vunpack.c.l.b16 %v4061
    %v4209 = vunpack.c.h.b16 %v4061
    %v4210 = vunpack.c.l.b16 %v4062
    %v4211 = vunpack.c.h.b16 %v4062
    %v4212 = vunpack.c.l.b16 %v4063
    %v4213 = vunpack.c.h.b16 %v4063
    %v4214 = vunpack.c.l.b16 %v4064
    %v4215 = vunpack.c.h.b16 %v4064
    %v4216 = vunpack.c.l.b16 %v4065
    %v4217 = vunpack.c.h.b16 %v4065
    %v4218 = vunpack.c.l.b16 %v4066
    %v4219 = vunpack.c.h.b16 %v4066
    %v4220 = vunpack.c.l.b16 %v4067
    %v4221 = vunpack.c.h.b16 %v4067
    %v4222 = vunpack.c.l.b16 %v4068
    %v4223 = vunpack.c.h.b16 %v4068
    %v4224 = vunpack.c.l.b16 %v4069
    %v4225 = vunpack.c.h.b16 %v4069
    %v4226 = vunpack.c.l.b16 %v4070
    %v4227 = vunpack.c.h.b16 %v4070
    %v4228 = vunpack.c.l.b16 %v4071
    %v4229 = vunpack.c.h.b16 %v4071
    %v4230 = vunpack.c.l.b16 %v4072
    %v4231 = vunpack.c.h.b16 %v4072
    %v4232 = vunpack.c.l.b16 %v4073
    %v4233 = vunpack.c.h.b16 %v4073
    %v4234 = vunpack.c.l.b16 %v4074
    %v4235 = vunpack.c.h.b16 %v4074
    %v4236 = vunpack.c.l.b16 %v4075
    %v4237 = vunpack.c.h.b16 %v4075
    %v4238 = vunpack.c.l.b16 %v4076
    %v4239 = vunpack.c.h.b16 %v4076
    %v4240 = vunpack.c.l.b16 %v4077
    %v4241 = vunpack.c.h.b16 %v4077
    %v4242 = vunpack.c.l.b16 %v4078
    %v4243 = vunpack.c.h.b16 %v4078
    %v4244 = vunpack.c.l.b16 %v4079
    %v4245 = vunpack.c.h.b16 %v4079
    %v4246 = vunpack.c.l.b16 %v4080
    %v4247 = vunpack.c.h.b16 %v4080
    %v4248 = vunpack.c.l.b16 %v4081
    %v4249 = vunpack.c.h.b16 %v4081
    %v4250 = vunpack.c.l.b16 %v4082
    %v4251 = vunpack.c.h.b16 %v4082
    %v4252 = vunpack.c.l.b16 %v4083
    %v4253 = vunpack.c.h.b16 %v4083
    %v4254 = vunpack.c.l.b16 %v4084
    %v4255 = vunpack.c.h.b16 %v4084
    %v4256 = vpack.c.b16 %v4160, %v4156
    %v4257 = vpack.c.b16 %v4161, %v4157
    %v4258 = vpack.c.b16 %v4162, %v4158
    %v4259 = vpack.c.b16 %v4163, %v4159
    %v4260 = vpack.c.b16 %v4168, %v4164
    %v4261 = vpack.c.b16 %v4169, %v4165
    %v4262 = vpack.c.b16 %v4170, %v4166
    %v4263 = vpack.c.b16 %v4171, %v4167
    %v4264 = vpack.c.b16 %v4176, %v4172
    %v4265 = vpack.c.b16 %v4177, %v4173
    %v4266 = vpack.c.b16 %v4178, %v4174
    %v4267 = vpack.c.b16 %v4179, %v4175
    %v4268 = vpack.c.b16 %v4184, %v4180
    %v4269 = vpack.c.b16 %v4185, %v4181
    %v4270 = vpack.c.b16 %v4186, %v4182
    %v4271 = vpack.c.b16 %v4187, %v4183
    %v4272 = vpack.c.b16 %v4192, %v4188
    %v4273 = vpack.c.b16 %v4193, %v4189
    %v4274 = vpack.c.b16 %v4194, %v4190
    %v4275 = vpack.c.b16 %v4195, %v4191
    %v4276 = vpack.c.b16 %v4200, %v4196
    %v4277 = vpack.c.b16 %v4201, %v4197
    %v4278 = vpack.c.b16 %v4202, %v4198
    %v4279 = vpack.c.b16 %v4203, %v4199
    %v4280 = vpack.c.b16 %v4208, %v4204
    %v4281 = vpack.c.b16 %v4209, %v4205
    %v4282 = vpack.c.b16 %v4210, %v4206
    %v4283 = vpack.c.b16 %v4211, %v4207
    %v4284 = vpack.c.b16 %v4216, %v4212
    %v4285 = vpack.c.b16 %v4217, %v4213
    %v4286 = vpack.c.b16 %v4218, %v4214
    %v4287 = vpack.c.b16 %v4219, %v4215
    %v4288 = vpack.c.b16 %v4224, %v4220
    %v4289 = vpack.c.b16 %v4225, %v4221
    %v4290 = vpack.c.b16 %v4226, %v4222
    %v4291 = vpack.c.b16 %v4227, %v4223
    %v4292 = vpack.c.b16 %v4232, %v4228
    %v4293 = vpack.c.b16 %v4233, %v4229
    %v4294 = vpack.c.b16 %v4234, %v4230
    %v4295 = vpack.c.b16 %v4235, %v4231
    %v4296 = vpack.c.b16 %v4240, %v4236
    %v4297 = vpack.c.b16 %v4241, %v4237
    %v4298 = vpack.c.b16 %v4242, %v4238
    %v4299 = vpack.c.b16 %v4243, %v4239
    %v4300 = vpack.c.b16 %v4248, %v4244
    %v4301 = vpack.c.b16 %v4249, %v4245
    %v4302 = vpack.c.b16 %v4250, %v4246
    %v4303 = vpack.c.b16 %v4251, %v4247
    %v4304 = vpack.c.b16 %v4252, %v4252
    %v4305 = vpack.c.b16 %v4253, %v4253
    %v4306 = vpack.c.b16 %v4254, %v4254
    %v4307 = vpack.c.b16 %v4255, %v4255
    %v4357 = vsel %vm363, %v4104, 0
    %v4360 = vsel %vm367, %v4304, 0
    %v4363 = vsel %vm367, %v4305, 0
    %v4366 = vsel %vm367, %v4306, 0
    %v4369 = vsel %vm367, %v4307, 0
    %4371 = vmatpush.bf16.msra.mxu0 %v4284
    %4372 = vmatpush.bf16.msra.mxu0 %v4280
    %4373 = vmatpush.bf16.msra.mxu0 %v4276
    %4374 = vmatpush.bf16.msra.mxu0 %v4272
    %4375 = vmatpush.bf16.msra.mxu0 %v4268
    %4376 = vmatpush.bf16.msra.mxu0 %v4264
    %4377 = vmatpush.bf16.msra.mxu0 %v4260
    %4378 = vmatpush.bf16.msra.mxu0 %v4256
    %4379 = vmatmul.bf16.gmra.mxu0 %v4103
    %v4380 = vpop.f32.mrf.mxu0
    %v4381 = vadd.f32 %v4090, %v4380
    %v4382 = vpop.f32.mrf.mxu0
    %v4383 = vadd.f32 %v4095, %v4382
    %4384 = vdwg.mxu0
    %4385 = vmatpush.bf16.msra.mxu0 0
    %4386 = vmatpush.bf16.msra.mxu0 0
    %4387 = vmatpush.bf16.msra.mxu0 0
    %4388 = vmatpush.bf16.msra.mxu0 %v4360
    %4389 = vmatpush.bf16.msra.mxu0 %v4300
    %4390 = vmatpush.bf16.msra.mxu0 %v4296
    %4391 = vmatpush.bf16.msra.mxu0 %v4292
    %4392 = vmatpush.bf16.msra.mxu0 %v4288
    %4393 = vmatmul.bf16.gmra.mxu0 %v4357
    %v4394 = vpop.f32.mrf.mxu0
    %v4395 = vadd.f32 %v4381, %v4394
    %v4396 = vpop.f32.mrf.mxu0
    %v4397 = vadd.f32 %v4383, %v4396
    %4398 = vdwg.mxu0
    %4399 = vmatpush.bf16.msra.mxu0 %v4285
    %4400 = vmatpush.bf16.msra.mxu0 %v4281
    %4401 = vmatpush.bf16.msra.mxu0 %v4277
    %4402 = vmatpush.bf16.msra.mxu0 %v4273
    %4403 = vmatpush.bf16.msra.mxu0 %v4269
    %4404 = vmatpush.bf16.msra.mxu0 %v4265
    %4405 = vmatpush.bf16.msra.mxu0 %v4261
    %4406 = vmatpush.bf16.msra.mxu0 %v4257
    %4407 = vmatmul.bf16.gmra.mxu0 %v4103
    %v4408 = vpop.f32.mrf.mxu0
    %v4409 = vadd.f32 %v4090, %v4408
    %v4410 = vpop.f32.mrf.mxu0
    %v4411 = vadd.f32 %v4095, %v4410
    %4412 = vdwg.mxu0
    %4413 = vmatpush.bf16.msra.mxu0 0
    %4414 = vmatpush.bf16.msra.mxu0 0
    %4415 = vmatpush.bf16.msra.mxu0 0
    %4416 = vmatpush.bf16.msra.mxu0 %v4363
    %4417 = vmatpush.bf16.msra.mxu0 %v4301
    %4418 = vmatpush.bf16.msra.mxu0 %v4297
    %4419 = vmatpush.bf16.msra.mxu0 %v4293
    %4420 = vmatpush.bf16.msra.mxu0 %v4289
    %4421 = vmatmul.bf16.gmra.mxu0 %v4357
    %v4422 = vpop.f32.mrf.mxu0
    %v4423 = vadd.f32 %v4409, %v4422
    %v4424 = vpop.f32.mrf.mxu0
    %v4425 = vadd.f32 %v4411, %v4424
    %4426 = vdwg.mxu0
    %4427 = vmatpush.bf16.msra.mxu0 %v4286
    %4428 = vmatpush.bf16.msra.mxu0 %v4282
    %4429 = vmatpush.bf16.msra.mxu0 %v4278
    %4430 = vmatpush.bf16.msra.mxu0 %v4274
    %4431 = vmatpush.bf16.msra.mxu0 %v4270
    %4432 = vmatpush.bf16.msra.mxu0 %v4266
    %4433 = vmatpush.bf16.msra.mxu0 %v4262
    %4434 = vmatpush.bf16.msra.mxu0 %v4258
    %4435 = vmatmul.bf16.gmra.mxu0 %v4103
    %v4436 = vpop.f32.mrf.mxu0
    %v4437 = vadd.f32 %v4090, %v4436
    %v4438 = vpop.f32.mrf.mxu0
    %v4439 = vadd.f32 %v4095, %v4438
    %4440 = vdwg.mxu0
    %4441 = vmatpush.bf16.msra.mxu0 0
    %4442 = vmatpush.bf16.msra.mxu0 0
    %4443 = vmatpush.bf16.msra.mxu0 0
    %4444 = vmatpush.bf16.msra.mxu0 %v4366
    %4445 = vmatpush.bf16.msra.mxu0 %v4302
    %4446 = vmatpush.bf16.msra.mxu0 %v4298
    %4447 = vmatpush.bf16.msra.mxu0 %v4294
    %4448 = vmatpush.bf16.msra.mxu0 %v4290
    %4449 = vmatmul.bf16.gmra.mxu0 %v4357
    %v4450 = vpop.f32.mrf.mxu0
    %v4451 = vadd.f32 %v4437, %v4450
    %v4452 = vpop.f32.mrf.mxu0
    %v4453 = vadd.f32 %v4439, %v4452
    %4454 = vdwg.mxu0
    %4455 = vmatpush.bf16.msra.mxu0 %v4287
    %4456 = vmatpush.bf16.msra.mxu0 %v4283
    %4457 = vmatpush.bf16.msra.mxu0 %v4279
    %4458 = vmatpush.bf16.msra.mxu0 %v4275
    %4459 = vmatpush.bf16.msra.mxu0 %v4271
    %4460 = vmatpush.bf16.msra.mxu0 %v4267
    %4461 = vmatpush.bf16.msra.mxu0 %v4263
    %4462 = vmatpush.bf16.msra.mxu0 %v4259
    %4463 = vmatmul.bf16.gmra.mxu0 %v4103
    %v4464 = vpop.f32.mrf.mxu0
    %v4465 = vadd.f32 %v4090, %v4464
    %v4466 = vpop.f32.mrf.mxu0
    %v4467 = vadd.f32 %v4095, %v4466
    %4468 = vdwg.mxu0
    %4469 = vmatpush.bf16.msra.mxu0 0
    %4470 = vmatpush.bf16.msra.mxu0 0
    %4471 = vmatpush.bf16.msra.mxu0 0
    %4472 = vmatpush.bf16.msra.mxu0 %v4369
    %4473 = vmatpush.bf16.msra.mxu0 %v4303
    %4474 = vmatpush.bf16.msra.mxu0 %v4299
    %4475 = vmatpush.bf16.msra.mxu0 %v4295
    %4476 = vmatpush.bf16.msra.mxu0 %v4291
    %4477 = vmatmul.bf16.gmra.mxu0 %v4357
    %v4478 = vpop.f32.mrf.mxu0
    %v4479 = vadd.f32 %v4465, %v4478
    %v4480 = vpop.f32.mrf.mxu0
    %v4481 = vadd.f32 %v4467, %v4480
    %4482 = vdwg.mxu0
    %v4483 = vmax.f32 %v4395, 0.0
    %v4484 = vmax.f32 %v4423, 0.0
    %v4485 = vmax.f32 %v4451, 0.0
    %v4486 = vmax.f32 %v4479, 0.0
    %v4487 = vmax.f32 %v4397, 0.0
    %v4488 = vmax.f32 %v4425, 0.0
    %v4489 = vmax.f32 %v4453, 0.0
    %v4490 = vmax.f32 %v4481, 0.0
    %4499 = vrot.lane.b32.xlu0 %v4483, 112
    %v4500 = vpop.permute.xlu0 %4499
    %4501 = vrot.lane.b32.xlu0 %v4484, 112
    %v4502 = vpop.permute.xlu0 %4501
    %4503 = vrot.lane.b32.xlu0 %v4485, 112
    %v4504 = vpop.permute.xlu0 %4503
    %4505 = vrot.lane.b32.xlu0 %v4486, 112
    %v4506 = vpop.permute.xlu0 %4505
    %4507 = vrot.lane.b32.xlu0 %v4487, 112
    %v4508 = vpop.permute.xlu0 %4507
    %4509 = vrot.lane.b32.xlu0 %v4488, 112
    %v4510 = vpop.permute.xlu0 %4509
    %4511 = vrot.lane.b32.xlu0 %v4489, 112
    %v4512 = vpop.permute.xlu0 %4511
    %4513 = vrot.lane.b32.xlu0 %v4490, 112
    %v4514 = vpop.permute.xlu0 %4513
    %v4515 = vsel %vm524, %v4500, %v4502
    %v4516 = vsel %vm524, %v4502, %v4504
    %v4517 = vsel %vm524, %v4504, %v4506
    %v4518 = vsel %vm524, %v4508, %v4510
    %v4519 = vsel %vm524, %v4510, %v4512
    %v4520 = vsel %vm524, %v4512, %v4514
    %v4529 = vmax.f32 %v4483, %v4515
    %v4530 = vmax.f32 %v4484, %v4516
    %v4531 = vmax.f32 %v4485, %v4517
    %v4532 = vmax.f32 %v4486, %v4506
    %v4533 = vmax.f32 %v4487, %v4518
    %v4534 = vmax.f32 %v4488, %v4519
    %v4535 = vmax.f32 %v4489, %v4520
    %v4536 = vmax.f32 %v4490, %v4514
    %4537 = vrot.lane.b32.xlu0 %v4483, 127
    %v4538 = vpop.permute.xlu0 %4537
    %4539 = vrot.lane.b32.xlu0 %v4484, 127
    %v4540 = vpop.permute.xlu0 %4539
    %4541 = vrot.lane.b32.xlu0 %v4485, 127
    %v4542 = vpop.permute.xlu0 %4541
    %4543 = vrot.lane.b32.xlu0 %v4486, 127
    %v4544 = vpop.permute.xlu0 %4543
    %4545 = vrot.lane.b32.xlu0 %v4487, 127
    %v4546 = vpop.permute.xlu0 %4545
    %4547 = vrot.lane.b32.xlu0 %v4488, 127
    %v4548 = vpop.permute.xlu0 %4547
    %4549 = vrot.lane.b32.xlu0 %v4489, 127
    %v4550 = vpop.permute.xlu0 %4549
    %4551 = vrot.lane.b32.xlu0 %v4490, 127
    %v4552 = vpop.permute.xlu0 %4551
    %v4553 = vsel %vm563, %v4538, %v4540
    %v4554 = vsel %vm563, %v4540, %v4542
    %v4555 = vsel %vm563, %v4542, %v4544
    %v4556 = vsel %vm563, %v4546, %v4548
    %v4557 = vsel %vm563, %v4548, %v4550
    %v4558 = vsel %vm563, %v4550, %v4552
    %v4567 = vmax.f32 %v4529, %v4553
    %v4568 = vmax.f32 %v4530, %v4554
    %v4569 = vmax.f32 %v4531, %v4555
    %v4570 = vmax.f32 %v4532, %v4544
    %v4571 = vmax.f32 %v4533, %v4556
    %v4572 = vmax.f32 %v4534, %v4557
    %v4573 = vmax.f32 %v4535, %v4558
    %v4574 = vmax.f32 %v4536, %v4552
    %4575 = vrot.lane.b32.xlu0 %v4483, 111
    %v4576 = vpop.permute.xlu0 %4575
    %4577 = vrot.lane.b32.xlu0 %v4484, 111
    %v4578 = vpop.permute.xlu0 %4577
    %4579 = vrot.lane.b32.xlu0 %v4485, 111
    %v4580 = vpop.permute.xlu0 %4579
    %4581 = vrot.lane.b32.xlu0 %v4486, 111
    %v4582 = vpop.permute.xlu0 %4581
    %4583 = vrot.lane.b32.xlu0 %v4487, 111
    %v4584 = vpop.permute.xlu0 %4583
    %4585 = vrot.lane.b32.xlu0 %v4488, 111
    %v4586 = vpop.permute.xlu0 %4585
    %4587 = vrot.lane.b32.xlu0 %v4489, 111
    %v4588 = vpop.permute.xlu0 %4587
    %4589 = vrot.lane.b32.xlu0 %v4490, 111
    %v4590 = vpop.permute.xlu0 %4589
    %v4591 = vsel %vm602, %v4576, %v4578
    %v4592 = vsel %vm602, %v4578, %v4580
    %v4593 = vsel %vm602, %v4580, %v4582
    %v4594 = vsel %vm602, %v4584, %v4586
    %v4595 = vsel %vm602, %v4586, %v4588
    %v4596 = vsel %vm602, %v4588, %v4590
    %v4605 = vmax.f32 %v4567, %v4591
    %v4606 = vmax.f32 %v4568, %v4592
    %v4607 = vmax.f32 %v4569, %v4593
    %v4608 = vmax.f32 %v4570, %v4582
    %v4609 = vmax.f32 %v4571, %v4594
    %v4610 = vmax.f32 %v4572, %v4595
    %v4611 = vmax.f32 %v4573, %v4596
    %v4612 = vmax.f32 %v4574, %v4590
    %4613 = vrot.lane.b32.xlu0 %v4483, 126
    %v4614 = vpop.permute.xlu0 %4613
    %4615 = vrot.lane.b32.xlu0 %v4484, 126
    %v4616 = vpop.permute.xlu0 %4615
    %4617 = vrot.lane.b32.xlu0 %v4485, 126
    %v4618 = vpop.permute.xlu0 %4617
    %4619 = vrot.lane.b32.xlu0 %v4486, 126
    %v4620 = vpop.permute.xlu0 %4619
    %4621 = vrot.lane.b32.xlu0 %v4487, 126
    %v4622 = vpop.permute.xlu0 %4621
    %4623 = vrot.lane.b32.xlu0 %v4488, 126
    %v4624 = vpop.permute.xlu0 %4623
    %4625 = vrot.lane.b32.xlu0 %v4489, 126
    %v4626 = vpop.permute.xlu0 %4625
    %4627 = vrot.lane.b32.xlu0 %v4490, 126
    %v4628 = vpop.permute.xlu0 %4627
    %v4629 = vsel %vm641, %v4614, %v4616
    %v4630 = vsel %vm641, %v4616, %v4618
    %v4631 = vsel %vm641, %v4618, %v4620
    %v4632 = vsel %vm641, %v4622, %v4624
    %v4633 = vsel %vm641, %v4624, %v4626
    %v4634 = vsel %vm641, %v4626, %v4628
    %v4643 = vmax.f32 %v4605, %v4629
    %v4644 = vmax.f32 %v4606, %v4630
    %v4645 = vmax.f32 %v4607, %v4631
    %v4646 = vmax.f32 %v4608, %v4620
    %v4647 = vmax.f32 %v4609, %v4632
    %v4648 = vmax.f32 %v4610, %v4633
    %v4649 = vmax.f32 %v4611, %v4634
    %v4650 = vmax.f32 %v4612, %v4628
    %v4651 = vmax.f32 %v4643, %v4645
    %v4652 = vmax.f32 %v4644, %v4646
    %v4653 = vmax.f32 %v4647, %v4649
    %v4654 = vmax.f32 %v4648, %v4650
    %4659 = vrot.lane.b32.xlu0 %v4643, 96
    %v4660 = vpop.permute.xlu0 %4659
    %4661 = vrot.lane.b32.xlu0 %v4644, 96
    %v4662 = vpop.permute.xlu0 %4661
    %4663 = vrot.lane.b32.xlu0 %v4647, 96
    %v4664 = vpop.permute.xlu0 %4663
    %4665 = vrot.lane.b32.xlu0 %v4648, 96
    %v4666 = vpop.permute.xlu0 %4665
    %v4667 = vsel %vm680, %v4660, %v4662
    %v4668 = vsel %vm680, %v4664, %v4666
    %v4673 = vmax.f32 %v4651, %v4667
    %v4674 = vmax.f32 %v4652, %v4662
    %v4675 = vmax.f32 %v4653, %v4668
    %v4676 = vmax.f32 %v4654, %v4666
    %4681 = vrot.lane.b32.xlu0 %v4645, 96
    %v4682 = vpop.permute.xlu0 %4681
    %4683 = vrot.lane.b32.xlu0 %v4646, 96
    %v4684 = vpop.permute.xlu0 %4683
    %4685 = vrot.lane.b32.xlu0 %v4649, 96
    %v4686 = vpop.permute.xlu0 %4685
    %4687 = vrot.lane.b32.xlu0 %v4650, 96
    %v4688 = vpop.permute.xlu0 %4687
    %v4689 = vsel %vm680, %v4682, %v4684
    %v4690 = vsel %vm680, %v4686, %v4688
    %v4695 = vmax.f32 %v4673, %v4689
    %v4696 = vmax.f32 %v4674, %v4684
    %v4697 = vmax.f32 %v4675, %v4690
    %v4698 = vmax.f32 %v4676, %v4688
    %4699 = vrot.lane.b32.xlu0 %v4643, 64
    %v4700 = vpop.permute.xlu0 %4699
    %4701 = vrot.lane.b32.xlu0 %v4644, 64
    %v4702 = vpop.permute.xlu0 %4701
    %4703 = vrot.lane.b32.xlu0 %v4647, 64
    %v4704 = vpop.permute.xlu0 %4703
    %4705 = vrot.lane.b32.xlu0 %v4648, 64
    %v4706 = vpop.permute.xlu0 %4705
    %v4707 = vsel %vm721, %v4700, %v4702
    %v4708 = vsel %vm721, %v4704, %v4706
    %v4713 = vmax.f32 %v4695, %v4707
    %v4714 = vmax.f32 %v4696, %v4702
    %v4715 = vmax.f32 %v4697, %v4708
    %v4716 = vmax.f32 %v4698, %v4706
    %v4717 = vpack.c.bf16 %v4714, %v4713
    %v4718 = vpack.c.bf16 %v4716, %v4715
    %v4719 = vld [vmem:[%s7] sm:$0xff]
    %v4720 = vld [vmem:[%s7 + $0x8] sm:$0xff]
    %v4721 = vld [vmem:[%s7 + $0x10] sm:$0xff]
    %v4722 = vld [vmem:[%s7 + $0x18] sm:$0xff]
    %v4723 = vld [vmem:[%s7 + $0x20] sm:$0xff]
    %v4724 = vld [vmem:[%s7 + $0x28] sm:$0xff]
    %v4725 = vld [vmem:[%s7 + $0x30] sm:$0xff]
    %v4726 = vld [vmem:[%s7 + $0x38] sm:$0xff]
    %v4727 = vld [vmem:[%s7 + $0x40] sm:$0xff]
    %v4728 = vld [vmem:[%s7 + $0x48] sm:$0xff]
    %v4729 = vld [vmem:[%s7 + $0x50] sm:$0xff]
    %v4730 = vld [vmem:[%s7 + $0x58] sm:$0xff]
    %v4731 = vld [vmem:[%s7 + $0x60] sm:$0xff]
    %v4732 = vld [vmem:[%s7 + $0x68] sm:$0xff]
    %v4733 = vld [vmem:[%s7 + $0x70] sm:$0xff]
    %v4734 = vld [vmem:[%s7 + $0x78] sm:$0xff]
    %v4735 = vld [vmem:[%s7 + $0x80] sm:$0xff]
    %v4736 = vld [vmem:[%s7 + $0x88] sm:$0xff]
    %v4737 = vld [vmem:[%s7 + $0x90] sm:$0xff]
    %v4738 = vld [vmem:[%s7 + $0x98] sm:$0xff]
    %v4739 = vld [vmem:[%s7 + $0xa0] sm:$0xff]
    %v4740 = vld [vmem:[%s7 + $0xa8] sm:$0xff]
    %v4741 = vld [vmem:[%s7 + $0xb0] sm:$0xff]
    %v4742 = vld [vmem:[%s7 + $0xb8] sm:$0xff]
    %v4743 = vld [vmem:[%s758] sm:$0xff]
    %v4744 = vld [vmem:[%s758 + $0x8] sm:$0xff]
    %v4745 = vld [vmem:[%s758 + $0x10] sm:$0xff]
    %v4746 = vld [vmem:[%s758 + $0x18] sm:$0xff]
    %v4747 = vld [vmem:[%s758 + $0x20] sm:$0xff]
    %v4748 = vld [vmem:[%s758 + $0x28] sm:$0xff]
    %v4749 = vld [vmem:[%s758 + $0x30] sm:$0xff]
    %v4750 = vld [vmem:[%s758 + $0x38] sm:$0xff]
    %v4751 = vld [vmem:[%s758 + $0x40] sm:$0xff]
    %v4752 = vld [vmem:[%s758 + $0x48] sm:$0xff]
    %v4753 = vld [vmem:[%s758 + $0x50] sm:$0xff]
    %v4754 = vld [vmem:[%s758 + $0x58] sm:$0xff]
    %v4755 = vld [vmem:[%s758 + $0x60] sm:$0xff]
    %v4756 = vld [vmem:[%s758 + $0x68] sm:$0xff]
    %v4757 = vld [vmem:[%s758 + $0x70] sm:$0xff]
    %v4758 = vld [vmem:[%s758 + $0x78] sm:$0xff]
    %v4759 = vld [vmem:[%s758 + $0x80] sm:$0xff]
    %v4760 = vld [vmem:[%s758 + $0x88] sm:$0xff]
    %v4761 = vld [vmem:[%s758 + $0x90] sm:$0xff]
    %v4762 = vld [vmem:[%s758 + $0x98] sm:$0xff]
    %v4763 = vld [vmem:[%s758 + $0xa0] sm:$0xff]
    %v4764 = vld [vmem:[%s758 + $0xa8] sm:$0xff]
    %v4765 = vld [vmem:[%s758 + $0xb0] sm:$0xff]
    %v4766 = vld [vmem:[%s758 + $0xb8] sm:$0xff]
    %v4768 = vunpack.c.l.b16 %v4717
    %v4769 = vunpack.c.h.b16 %v4717
    %v4770 = vpack.c.b16 %v4768, %v4768
    %v4771 = vpack.c.b16 %v4769, %v4769
    %v4773 = vshrl.u32 %v4770, 16
    %v4776 = vshrl.u32 %v4771, 16
    %v4803 = vunpack.c.l.b16 %v4743
    %v4804 = vunpack.c.h.b16 %v4743
    %v4805 = vunpack.c.l.b16 %v4744
    %v4806 = vunpack.c.h.b16 %v4744
    %v4807 = vunpack.c.l.b16 %v4745
    %v4808 = vunpack.c.h.b16 %v4745
    %v4809 = vunpack.c.l.b16 %v4746
    %v4810 = vunpack.c.h.b16 %v4746
    %v4811 = vunpack.c.l.b16 %v4747
    %v4812 = vunpack.c.h.b16 %v4747
    %v4813 = vunpack.c.l.b16 %v4748
    %v4814 = vunpack.c.h.b16 %v4748
    %v4815 = vunpack.c.l.b16 %v4749
    %v4816 = vunpack.c.h.b16 %v4749
    %v4817 = vunpack.c.l.b16 %v4750
    %v4818 = vunpack.c.h.b16 %v4750
    %v4819 = vunpack.c.l.b16 %v4751
    %v4820 = vunpack.c.h.b16 %v4751
    %v4821 = vunpack.c.l.b16 %v4752
    %v4822 = vunpack.c.h.b16 %v4752
    %v4823 = vunpack.c.l.b16 %v4753
    %v4824 = vunpack.c.h.b16 %v4753
    %v4825 = vunpack.c.l.b16 %v4754
    %v4826 = vunpack.c.h.b16 %v4754
    %v4827 = vunpack.c.l.b16 %v4755
    %v4828 = vunpack.c.h.b16 %v4755
    %v4829 = vunpack.c.l.b16 %v4756
    %v4830 = vunpack.c.h.b16 %v4756
    %v4831 = vunpack.c.l.b16 %v4757
    %v4832 = vunpack.c.h.b16 %v4757
    %v4833 = vunpack.c.l.b16 %v4758
    %v4834 = vunpack.c.h.b16 %v4758
    %v4835 = vunpack.c.l.b16 %v4759
    %v4836 = vunpack.c.h.b16 %v4759
    %v4837 = vunpack.c.l.b16 %v4760
    %v4838 = vunpack.c.h.b16 %v4760
    %v4839 = vunpack.c.l.b16 %v4761
    %v4840 = vunpack.c.h.b16 %v4761
    %v4841 = vunpack.c.l.b16 %v4762
    %v4842 = vunpack.c.h.b16 %v4762
    %v4843 = vunpack.c.l.b16 %v4763
    %v4844 = vunpack.c.h.b16 %v4763
    %v4845 = vunpack.c.l.b16 %v4764
    %v4846 = vunpack.c.h.b16 %v4764
    %v4847 = vunpack.c.l.b16 %v4765
    %v4848 = vunpack.c.h.b16 %v4765
    %v4849 = vunpack.c.l.b16 %v4766
    %v4850 = vunpack.c.h.b16 %v4766
    %v4851 = vpack.c.b16 %v4805, %v4803
    %v4852 = vpack.c.b16 %v4806, %v4804
    %v4853 = vpack.c.b16 %v4809, %v4807
    %v4854 = vpack.c.b16 %v4810, %v4808
    %v4855 = vpack.c.b16 %v4813, %v4811
    %v4856 = vpack.c.b16 %v4814, %v4812
    %v4857 = vpack.c.b16 %v4817, %v4815
    %v4858 = vpack.c.b16 %v4818, %v4816
    %v4859 = vpack.c.b16 %v4821, %v4819
    %v4860 = vpack.c.b16 %v4822, %v4820
    %v4861 = vpack.c.b16 %v4825, %v4823
    %v4862 = vpack.c.b16 %v4826, %v4824
    %v4863 = vpack.c.b16 %v4829, %v4827
    %v4864 = vpack.c.b16 %v4830, %v4828
    %v4865 = vpack.c.b16 %v4833, %v4831
    %v4866 = vpack.c.b16 %v4834, %v4832
    %v4867 = vpack.c.b16 %v4837, %v4835
    %v4868 = vpack.c.b16 %v4838, %v4836
    %v4869 = vpack.c.b16 %v4841, %v4839
    %v4870 = vpack.c.b16 %v4842, %v4840
    %v4871 = vpack.c.b16 %v4845, %v4843
    %v4872 = vpack.c.b16 %v4846, %v4844
    %v4873 = vpack.c.b16 %v4849, %v4847
    %v4874 = vpack.c.b16 %v4850, %v4848
    %v4900 = vsel %vm721, %v4776, 0
    %4902 = vmatpush.bf16.msra.mxu0 %v4865
    %4903 = vmatpush.bf16.msra.mxu0 %v4863
    %4904 = vmatpush.bf16.msra.mxu0 %v4861
    %4905 = vmatpush.bf16.msra.mxu0 %v4859
    %4906 = vmatpush.bf16.msra.mxu0 %v4857
    %4907 = vmatpush.bf16.msra.mxu0 %v4855
    %4908 = vmatpush.bf16.msra.mxu0 %v4853
    %4909 = vmatpush.bf16.msra.mxu0 %v4851
    %4910 = vmatmul.bf16.gmra.mxu0 %v4773
    %v4911 = vpop.f32.mrf.mxu0
    %v4912 = vadd.f32 0.0, %v4911
    %v4913 = vpop.f32.mrf.mxu0
    %4914 = vdwg.mxu0
    %4915 = vmatpush.bf16.msra.mxu0 0
    %4916 = vmatpush.bf16.msra.mxu0 0
    %4917 = vmatpush.bf16.msra.mxu0 0
    %4918 = vmatpush.bf16.msra.mxu0 0
    %4919 = vmatpush.bf16.msra.mxu0 %v4873
    %4920 = vmatpush.bf16.msra.mxu0 %v4871
    %4921 = vmatpush.bf16.msra.mxu0 %v4869
    %4922 = vmatpush.bf16.msra.mxu0 %v4867
    %4923 = vmatmul.bf16.gmra.mxu0 %v4900
    %v4924 = vpop.f32.mrf.mxu0
    %v4925 = vadd.f32 %v4912, %v4924
    %v4926 = vpop.f32.mrf.mxu0
    %4927 = vdwg.mxu0
    %4928 = vmatpush.bf16.msra.mxu0 %v4866
    %4929 = vmatpush.bf16.msra.mxu0 %v4864
    %4930 = vmatpush.bf16.msra.mxu0 %v4862
    %4931 = vmatpush.bf16.msra.mxu0 %v4860
    %4932 = vmatpush.bf16.msra.mxu0 %v4858
    %4933 = vmatpush.bf16.msra.mxu0 %v4856
    %4934 = vmatpush.bf16.msra.mxu0 %v4854
    %4935 = vmatpush.bf16.msra.mxu0 %v4852
    %4936 = vmatmul.bf16.gmra.mxu0 %v4773
    %v4937 = vpop.f32.mrf.mxu0
    %v4938 = vadd.f32 0.0, %v4937
    %v4939 = vpop.f32.mrf.mxu0
    %4940 = vdwg.mxu0
    %4941 = vmatpush.bf16.msra.mxu0 0
    %4942 = vmatpush.bf16.msra.mxu0 0
    %4943 = vmatpush.bf16.msra.mxu0 0
    %4944 = vmatpush.bf16.msra.mxu0 0
    %4945 = vmatpush.bf16.msra.mxu0 %v4874
    %4946 = vmatpush.bf16.msra.mxu0 %v4872
    %4947 = vmatpush.bf16.msra.mxu0 %v4870
    %4948 = vmatpush.bf16.msra.mxu0 %v4868
    %4949 = vmatmul.bf16.gmra.mxu0 %v4900
    %v4950 = vpop.f32.mrf.mxu0
    %v4951 = vadd.f32 %v4938, %v4950
    %v4952 = vpop.f32.mrf.mxu0
    %4953 = vdwg.mxu0
    %v4979 = vunpack.c.l.b16 %v4719
    %v4980 = vunpack.c.h.b16 %v4719
    %v4981 = vunpack.c.l.b16 %v4720
    %v4982 = vunpack.c.h.b16 %v4720
    %v4983 = vunpack.c.l.b16 %v4721
    %v4984 = vunpack.c.h.b16 %v4721
    %v4985 = vunpack.c.l.b16 %v4722
    %v4986 = vunpack.c.h.b16 %v4722
    %v4987 = vunpack.c.l.b16 %v4723
    %v4988 = vunpack.c.h.b16 %v4723
    %v4989 = vunpack.c.l.b16 %v4724
    %v4990 = vunpack.c.h.b16 %v4724
    %v4991 = vunpack.c.l.b16 %v4725
    %v4992 = vunpack.c.h.b16 %v4725
    %v4993 = vunpack.c.l.b16 %v4726
    %v4994 = vunpack.c.h.b16 %v4726
    %v4995 = vunpack.c.l.b16 %v4727
    %v4996 = vunpack.c.h.b16 %v4727
    %v4997 = vunpack.c.l.b16 %v4728
    %v4998 = vunpack.c.h.b16 %v4728
    %v4999 = vunpack.c.l.b16 %v4729
    %v5000 = vunpack.c.h.b16 %v4729
    %v5001 = vunpack.c.l.b16 %v4730
    %v5002 = vunpack.c.h.b16 %v4730
    %v5003 = vunpack.c.l.b16 %v4731
    %v5004 = vunpack.c.h.b16 %v4731
    %v5005 = vunpack.c.l.b16 %v4732
    %v5006 = vunpack.c.h.b16 %v4732
    %v5007 = vunpack.c.l.b16 %v4733
    %v5008 = vunpack.c.h.b16 %v4733
    %v5009 = vunpack.c.l.b16 %v4734
    %v5010 = vunpack.c.h.b16 %v4734
    %v5011 = vunpack.c.l.b16 %v4735
    %v5012 = vunpack.c.h.b16 %v4735
    %v5013 = vunpack.c.l.b16 %v4736
    %v5014 = vunpack.c.h.b16 %v4736
    %v5015 = vunpack.c.l.b16 %v4737
    %v5016 = vunpack.c.h.b16 %v4737
    %v5017 = vunpack.c.l.b16 %v4738
    %v5018 = vunpack.c.h.b16 %v4738
    %v5019 = vunpack.c.l.b16 %v4739
    %v5020 = vunpack.c.h.b16 %v4739
    %v5021 = vunpack.c.l.b16 %v4740
    %v5022 = vunpack.c.h.b16 %v4740
    %v5023 = vunpack.c.l.b16 %v4741
    %v5024 = vunpack.c.h.b16 %v4741
    %v5025 = vunpack.c.l.b16 %v4742
    %v5026 = vunpack.c.h.b16 %v4742
    %v5027 = vpack.c.b16 %v4981, %v4979
    %v5028 = vpack.c.b16 %v4982, %v4980
    %v5029 = vpack.c.b16 %v4985, %v4983
    %v5030 = vpack.c.b16 %v4986, %v4984
    %v5031 = vpack.c.b16 %v4989, %v4987
    %v5032 = vpack.c.b16 %v4990, %v4988
    %v5033 = vpack.c.b16 %v4993, %v4991
    %v5034 = vpack.c.b16 %v4994, %v4992
    %v5035 = vpack.c.b16 %v4997, %v4995
    %v5036 = vpack.c.b16 %v4998, %v4996
    %v5037 = vpack.c.b16 %v5001, %v4999
    %v5038 = vpack.c.b16 %v5002, %v5000
    %v5039 = vpack.c.b16 %v5005, %v5003
    %v5040 = vpack.c.b16 %v5006, %v5004
    %v5041 = vpack.c.b16 %v5009, %v5007
    %v5042 = vpack.c.b16 %v5010, %v5008
    %v5043 = vpack.c.b16 %v5013, %v5011
    %v5044 = vpack.c.b16 %v5014, %v5012
    %v5045 = vpack.c.b16 %v5017, %v5015
    %v5046 = vpack.c.b16 %v5018, %v5016
    %v5047 = vpack.c.b16 %v5021, %v5019
    %v5048 = vpack.c.b16 %v5022, %v5020
    %v5049 = vpack.c.b16 %v5025, %v5023
    %v5050 = vpack.c.b16 %v5026, %v5024
    %v5075 = vsel %vm721, %v4771, 0
    %5077 = vmatpush.bf16.msra.mxu0 %v5041
    %5078 = vmatpush.bf16.msra.mxu0 %v5039
    %5079 = vmatpush.bf16.msra.mxu0 %v5037
    %5080 = vmatpush.bf16.msra.mxu0 %v5035
    %5081 = vmatpush.bf16.msra.mxu0 %v5033
    %5082 = vmatpush.bf16.msra.mxu0 %v5031
    %5083 = vmatpush.bf16.msra.mxu0 %v5029
    %5084 = vmatpush.bf16.msra.mxu0 %v5027
    %5085 = vmatmul.bf16.gmra.mxu0 %v4770
    %v5086 = vpop.f32.mrf.mxu0
    %v5087 = vadd.f32 %v4925, %v5086
    %v5088 = vpop.f32.mrf.mxu0
    %5089 = vdwg.mxu0
    %5090 = vmatpush.bf16.msra.mxu0 0
    %5091 = vmatpush.bf16.msra.mxu0 0
    %5092 = vmatpush.bf16.msra.mxu0 0
    %5093 = vmatpush.bf16.msra.mxu0 0
    %5094 = vmatpush.bf16.msra.mxu0 %v5049
    %5095 = vmatpush.bf16.msra.mxu0 %v5047
    %5096 = vmatpush.bf16.msra.mxu0 %v5045
    %5097 = vmatpush.bf16.msra.mxu0 %v5043
    %5098 = vmatmul.bf16.gmra.mxu0 %v5075
    %v5099 = vpop.f32.mrf.mxu0
    %v5100 = vadd.f32 %v5087, %v5099
    %v5101 = vpop.f32.mrf.mxu0
    %5102 = vdwg.mxu0
    %5103 = vmatpush.bf16.msra.mxu0 %v5042
    %5104 = vmatpush.bf16.msra.mxu0 %v5040
    %5105 = vmatpush.bf16.msra.mxu0 %v5038
    %5106 = vmatpush.bf16.msra.mxu0 %v5036
    %5107 = vmatpush.bf16.msra.mxu0 %v5034
    %5108 = vmatpush.bf16.msra.mxu0 %v5032
    %5109 = vmatpush.bf16.msra.mxu0 %v5030
    %5110 = vmatpush.bf16.msra.mxu0 %v5028
    %5111 = vmatmul.bf16.gmra.mxu0 %v4770
    %v5112 = vpop.f32.mrf.mxu0
    %v5113 = vadd.f32 %v4951, %v5112
    %v5114 = vpop.f32.mrf.mxu0
    %5115 = vdwg.mxu0
    %5116 = vmatpush.bf16.msra.mxu0 0
    %5117 = vmatpush.bf16.msra.mxu0 0
    %5118 = vmatpush.bf16.msra.mxu0 0
    %5119 = vmatpush.bf16.msra.mxu0 0
    %5120 = vmatpush.bf16.msra.mxu0 %v5050
    %5121 = vmatpush.bf16.msra.mxu0 %v5048
    %5122 = vmatpush.bf16.msra.mxu0 %v5046
    %5123 = vmatpush.bf16.msra.mxu0 %v5044
    %5124 = vmatmul.bf16.gmra.mxu0 %v5075
    %v5125 = vpop.f32.mrf.mxu0
    %v5126 = vadd.f32 %v5113, %v5125
    %v5127 = vpop.f32.mrf.mxu0
    %5128 = vdwg.mxu0
    %v5129 = vld [vmem:[%s1145] sm:$0xff]
    %v5130 = vld [vmem:[%s1145 + $0x8] sm:$0xff]
    %v5131 = vld [vmem:[%s1145 + $0x10] sm:$0xff]
    %v5132 = vld [vmem:[%s1145 + $0x18] sm:$0xff]
    %v5133 = vld [vmem:[%s1145 + $0x20] sm:$0xff]
    %v5134 = vld [vmem:[%s1145 + $0x28] sm:$0xff]
    %v5135 = vld [vmem:[%s1145 + $0x30] sm:$0xff]
    %v5136 = vld [vmem:[%s1145 + $0x38] sm:$0xff]
    %v5137 = vld [vmem:[%s1145 + $0x40] sm:$0xff]
    %v5138 = vld [vmem:[%s1145 + $0x48] sm:$0xff]
    %v5139 = vld [vmem:[%s1145 + $0x50] sm:$0xff]
    %v5140 = vld [vmem:[%s1145 + $0x58] sm:$0xff]
    %v5141 = vld [vmem:[%s1145 + $0x60] sm:$0xff]
    %v5142 = vld [vmem:[%s1145 + $0x68] sm:$0xff]
    %v5143 = vld [vmem:[%s1145 + $0x70] sm:$0xff]
    %v5144 = vld [vmem:[%s1145 + $0x78] sm:$0xff]
    %v5145 = vld [vmem:[%s1145 + $0x80] sm:$0xff]
    %v5146 = vld [vmem:[%s1145 + $0x88] sm:$0xff]
    %v5147 = vld [vmem:[%s1145 + $0x90] sm:$0xff]
    %v5148 = vld [vmem:[%s1145 + $0x98] sm:$0xff]
    %v5149 = vld [vmem:[%s1145 + $0xa0] sm:$0xff]
    %v5150 = vld [vmem:[%s1145 + $0xa8] sm:$0xff]
    %v5151 = vld [vmem:[%s1145 + $0xb0] sm:$0xff]
    %v5152 = vld [vmem:[%s1145 + $0xb8] sm:$0xff]
    %v5153 = vrot.slane %v4770, 1
    %v5154 = vrot.slane %v4771, 1
    %v5180 = vunpack.c.l.b16 %v5129
    %v5181 = vunpack.c.h.b16 %v5129
    %v5182 = vunpack.c.l.b16 %v5130
    %v5183 = vunpack.c.h.b16 %v5130
    %v5184 = vunpack.c.l.b16 %v5131
    %v5185 = vunpack.c.h.b16 %v5131
    %v5186 = vunpack.c.l.b16 %v5132
    %v5187 = vunpack.c.h.b16 %v5132
    %v5188 = vunpack.c.l.b16 %v5133
    %v5189 = vunpack.c.h.b16 %v5133
    %v5190 = vunpack.c.l.b16 %v5134
    %v5191 = vunpack.c.h.b16 %v5134
    %v5192 = vunpack.c.l.b16 %v5135
    %v5193 = vunpack.c.h.b16 %v5135
    %v5194 = vunpack.c.l.b16 %v5136
    %v5195 = vunpack.c.h.b16 %v5136
    %v5196 = vunpack.c.l.b16 %v5137
    %v5197 = vunpack.c.h.b16 %v5137
    %v5198 = vunpack.c.l.b16 %v5138
    %v5199 = vunpack.c.h.b16 %v5138
    %v5200 = vunpack.c.l.b16 %v5139
    %v5201 = vunpack.c.h.b16 %v5139
    %v5202 = vunpack.c.l.b16 %v5140
    %v5203 = vunpack.c.h.b16 %v5140
    %v5204 = vunpack.c.l.b16 %v5141
    %v5205 = vunpack.c.h.b16 %v5141
    %v5206 = vunpack.c.l.b16 %v5142
    %v5207 = vunpack.c.h.b16 %v5142
    %v5208 = vunpack.c.l.b16 %v5143
    %v5209 = vunpack.c.h.b16 %v5143
    %v5210 = vunpack.c.l.b16 %v5144
    %v5211 = vunpack.c.h.b16 %v5144
    %v5212 = vunpack.c.l.b16 %v5145
    %v5213 = vunpack.c.h.b16 %v5145
    %v5214 = vunpack.c.l.b16 %v5146
    %v5215 = vunpack.c.h.b16 %v5146
    %v5216 = vunpack.c.l.b16 %v5147
    %v5217 = vunpack.c.h.b16 %v5147
    %v5218 = vunpack.c.l.b16 %v5148
    %v5219 = vunpack.c.h.b16 %v5148
    %v5220 = vunpack.c.l.b16 %v5149
    %v5221 = vunpack.c.h.b16 %v5149
    %v5222 = vunpack.c.l.b16 %v5150
    %v5223 = vunpack.c.h.b16 %v5150
    %v5224 = vunpack.c.l.b16 %v5151
    %v5225 = vunpack.c.h.b16 %v5151
    %v5226 = vunpack.c.l.b16 %v5152
    %v5227 = vunpack.c.h.b16 %v5152
    %v5228 = vpack.c.b16 %v5182, %v5180
    %v5229 = vpack.c.b16 %v5183, %v5181
    %v5230 = vpack.c.b16 %v5186, %v5184
    %v5231 = vpack.c.b16 %v5187, %v5185
    %v5232 = vpack.c.b16 %v5190, %v5188
    %v5233 = vpack.c.b16 %v5191, %v5189
    %v5234 = vpack.c.b16 %v5194, %v5192
    %v5235 = vpack.c.b16 %v5195, %v5193
    %v5236 = vpack.c.b16 %v5198, %v5196
    %v5237 = vpack.c.b16 %v5199, %v5197
    %v5238 = vpack.c.b16 %v5202, %v5200
    %v5239 = vpack.c.b16 %v5203, %v5201
    %v5240 = vpack.c.b16 %v5206, %v5204
    %v5241 = vpack.c.b16 %v5207, %v5205
    %v5242 = vpack.c.b16 %v5210, %v5208
    %v5243 = vpack.c.b16 %v5211, %v5209
    %v5244 = vpack.c.b16 %v5214, %v5212
    %v5245 = vpack.c.b16 %v5215, %v5213
    %v5246 = vpack.c.b16 %v5218, %v5216
    %v5247 = vpack.c.b16 %v5219, %v5217
    %v5248 = vpack.c.b16 %v5222, %v5220
    %v5249 = vpack.c.b16 %v5223, %v5221
    %v5250 = vpack.c.b16 %v5226, %v5224
    %v5251 = vpack.c.b16 %v5227, %v5225
    %v5277 = vsel %vm721, %v5154, 0
    %5279 = vmatpush.bf16.msra.mxu0 %v5242
    %5280 = vmatpush.bf16.msra.mxu0 %v5240
    %5281 = vmatpush.bf16.msra.mxu0 %v5238
    %5282 = vmatpush.bf16.msra.mxu0 %v5236
    %5283 = vmatpush.bf16.msra.mxu0 %v5234
    %5284 = vmatpush.bf16.msra.mxu0 %v5232
    %5285 = vmatpush.bf16.msra.mxu0 %v5230
    %5286 = vmatpush.bf16.msra.mxu0 %v5228
    %5287 = vmatmul.bf16.gmra.mxu0 %v5153
    %v5288 = vpop.f32.mrf.mxu0
    %v5289 = vadd.f32 0.0, %v5288
    %v5290 = vpop.f32.mrf.mxu0
    %5291 = vdwg.mxu0
    %5292 = vmatpush.bf16.msra.mxu0 0
    %5293 = vmatpush.bf16.msra.mxu0 0
    %5294 = vmatpush.bf16.msra.mxu0 0
    %5295 = vmatpush.bf16.msra.mxu0 0
    %5296 = vmatpush.bf16.msra.mxu0 %v5250
    %5297 = vmatpush.bf16.msra.mxu0 %v5248
    %5298 = vmatpush.bf16.msra.mxu0 %v5246
    %5299 = vmatpush.bf16.msra.mxu0 %v5244
    %5300 = vmatmul.bf16.gmra.mxu0 %v5277
    %v5301 = vpop.f32.mrf.mxu0
    %v5302 = vadd.f32 %v5289, %v5301
    %v5303 = vpop.f32.mrf.mxu0
    %5304 = vdwg.mxu0
    %5305 = vmatpush.bf16.msra.mxu0 %v5243
    %5306 = vmatpush.bf16.msra.mxu0 %v5241
    %5307 = vmatpush.bf16.msra.mxu0 %v5239
    %5308 = vmatpush.bf16.msra.mxu0 %v5237
    %5309 = vmatpush.bf16.msra.mxu0 %v5235
    %5310 = vmatpush.bf16.msra.mxu0 %v5233
    %5311 = vmatpush.bf16.msra.mxu0 %v5231
    %5312 = vmatpush.bf16.msra.mxu0 %v5229
    %5313 = vmatmul.bf16.gmra.mxu0 %v5153
    %v5314 = vpop.f32.mrf.mxu0
    %v5315 = vadd.f32 0.0, %v5314
    %v5316 = vpop.f32.mrf.mxu0
    %5317 = vdwg.mxu0
    %5318 = vmatpush.bf16.msra.mxu0 0
    %5319 = vmatpush.bf16.msra.mxu0 0
    %5320 = vmatpush.bf16.msra.mxu0 0
    %5321 = vmatpush.bf16.msra.mxu0 0
    %5322 = vmatpush.bf16.msra.mxu0 %v5251
    %5323 = vmatpush.bf16.msra.mxu0 %v5249
    %5324 = vmatpush.bf16.msra.mxu0 %v5247
    %5325 = vmatpush.bf16.msra.mxu0 %v5245
    %5326 = vmatmul.bf16.gmra.mxu0 %v5277
    %v5327 = vpop.f32.mrf.mxu0
    %v5328 = vadd.f32 %v5315, %v5327
    %v5329 = vpop.f32.mrf.mxu0
    %5330 = vdwg.mxu0
    %v5331 = vadd.f32 %v5100, %v5302
    %v5332 = vadd.f32 %v5126, %v5328
    %v5333 = vld [vmem:[%s1350] sm:$0xff]
    %v5334 = vld [vmem:[%s1350 + $0x8] sm:$0xff]
    %v5335 = vld [vmem:[%s1350 + $0x10] sm:$0xff]
    %v5336 = vld [vmem:[%s1350 + $0x18] sm:$0xff]
    %v5337 = vld [vmem:[%s1350 + $0x20] sm:$0xff]
    %v5338 = vld [vmem:[%s1350 + $0x28] sm:$0xff]
    %v5339 = vld [vmem:[%s1350 + $0x30] sm:$0xff]
    %v5340 = vld [vmem:[%s1350 + $0x38] sm:$0xff]
    %v5341 = vld [vmem:[%s1350 + $0x40] sm:$0xff]
    %v5342 = vld [vmem:[%s1350 + $0x48] sm:$0xff]
    %v5343 = vld [vmem:[%s1350 + $0x50] sm:$0xff]
    %v5344 = vld [vmem:[%s1350 + $0x58] sm:$0xff]
    %v5345 = vld [vmem:[%s1350 + $0x60] sm:$0xff]
    %v5346 = vld [vmem:[%s1350 + $0x68] sm:$0xff]
    %v5347 = vld [vmem:[%s1350 + $0x70] sm:$0xff]
    %v5348 = vld [vmem:[%s1350 + $0x78] sm:$0xff]
    %v5349 = vld [vmem:[%s1350 + $0x80] sm:$0xff]
    %v5350 = vld [vmem:[%s1350 + $0x88] sm:$0xff]
    %v5351 = vld [vmem:[%s1350 + $0x90] sm:$0xff]
    %v5352 = vld [vmem:[%s1350 + $0x98] sm:$0xff]
    %v5353 = vld [vmem:[%s1350 + $0xa0] sm:$0xff]
    %v5354 = vld [vmem:[%s1350 + $0xa8] sm:$0xff]
    %v5355 = vld [vmem:[%s1350 + $0xb0] sm:$0xff]
    %v5356 = vld [vmem:[%s1350 + $0xb8] sm:$0xff]
    %v5357 = vrot.slane %v4773, 1
    %v5358 = vrot.slane %v4776, 1
    %v5384 = vunpack.c.l.b16 %v5333
    %v5385 = vunpack.c.h.b16 %v5333
    %v5386 = vunpack.c.l.b16 %v5334
    %v5387 = vunpack.c.h.b16 %v5334
    %v5388 = vunpack.c.l.b16 %v5335
    %v5389 = vunpack.c.h.b16 %v5335
    %v5390 = vunpack.c.l.b16 %v5336
    %v5391 = vunpack.c.h.b16 %v5336
    %v5392 = vunpack.c.l.b16 %v5337
    %v5393 = vunpack.c.h.b16 %v5337
    %v5394 = vunpack.c.l.b16 %v5338
    %v5395 = vunpack.c.h.b16 %v5338
    %v5396 = vunpack.c.l.b16 %v5339
    %v5397 = vunpack.c.h.b16 %v5339
    %v5398 = vunpack.c.l.b16 %v5340
    %v5399 = vunpack.c.h.b16 %v5340
    %v5400 = vunpack.c.l.b16 %v5341
    %v5401 = vunpack.c.h.b16 %v5341
    %v5402 = vunpack.c.l.b16 %v5342
    %v5403 = vunpack.c.h.b16 %v5342
    %v5404 = vunpack.c.l.b16 %v5343
    %v5405 = vunpack.c.h.b16 %v5343
    %v5406 = vunpack.c.l.b16 %v5344
    %v5407 = vunpack.c.h.b16 %v5344
    %v5408 = vunpack.c.l.b16 %v5345
    %v5409 = vunpack.c.h.b16 %v5345
    %v5410 = vunpack.c.l.b16 %v5346
    %v5411 = vunpack.c.h.b16 %v5346
    %v5412 = vunpack.c.l.b16 %v5347
    %v5413 = vunpack.c.h.b16 %v5347
    %v5414 = vunpack.c.l.b16 %v5348
    %v5415 = vunpack.c.h.b16 %v5348
    %v5416 = vunpack.c.l.b16 %v5349
    %v5417 = vunpack.c.h.b16 %v5349
    %v5418 = vunpack.c.l.b16 %v5350
    %v5419 = vunpack.c.h.b16 %v5350
    %v5420 = vunpack.c.l.b16 %v5351
    %v5421 = vunpack.c.h.b16 %v5351
    %v5422 = vunpack.c.l.b16 %v5352
    %v5423 = vunpack.c.h.b16 %v5352
    %v5424 = vunpack.c.l.b16 %v5353
    %v5425 = vunpack.c.h.b16 %v5353
    %v5426 = vunpack.c.l.b16 %v5354
    %v5427 = vunpack.c.h.b16 %v5354
    %v5428 = vunpack.c.l.b16 %v5355
    %v5429 = vunpack.c.h.b16 %v5355
    %v5430 = vunpack.c.l.b16 %v5356
    %v5431 = vunpack.c.h.b16 %v5356
    %v5432 = vpack.c.b16 %v5386, %v5384
    %v5433 = vpack.c.b16 %v5387, %v5385
    %v5434 = vpack.c.b16 %v5390, %v5388
    %v5435 = vpack.c.b16 %v5391, %v5389
    %v5436 = vpack.c.b16 %v5394, %v5392
    %v5437 = vpack.c.b16 %v5395, %v5393
    %v5438 = vpack.c.b16 %v5398, %v5396
    %v5439 = vpack.c.b16 %v5399, %v5397
    %v5440 = vpack.c.b16 %v5402, %v5400
    %v5441 = vpack.c.b16 %v5403, %v5401
    %v5442 = vpack.c.b16 %v5406, %v5404
    %v5443 = vpack.c.b16 %v5407, %v5405
    %v5444 = vpack.c.b16 %v5410, %v5408
    %v5445 = vpack.c.b16 %v5411, %v5409
    %v5446 = vpack.c.b16 %v5414, %v5412
    %v5447 = vpack.c.b16 %v5415, %v5413
    %v5448 = vpack.c.b16 %v5418, %v5416
    %v5449 = vpack.c.b16 %v5419, %v5417
    %v5450 = vpack.c.b16 %v5422, %v5420
    %v5451 = vpack.c.b16 %v5423, %v5421
    %v5452 = vpack.c.b16 %v5426, %v5424
    %v5453 = vpack.c.b16 %v5427, %v5425
    %v5454 = vpack.c.b16 %v5430, %v5428
    %v5455 = vpack.c.b16 %v5431, %v5429
    %v5481 = vsel %vm721, %v5358, 0
    %5483 = vmatpush.bf16.msra.mxu0 %v5446
    %5484 = vmatpush.bf16.msra.mxu0 %v5444
    %5485 = vmatpush.bf16.msra.mxu0 %v5442
    %5486 = vmatpush.bf16.msra.mxu0 %v5440
    %5487 = vmatpush.bf16.msra.mxu0 %v5438
    %5488 = vmatpush.bf16.msra.mxu0 %v5436
    %5489 = vmatpush.bf16.msra.mxu0 %v5434
    %5490 = vmatpush.bf16.msra.mxu0 %v5432
    %5491 = vmatmul.bf16.gmra.mxu0 %v5357
    %v5492 = vpop.f32.mrf.mxu0
    %v5493 = vadd.f32 0.0, %v5492
    %v5494 = vpop.f32.mrf.mxu0
    %5495 = vdwg.mxu0
    %5496 = vmatpush.bf16.msra.mxu0 0
    %5497 = vmatpush.bf16.msra.mxu0 0
    %5498 = vmatpush.bf16.msra.mxu0 0
    %5499 = vmatpush.bf16.msra.mxu0 0
    %5500 = vmatpush.bf16.msra.mxu0 %v5454
    %5501 = vmatpush.bf16.msra.mxu0 %v5452
    %5502 = vmatpush.bf16.msra.mxu0 %v5450
    %5503 = vmatpush.bf16.msra.mxu0 %v5448
    %5504 = vmatmul.bf16.gmra.mxu0 %v5481
    %v5505 = vpop.f32.mrf.mxu0
    %v5506 = vadd.f32 %v5493, %v5505
    %v5507 = vpop.f32.mrf.mxu0
    %5508 = vdwg.mxu0
    %5509 = vmatpush.bf16.msra.mxu0 %v5447
    %5510 = vmatpush.bf16.msra.mxu0 %v5445
    %5511 = vmatpush.bf16.msra.mxu0 %v5443
    %5512 = vmatpush.bf16.msra.mxu0 %v5441
    %5513 = vmatpush.bf16.msra.mxu0 %v5439
    %5514 = vmatpush.bf16.msra.mxu0 %v5437
    %5515 = vmatpush.bf16.msra.mxu0 %v5435
    %5516 = vmatpush.bf16.msra.mxu0 %v5433
    %5517 = vmatmul.bf16.gmra.mxu0 %v5357
    %v5518 = vpop.f32.mrf.mxu0
    %v5519 = vadd.f32 0.0, %v5518
    %v5520 = vpop.f32.mrf.mxu0
    %5521 = vdwg.mxu0
    %5522 = vmatpush.bf16.msra.mxu0 0
    %5523 = vmatpush.bf16.msra.mxu0 0
    %5524 = vmatpush.bf16.msra.mxu0 0
    %5525 = vmatpush.bf16.msra.mxu0 0
    %5526 = vmatpush.bf16.msra.mxu0 %v5455
    %5527 = vmatpush.bf16.msra.mxu0 %v5453
    %5528 = vmatpush.bf16.msra.mxu0 %v5451
    %5529 = vmatpush.bf16.msra.mxu0 %v5449
    %5530 = vmatmul.bf16.gmra.mxu0 %v5481
    %v5531 = vpop.f32.mrf.mxu0
    %v5532 = vadd.f32 %v5519, %v5531
    %v5533 = vpop.f32.mrf.mxu0
    %5534 = vdwg.mxu0
    %v5535 = vadd.f32 %v5331, %v5506
    %v5536 = vadd.f32 %v5332, %v5532
    %v5537 = vld [vmem:[%s1555] sm:$0xff]
    %v5538 = vld [vmem:[%s1555 + $0x8] sm:$0xff]
    %v5539 = vld [vmem:[%s1555 + $0x10] sm:$0xff]
    %v5540 = vld [vmem:[%s1555 + $0x18] sm:$0xff]
    %v5541 = vld [vmem:[%s1555 + $0x20] sm:$0xff]
    %v5542 = vld [vmem:[%s1555 + $0x28] sm:$0xff]
    %v5543 = vld [vmem:[%s1555 + $0x30] sm:$0xff]
    %v5544 = vld [vmem:[%s1555 + $0x38] sm:$0xff]
    %v5545 = vld [vmem:[%s1555 + $0x40] sm:$0xff]
    %v5546 = vld [vmem:[%s1555 + $0x48] sm:$0xff]
    %v5547 = vld [vmem:[%s1555 + $0x50] sm:$0xff]
    %v5548 = vld [vmem:[%s1555 + $0x58] sm:$0xff]
    %v5549 = vld [vmem:[%s1555 + $0x60] sm:$0xff]
    %v5550 = vld [vmem:[%s1555 + $0x68] sm:$0xff]
    %v5551 = vld [vmem:[%s1555 + $0x70] sm:$0xff]
    %v5552 = vld [vmem:[%s1555 + $0x78] sm:$0xff]
    %v5553 = vld [vmem:[%s1555 + $0x80] sm:$0xff]
    %v5554 = vld [vmem:[%s1555 + $0x88] sm:$0xff]
    %v5555 = vld [vmem:[%s1555 + $0x90] sm:$0xff]
    %v5556 = vld [vmem:[%s1555 + $0x98] sm:$0xff]
    %v5557 = vld [vmem:[%s1555 + $0xa0] sm:$0xff]
    %v5558 = vld [vmem:[%s1555 + $0xa8] sm:$0xff]
    %v5559 = vld [vmem:[%s1555 + $0xb0] sm:$0xff]
    %v5560 = vld [vmem:[%s1555 + $0xb8] sm:$0xff]
    %v5561 = vrot.slane %v4770, 2
    %v5562 = vrot.slane %v4771, 2
    %v5588 = vunpack.c.l.b16 %v5537
    %v5589 = vunpack.c.h.b16 %v5537
    %v5590 = vunpack.c.l.b16 %v5538
    %v5591 = vunpack.c.h.b16 %v5538
    %v5592 = vunpack.c.l.b16 %v5539
    %v5593 = vunpack.c.h.b16 %v5539
    %v5594 = vunpack.c.l.b16 %v5540
    %v5595 = vunpack.c.h.b16 %v5540
    %v5596 = vunpack.c.l.b16 %v5541
    %v5597 = vunpack.c.h.b16 %v5541
    %v5598 = vunpack.c.l.b16 %v5542
    %v5599 = vunpack.c.h.b16 %v5542
    %v5600 = vunpack.c.l.b16 %v5543
    %v5601 = vunpack.c.h.b16 %v5543
    %v5602 = vunpack.c.l.b16 %v5544
    %v5603 = vunpack.c.h.b16 %v5544
    %v5604 = vunpack.c.l.b16 %v5545
    %v5605 = vunpack.c.h.b16 %v5545
    %v5606 = vunpack.c.l.b16 %v5546
    %v5607 = vunpack.c.h.b16 %v5546
    %v5608 = vunpack.c.l.b16 %v5547
    %v5609 = vunpack.c.h.b16 %v5547
    %v5610 = vunpack.c.l.b16 %v5548
    %v5611 = vunpack.c.h.b16 %v5548
    %v5612 = vunpack.c.l.b16 %v5549
    %v5613 = vunpack.c.h.b16 %v5549
    %v5614 = vunpack.c.l.b16 %v5550
    %v5615 = vunpack.c.h.b16 %v5550
    %v5616 = vunpack.c.l.b16 %v5551
    %v5617 = vunpack.c.h.b16 %v5551
    %v5618 = vunpack.c.l.b16 %v5552
    %v5619 = vunpack.c.h.b16 %v5552
    %v5620 = vunpack.c.l.b16 %v5553
    %v5621 = vunpack.c.h.b16 %v5553
    %v5622 = vunpack.c.l.b16 %v5554
    %v5623 = vunpack.c.h.b16 %v5554
    %v5624 = vunpack.c.l.b16 %v5555
    %v5625 = vunpack.c.h.b16 %v5555
    %v5626 = vunpack.c.l.b16 %v5556
    %v5627 = vunpack.c.h.b16 %v5556
    %v5628 = vunpack.c.l.b16 %v5557
    %v5629 = vunpack.c.h.b16 %v5557
    %v5630 = vunpack.c.l.b16 %v5558
    %v5631 = vunpack.c.h.b16 %v5558
    %v5632 = vunpack.c.l.b16 %v5559
    %v5633 = vunpack.c.h.b16 %v5559
    %v5634 = vunpack.c.l.b16 %v5560
    %v5635 = vunpack.c.h.b16 %v5560
    %v5636 = vpack.c.b16 %v5590, %v5588
    %v5637 = vpack.c.b16 %v5591, %v5589
    %v5638 = vpack.c.b16 %v5594, %v5592
    %v5639 = vpack.c.b16 %v5595, %v5593
    %v5640 = vpack.c.b16 %v5598, %v5596
    %v5641 = vpack.c.b16 %v5599, %v5597
    %v5642 = vpack.c.b16 %v5602, %v5600
    %v5643 = vpack.c.b16 %v5603, %v5601
    %v5644 = vpack.c.b16 %v5606, %v5604
    %v5645 = vpack.c.b16 %v5607, %v5605
    %v5646 = vpack.c.b16 %v5610, %v5608
    %v5647 = vpack.c.b16 %v5611, %v5609
    %v5648 = vpack.c.b16 %v5614, %v5612
    %v5649 = vpack.c.b16 %v5615, %v5613
    %v5650 = vpack.c.b16 %v5618, %v5616
    %v5651 = vpack.c.b16 %v5619, %v5617
    %v5652 = vpack.c.b16 %v5622, %v5620
    %v5653 = vpack.c.b16 %v5623, %v5621
    %v5654 = vpack.c.b16 %v5626, %v5624
    %v5655 = vpack.c.b16 %v5627, %v5625
    %v5656 = vpack.c.b16 %v5630, %v5628
    %v5657 = vpack.c.b16 %v5631, %v5629
    %v5658 = vpack.c.b16 %v5634, %v5632
    %v5659 = vpack.c.b16 %v5635, %v5633
    %v5685 = vsel %vm721, %v5562, 0
    %5687 = vmatpush.bf16.msra.mxu0 %v5650
    %5688 = vmatpush.bf16.msra.mxu0 %v5648
    %5689 = vmatpush.bf16.msra.mxu0 %v5646
    %5690 = vmatpush.bf16.msra.mxu0 %v5644
    %5691 = vmatpush.bf16.msra.mxu0 %v5642
    %5692 = vmatpush.bf16.msra.mxu0 %v5640
    %5693 = vmatpush.bf16.msra.mxu0 %v5638
    %5694 = vmatpush.bf16.msra.mxu0 %v5636
    %5695 = vmatmul.bf16.gmra.mxu0 %v5561
    %v5696 = vpop.f32.mrf.mxu0
    %v5697 = vadd.f32 0.0, %v5696
    %v5698 = vpop.f32.mrf.mxu0
    %5699 = vdwg.mxu0
    %5700 = vmatpush.bf16.msra.mxu0 0
    %5701 = vmatpush.bf16.msra.mxu0 0
    %5702 = vmatpush.bf16.msra.mxu0 0
    %5703 = vmatpush.bf16.msra.mxu0 0
    %5704 = vmatpush.bf16.msra.mxu0 %v5658
    %5705 = vmatpush.bf16.msra.mxu0 %v5656
    %5706 = vmatpush.bf16.msra.mxu0 %v5654
    %5707 = vmatpush.bf16.msra.mxu0 %v5652
    %5708 = vmatmul.bf16.gmra.mxu0 %v5685
    %v5709 = vpop.f32.mrf.mxu0
    %v5710 = vadd.f32 %v5697, %v5709
    %v5711 = vpop.f32.mrf.mxu0
    %5712 = vdwg.mxu0
    %5713 = vmatpush.bf16.msra.mxu0 %v5651
    %5714 = vmatpush.bf16.msra.mxu0 %v5649
    %5715 = vmatpush.bf16.msra.mxu0 %v5647
    %5716 = vmatpush.bf16.msra.mxu0 %v5645
    %5717 = vmatpush.bf16.msra.mxu0 %v5643
    %5718 = vmatpush.bf16.msra.mxu0 %v5641
    %5719 = vmatpush.bf16.msra.mxu0 %v5639
    %5720 = vmatpush.bf16.msra.mxu0 %v5637
    %5721 = vmatmul.bf16.gmra.mxu0 %v5561
    %v5722 = vpop.f32.mrf.mxu0
    %v5723 = vadd.f32 0.0, %v5722
    %v5724 = vpop.f32.mrf.mxu0
    %5725 = vdwg.mxu0
    %5726 = vmatpush.bf16.msra.mxu0 0
    %5727 = vmatpush.bf16.msra.mxu0 0
    %5728 = vmatpush.bf16.msra.mxu0 0
    %5729 = vmatpush.bf16.msra.mxu0 0
    %5730 = vmatpush.bf16.msra.mxu0 %v5659
    %5731 = vmatpush.bf16.msra.mxu0 %v5657
    %5732 = vmatpush.bf16.msra.mxu0 %v5655
    %5733 = vmatpush.bf16.msra.mxu0 %v5653
    %5734 = vmatmul.bf16.gmra.mxu0 %v5685
    %v5735 = vpop.f32.mrf.mxu0
    %v5736 = vadd.f32 %v5723, %v5735
    %v5737 = vpop.f32.mrf.mxu0
    %5738 = vdwg.mxu0
    %v5739 = vadd.f32 %v5535, %v5710
    %v5740 = vadd.f32 %v5536, %v5736
    %v5741 = vld [vmem:[%s1760] sm:$0xff]
    %v5742 = vld [vmem:[%s1760 + $0x8] sm:$0xff]
    %v5743 = vld [vmem:[%s1760 + $0x10] sm:$0xff]
    %v5744 = vld [vmem:[%s1760 + $0x18] sm:$0xff]
    %v5745 = vld [vmem:[%s1760 + $0x20] sm:$0xff]
    %v5746 = vld [vmem:[%s1760 + $0x28] sm:$0xff]
    %v5747 = vld [vmem:[%s1760 + $0x30] sm:$0xff]
    %v5748 = vld [vmem:[%s1760 + $0x38] sm:$0xff]
    %v5749 = vld [vmem:[%s1760 + $0x40] sm:$0xff]
    %v5750 = vld [vmem:[%s1760 + $0x48] sm:$0xff]
    %v5751 = vld [vmem:[%s1760 + $0x50] sm:$0xff]
    %v5752 = vld [vmem:[%s1760 + $0x58] sm:$0xff]
    %v5753 = vld [vmem:[%s1760 + $0x60] sm:$0xff]
    %v5754 = vld [vmem:[%s1760 + $0x68] sm:$0xff]
    %v5755 = vld [vmem:[%s1760 + $0x70] sm:$0xff]
    %v5756 = vld [vmem:[%s1760 + $0x78] sm:$0xff]
    %v5757 = vld [vmem:[%s1760 + $0x80] sm:$0xff]
    %v5758 = vld [vmem:[%s1760 + $0x88] sm:$0xff]
    %v5759 = vld [vmem:[%s1760 + $0x90] sm:$0xff]
    %v5760 = vld [vmem:[%s1760 + $0x98] sm:$0xff]
    %v5761 = vld [vmem:[%s1760 + $0xa0] sm:$0xff]
    %v5762 = vld [vmem:[%s1760 + $0xa8] sm:$0xff]
    %v5763 = vld [vmem:[%s1760 + $0xb0] sm:$0xff]
    %v5764 = vld [vmem:[%s1760 + $0xb8] sm:$0xff]
    %v5765 = vrot.slane %v4773, 2
    %v5766 = vrot.slane %v4776, 2
    %v5792 = vunpack.c.l.b16 %v5741
    %v5793 = vunpack.c.h.b16 %v5741
    %v5794 = vunpack.c.l.b16 %v5742
    %v5795 = vunpack.c.h.b16 %v5742
    %v5796 = vunpack.c.l.b16 %v5743
    %v5797 = vunpack.c.h.b16 %v5743
    %v5798 = vunpack.c.l.b16 %v5744
    %v5799 = vunpack.c.h.b16 %v5744
    %v5800 = vunpack.c.l.b16 %v5745
    %v5801 = vunpack.c.h.b16 %v5745
    %v5802 = vunpack.c.l.b16 %v5746
    %v5803 = vunpack.c.h.b16 %v5746
    %v5804 = vunpack.c.l.b16 %v5747
    %v5805 = vunpack.c.h.b16 %v5747
    %v5806 = vunpack.c.l.b16 %v5748
    %v5807 = vunpack.c.h.b16 %v5748
    %v5808 = vunpack.c.l.b16 %v5749
    %v5809 = vunpack.c.h.b16 %v5749
    %v5810 = vunpack.c.l.b16 %v5750
    %v5811 = vunpack.c.h.b16 %v5750
    %v5812 = vunpack.c.l.b16 %v5751
    %v5813 = vunpack.c.h.b16 %v5751
    %v5814 = vunpack.c.l.b16 %v5752
    %v5815 = vunpack.c.h.b16 %v5752
    %v5816 = vunpack.c.l.b16 %v5753
    %v5817 = vunpack.c.h.b16 %v5753
    %v5818 = vunpack.c.l.b16 %v5754
    %v5819 = vunpack.c.h.b16 %v5754
    %v5820 = vunpack.c.l.b16 %v5755
    %v5821 = vunpack.c.h.b16 %v5755
    %v5822 = vunpack.c.l.b16 %v5756
    %v5823 = vunpack.c.h.b16 %v5756
    %v5824 = vunpack.c.l.b16 %v5757
    %v5825 = vunpack.c.h.b16 %v5757
    %v5826 = vunpack.c.l.b16 %v5758
    %v5827 = vunpack.c.h.b16 %v5758
    %v5828 = vunpack.c.l.b16 %v5759
    %v5829 = vunpack.c.h.b16 %v5759
    %v5830 = vunpack.c.l.b16 %v5760
    %v5831 = vunpack.c.h.b16 %v5760
    %v5832 = vunpack.c.l.b16 %v5761
    %v5833 = vunpack.c.h.b16 %v5761
    %v5834 = vunpack.c.l.b16 %v5762
    %v5835 = vunpack.c.h.b16 %v5762
    %v5836 = vunpack.c.l.b16 %v5763
    %v5837 = vunpack.c.h.b16 %v5763
    %v5838 = vunpack.c.l.b16 %v5764
    %v5839 = vunpack.c.h.b16 %v5764
    %v5840 = vpack.c.b16 %v5794, %v5792
    %v5841 = vpack.c.b16 %v5795, %v5793
    %v5842 = vpack.c.b16 %v5798, %v5796
    %v5843 = vpack.c.b16 %v5799, %v5797
    %v5844 = vpack.c.b16 %v5802, %v5800
    %v5845 = vpack.c.b16 %v5803, %v5801
    %v5846 = vpack.c.b16 %v5806, %v5804
    %v5847 = vpack.c.b16 %v5807, %v5805
    %v5848 = vpack.c.b16 %v5810, %v5808
    %v5849 = vpack.c.b16 %v5811, %v5809
    %v5850 = vpack.c.b16 %v5814, %v5812
    %v5851 = vpack.c.b16 %v5815, %v5813
    %v5852 = vpack.c.b16 %v5818, %v5816
    %v5853 = vpack.c.b16 %v5819, %v5817
    %v5854 = vpack.c.b16 %v5822, %v5820
    %v5855 = vpack.c.b16 %v5823, %v5821
    %v5856 = vpack.c.b16 %v5826, %v5824
    %v5857 = vpack.c.b16 %v5827, %v5825
    %v5858 = vpack.c.b16 %v5830, %v5828
    %v5859 = vpack.c.b16 %v5831, %v5829
    %v5860 = vpack.c.b16 %v5834, %v5832
    %v5861 = vpack.c.b16 %v5835, %v5833
    %v5862 = vpack.c.b16 %v5838, %v5836
    %v5863 = vpack.c.b16 %v5839, %v5837
    %v5889 = vsel %vm721, %v5766, 0
    %5891 = vmatpush.bf16.msra.mxu0 %v5854
    %5892 = vmatpush.bf16.msra.mxu0 %v5852
    %5893 = vmatpush.bf16.msra.mxu0 %v5850
    %5894 = vmatpush.bf16.msra.mxu0 %v5848
    %5895 = vmatpush.bf16.msra.mxu0 %v5846
    %5896 = vmatpush.bf16.msra.mxu0 %v5844
    %5897 = vmatpush.bf16.msra.mxu0 %v5842
    %5898 = vmatpush.bf16.msra.mxu0 %v5840
    %5899 = vmatmul.bf16.gmra.mxu0 %v5765
    %v5900 = vpop.f32.mrf.mxu0
    %v5901 = vadd.f32 0.0, %v5900
    %v5902 = vpop.f32.mrf.mxu0
    %5903 = vdwg.mxu0
    %5904 = vmatpush.bf16.msra.mxu0 0
    %5905 = vmatpush.bf16.msra.mxu0 0
    %5906 = vmatpush.bf16.msra.mxu0 0
    %5907 = vmatpush.bf16.msra.mxu0 0
    %5908 = vmatpush.bf16.msra.mxu0 %v5862
    %5909 = vmatpush.bf16.msra.mxu0 %v5860
    %5910 = vmatpush.bf16.msra.mxu0 %v5858
    %5911 = vmatpush.bf16.msra.mxu0 %v5856
    %5912 = vmatmul.bf16.gmra.mxu0 %v5889
    %v5913 = vpop.f32.mrf.mxu0
    %v5914 = vadd.f32 %v5901, %v5913
    %v5915 = vpop.f32.mrf.mxu0
    %5916 = vdwg.mxu0
    %5917 = vmatpush.bf16.msra.mxu0 %v5855
    %5918 = vmatpush.bf16.msra.mxu0 %v5853
    %5919 = vmatpush.bf16.msra.mxu0 %v5851
    %5920 = vmatpush.bf16.msra.mxu0 %v5849
    %5921 = vmatpush.bf16.msra.mxu0 %v5847
    %5922 = vmatpush.bf16.msra.mxu0 %v5845
    %5923 = vmatpush.bf16.msra.mxu0 %v5843
    %5924 = vmatpush.bf16.msra.mxu0 %v5841
    %5925 = vmatmul.bf16.gmra.mxu0 %v5765
    %v5926 = vpop.f32.mrf.mxu0
    %v5927 = vadd.f32 0.0, %v5926
    %v5928 = vpop.f32.mrf.mxu0
    %5929 = vdwg.mxu0
    %5930 = vmatpush.bf16.msra.mxu0 0
    %5931 = vmatpush.bf16.msra.mxu0 0
    %5932 = vmatpush.bf16.msra.mxu0 0
    %5933 = vmatpush.bf16.msra.mxu0 0
    %5934 = vmatpush.bf16.msra.mxu0 %v5863
    %5935 = vmatpush.bf16.msra.mxu0 %v5861
    %5936 = vmatpush.bf16.msra.mxu0 %v5859
    %5937 = vmatpush.bf16.msra.mxu0 %v5857
    %5938 = vmatmul.bf16.gmra.mxu0 %v5889
    %v5939 = vpop.f32.mrf.mxu0
    %v5940 = vadd.f32 %v5927, %v5939
    %v5941 = vpop.f32.mrf.mxu0
    %5942 = vdwg.mxu0
    %v5943 = vadd.f32 %v5739, %v5914
    %v5944 = vadd.f32 %v5740, %v5940
    %v5945 = vld [vmem:[%s1965] sm:$0xff]
    %v5946 = vld [vmem:[%s1965 + $0x8] sm:$0xff]
    %v5947 = vld [vmem:[%s1965 + $0x10] sm:$0xff]
    %v5948 = vld [vmem:[%s1965 + $0x18] sm:$0xff]
    %v5949 = vld [vmem:[%s1965 + $0x20] sm:$0xff]
    %v5950 = vld [vmem:[%s1965 + $0x28] sm:$0xff]
    %v5951 = vld [vmem:[%s1965 + $0x30] sm:$0xff]
    %v5952 = vld [vmem:[%s1965 + $0x38] sm:$0xff]
    %v5953 = vld [vmem:[%s1965 + $0x40] sm:$0xff]
    %v5954 = vld [vmem:[%s1965 + $0x48] sm:$0xff]
    %v5955 = vld [vmem:[%s1965 + $0x50] sm:$0xff]
    %v5956 = vld [vmem:[%s1965 + $0x58] sm:$0xff]
    %v5957 = vld [vmem:[%s1965 + $0x60] sm:$0xff]
    %v5958 = vld [vmem:[%s1965 + $0x68] sm:$0xff]
    %v5959 = vld [vmem:[%s1965 + $0x70] sm:$0xff]
    %v5960 = vld [vmem:[%s1965 + $0x78] sm:$0xff]
    %v5961 = vld [vmem:[%s1965 + $0x80] sm:$0xff]
    %v5962 = vld [vmem:[%s1965 + $0x88] sm:$0xff]
    %v5963 = vld [vmem:[%s1965 + $0x90] sm:$0xff]
    %v5964 = vld [vmem:[%s1965 + $0x98] sm:$0xff]
    %v5965 = vld [vmem:[%s1965 + $0xa0] sm:$0xff]
    %v5966 = vld [vmem:[%s1965 + $0xa8] sm:$0xff]
    %v5967 = vld [vmem:[%s1965 + $0xb0] sm:$0xff]
    %v5968 = vld [vmem:[%s1965 + $0xb8] sm:$0xff]
    %v5969 = vrot.slane %v4770, 3
    %v5970 = vrot.slane %v4771, 3
    %v5996 = vunpack.c.l.b16 %v5945
    %v5997 = vunpack.c.h.b16 %v5945
    %v5998 = vunpack.c.l.b16 %v5946
    %v5999 = vunpack.c.h.b16 %v5946
    %v6000 = vunpack.c.l.b16 %v5947
    %v6001 = vunpack.c.h.b16 %v5947
    %v6002 = vunpack.c.l.b16 %v5948
    %v6003 = vunpack.c.h.b16 %v5948
    %v6004 = vunpack.c.l.b16 %v5949
    %v6005 = vunpack.c.h.b16 %v5949
    %v6006 = vunpack.c.l.b16 %v5950
    %v6007 = vunpack.c.h.b16 %v5950
    %v6008 = vunpack.c.l.b16 %v5951
    %v6009 = vunpack.c.h.b16 %v5951
    %v6010 = vunpack.c.l.b16 %v5952
    %v6011 = vunpack.c.h.b16 %v5952
    %v6012 = vunpack.c.l.b16 %v5953
    %v6013 = vunpack.c.h.b16 %v5953
    %v6014 = vunpack.c.l.b16 %v5954
    %v6015 = vunpack.c.h.b16 %v5954
    %v6016 = vunpack.c.l.b16 %v5955
    %v6017 = vunpack.c.h.b16 %v5955
    %v6018 = vunpack.c.l.b16 %v5956
    %v6019 = vunpack.c.h.b16 %v5956
    %v6020 = vunpack.c.l.b16 %v5957
    %v6021 = vunpack.c.h.b16 %v5957
    %v6022 = vunpack.c.l.b16 %v5958
    %v6023 = vunpack.c.h.b16 %v5958
    %v6024 = vunpack.c.l.b16 %v5959
    %v6025 = vunpack.c.h.b16 %v5959
    %v6026 = vunpack.c.l.b16 %v5960
    %v6027 = vunpack.c.h.b16 %v5960
    %v6028 = vunpack.c.l.b16 %v5961
    %v6029 = vunpack.c.h.b16 %v5961
    %v6030 = vunpack.c.l.b16 %v5962
    %v6031 = vunpack.c.h.b16 %v5962
    %v6032 = vunpack.c.l.b16 %v5963
    %v6033 = vunpack.c.h.b16 %v5963
    %v6034 = vunpack.c.l.b16 %v5964
    %v6035 = vunpack.c.h.b16 %v5964
    %v6036 = vunpack.c.l.b16 %v5965
    %v6037 = vunpack.c.h.b16 %v5965
    %v6038 = vunpack.c.l.b16 %v5966
    %v6039 = vunpack.c.h.b16 %v5966
    %v6040 = vunpack.c.l.b16 %v5967
    %v6041 = vunpack.c.h.b16 %v5967
    %v6042 = vunpack.c.l.b16 %v5968
    %v6043 = vunpack.c.h.b16 %v5968
    %v6044 = vpack.c.b16 %v5998, %v5996
    %v6045 = vpack.c.b16 %v5999, %v5997
    %v6046 = vpack.c.b16 %v6002, %v6000
    %v6047 = vpack.c.b16 %v6003, %v6001
    %v6048 = vpack.c.b16 %v6006, %v6004
    %v6049 = vpack.c.b16 %v6007, %v6005
    %v6050 = vpack.c.b16 %v6010, %v6008
    %v6051 = vpack.c.b16 %v6011, %v6009
    %v6052 = vpack.c.b16 %v6014, %v6012
    %v6053 = vpack.c.b16 %v6015, %v6013
    %v6054 = vpack.c.b16 %v6018, %v6016
    %v6055 = vpack.c.b16 %v6019, %v6017
    %v6056 = vpack.c.b16 %v6022, %v6020
    %v6057 = vpack.c.b16 %v6023, %v6021
    %v6058 = vpack.c.b16 %v6026, %v6024
    %v6059 = vpack.c.b16 %v6027, %v6025
    %v6060 = vpack.c.b16 %v6030, %v6028
    %v6061 = vpack.c.b16 %v6031, %v6029
    %v6062 = vpack.c.b16 %v6034, %v6032
    %v6063 = vpack.c.b16 %v6035, %v6033
    %v6064 = vpack.c.b16 %v6038, %v6036
    %v6065 = vpack.c.b16 %v6039, %v6037
    %v6066 = vpack.c.b16 %v6042, %v6040
    %v6067 = vpack.c.b16 %v6043, %v6041
    %v6093 = vsel %vm721, %v5970, 0
    %6095 = vmatpush.bf16.msra.mxu0 %v6058
    %6096 = vmatpush.bf16.msra.mxu0 %v6056
    %6097 = vmatpush.bf16.msra.mxu0 %v6054
    %6098 = vmatpush.bf16.msra.mxu0 %v6052
    %6099 = vmatpush.bf16.msra.mxu0 %v6050
    %6100 = vmatpush.bf16.msra.mxu0 %v6048
    %6101 = vmatpush.bf16.msra.mxu0 %v6046
    %6102 = vmatpush.bf16.msra.mxu0 %v6044
    %6103 = vmatmul.bf16.gmra.mxu0 %v5969
    %v6104 = vpop.f32.mrf.mxu0
    %v6105 = vadd.f32 0.0, %v6104
    %v6106 = vpop.f32.mrf.mxu0
    %6107 = vdwg.mxu0
    %6108 = vmatpush.bf16.msra.mxu0 0
    %6109 = vmatpush.bf16.msra.mxu0 0
    %6110 = vmatpush.bf16.msra.mxu0 0
    %6111 = vmatpush.bf16.msra.mxu0 0
    %6112 = vmatpush.bf16.msra.mxu0 %v6066
    %6113 = vmatpush.bf16.msra.mxu0 %v6064
    %6114 = vmatpush.bf16.msra.mxu0 %v6062
    %6115 = vmatpush.bf16.msra.mxu0 %v6060
    %6116 = vmatmul.bf16.gmra.mxu0 %v6093
    %v6117 = vpop.f32.mrf.mxu0
    %v6118 = vadd.f32 %v6105, %v6117
    %v6119 = vpop.f32.mrf.mxu0
    %6120 = vdwg.mxu0
    %6121 = vmatpush.bf16.msra.mxu0 %v6059
    %6122 = vmatpush.bf16.msra.mxu0 %v6057
    %6123 = vmatpush.bf16.msra.mxu0 %v6055
    %6124 = vmatpush.bf16.msra.mxu0 %v6053
    %6125 = vmatpush.bf16.msra.mxu0 %v6051
    %6126 = vmatpush.bf16.msra.mxu0 %v6049
    %6127 = vmatpush.bf16.msra.mxu0 %v6047
    %6128 = vmatpush.bf16.msra.mxu0 %v6045
    %6129 = vmatmul.bf16.gmra.mxu0 %v5969
    %v6130 = vpop.f32.mrf.mxu0
    %v6131 = vadd.f32 0.0, %v6130
    %v6132 = vpop.f32.mrf.mxu0
    %6133 = vdwg.mxu0
    %6134 = vmatpush.bf16.msra.mxu0 0
    %6135 = vmatpush.bf16.msra.mxu0 0
    %6136 = vmatpush.bf16.msra.mxu0 0
    %6137 = vmatpush.bf16.msra.mxu0 0
    %6138 = vmatpush.bf16.msra.mxu0 %v6067
    %6139 = vmatpush.bf16.msra.mxu0 %v6065
    %6140 = vmatpush.bf16.msra.mxu0 %v6063
    %6141 = vmatpush.bf16.msra.mxu0 %v6061
    %6142 = vmatmul.bf16.gmra.mxu0 %v6093
    %v6143 = vpop.f32.mrf.mxu0
    %v6144 = vadd.f32 %v6131, %v6143
    %v6145 = vpop.f32.mrf.mxu0
    %6146 = vdwg.mxu0
    %v6147 = vadd.f32 %v5943, %v6118
    %v6148 = vadd.f32 %v5944, %v6144
    %v6149 = vld [vmem:[%s2170] sm:$0xff]
    %v6150 = vld [vmem:[%s2170 + $0x8] sm:$0xff]
    %v6151 = vld [vmem:[%s2170 + $0x10] sm:$0xff]
    %v6152 = vld [vmem:[%s2170 + $0x18] sm:$0xff]
    %v6153 = vld [vmem:[%s2170 + $0x20] sm:$0xff]
    %v6154 = vld [vmem:[%s2170 + $0x28] sm:$0xff]
    %v6155 = vld [vmem:[%s2170 + $0x30] sm:$0xff]
    %v6156 = vld [vmem:[%s2170 + $0x38] sm:$0xff]
    %v6157 = vld [vmem:[%s2170 + $0x40] sm:$0xff]
    %v6158 = vld [vmem:[%s2170 + $0x48] sm:$0xff]
    %v6159 = vld [vmem:[%s2170 + $0x50] sm:$0xff]
    %v6160 = vld [vmem:[%s2170 + $0x58] sm:$0xff]
    %v6161 = vld [vmem:[%s2170 + $0x60] sm:$0xff]
    %v6162 = vld [vmem:[%s2170 + $0x68] sm:$0xff]
    %v6163 = vld [vmem:[%s2170 + $0x70] sm:$0xff]
    %v6164 = vld [vmem:[%s2170 + $0x78] sm:$0xff]
    %v6165 = vld [vmem:[%s2170 + $0x80] sm:$0xff]
    %v6166 = vld [vmem:[%s2170 + $0x88] sm:$0xff]
    %v6167 = vld [vmem:[%s2170 + $0x90] sm:$0xff]
    %v6168 = vld [vmem:[%s2170 + $0x98] sm:$0xff]
    %v6169 = vld [vmem:[%s2170 + $0xa0] sm:$0xff]
    %v6170 = vld [vmem:[%s2170 + $0xa8] sm:$0xff]
    %v6171 = vld [vmem:[%s2170 + $0xb0] sm:$0xff]
    %v6172 = vld [vmem:[%s2170 + $0xb8] sm:$0xff]
    %v6173 = vrot.slane %v4773, 3
    %v6174 = vrot.slane %v4776, 3
    %v6200 = vunpack.c.l.b16 %v6149
    %v6201 = vunpack.c.h.b16 %v6149
    %v6202 = vunpack.c.l.b16 %v6150
    %v6203 = vunpack.c.h.b16 %v6150
    %v6204 = vunpack.c.l.b16 %v6151
    %v6205 = vunpack.c.h.b16 %v6151
    %v6206 = vunpack.c.l.b16 %v6152
    %v6207 = vunpack.c.h.b16 %v6152
    %v6208 = vunpack.c.l.b16 %v6153
    %v6209 = vunpack.c.h.b16 %v6153
    %v6210 = vunpack.c.l.b16 %v6154
    %v6211 = vunpack.c.h.b16 %v6154
    %v6212 = vunpack.c.l.b16 %v6155
    %v6213 = vunpack.c.h.b16 %v6155
    %v6214 = vunpack.c.l.b16 %v6156
    %v6215 = vunpack.c.h.b16 %v6156
    %v6216 = vunpack.c.l.b16 %v6157
    %v6217 = vunpack.c.h.b16 %v6157
    %v6218 = vunpack.c.l.b16 %v6158
    %v6219 = vunpack.c.h.b16 %v6158
    %v6220 = vunpack.c.l.b16 %v6159
    %v6221 = vunpack.c.h.b16 %v6159
    %v6222 = vunpack.c.l.b16 %v6160
    %v6223 = vunpack.c.h.b16 %v6160
    %v6224 = vunpack.c.l.b16 %v6161
    %v6225 = vunpack.c.h.b16 %v6161
    %v6226 = vunpack.c.l.b16 %v6162
    %v6227 = vunpack.c.h.b16 %v6162
    %v6228 = vunpack.c.l.b16 %v6163
    %v6229 = vunpack.c.h.b16 %v6163
    %v6230 = vunpack.c.l.b16 %v6164
    %v6231 = vunpack.c.h.b16 %v6164
    %v6232 = vunpack.c.l.b16 %v6165
    %v6233 = vunpack.c.h.b16 %v6165
    %v6234 = vunpack.c.l.b16 %v6166
    %v6235 = vunpack.c.h.b16 %v6166
    %v6236 = vunpack.c.l.b16 %v6167
    %v6237 = vunpack.c.h.b16 %v6167
    %v6238 = vunpack.c.l.b16 %v6168
    %v6239 = vunpack.c.h.b16 %v6168
    %v6240 = vunpack.c.l.b16 %v6169
    %v6241 = vunpack.c.h.b16 %v6169
    %v6242 = vunpack.c.l.b16 %v6170
    %v6243 = vunpack.c.h.b16 %v6170
    %v6244 = vunpack.c.l.b16 %v6171
    %v6245 = vunpack.c.h.b16 %v6171
    %v6246 = vunpack.c.l.b16 %v6172
    %v6247 = vunpack.c.h.b16 %v6172
    %v6248 = vpack.c.b16 %v6202, %v6200
    %v6249 = vpack.c.b16 %v6203, %v6201
    %v6250 = vpack.c.b16 %v6206, %v6204
    %v6251 = vpack.c.b16 %v6207, %v6205
    %v6252 = vpack.c.b16 %v6210, %v6208
    %v6253 = vpack.c.b16 %v6211, %v6209
    %v6254 = vpack.c.b16 %v6214, %v6212
    %v6255 = vpack.c.b16 %v6215, %v6213
    %v6256 = vpack.c.b16 %v6218, %v6216
    %v6257 = vpack.c.b16 %v6219, %v6217
    %v6258 = vpack.c.b16 %v6222, %v6220
    %v6259 = vpack.c.b16 %v6223, %v6221
    %v6260 = vpack.c.b16 %v6226, %v6224
    %v6261 = vpack.c.b16 %v6227, %v6225
    %v6262 = vpack.c.b16 %v6230, %v6228
    %v6263 = vpack.c.b16 %v6231, %v6229
    %v6264 = vpack.c.b16 %v6234, %v6232
    %v6265 = vpack.c.b16 %v6235, %v6233
    %v6266 = vpack.c.b16 %v6238, %v6236
    %v6267 = vpack.c.b16 %v6239, %v6237
    %v6268 = vpack.c.b16 %v6242, %v6240
    %v6269 = vpack.c.b16 %v6243, %v6241
    %v6270 = vpack.c.b16 %v6246, %v6244
    %v6271 = vpack.c.b16 %v6247, %v6245
    %v6297 = vsel %vm721, %v6174, 0
    %6299 = vmatpush.bf16.msra.mxu0 %v6262
    %6300 = vmatpush.bf16.msra.mxu0 %v6260
    %6301 = vmatpush.bf16.msra.mxu0 %v6258
    %6302 = vmatpush.bf16.msra.mxu0 %v6256
    %6303 = vmatpush.bf16.msra.mxu0 %v6254
    %6304 = vmatpush.bf16.msra.mxu0 %v6252
    %6305 = vmatpush.bf16.msra.mxu0 %v6250
    %6306 = vmatpush.bf16.msra.mxu0 %v6248
    %6307 = vmatmul.bf16.gmra.mxu0 %v6173
    %v6308 = vpop.f32.mrf.mxu0
    %v6309 = vadd.f32 0.0, %v6308
    %v6310 = vpop.f32.mrf.mxu0
    %6311 = vdwg.mxu0
    %6312 = vmatpush.bf16.msra.mxu0 0
    %6313 = vmatpush.bf16.msra.mxu0 0
    %6314 = vmatpush.bf16.msra.mxu0 0
    %6315 = vmatpush.bf16.msra.mxu0 0
    %6316 = vmatpush.bf16.msra.mxu0 %v6270
    %6317 = vmatpush.bf16.msra.mxu0 %v6268
    %6318 = vmatpush.bf16.msra.mxu0 %v6266
    %6319 = vmatpush.bf16.msra.mxu0 %v6264
    %6320 = vmatmul.bf16.gmra.mxu0 %v6297
    %v6321 = vpop.f32.mrf.mxu0
    %v6322 = vadd.f32 %v6309, %v6321
    %v6323 = vpop.f32.mrf.mxu0
    %6324 = vdwg.mxu0
    %6325 = vmatpush.bf16.msra.mxu0 %v6263
    %6326 = vmatpush.bf16.msra.mxu0 %v6261
    %6327 = vmatpush.bf16.msra.mxu0 %v6259
    %6328 = vmatpush.bf16.msra.mxu0 %v6257
    %6329 = vmatpush.bf16.msra.mxu0 %v6255
    %6330 = vmatpush.bf16.msra.mxu0 %v6253
    %6331 = vmatpush.bf16.msra.mxu0 %v6251
    %6332 = vmatpush.bf16.msra.mxu0 %v6249
    %6333 = vmatmul.bf16.gmra.mxu0 %v6173
    %v6334 = vpop.f32.mrf.mxu0
    %v6335 = vadd.f32 0.0, %v6334
    %v6336 = vpop.f32.mrf.mxu0
    %6337 = vdwg.mxu0
    %6338 = vmatpush.bf16.msra.mxu0 0
    %6339 = vmatpush.bf16.msra.mxu0 0
    %6340 = vmatpush.bf16.msra.mxu0 0
    %6341 = vmatpush.bf16.msra.mxu0 0
    %6342 = vmatpush.bf16.msra.mxu0 %v6271
    %6343 = vmatpush.bf16.msra.mxu0 %v6269
    %6344 = vmatpush.bf16.msra.mxu0 %v6267
    %6345 = vmatpush.bf16.msra.mxu0 %v6265
    %6346 = vmatmul.bf16.gmra.mxu0 %v6297
    %v6347 = vpop.f32.mrf.mxu0
    %v6348 = vadd.f32 %v6335, %v6347
    %v6349 = vpop.f32.mrf.mxu0
    %6350 = vdwg.mxu0
    %v6351 = vadd.f32 %v6147, %v6322
    %v6352 = vadd.f32 %v6148, %v6348
    %v6353 = vld [vmem:[%s2375] sm:$0xff]
    %v6354 = vld [vmem:[%s2375 + $0x8] sm:$0xff]
    %v6355 = vld [vmem:[%s2375 + $0x10] sm:$0xff]
    %v6356 = vld [vmem:[%s2375 + $0x18] sm:$0xff]
    %v6357 = vld [vmem:[%s2375 + $0x20] sm:$0xff]
    %v6358 = vld [vmem:[%s2375 + $0x28] sm:$0xff]
    %v6359 = vld [vmem:[%s2375 + $0x30] sm:$0xff]
    %v6360 = vld [vmem:[%s2375 + $0x38] sm:$0xff]
    %v6361 = vld [vmem:[%s2375 + $0x40] sm:$0xff]
    %v6362 = vld [vmem:[%s2375 + $0x48] sm:$0xff]
    %v6363 = vld [vmem:[%s2375 + $0x50] sm:$0xff]
    %v6364 = vld [vmem:[%s2375 + $0x58] sm:$0xff]
    %v6365 = vld [vmem:[%s2375 + $0x60] sm:$0xff]
    %v6366 = vld [vmem:[%s2375 + $0x68] sm:$0xff]
    %v6367 = vld [vmem:[%s2375 + $0x70] sm:$0xff]
    %v6368 = vld [vmem:[%s2375 + $0x78] sm:$0xff]
    %v6369 = vld [vmem:[%s2375 + $0x80] sm:$0xff]
    %v6370 = vld [vmem:[%s2375 + $0x88] sm:$0xff]
    %v6371 = vld [vmem:[%s2375 + $0x90] sm:$0xff]
    %v6372 = vld [vmem:[%s2375 + $0x98] sm:$0xff]
    %v6373 = vld [vmem:[%s2375 + $0xa0] sm:$0xff]
    %v6374 = vld [vmem:[%s2375 + $0xa8] sm:$0xff]
    %v6375 = vld [vmem:[%s2375 + $0xb0] sm:$0xff]
    %v6376 = vld [vmem:[%s2375 + $0xb8] sm:$0xff]
    %v6378 = vunpack.c.l.b16 %v4718
    %v6379 = vunpack.c.h.b16 %v4718
    %v6380 = vpack.c.b16 %v6378, %v6378
    %v6381 = vpack.c.b16 %v6379, %v6379
    %v6407 = vunpack.c.l.b16 %v6353
    %v6408 = vunpack.c.h.b16 %v6353
    %v6409 = vunpack.c.l.b16 %v6354
    %v6410 = vunpack.c.h.b16 %v6354
    %v6411 = vunpack.c.l.b16 %v6355
    %v6412 = vunpack.c.h.b16 %v6355
    %v6413 = vunpack.c.l.b16 %v6356
    %v6414 = vunpack.c.h.b16 %v6356
    %v6415 = vunpack.c.l.b16 %v6357
    %v6416 = vunpack.c.h.b16 %v6357
    %v6417 = vunpack.c.l.b16 %v6358
    %v6418 = vunpack.c.h.b16 %v6358
    %v6419 = vunpack.c.l.b16 %v6359
    %v6420 = vunpack.c.h.b16 %v6359
    %v6421 = vunpack.c.l.b16 %v6360
    %v6422 = vunpack.c.h.b16 %v6360
    %v6423 = vunpack.c.l.b16 %v6361
    %v6424 = vunpack.c.h.b16 %v6361
    %v6425 = vunpack.c.l.b16 %v6362
    %v6426 = vunpack.c.h.b16 %v6362
    %v6427 = vunpack.c.l.b16 %v6363
    %v6428 = vunpack.c.h.b16 %v6363
    %v6429 = vunpack.c.l.b16 %v6364
    %v6430 = vunpack.c.h.b16 %v6364
    %v6431 = vunpack.c.l.b16 %v6365
    %v6432 = vunpack.c.h.b16 %v6365
    %v6433 = vunpack.c.l.b16 %v6366
    %v6434 = vunpack.c.h.b16 %v6366
    %v6435 = vunpack.c.l.b16 %v6367
    %v6436 = vunpack.c.h.b16 %v6367
    %v6437 = vunpack.c.l.b16 %v6368
    %v6438 = vunpack.c.h.b16 %v6368
    %v6439 = vunpack.c.l.b16 %v6369
    %v6440 = vunpack.c.h.b16 %v6369
    %v6441 = vunpack.c.l.b16 %v6370
    %v6442 = vunpack.c.h.b16 %v6370
    %v6443 = vunpack.c.l.b16 %v6371
    %v6444 = vunpack.c.h.b16 %v6371
    %v6445 = vunpack.c.l.b16 %v6372
    %v6446 = vunpack.c.h.b16 %v6372
    %v6447 = vunpack.c.l.b16 %v6373
    %v6448 = vunpack.c.h.b16 %v6373
    %v6449 = vunpack.c.l.b16 %v6374
    %v6450 = vunpack.c.h.b16 %v6374
    %v6451 = vunpack.c.l.b16 %v6375
    %v6452 = vunpack.c.h.b16 %v6375
    %v6453 = vunpack.c.l.b16 %v6376
    %v6454 = vunpack.c.h.b16 %v6376
    %v6455 = vpack.c.b16 %v6409, %v6407
    %v6456 = vpack.c.b16 %v6410, %v6408
    %v6457 = vpack.c.b16 %v6413, %v6411
    %v6458 = vpack.c.b16 %v6414, %v6412
    %v6459 = vpack.c.b16 %v6417, %v6415
    %v6460 = vpack.c.b16 %v6418, %v6416
    %v6461 = vpack.c.b16 %v6421, %v6419
    %v6462 = vpack.c.b16 %v6422, %v6420
    %v6463 = vpack.c.b16 %v6425, %v6423
    %v6464 = vpack.c.b16 %v6426, %v6424
    %v6465 = vpack.c.b16 %v6429, %v6427
    %v6466 = vpack.c.b16 %v6430, %v6428
    %v6467 = vpack.c.b16 %v6433, %v6431
    %v6468 = vpack.c.b16 %v6434, %v6432
    %v6469 = vpack.c.b16 %v6437, %v6435
    %v6470 = vpack.c.b16 %v6438, %v6436
    %v6471 = vpack.c.b16 %v6441, %v6439
    %v6472 = vpack.c.b16 %v6442, %v6440
    %v6473 = vpack.c.b16 %v6445, %v6443
    %v6474 = vpack.c.b16 %v6446, %v6444
    %v6475 = vpack.c.b16 %v6449, %v6447
    %v6476 = vpack.c.b16 %v6450, %v6448
    %v6477 = vpack.c.b16 %v6453, %v6451
    %v6478 = vpack.c.b16 %v6454, %v6452
    %v6504 = vsel %vm721, %v6381, 0
    %6506 = vmatpush.bf16.msra.mxu0 %v6469
    %6507 = vmatpush.bf16.msra.mxu0 %v6467
    %6508 = vmatpush.bf16.msra.mxu0 %v6465
    %6509 = vmatpush.bf16.msra.mxu0 %v6463
    %6510 = vmatpush.bf16.msra.mxu0 %v6461
    %6511 = vmatpush.bf16.msra.mxu0 %v6459
    %6512 = vmatpush.bf16.msra.mxu0 %v6457
    %6513 = vmatpush.bf16.msra.mxu0 %v6455
    %6514 = vmatmul.bf16.gmra.mxu0 %v6380
    %v6515 = vpop.f32.mrf.mxu0
    %v6516 = vadd.f32 0.0, %v6515
    %v6517 = vpop.f32.mrf.mxu0
    %6518 = vdwg.mxu0
    %6519 = vmatpush.bf16.msra.mxu0 0
    %6520 = vmatpush.bf16.msra.mxu0 0
    %6521 = vmatpush.bf16.msra.mxu0 0
    %6522 = vmatpush.bf16.msra.mxu0 0
    %6523 = vmatpush.bf16.msra.mxu0 %v6477
    %6524 = vmatpush.bf16.msra.mxu0 %v6475
    %6525 = vmatpush.bf16.msra.mxu0 %v6473
    %6526 = vmatpush.bf16.msra.mxu0 %v6471
    %6527 = vmatmul.bf16.gmra.mxu0 %v6504
    %v6528 = vpop.f32.mrf.mxu0
    %v6529 = vadd.f32 %v6516, %v6528
    %v6530 = vpop.f32.mrf.mxu0
    %6531 = vdwg.mxu0
    %6532 = vmatpush.bf16.msra.mxu0 %v6470
    %6533 = vmatpush.bf16.msra.mxu0 %v6468
    %6534 = vmatpush.bf16.msra.mxu0 %v6466
    %6535 = vmatpush.bf16.msra.mxu0 %v6464
    %6536 = vmatpush.bf16.msra.mxu0 %v6462
    %6537 = vmatpush.bf16.msra.mxu0 %v6460
    %6538 = vmatpush.bf16.msra.mxu0 %v6458
    %6539 = vmatpush.bf16.msra.mxu0 %v6456
    %6540 = vmatmul.bf16.gmra.mxu0 %v6380
    %v6541 = vpop.f32.mrf.mxu0
    %v6542 = vadd.f32 0.0, %v6541
    %v6543 = vpop.f32.mrf.mxu0
    %6544 = vdwg.mxu0
    %6545 = vmatpush.bf16.msra.mxu0 0
    %6546 = vmatpush.bf16.msra.mxu0 0
    %6547 = vmatpush.bf16.msra.mxu0 0
    %6548 = vmatpush.bf16.msra.mxu0 0
    %6549 = vmatpush.bf16.msra.mxu0 %v6478
    %6550 = vmatpush.bf16.msra.mxu0 %v6476
    %6551 = vmatpush.bf16.msra.mxu0 %v6474
    %6552 = vmatpush.bf16.msra.mxu0 %v6472
    %6553 = vmatmul.bf16.gmra.mxu0 %v6504
    %v6554 = vpop.f32.mrf.mxu0
    %v6555 = vadd.f32 %v6542, %v6554
    %v6556 = vpop.f32.mrf.mxu0
    %6557 = vdwg.mxu0
    %v6558 = vadd.f32 %v6351, %v6529
    %v6559 = vadd.f32 %v6352, %v6555
    %v6560 = vld [vmem:[%s2583] sm:$0xff]
    %v6561 = vld [vmem:[%s2583 + $0x8] sm:$0xff]
    %v6562 = vld [vmem:[%s2583 + $0x10] sm:$0xff]
    %v6563 = vld [vmem:[%s2583 + $0x18] sm:$0xff]
    %v6564 = vld [vmem:[%s2583 + $0x20] sm:$0xff]
    %v6565 = vld [vmem:[%s2583 + $0x28] sm:$0xff]
    %v6566 = vld [vmem:[%s2583 + $0x30] sm:$0xff]
    %v6567 = vld [vmem:[%s2583 + $0x38] sm:$0xff]
    %v6568 = vld [vmem:[%s2583 + $0x40] sm:$0xff]
    %v6569 = vld [vmem:[%s2583 + $0x48] sm:$0xff]
    %v6570 = vld [vmem:[%s2583 + $0x50] sm:$0xff]
    %v6571 = vld [vmem:[%s2583 + $0x58] sm:$0xff]
    %v6572 = vld [vmem:[%s2583 + $0x60] sm:$0xff]
    %v6573 = vld [vmem:[%s2583 + $0x68] sm:$0xff]
    %v6574 = vld [vmem:[%s2583 + $0x70] sm:$0xff]
    %v6575 = vld [vmem:[%s2583 + $0x78] sm:$0xff]
    %v6576 = vld [vmem:[%s2583 + $0x80] sm:$0xff]
    %v6577 = vld [vmem:[%s2583 + $0x88] sm:$0xff]
    %v6578 = vld [vmem:[%s2583 + $0x90] sm:$0xff]
    %v6579 = vld [vmem:[%s2583 + $0x98] sm:$0xff]
    %v6580 = vld [vmem:[%s2583 + $0xa0] sm:$0xff]
    %v6581 = vld [vmem:[%s2583 + $0xa8] sm:$0xff]
    %v6582 = vld [vmem:[%s2583 + $0xb0] sm:$0xff]
    %v6583 = vld [vmem:[%s2583 + $0xb8] sm:$0xff]
    %v6585 = vshrl.u32 %v6380, 16
    %v6587 = vshrl.u32 %v6381, 16
    %v6614 = vunpack.c.l.b16 %v6560
    %v6615 = vunpack.c.h.b16 %v6560
    %v6616 = vunpack.c.l.b16 %v6561
    %v6617 = vunpack.c.h.b16 %v6561
    %v6618 = vunpack.c.l.b16 %v6562
    %v6619 = vunpack.c.h.b16 %v6562
    %v6620 = vunpack.c.l.b16 %v6563
    %v6621 = vunpack.c.h.b16 %v6563
    %v6622 = vunpack.c.l.b16 %v6564
    %v6623 = vunpack.c.h.b16 %v6564
    %v6624 = vunpack.c.l.b16 %v6565
    %v6625 = vunpack.c.h.b16 %v6565
    %v6626 = vunpack.c.l.b16 %v6566
    %v6627 = vunpack.c.h.b16 %v6566
    %v6628 = vunpack.c.l.b16 %v6567
    %v6629 = vunpack.c.h.b16 %v6567
    %v6630 = vunpack.c.l.b16 %v6568
    %v6631 = vunpack.c.h.b16 %v6568
    %v6632 = vunpack.c.l.b16 %v6569
    %v6633 = vunpack.c.h.b16 %v6569
    %v6634 = vunpack.c.l.b16 %v6570
    %v6635 = vunpack.c.h.b16 %v6570
    %v6636 = vunpack.c.l.b16 %v6571
    %v6637 = vunpack.c.h.b16 %v6571
    %v6638 = vunpack.c.l.b16 %v6572
    %v6639 = vunpack.c.h.b16 %v6572
    %v6640 = vunpack.c.l.b16 %v6573
    %v6641 = vunpack.c.h.b16 %v6573
    %v6642 = vunpack.c.l.b16 %v6574
    %v6643 = vunpack.c.h.b16 %v6574
    %v6644 = vunpack.c.l.b16 %v6575
    %v6645 = vunpack.c.h.b16 %v6575
    %v6646 = vunpack.c.l.b16 %v6576
    %v6647 = vunpack.c.h.b16 %v6576
    %v6648 = vunpack.c.l.b16 %v6577
    %v6649 = vunpack.c.h.b16 %v6577
    %v6650 = vunpack.c.l.b16 %v6578
    %v6651 = vunpack.c.h.b16 %v6578
    %v6652 = vunpack.c.l.b16 %v6579
    %v6653 = vunpack.c.h.b16 %v6579
    %v6654 = vunpack.c.l.b16 %v6580
    %v6655 = vunpack.c.h.b16 %v6580
    %v6656 = vunpack.c.l.b16 %v6581
    %v6657 = vunpack.c.h.b16 %v6581
    %v6658 = vunpack.c.l.b16 %v6582
    %v6659 = vunpack.c.h.b16 %v6582
    %v6660 = vunpack.c.l.b16 %v6583
    %v6661 = vunpack.c.h.b16 %v6583
    %v6662 = vpack.c.b16 %v6616, %v6614
    %v6663 = vpack.c.b16 %v6617, %v6615
    %v6664 = vpack.c.b16 %v6620, %v6618
    %v6665 = vpack.c.b16 %v6621, %v6619
    %v6666 = vpack.c.b16 %v6624, %v6622
    %v6667 = vpack.c.b16 %v6625, %v6623
    %v6668 = vpack.c.b16 %v6628, %v6626
    %v6669 = vpack.c.b16 %v6629, %v6627
    %v6670 = vpack.c.b16 %v6632, %v6630
    %v6671 = vpack.c.b16 %v6633, %v6631
    %v6672 = vpack.c.b16 %v6636, %v6634
    %v6673 = vpack.c.b16 %v6637, %v6635
    %v6674 = vpack.c.b16 %v6640, %v6638
    %v6675 = vpack.c.b16 %v6641, %v6639
    %v6676 = vpack.c.b16 %v6644, %v6642
    %v6677 = vpack.c.b16 %v6645, %v6643
    %v6678 = vpack.c.b16 %v6648, %v6646
    %v6679 = vpack.c.b16 %v6649, %v6647
    %v6680 = vpack.c.b16 %v6652, %v6650
    %v6681 = vpack.c.b16 %v6653, %v6651
    %v6682 = vpack.c.b16 %v6656, %v6654
    %v6683 = vpack.c.b16 %v6657, %v6655
    %v6684 = vpack.c.b16 %v6660, %v6658
    %v6685 = vpack.c.b16 %v6661, %v6659
    %v6711 = vsel %vm721, %v6587, 0
    %6713 = vmatpush.bf16.msra.mxu0 %v6676
    %6714 = vmatpush.bf16.msra.mxu0 %v6674
    %6715 = vmatpush.bf16.msra.mxu0 %v6672
    %6716 = vmatpush.bf16.msra.mxu0 %v6670
    %6717 = vmatpush.bf16.msra.mxu0 %v6668
    %6718 = vmatpush.bf16.msra.mxu0 %v6666
    %6719 = vmatpush.bf16.msra.mxu0 %v6664
    %6720 = vmatpush.bf16.msra.mxu0 %v6662
    %6721 = vmatmul.bf16.gmra.mxu0 %v6585
    %v6722 = vpop.f32.mrf.mxu0
    %v6723 = vadd.f32 0.0, %v6722
    %v6724 = vpop.f32.mrf.mxu0
    %6725 = vdwg.mxu0
    %6726 = vmatpush.bf16.msra.mxu0 0
    %6727 = vmatpush.bf16.msra.mxu0 0
    %6728 = vmatpush.bf16.msra.mxu0 0
    %6729 = vmatpush.bf16.msra.mxu0 0
    %6730 = vmatpush.bf16.msra.mxu0 %v6684
    %6731 = vmatpush.bf16.msra.mxu0 %v6682
    %6732 = vmatpush.bf16.msra.mxu0 %v6680
    %6733 = vmatpush.bf16.msra.mxu0 %v6678
    %6734 = vmatmul.bf16.gmra.mxu0 %v6711
    %v6735 = vpop.f32.mrf.mxu0
    %v6736 = vadd.f32 %v6723, %v6735
    %v6737 = vpop.f32.mrf.mxu0
    %6738 = vdwg.mxu0
    %6739 = vmatpush.bf16.msra.mxu0 %v6677
    %6740 = vmatpush.bf16.msra.mxu0 %v6675
    %6741 = vmatpush.bf16.msra.mxu0 %v6673
    %6742 = vmatpush.bf16.msra.mxu0 %v6671
    %6743 = vmatpush.bf16.msra.mxu0 %v6669
    %6744 = vmatpush.bf16.msra.mxu0 %v6667
    %6745 = vmatpush.bf16.msra.mxu0 %v6665
    %6746 = vmatpush.bf16.msra.mxu0 %v6663
    %6747 = vmatmul.bf16.gmra.mxu0 %v6585
    %v6748 = vpop.f32.mrf.mxu0
    %v6749 = vadd.f32 0.0, %v6748
    %v6750 = vpop.f32.mrf.mxu0
    %6751 = vdwg.mxu0
    %6752 = vmatpush.bf16.msra.mxu0 0
    %6753 = vmatpush.bf16.msra.mxu0 0
    %6754 = vmatpush.bf16.msra.mxu0 0
    %6755 = vmatpush.bf16.msra.mxu0 0
    %6756 = vmatpush.bf16.msra.mxu0 %v6685
    %6757 = vmatpush.bf16.msra.mxu0 %v6683
    %6758 = vmatpush.bf16.msra.mxu0 %v6681
    %6759 = vmatpush.bf16.msra.mxu0 %v6679
    %6760 = vmatmul.bf16.gmra.mxu0 %v6711
    %v6761 = vpop.f32.mrf.mxu0
    %v6762 = vadd.f32 %v6749, %v6761
    %v6763 = vpop.f32.mrf.mxu0
    %6764 = vdwg.mxu0
    %v6765 = vadd.f32 %v6558, %v6736
    %v6766 = vadd.f32 %v6559, %v6762
    %v6767 = vld [vmem:[%s2791] sm:$0xff]
    %v6768 = vld [vmem:[%s2791 + $0x8] sm:$0xff]
    %v6769 = vld [vmem:[%s2791 + $0x10] sm:$0xff]
    %v6770 = vld [vmem:[%s2791 + $0x18] sm:$0xff]
    %v6771 = vld [vmem:[%s2791 + $0x20] sm:$0xff]
    %v6772 = vld [vmem:[%s2791 + $0x28] sm:$0xff]
    %v6773 = vld [vmem:[%s2791 + $0x30] sm:$0xff]
    %v6774 = vld [vmem:[%s2791 + $0x38] sm:$0xff]
    %v6775 = vld [vmem:[%s2791 + $0x40] sm:$0xff]
    %v6776 = vld [vmem:[%s2791 + $0x48] sm:$0xff]
    %v6777 = vld [vmem:[%s2791 + $0x50] sm:$0xff]
    %v6778 = vld [vmem:[%s2791 + $0x58] sm:$0xff]
    %v6779 = vld [vmem:[%s2791 + $0x60] sm:$0xff]
    %v6780 = vld [vmem:[%s2791 + $0x68] sm:$0xff]
    %v6781 = vld [vmem:[%s2791 + $0x70] sm:$0xff]
    %v6782 = vld [vmem:[%s2791 + $0x78] sm:$0xff]
    %v6783 = vld [vmem:[%s2791 + $0x80] sm:$0xff]
    %v6784 = vld [vmem:[%s2791 + $0x88] sm:$0xff]
    %v6785 = vld [vmem:[%s2791 + $0x90] sm:$0xff]
    %v6786 = vld [vmem:[%s2791 + $0x98] sm:$0xff]
    %v6787 = vld [vmem:[%s2791 + $0xa0] sm:$0xff]
    %v6788 = vld [vmem:[%s2791 + $0xa8] sm:$0xff]
    %v6789 = vld [vmem:[%s2791 + $0xb0] sm:$0xff]
    %v6790 = vld [vmem:[%s2791 + $0xb8] sm:$0xff]
    %v6791 = vrot.slane %v6380, 1
    %v6792 = vrot.slane %v6381, 1
    %v6818 = vunpack.c.l.b16 %v6767
    %v6819 = vunpack.c.h.b16 %v6767
    %v6820 = vunpack.c.l.b16 %v6768
    %v6821 = vunpack.c.h.b16 %v6768
    %v6822 = vunpack.c.l.b16 %v6769
    %v6823 = vunpack.c.h.b16 %v6769
    %v6824 = vunpack.c.l.b16 %v6770
    %v6825 = vunpack.c.h.b16 %v6770
    %v6826 = vunpack.c.l.b16 %v6771
    %v6827 = vunpack.c.h.b16 %v6771
    %v6828 = vunpack.c.l.b16 %v6772
    %v6829 = vunpack.c.h.b16 %v6772
    %v6830 = vunpack.c.l.b16 %v6773
    %v6831 = vunpack.c.h.b16 %v6773
    %v6832 = vunpack.c.l.b16 %v6774
    %v6833 = vunpack.c.h.b16 %v6774
    %v6834 = vunpack.c.l.b16 %v6775
    %v6835 = vunpack.c.h.b16 %v6775
    %v6836 = vunpack.c.l.b16 %v6776
    %v6837 = vunpack.c.h.b16 %v6776
    %v6838 = vunpack.c.l.b16 %v6777
    %v6839 = vunpack.c.h.b16 %v6777
    %v6840 = vunpack.c.l.b16 %v6778
    %v6841 = vunpack.c.h.b16 %v6778
    %v6842 = vunpack.c.l.b16 %v6779
    %v6843 = vunpack.c.h.b16 %v6779
    %v6844 = vunpack.c.l.b16 %v6780
    %v6845 = vunpack.c.h.b16 %v6780
    %v6846 = vunpack.c.l.b16 %v6781
    %v6847 = vunpack.c.h.b16 %v6781
    %v6848 = vunpack.c.l.b16 %v6782
    %v6849 = vunpack.c.h.b16 %v6782
    %v6850 = vunpack.c.l.b16 %v6783
    %v6851 = vunpack.c.h.b16 %v6783
    %v6852 = vunpack.c.l.b16 %v6784
    %v6853 = vunpack.c.h.b16 %v6784
    %v6854 = vunpack.c.l.b16 %v6785
    %v6855 = vunpack.c.h.b16 %v6785
    %v6856 = vunpack.c.l.b16 %v6786
    %v6857 = vunpack.c.h.b16 %v6786
    %v6858 = vunpack.c.l.b16 %v6787
    %v6859 = vunpack.c.h.b16 %v6787
    %v6860 = vunpack.c.l.b16 %v6788
    %v6861 = vunpack.c.h.b16 %v6788
    %v6862 = vunpack.c.l.b16 %v6789
    %v6863 = vunpack.c.h.b16 %v6789
    %v6864 = vunpack.c.l.b16 %v6790
    %v6865 = vunpack.c.h.b16 %v6790
    %v6866 = vpack.c.b16 %v6820, %v6818
    %v6867 = vpack.c.b16 %v6821, %v6819
    %v6868 = vpack.c.b16 %v6824, %v6822
    %v6869 = vpack.c.b16 %v6825, %v6823
    %v6870 = vpack.c.b16 %v6828, %v6826
    %v6871 = vpack.c.b16 %v6829, %v6827
    %v6872 = vpack.c.b16 %v6832, %v6830
    %v6873 = vpack.c.b16 %v6833, %v6831
    %v6874 = vpack.c.b16 %v6836, %v6834
    %v6875 = vpack.c.b16 %v6837, %v6835
    %v6876 = vpack.c.b16 %v6840, %v6838
    %v6877 = vpack.c.b16 %v6841, %v6839
    %v6878 = vpack.c.b16 %v6844, %v6842
    %v6879 = vpack.c.b16 %v6845, %v6843
    %v6880 = vpack.c.b16 %v6848, %v6846
    %v6881 = vpack.c.b16 %v6849, %v6847
    %v6882 = vpack.c.b16 %v6852, %v6850
    %v6883 = vpack.c.b16 %v6853, %v6851
    %v6884 = vpack.c.b16 %v6856, %v6854
    %v6885 = vpack.c.b16 %v6857, %v6855
    %v6886 = vpack.c.b16 %v6860, %v6858
    %v6887 = vpack.c.b16 %v6861, %v6859
    %v6888 = vpack.c.b16 %v6864, %v6862
    %v6889 = vpack.c.b16 %v6865, %v6863
    %v6915 = vsel %vm721, %v6792, 0
    %6917 = vmatpush.bf16.msra.mxu0 %v6880
    %6918 = vmatpush.bf16.msra.mxu0 %v6878
    %6919 = vmatpush.bf16.msra.mxu0 %v6876
    %6920 = vmatpush.bf16.msra.mxu0 %v6874
    %6921 = vmatpush.bf16.msra.mxu0 %v6872
    %6922 = vmatpush.bf16.msra.mxu0 %v6870
    %6923 = vmatpush.bf16.msra.mxu0 %v6868
    %6924 = vmatpush.bf16.msra.mxu0 %v6866
    %6925 = vmatmul.bf16.gmra.mxu0 %v6791
    %v6926 = vpop.f32.mrf.mxu0
    %v6927 = vadd.f32 0.0, %v6926
    %v6928 = vpop.f32.mrf.mxu0
    %6929 = vdwg.mxu0
    %6930 = vmatpush.bf16.msra.mxu0 0
    %6931 = vmatpush.bf16.msra.mxu0 0
    %6932 = vmatpush.bf16.msra.mxu0 0
    %6933 = vmatpush.bf16.msra.mxu0 0
    %6934 = vmatpush.bf16.msra.mxu0 %v6888
    %6935 = vmatpush.bf16.msra.mxu0 %v6886
    %6936 = vmatpush.bf16.msra.mxu0 %v6884
    %6937 = vmatpush.bf16.msra.mxu0 %v6882
    %6938 = vmatmul.bf16.gmra.mxu0 %v6915
    %v6939 = vpop.f32.mrf.mxu0
    %v6940 = vadd.f32 %v6927, %v6939
    %v6941 = vpop.f32.mrf.mxu0
    %6942 = vdwg.mxu0
    %6943 = vmatpush.bf16.msra.mxu0 %v6881
    %6944 = vmatpush.bf16.msra.mxu0 %v6879
    %6945 = vmatpush.bf16.msra.mxu0 %v6877
    %6946 = vmatpush.bf16.msra.mxu0 %v6875
    %6947 = vmatpush.bf16.msra.mxu0 %v6873
    %6948 = vmatpush.bf16.msra.mxu0 %v6871
    %6949 = vmatpush.bf16.msra.mxu0 %v6869
    %6950 = vmatpush.bf16.msra.mxu0 %v6867
    %6951 = vmatmul.bf16.gmra.mxu0 %v6791
    %v6952 = vpop.f32.mrf.mxu0
    %v6953 = vadd.f32 0.0, %v6952
    %v6954 = vpop.f32.mrf.mxu0
    %6955 = vdwg.mxu0
    %6956 = vmatpush.bf16.msra.mxu0 0
    %6957 = vmatpush.bf16.msra.mxu0 0
    %6958 = vmatpush.bf16.msra.mxu0 0
    %6959 = vmatpush.bf16.msra.mxu0 0
    %6960 = vmatpush.bf16.msra.mxu0 %v6889
    %6961 = vmatpush.bf16.msra.mxu0 %v6887
    %6962 = vmatpush.bf16.msra.mxu0 %v6885
    %6963 = vmatpush.bf16.msra.mxu0 %v6883
    %6964 = vmatmul.bf16.gmra.mxu0 %v6915
    %v6965 = vpop.f32.mrf.mxu0
    %v6966 = vadd.f32 %v6953, %v6965
    %v6967 = vpop.f32.mrf.mxu0
    %6968 = vdwg.mxu0
    %v6969 = vadd.f32 %v6765, %v6940
    %v6970 = vadd.f32 %v6766, %v6966
    %v6971 = vld [vmem:[%s2996] sm:$0xff]
    %v6972 = vld [vmem:[%s2996 + $0x8] sm:$0xff]
    %v6973 = vld [vmem:[%s2996 + $0x10] sm:$0xff]
    %v6974 = vld [vmem:[%s2996 + $0x18] sm:$0xff]
    %v6975 = vld [vmem:[%s2996 + $0x20] sm:$0xff]
    %v6976 = vld [vmem:[%s2996 + $0x28] sm:$0xff]
    %v6977 = vld [vmem:[%s2996 + $0x30] sm:$0xff]
    %v6978 = vld [vmem:[%s2996 + $0x38] sm:$0xff]
    %v6979 = vld [vmem:[%s2996 + $0x40] sm:$0xff]
    %v6980 = vld [vmem:[%s2996 + $0x48] sm:$0xff]
    %v6981 = vld [vmem:[%s2996 + $0x50] sm:$0xff]
    %v6982 = vld [vmem:[%s2996 + $0x58] sm:$0xff]
    %v6983 = vld [vmem:[%s2996 + $0x60] sm:$0xff]
    %v6984 = vld [vmem:[%s2996 + $0x68] sm:$0xff]
    %v6985 = vld [vmem:[%s2996 + $0x70] sm:$0xff]
    %v6986 = vld [vmem:[%s2996 + $0x78] sm:$0xff]
    %v6987 = vld [vmem:[%s2996 + $0x80] sm:$0xff]
    %v6988 = vld [vmem:[%s2996 + $0x88] sm:$0xff]
    %v6989 = vld [vmem:[%s2996 + $0x90] sm:$0xff]
    %v6990 = vld [vmem:[%s2996 + $0x98] sm:$0xff]
    %v6991 = vld [vmem:[%s2996 + $0xa0] sm:$0xff]
    %v6992 = vld [vmem:[%s2996 + $0xa8] sm:$0xff]
    %v6993 = vld [vmem:[%s2996 + $0xb0] sm:$0xff]
    %v6994 = vld [vmem:[%s2996 + $0xb8] sm:$0xff]
    %v6995 = vrot.slane %v6585, 1
    %v6996 = vrot.slane %v6587, 1
    %v7022 = vunpack.c.l.b16 %v6971
    %v7023 = vunpack.c.h.b16 %v6971
    %v7024 = vunpack.c.l.b16 %v6972
    %v7025 = vunpack.c.h.b16 %v6972
    %v7026 = vunpack.c.l.b16 %v6973
    %v7027 = vunpack.c.h.b16 %v6973
    %v7028 = vunpack.c.l.b16 %v6974
    %v7029 = vunpack.c.h.b16 %v6974
    %v7030 = vunpack.c.l.b16 %v6975
    %v7031 = vunpack.c.h.b16 %v6975
    %v7032 = vunpack.c.l.b16 %v6976
    %v7033 = vunpack.c.h.b16 %v6976
    %v7034 = vunpack.c.l.b16 %v6977
    %v7035 = vunpack.c.h.b16 %v6977
    %v7036 = vunpack.c.l.b16 %v6978
    %v7037 = vunpack.c.h.b16 %v6978
    %v7038 = vunpack.c.l.b16 %v6979
    %v7039 = vunpack.c.h.b16 %v6979
    %v7040 = vunpack.c.l.b16 %v6980
    %v7041 = vunpack.c.h.b16 %v6980
    %v7042 = vunpack.c.l.b16 %v6981
    %v7043 = vunpack.c.h.b16 %v6981
    %v7044 = vunpack.c.l.b16 %v6982
    %v7045 = vunpack.c.h.b16 %v6982
    %v7046 = vunpack.c.l.b16 %v6983
    %v7047 = vunpack.c.h.b16 %v6983
    %v7048 = vunpack.c.l.b16 %v6984
    %v7049 = vunpack.c.h.b16 %v6984
    %v7050 = vunpack.c.l.b16 %v6985
    %v7051 = vunpack.c.h.b16 %v6985
    %v7052 = vunpack.c.l.b16 %v6986
    %v7053 = vunpack.c.h.b16 %v6986
    %v7054 = vunpack.c.l.b16 %v6987
    %v7055 = vunpack.c.h.b16 %v6987
    %v7056 = vunpack.c.l.b16 %v6988
    %v7057 = vunpack.c.h.b16 %v6988
    %v7058 = vunpack.c.l.b16 %v6989
    %v7059 = vunpack.c.h.b16 %v6989
    %v7060 = vunpack.c.l.b16 %v6990
    %v7061 = vunpack.c.h.b16 %v6990
    %v7062 = vunpack.c.l.b16 %v6991
    %v7063 = vunpack.c.h.b16 %v6991
    %v7064 = vunpack.c.l.b16 %v6992
    %v7065 = vunpack.c.h.b16 %v6992
    %v7066 = vunpack.c.l.b16 %v6993
    %v7067 = vunpack.c.h.b16 %v6993
    %v7068 = vunpack.c.l.b16 %v6994
    %v7069 = vunpack.c.h.b16 %v6994
    %v7070 = vpack.c.b16 %v7024, %v7022
    %v7071 = vpack.c.b16 %v7025, %v7023
    %v7072 = vpack.c.b16 %v7028, %v7026
    %v7073 = vpack.c.b16 %v7029, %v7027
    %v7074 = vpack.c.b16 %v7032, %v7030
    %v7075 = vpack.c.b16 %v7033, %v7031
    %v7076 = vpack.c.b16 %v7036, %v7034
    %v7077 = vpack.c.b16 %v7037, %v7035
    %v7078 = vpack.c.b16 %v7040, %v7038
    %v7079 = vpack.c.b16 %v7041, %v7039
    %v7080 = vpack.c.b16 %v7044, %v7042
    %v7081 = vpack.c.b16 %v7045, %v7043
    %v7082 = vpack.c.b16 %v7048, %v7046
    %v7083 = vpack.c.b16 %v7049, %v7047
    %v7084 = vpack.c.b16 %v7052, %v7050
    %v7085 = vpack.c.b16 %v7053, %v7051
    %v7086 = vpack.c.b16 %v7056, %v7054
    %v7087 = vpack.c.b16 %v7057, %v7055
    %v7088 = vpack.c.b16 %v7060, %v7058
    %v7089 = vpack.c.b16 %v7061, %v7059
    %v7090 = vpack.c.b16 %v7064, %v7062
    %v7091 = vpack.c.b16 %v7065, %v7063
    %v7092 = vpack.c.b16 %v7068, %v7066
    %v7093 = vpack.c.b16 %v7069, %v7067
    %v7119 = vsel %vm721, %v6996, 0
    %7121 = vmatpush.bf16.msra.mxu0 %v7084
    %7122 = vmatpush.bf16.msra.mxu0 %v7082
    %7123 = vmatpush.bf16.msra.mxu0 %v7080
    %7124 = vmatpush.bf16.msra.mxu0 %v7078
    %7125 = vmatpush.bf16.msra.mxu0 %v7076
    %7126 = vmatpush.bf16.msra.mxu0 %v7074
    %7127 = vmatpush.bf16.msra.mxu0 %v7072
    %7128 = vmatpush.bf16.msra.mxu0 %v7070
    %7129 = vmatmul.bf16.gmra.mxu0 %v6995
    %v7130 = vpop.f32.mrf.mxu0
    %v7131 = vadd.f32 0.0, %v7130
    %v7132 = vpop.f32.mrf.mxu0
    %7133 = vdwg.mxu0
    %7134 = vmatpush.bf16.msra.mxu0 0
    %7135 = vmatpush.bf16.msra.mxu0 0
    %7136 = vmatpush.bf16.msra.mxu0 0
    %7137 = vmatpush.bf16.msra.mxu0 0
    %7138 = vmatpush.bf16.msra.mxu0 %v7092
    %7139 = vmatpush.bf16.msra.mxu0 %v7090
    %7140 = vmatpush.bf16.msra.mxu0 %v7088
    %7141 = vmatpush.bf16.msra.mxu0 %v7086
    %7142 = vmatmul.bf16.gmra.mxu0 %v7119
    %v7143 = vpop.f32.mrf.mxu0
    %v7144 = vadd.f32 %v7131, %v7143
    %v7145 = vpop.f32.mrf.mxu0
    %7146 = vdwg.mxu0
    %7147 = vmatpush.bf16.msra.mxu0 %v7085
    %7148 = vmatpush.bf16.msra.mxu0 %v7083
    %7149 = vmatpush.bf16.msra.mxu0 %v7081
    %7150 = vmatpush.bf16.msra.mxu0 %v7079
    %7151 = vmatpush.bf16.msra.mxu0 %v7077
    %7152 = vmatpush.bf16.msra.mxu0 %v7075
    %7153 = vmatpush.bf16.msra.mxu0 %v7073
    %7154 = vmatpush.bf16.msra.mxu0 %v7071
    %7155 = vmatmul.bf16.gmra.mxu0 %v6995
    %v7156 = vpop.f32.mrf.mxu0
    %v7157 = vadd.f32 0.0, %v7156
    %v7158 = vpop.f32.mrf.mxu0
    %7159 = vdwg.mxu0
    %7160 = vmatpush.bf16.msra.mxu0 0
    %7161 = vmatpush.bf16.msra.mxu0 0
    %7162 = vmatpush.bf16.msra.mxu0 0
    %7163 = vmatpush.bf16.msra.mxu0 0
    %7164 = vmatpush.bf16.msra.mxu0 %v7093
    %7165 = vmatpush.bf16.msra.mxu0 %v7091
    %7166 = vmatpush.bf16.msra.mxu0 %v7089
    %7167 = vmatpush.bf16.msra.mxu0 %v7087
    %7168 = vmatmul.bf16.gmra.mxu0 %v7119
    %v7169 = vpop.f32.mrf.mxu0
    %v7170 = vadd.f32 %v7157, %v7169
    %v7171 = vpop.f32.mrf.mxu0
    %7172 = vdwg.mxu0
    %v7173 = vadd.f32 %v6969, %v7144
    %v7174 = vadd.f32 %v6970, %v7170
    %v7175 = vld [vmem:[%s3201] sm:$0xff]
    %v7176 = vld [vmem:[%s3201 + $0x8] sm:$0xff]
    %v7177 = vld [vmem:[%s3201 + $0x10] sm:$0xff]
    %v7178 = vld [vmem:[%s3201 + $0x18] sm:$0xff]
    %v7179 = vld [vmem:[%s3201 + $0x20] sm:$0xff]
    %v7180 = vld [vmem:[%s3201 + $0x28] sm:$0xff]
    %v7181 = vld [vmem:[%s3201 + $0x30] sm:$0xff]
    %v7182 = vld [vmem:[%s3201 + $0x38] sm:$0xff]
    %v7183 = vld [vmem:[%s3201 + $0x40] sm:$0xff]
    %v7184 = vld [vmem:[%s3201 + $0x48] sm:$0xff]
    %v7185 = vld [vmem:[%s3201 + $0x50] sm:$0xff]
    %v7186 = vld [vmem:[%s3201 + $0x58] sm:$0xff]
    %v7187 = vld [vmem:[%s3201 + $0x60] sm:$0xff]
    %v7188 = vld [vmem:[%s3201 + $0x68] sm:$0xff]
    %v7189 = vld [vmem:[%s3201 + $0x70] sm:$0xff]
    %v7190 = vld [vmem:[%s3201 + $0x78] sm:$0xff]
    %v7191 = vld [vmem:[%s3201 + $0x80] sm:$0xff]
    %v7192 = vld [vmem:[%s3201 + $0x88] sm:$0xff]
    %v7193 = vld [vmem:[%s3201 + $0x90] sm:$0xff]
    %v7194 = vld [vmem:[%s3201 + $0x98] sm:$0xff]
    %v7195 = vld [vmem:[%s3201 + $0xa0] sm:$0xff]
    %v7196 = vld [vmem:[%s3201 + $0xa8] sm:$0xff]
    %v7197 = vld [vmem:[%s3201 + $0xb0] sm:$0xff]
    %v7198 = vld [vmem:[%s3201 + $0xb8] sm:$0xff]
    %v7199 = vrot.slane %v6380, 2
    %v7200 = vrot.slane %v6381, 2
    %v7226 = vunpack.c.l.b16 %v7175
    %v7227 = vunpack.c.h.b16 %v7175
    %v7228 = vunpack.c.l.b16 %v7176
    %v7229 = vunpack.c.h.b16 %v7176
    %v7230 = vunpack.c.l.b16 %v7177
    %v7231 = vunpack.c.h.b16 %v7177
    %v7232 = vunpack.c.l.b16 %v7178
    %v7233 = vunpack.c.h.b16 %v7178
    %v7234 = vunpack.c.l.b16 %v7179
    %v7235 = vunpack.c.h.b16 %v7179
    %v7236 = vunpack.c.l.b16 %v7180
    %v7237 = vunpack.c.h.b16 %v7180
    %v7238 = vunpack.c.l.b16 %v7181
    %v7239 = vunpack.c.h.b16 %v7181
    %v7240 = vunpack.c.l.b16 %v7182
    %v7241 = vunpack.c.h.b16 %v7182
    %v7242 = vunpack.c.l.b16 %v7183
    %v7243 = vunpack.c.h.b16 %v7183
    %v7244 = vunpack.c.l.b16 %v7184
    %v7245 = vunpack.c.h.b16 %v7184
    %v7246 = vunpack.c.l.b16 %v7185
    %v7247 = vunpack.c.h.b16 %v7185
    %v7248 = vunpack.c.l.b16 %v7186
    %v7249 = vunpack.c.h.b16 %v7186
    %v7250 = vunpack.c.l.b16 %v7187
    %v7251 = vunpack.c.h.b16 %v7187
    %v7252 = vunpack.c.l.b16 %v7188
    %v7253 = vunpack.c.h.b16 %v7188
    %v7254 = vunpack.c.l.b16 %v7189
    %v7255 = vunpack.c.h.b16 %v7189
    %v7256 = vunpack.c.l.b16 %v7190
    %v7257 = vunpack.c.h.b16 %v7190
    %v7258 = vunpack.c.l.b16 %v7191
    %v7259 = vunpack.c.h.b16 %v7191
    %v7260 = vunpack.c.l.b16 %v7192
    %v7261 = vunpack.c.h.b16 %v7192
    %v7262 = vunpack.c.l.b16 %v7193
    %v7263 = vunpack.c.h.b16 %v7193
    %v7264 = vunpack.c.l.b16 %v7194
    %v7265 = vunpack.c.h.b16 %v7194
    %v7266 = vunpack.c.l.b16 %v7195
    %v7267 = vunpack.c.h.b16 %v7195
    %v7268 = vunpack.c.l.b16 %v7196
    %v7269 = vunpack.c.h.b16 %v7196
    %v7270 = vunpack.c.l.b16 %v7197
    %v7271 = vunpack.c.h.b16 %v7197
    %v7272 = vunpack.c.l.b16 %v7198
    %v7273 = vunpack.c.h.b16 %v7198
    %v7274 = vpack.c.b16 %v7228, %v7226
    %v7275 = vpack.c.b16 %v7229, %v7227
    %v7276 = vpack.c.b16 %v7232, %v7230
    %v7277 = vpack.c.b16 %v7233, %v7231
    %v7278 = vpack.c.b16 %v7236, %v7234
    %v7279 = vpack.c.b16 %v7237, %v7235
    %v7280 = vpack.c.b16 %v7240, %v7238
    %v7281 = vpack.c.b16 %v7241, %v7239
    %v7282 = vpack.c.b16 %v7244, %v7242
    %v7283 = vpack.c.b16 %v7245, %v7243
    %v7284 = vpack.c.b16 %v7248, %v7246
    %v7285 = vpack.c.b16 %v7249, %v7247
    %v7286 = vpack.c.b16 %v7252, %v7250
    %v7287 = vpack.c.b16 %v7253, %v7251
    %v7288 = vpack.c.b16 %v7256, %v7254
    %v7289 = vpack.c.b16 %v7257, %v7255
    %v7290 = vpack.c.b16 %v7260, %v7258
    %v7291 = vpack.c.b16 %v7261, %v7259
    %v7292 = vpack.c.b16 %v7264, %v7262
    %v7293 = vpack.c.b16 %v7265, %v7263
    %v7294 = vpack.c.b16 %v7268, %v7266
    %v7295 = vpack.c.b16 %v7269, %v7267
    %v7296 = vpack.c.b16 %v7272, %v7270
    %v7297 = vpack.c.b16 %v7273, %v7271
    %v7323 = vsel %vm721, %v7200, 0
    %7325 = vmatpush.bf16.msra.mxu0 %v7288
    %7326 = vmatpush.bf16.msra.mxu0 %v7286
    %7327 = vmatpush.bf16.msra.mxu0 %v7284
    %7328 = vmatpush.bf16.msra.mxu0 %v7282
    %7329 = vmatpush.bf16.msra.mxu0 %v7280
    %7330 = vmatpush.bf16.msra.mxu0 %v7278
    %7331 = vmatpush.bf16.msra.mxu0 %v7276
    %7332 = vmatpush.bf16.msra.mxu0 %v7274
    %7333 = vmatmul.bf16.gmra.mxu0 %v7199
    %v7334 = vpop.f32.mrf.mxu0
    %v7335 = vadd.f32 0.0, %v7334
    %v7336 = vpop.f32.mrf.mxu0
    %7337 = vdwg.mxu0
    %7338 = vmatpush.bf16.msra.mxu0 0
    %7339 = vmatpush.bf16.msra.mxu0 0
    %7340 = vmatpush.bf16.msra.mxu0 0
    %7341 = vmatpush.bf16.msra.mxu0 0
    %7342 = vmatpush.bf16.msra.mxu0 %v7296
    %7343 = vmatpush.bf16.msra.mxu0 %v7294
    %7344 = vmatpush.bf16.msra.mxu0 %v7292
    %7345 = vmatpush.bf16.msra.mxu0 %v7290
    %7346 = vmatmul.bf16.gmra.mxu0 %v7323
    %v7347 = vpop.f32.mrf.mxu0
    %v7348 = vadd.f32 %v7335, %v7347
    %v7349 = vpop.f32.mrf.mxu0
    %7350 = vdwg.mxu0
    %7351 = vmatpush.bf16.msra.mxu0 %v7289
    %7352 = vmatpush.bf16.msra.mxu0 %v7287
    %7353 = vmatpush.bf16.msra.mxu0 %v7285
    %7354 = vmatpush.bf16.msra.mxu0 %v7283
    %7355 = vmatpush.bf16.msra.mxu0 %v7281
    %7356 = vmatpush.bf16.msra.mxu0 %v7279
    %7357 = vmatpush.bf16.msra.mxu0 %v7277
    %7358 = vmatpush.bf16.msra.mxu0 %v7275
    %7359 = vmatmul.bf16.gmra.mxu0 %v7199
    %v7360 = vpop.f32.mrf.mxu0
    %v7361 = vadd.f32 0.0, %v7360
    %v7362 = vpop.f32.mrf.mxu0
    %7363 = vdwg.mxu0
    %7364 = vmatpush.bf16.msra.mxu0 0
    %7365 = vmatpush.bf16.msra.mxu0 0
    %7366 = vmatpush.bf16.msra.mxu0 0
    %7367 = vmatpush.bf16.msra.mxu0 0
    %7368 = vmatpush.bf16.msra.mxu0 %v7297
    %7369 = vmatpush.bf16.msra.mxu0 %v7295
    %7370 = vmatpush.bf16.msra.mxu0 %v7293
    %7371 = vmatpush.bf16.msra.mxu0 %v7291
    %7372 = vmatmul.bf16.gmra.mxu0 %v7323
    %v7373 = vpop.f32.mrf.mxu0
    %v7374 = vadd.f32 %v7361, %v7373
    %v7375 = vpop.f32.mrf.mxu0
    %7376 = vdwg.mxu0
    %v7377 = vadd.f32 %v7173, %v7348
    %v7378 = vadd.f32 %v7174, %v7374
    %v7379 = vld [vmem:[%s3406] sm:$0xff]
    %v7380 = vld [vmem:[%s3406 + $0x8] sm:$0xff]
    %v7381 = vld [vmem:[%s3406 + $0x10] sm:$0xff]
    %v7382 = vld [vmem:[%s3406 + $0x18] sm:$0xff]
    %v7383 = vld [vmem:[%s3406 + $0x20] sm:$0xff]
    %v7384 = vld [vmem:[%s3406 + $0x28] sm:$0xff]
    %v7385 = vld [vmem:[%s3406 + $0x30] sm:$0xff]
    %v7386 = vld [vmem:[%s3406 + $0x38] sm:$0xff]
    %v7387 = vld [vmem:[%s3406 + $0x40] sm:$0xff]
    %v7388 = vld [vmem:[%s3406 + $0x48] sm:$0xff]
    %v7389 = vld [vmem:[%s3406 + $0x50] sm:$0xff]
    %v7390 = vld [vmem:[%s3406 + $0x58] sm:$0xff]
    %v7391 = vld [vmem:[%s3406 + $0x60] sm:$0xff]
    %v7392 = vld [vmem:[%s3406 + $0x68] sm:$0xff]
    %v7393 = vld [vmem:[%s3406 + $0x70] sm:$0xff]
    %v7394 = vld [vmem:[%s3406 + $0x78] sm:$0xff]
    %v7395 = vld [vmem:[%s3406 + $0x80] sm:$0xff]
    %v7396 = vld [vmem:[%s3406 + $0x88] sm:$0xff]
    %v7397 = vld [vmem:[%s3406 + $0x90] sm:$0xff]
    %v7398 = vld [vmem:[%s3406 + $0x98] sm:$0xff]
    %v7399 = vld [vmem:[%s3406 + $0xa0] sm:$0xff]
    %v7400 = vld [vmem:[%s3406 + $0xa8] sm:$0xff]
    %v7401 = vld [vmem:[%s3406 + $0xb0] sm:$0xff]
    %v7402 = vld [vmem:[%s3406 + $0xb8] sm:$0xff]
    %v7403 = vrot.slane %v6585, 2
    %v7404 = vrot.slane %v6587, 2
    %v7430 = vunpack.c.l.b16 %v7379
    %v7431 = vunpack.c.h.b16 %v7379
    %v7432 = vunpack.c.l.b16 %v7380
    %v7433 = vunpack.c.h.b16 %v7380
    %v7434 = vunpack.c.l.b16 %v7381
    %v7435 = vunpack.c.h.b16 %v7381
    %v7436 = vunpack.c.l.b16 %v7382
    %v7437 = vunpack.c.h.b16 %v7382
    %v7438 = vunpack.c.l.b16 %v7383
    %v7439 = vunpack.c.h.b16 %v7383
    %v7440 = vunpack.c.l.b16 %v7384
    %v7441 = vunpack.c.h.b16 %v7384
    %v7442 = vunpack.c.l.b16 %v7385
    %v7443 = vunpack.c.h.b16 %v7385
    %v7444 = vunpack.c.l.b16 %v7386
    %v7445 = vunpack.c.h.b16 %v7386
    %v7446 = vunpack.c.l.b16 %v7387
    %v7447 = vunpack.c.h.b16 %v7387
    %v7448 = vunpack.c.l.b16 %v7388
    %v7449 = vunpack.c.h.b16 %v7388
    %v7450 = vunpack.c.l.b16 %v7389
    %v7451 = vunpack.c.h.b16 %v7389
    %v7452 = vunpack.c.l.b16 %v7390
    %v7453 = vunpack.c.h.b16 %v7390
    %v7454 = vunpack.c.l.b16 %v7391
    %v7455 = vunpack.c.h.b16 %v7391
    %v7456 = vunpack.c.l.b16 %v7392
    %v7457 = vunpack.c.h.b16 %v7392
    %v7458 = vunpack.c.l.b16 %v7393
    %v7459 = vunpack.c.h.b16 %v7393
    %v7460 = vunpack.c.l.b16 %v7394
    %v7461 = vunpack.c.h.b16 %v7394
    %v7462 = vunpack.c.l.b16 %v7395
    %v7463 = vunpack.c.h.b16 %v7395
    %v7464 = vunpack.c.l.b16 %v7396
    %v7465 = vunpack.c.h.b16 %v7396
    %v7466 = vunpack.c.l.b16 %v7397
    %v7467 = vunpack.c.h.b16 %v7397
    %v7468 = vunpack.c.l.b16 %v7398
    %v7469 = vunpack.c.h.b16 %v7398
    %v7470 = vunpack.c.l.b16 %v7399
    %v7471 = vunpack.c.h.b16 %v7399
    %v7472 = vunpack.c.l.b16 %v7400
    %v7473 = vunpack.c.h.b16 %v7400
    %v7474 = vunpack.c.l.b16 %v7401
    %v7475 = vunpack.c.h.b16 %v7401
    %v7476 = vunpack.c.l.b16 %v7402
    %v7477 = vunpack.c.h.b16 %v7402
    %v7478 = vpack.c.b16 %v7432, %v7430
    %v7479 = vpack.c.b16 %v7433, %v7431
    %v7480 = vpack.c.b16 %v7436, %v7434
    %v7481 = vpack.c.b16 %v7437, %v7435
    %v7482 = vpack.c.b16 %v7440, %v7438
    %v7483 = vpack.c.b16 %v7441, %v7439
    %v7484 = vpack.c.b16 %v7444, %v7442
    %v7485 = vpack.c.b16 %v7445, %v7443
    %v7486 = vpack.c.b16 %v7448, %v7446
    %v7487 = vpack.c.b16 %v7449, %v7447
    %v7488 = vpack.c.b16 %v7452, %v7450
    %v7489 = vpack.c.b16 %v7453, %v7451
    %v7490 = vpack.c.b16 %v7456, %v7454
    %v7491 = vpack.c.b16 %v7457, %v7455
    %v7492 = vpack.c.b16 %v7460, %v7458
    %v7493 = vpack.c.b16 %v7461, %v7459
    %v7494 = vpack.c.b16 %v7464, %v7462
    %v7495 = vpack.c.b16 %v7465, %v7463
    %v7496 = vpack.c.b16 %v7468, %v7466
    %v7497 = vpack.c.b16 %v7469, %v7467
    %v7498 = vpack.c.b16 %v7472, %v7470
    %v7499 = vpack.c.b16 %v7473, %v7471
    %v7500 = vpack.c.b16 %v7476, %v7474
    %v7501 = vpack.c.b16 %v7477, %v7475
    %v7527 = vsel %vm721, %v7404, 0
    %7529 = vmatpush.bf16.msra.mxu0 %v7492
    %7530 = vmatpush.bf16.msra.mxu0 %v7490
    %7531 = vmatpush.bf16.msra.mxu0 %v7488
    %7532 = vmatpush.bf16.msra.mxu0 %v7486
    %7533 = vmatpush.bf16.msra.mxu0 %v7484
    %7534 = vmatpush.bf16.msra.mxu0 %v7482
    %7535 = vmatpush.bf16.msra.mxu0 %v7480
    %7536 = vmatpush.bf16.msra.mxu0 %v7478
    %7537 = vmatmul.bf16.gmra.mxu0 %v7403
    %v7538 = vpop.f32.mrf.mxu0
    %v7539 = vadd.f32 0.0, %v7538
    %v7540 = vpop.f32.mrf.mxu0
    %7541 = vdwg.mxu0
    %7542 = vmatpush.bf16.msra.mxu0 0
    %7543 = vmatpush.bf16.msra.mxu0 0
    %7544 = vmatpush.bf16.msra.mxu0 0
    %7545 = vmatpush.bf16.msra.mxu0 0
    %7546 = vmatpush.bf16.msra.mxu0 %v7500
    %7547 = vmatpush.bf16.msra.mxu0 %v7498
    %7548 = vmatpush.bf16.msra.mxu0 %v7496
    %7549 = vmatpush.bf16.msra.mxu0 %v7494
    %7550 = vmatmul.bf16.gmra.mxu0 %v7527
    %v7551 = vpop.f32.mrf.mxu0
    %v7552 = vadd.f32 %v7539, %v7551
    %v7553 = vpop.f32.mrf.mxu0
    %7554 = vdwg.mxu0
    %7555 = vmatpush.bf16.msra.mxu0 %v7493
    %7556 = vmatpush.bf16.msra.mxu0 %v7491
    %7557 = vmatpush.bf16.msra.mxu0 %v7489
    %7558 = vmatpush.bf16.msra.mxu0 %v7487
    %7559 = vmatpush.bf16.msra.mxu0 %v7485
    %7560 = vmatpush.bf16.msra.mxu0 %v7483
    %7561 = vmatpush.bf16.msra.mxu0 %v7481
    %7562 = vmatpush.bf16.msra.mxu0 %v7479
    %7563 = vmatmul.bf16.gmra.mxu0 %v7403
    %v7564 = vpop.f32.mrf.mxu0
    %v7565 = vadd.f32 0.0, %v7564
    %v7566 = vpop.f32.mrf.mxu0
    %7567 = vdwg.mxu0
    %7568 = vmatpush.bf16.msra.mxu0 0
    %7569 = vmatpush.bf16.msra.mxu0 0
    %7570 = vmatpush.bf16.msra.mxu0 0
    %7571 = vmatpush.bf16.msra.mxu0 0
    %7572 = vmatpush.bf16.msra.mxu0 %v7501
    %7573 = vmatpush.bf16.msra.mxu0 %v7499
    %7574 = vmatpush.bf16.msra.mxu0 %v7497
    %7575 = vmatpush.bf16.msra.mxu0 %v7495
    %7576 = vmatmul.bf16.gmra.mxu0 %v7527
    %v7577 = vpop.f32.mrf.mxu0
    %v7578 = vadd.f32 %v7565, %v7577
    %v7579 = vpop.f32.mrf.mxu0
    %7580 = vdwg.mxu0
    %v7581 = vadd.f32 %v7377, %v7552
    %v7582 = vadd.f32 %v7378, %v7578
    %v7583 = vld [vmem:[%s3611] sm:$0xff]
    %v7584 = vld [vmem:[%s3611 + $0x8] sm:$0xff]
    %v7585 = vld [vmem:[%s3611 + $0x10] sm:$0xff]
    %v7586 = vld [vmem:[%s3611 + $0x18] sm:$0xff]
    %v7587 = vld [vmem:[%s3611 + $0x20] sm:$0xff]
    %v7588 = vld [vmem:[%s3611 + $0x28] sm:$0xff]
    %v7589 = vld [vmem:[%s3611 + $0x30] sm:$0xff]
    %v7590 = vld [vmem:[%s3611 + $0x38] sm:$0xff]
    %v7591 = vld [vmem:[%s3611 + $0x40] sm:$0xff]
    %v7592 = vld [vmem:[%s3611 + $0x48] sm:$0xff]
    %v7593 = vld [vmem:[%s3611 + $0x50] sm:$0xff]
    %v7594 = vld [vmem:[%s3611 + $0x58] sm:$0xff]
    %v7595 = vld [vmem:[%s3611 + $0x60] sm:$0xff]
    %v7596 = vld [vmem:[%s3611 + $0x68] sm:$0xff]
    %v7597 = vld [vmem:[%s3611 + $0x70] sm:$0xff]
    %v7598 = vld [vmem:[%s3611 + $0x78] sm:$0xff]
    %v7599 = vld [vmem:[%s3611 + $0x80] sm:$0xff]
    %v7600 = vld [vmem:[%s3611 + $0x88] sm:$0xff]
    %v7601 = vld [vmem:[%s3611 + $0x90] sm:$0xff]
    %v7602 = vld [vmem:[%s3611 + $0x98] sm:$0xff]
    %v7603 = vld [vmem:[%s3611 + $0xa0] sm:$0xff]
    %v7604 = vld [vmem:[%s3611 + $0xa8] sm:$0xff]
    %v7605 = vld [vmem:[%s3611 + $0xb0] sm:$0xff]
    %v7606 = vld [vmem:[%s3611 + $0xb8] sm:$0xff]
    %v7607 = vrot.slane %v6380, 3
    %v7608 = vrot.slane %v6381, 3
    %v7634 = vunpack.c.l.b16 %v7583
    %v7635 = vunpack.c.h.b16 %v7583
    %v7636 = vunpack.c.l.b16 %v7584
    %v7637 = vunpack.c.h.b16 %v7584
    %v7638 = vunpack.c.l.b16 %v7585
    %v7639 = vunpack.c.h.b16 %v7585
    %v7640 = vunpack.c.l.b16 %v7586
    %v7641 = vunpack.c.h.b16 %v7586
    %v7642 = vunpack.c.l.b16 %v7587
    %v7643 = vunpack.c.h.b16 %v7587
    %v7644 = vunpack.c.l.b16 %v7588
    %v7645 = vunpack.c.h.b16 %v7588
    %v7646 = vunpack.c.l.b16 %v7589
    %v7647 = vunpack.c.h.b16 %v7589
    %v7648 = vunpack.c.l.b16 %v7590
    %v7649 = vunpack.c.h.b16 %v7590
    %v7650 = vunpack.c.l.b16 %v7591
    %v7651 = vunpack.c.h.b16 %v7591
    %v7652 = vunpack.c.l.b16 %v7592
    %v7653 = vunpack.c.h.b16 %v7592
    %v7654 = vunpack.c.l.b16 %v7593
    %v7655 = vunpack.c.h.b16 %v7593
    %v7656 = vunpack.c.l.b16 %v7594
    %v7657 = vunpack.c.h.b16 %v7594
    %v7658 = vunpack.c.l.b16 %v7595
    %v7659 = vunpack.c.h.b16 %v7595
    %v7660 = vunpack.c.l.b16 %v7596
    %v7661 = vunpack.c.h.b16 %v7596
    %v7662 = vunpack.c.l.b16 %v7597
    %v7663 = vunpack.c.h.b16 %v7597
    %v7664 = vunpack.c.l.b16 %v7598
    %v7665 = vunpack.c.h.b16 %v7598
    %v7666 = vunpack.c.l.b16 %v7599
    %v7667 = vunpack.c.h.b16 %v7599
    %v7668 = vunpack.c.l.b16 %v7600
    %v7669 = vunpack.c.h.b16 %v7600
    %v7670 = vunpack.c.l.b16 %v7601
    %v7671 = vunpack.c.h.b16 %v7601
    %v7672 = vunpack.c.l.b16 %v7602
    %v7673 = vunpack.c.h.b16 %v7602
    %v7674 = vunpack.c.l.b16 %v7603
    %v7675 = vunpack.c.h.b16 %v7603
    %v7676 = vunpack.c.l.b16 %v7604
    %v7677 = vunpack.c.h.b16 %v7604
    %v7678 = vunpack.c.l.b16 %v7605
    %v7679 = vunpack.c.h.b16 %v7605
    %v7680 = vunpack.c.l.b16 %v7606
    %v7681 = vunpack.c.h.b16 %v7606
    %v7682 = vpack.c.b16 %v7636, %v7634
    %v7683 = vpack.c.b16 %v7637, %v7635
    %v7684 = vpack.c.b16 %v7640, %v7638
    %v7685 = vpack.c.b16 %v7641, %v7639
    %v7686 = vpack.c.b16 %v7644, %v7642
    %v7687 = vpack.c.b16 %v7645, %v7643
    %v7688 = vpack.c.b16 %v7648, %v7646
    %v7689 = vpack.c.b16 %v7649, %v7647
    %v7690 = vpack.c.b16 %v7652, %v7650
    %v7691 = vpack.c.b16 %v7653, %v7651
    %v7692 = vpack.c.b16 %v7656, %v7654
    %v7693 = vpack.c.b16 %v7657, %v7655
    %v7694 = vpack.c.b16 %v7660, %v7658
    %v7695 = vpack.c.b16 %v7661, %v7659
    %v7696 = vpack.c.b16 %v7664, %v7662
    %v7697 = vpack.c.b16 %v7665, %v7663
    %v7698 = vpack.c.b16 %v7668, %v7666
    %v7699 = vpack.c.b16 %v7669, %v7667
    %v7700 = vpack.c.b16 %v7672, %v7670
    %v7701 = vpack.c.b16 %v7673, %v7671
    %v7702 = vpack.c.b16 %v7676, %v7674
    %v7703 = vpack.c.b16 %v7677, %v7675
    %v7704 = vpack.c.b16 %v7680, %v7678
    %v7705 = vpack.c.b16 %v7681, %v7679
    %v7731 = vsel %vm721, %v7608, 0
    %7733 = vmatpush.bf16.msra.mxu0 %v7696
    %7734 = vmatpush.bf16.msra.mxu0 %v7694
    %7735 = vmatpush.bf16.msra.mxu0 %v7692
    %7736 = vmatpush.bf16.msra.mxu0 %v7690
    %7737 = vmatpush.bf16.msra.mxu0 %v7688
    %7738 = vmatpush.bf16.msra.mxu0 %v7686
    %7739 = vmatpush.bf16.msra.mxu0 %v7684
    %7740 = vmatpush.bf16.msra.mxu0 %v7682
    %7741 = vmatmul.bf16.gmra.mxu0 %v7607
    %v7742 = vpop.f32.mrf.mxu0
    %v7743 = vadd.f32 0.0, %v7742
    %v7744 = vpop.f32.mrf.mxu0
    %7745 = vdwg.mxu0
    %7746 = vmatpush.bf16.msra.mxu0 0
    %7747 = vmatpush.bf16.msra.mxu0 0
    %7748 = vmatpush.bf16.msra.mxu0 0
    %7749 = vmatpush.bf16.msra.mxu0 0
    %7750 = vmatpush.bf16.msra.mxu0 %v7704
    %7751 = vmatpush.bf16.msra.mxu0 %v7702
    %7752 = vmatpush.bf16.msra.mxu0 %v7700
    %7753 = vmatpush.bf16.msra.mxu0 %v7698
    %7754 = vmatmul.bf16.gmra.mxu0 %v7731
    %v7755 = vpop.f32.mrf.mxu0
    %v7756 = vadd.f32 %v7743, %v7755
    %v7757 = vpop.f32.mrf.mxu0
    %7758 = vdwg.mxu0
    %7759 = vmatpush.bf16.msra.mxu0 %v7697
    %7760 = vmatpush.bf16.msra.mxu0 %v7695
    %7761 = vmatpush.bf16.msra.mxu0 %v7693
    %7762 = vmatpush.bf16.msra.mxu0 %v7691
    %7763 = vmatpush.bf16.msra.mxu0 %v7689
    %7764 = vmatpush.bf16.msra.mxu0 %v7687
    %7765 = vmatpush.bf16.msra.mxu0 %v7685
    %7766 = vmatpush.bf16.msra.mxu0 %v7683
    %7767 = vmatmul.bf16.gmra.mxu0 %v7607
    %v7768 = vpop.f32.mrf.mxu0
    %v7769 = vadd.f32 0.0, %v7768
    %v7770 = vpop.f32.mrf.mxu0
    %7771 = vdwg.mxu0
    %7772 = vmatpush.bf16.msra.mxu0 0
    %7773 = vmatpush.bf16.msra.mxu0 0
    %7774 = vmatpush.bf16.msra.mxu0 0
    %7775 = vmatpush.bf16.msra.mxu0 0
    %7776 = vmatpush.bf16.msra.mxu0 %v7705
    %7777 = vmatpush.bf16.msra.mxu0 %v7703
    %7778 = vmatpush.bf16.msra.mxu0 %v7701
    %7779 = vmatpush.bf16.msra.mxu0 %v7699
    %7780 = vmatmul.bf16.gmra.mxu0 %v7731
    %v7781 = vpop.f32.mrf.mxu0
    %v7782 = vadd.f32 %v7769, %v7781
    %v7783 = vpop.f32.mrf.mxu0
    %7784 = vdwg.mxu0
    %v7785 = vadd.f32 %v7581, %v7756
    %v7786 = vadd.f32 %v7582, %v7782
    %v7787 = vld [vmem:[%s3816] sm:$0xff]
    %v7788 = vld [vmem:[%s3816 + $0x8] sm:$0xff]
    %v7789 = vld [vmem:[%s3816 + $0x10] sm:$0xff]
    %v7790 = vld [vmem:[%s3816 + $0x18] sm:$0xff]
    %v7791 = vld [vmem:[%s3816 + $0x20] sm:$0xff]
    %v7792 = vld [vmem:[%s3816 + $0x28] sm:$0xff]
    %v7793 = vld [vmem:[%s3816 + $0x30] sm:$0xff]
    %v7794 = vld [vmem:[%s3816 + $0x38] sm:$0xff]
    %v7795 = vld [vmem:[%s3816 + $0x40] sm:$0xff]
    %v7796 = vld [vmem:[%s3816 + $0x48] sm:$0xff]
    %v7797 = vld [vmem:[%s3816 + $0x50] sm:$0xff]
    %v7798 = vld [vmem:[%s3816 + $0x58] sm:$0xff]
    %v7799 = vld [vmem:[%s3816 + $0x60] sm:$0xff]
    %v7800 = vld [vmem:[%s3816 + $0x68] sm:$0xff]
    %v7801 = vld [vmem:[%s3816 + $0x70] sm:$0xff]
    %v7802 = vld [vmem:[%s3816 + $0x78] sm:$0xff]
    %v7803 = vld [vmem:[%s3816 + $0x80] sm:$0xff]
    %v7804 = vld [vmem:[%s3816 + $0x88] sm:$0xff]
    %v7805 = vld [vmem:[%s3816 + $0x90] sm:$0xff]
    %v7806 = vld [vmem:[%s3816 + $0x98] sm:$0xff]
    %v7807 = vld [vmem:[%s3816 + $0xa0] sm:$0xff]
    %v7808 = vld [vmem:[%s3816 + $0xa8] sm:$0xff]
    %v7809 = vld [vmem:[%s3816 + $0xb0] sm:$0xff]
    %v7810 = vld [vmem:[%s3816 + $0xb8] sm:$0xff]
    %v7811 = vrot.slane %v6585, 3
    %v7812 = vrot.slane %v6587, 3
    %v7838 = vunpack.c.l.b16 %v7787
    %v7839 = vunpack.c.h.b16 %v7787
    %v7840 = vunpack.c.l.b16 %v7788
    %v7841 = vunpack.c.h.b16 %v7788
    %v7842 = vunpack.c.l.b16 %v7789
    %v7843 = vunpack.c.h.b16 %v7789
    %v7844 = vunpack.c.l.b16 %v7790
    %v7845 = vunpack.c.h.b16 %v7790
    %v7846 = vunpack.c.l.b16 %v7791
    %v7847 = vunpack.c.h.b16 %v7791
    %v7848 = vunpack.c.l.b16 %v7792
    %v7849 = vunpack.c.h.b16 %v7792
    %v7850 = vunpack.c.l.b16 %v7793
    %v7851 = vunpack.c.h.b16 %v7793
    %v7852 = vunpack.c.l.b16 %v7794
    %v7853 = vunpack.c.h.b16 %v7794
    %v7854 = vunpack.c.l.b16 %v7795
    %v7855 = vunpack.c.h.b16 %v7795
    %v7856 = vunpack.c.l.b16 %v7796
    %v7857 = vunpack.c.h.b16 %v7796
    %v7858 = vunpack.c.l.b16 %v7797
    %v7859 = vunpack.c.h.b16 %v7797
    %v7860 = vunpack.c.l.b16 %v7798
    %v7861 = vunpack.c.h.b16 %v7798
    %v7862 = vunpack.c.l.b16 %v7799
    %v7863 = vunpack.c.h.b16 %v7799
    %v7864 = vunpack.c.l.b16 %v7800
    %v7865 = vunpack.c.h.b16 %v7800
    %v7866 = vunpack.c.l.b16 %v7801
    %v7867 = vunpack.c.h.b16 %v7801
    %v7868 = vunpack.c.l.b16 %v7802
    %v7869 = vunpack.c.h.b16 %v7802
    %v7870 = vunpack.c.l.b16 %v7803
    %v7871 = vunpack.c.h.b16 %v7803
    %v7872 = vunpack.c.l.b16 %v7804
    %v7873 = vunpack.c.h.b16 %v7804
    %v7874 = vunpack.c.l.b16 %v7805
    %v7875 = vunpack.c.h.b16 %v7805
    %v7876 = vunpack.c.l.b16 %v7806
    %v7877 = vunpack.c.h.b16 %v7806
    %v7878 = vunpack.c.l.b16 %v7807
    %v7879 = vunpack.c.h.b16 %v7807
    %v7880 = vunpack.c.l.b16 %v7808
    %v7881 = vunpack.c.h.b16 %v7808
    %v7882 = vunpack.c.l.b16 %v7809
    %v7883 = vunpack.c.h.b16 %v7809
    %v7884 = vunpack.c.l.b16 %v7810
    %v7885 = vunpack.c.h.b16 %v7810
    %v7886 = vpack.c.b16 %v7840, %v7838
    %v7887 = vpack.c.b16 %v7841, %v7839
    %v7888 = vpack.c.b16 %v7844, %v7842
    %v7889 = vpack.c.b16 %v7845, %v7843
    %v7890 = vpack.c.b16 %v7848, %v7846
    %v7891 = vpack.c.b16 %v7849, %v7847
    %v7892 = vpack.c.b16 %v7852, %v7850
    %v7893 = vpack.c.b16 %v7853, %v7851
    %v7894 = vpack.c.b16 %v7856, %v7854
    %v7895 = vpack.c.b16 %v7857, %v7855
    %v7896 = vpack.c.b16 %v7860, %v7858
    %v7897 = vpack.c.b16 %v7861, %v7859
    %v7898 = vpack.c.b16 %v7864, %v7862
    %v7899 = vpack.c.b16 %v7865, %v7863
    %v7900 = vpack.c.b16 %v7868, %v7866
    %v7901 = vpack.c.b16 %v7869, %v7867
    %v7902 = vpack.c.b16 %v7872, %v7870
    %v7903 = vpack.c.b16 %v7873, %v7871
    %v7904 = vpack.c.b16 %v7876, %v7874
    %v7905 = vpack.c.b16 %v7877, %v7875
    %v7906 = vpack.c.b16 %v7880, %v7878
    %v7907 = vpack.c.b16 %v7881, %v7879
    %v7908 = vpack.c.b16 %v7884, %v7882
    %v7909 = vpack.c.b16 %v7885, %v7883
    %v7935 = vsel %vm721, %v7812, 0
    %7937 = vmatpush.bf16.msra.mxu0 %v7900
    %7938 = vmatpush.bf16.msra.mxu0 %v7898
    %7939 = vmatpush.bf16.msra.mxu0 %v7896
    %7940 = vmatpush.bf16.msra.mxu0 %v7894
    %7941 = vmatpush.bf16.msra.mxu0 %v7892
    %7942 = vmatpush.bf16.msra.mxu0 %v7890
    %7943 = vmatpush.bf16.msra.mxu0 %v7888
    %7944 = vmatpush.bf16.msra.mxu0 %v7886
    %7945 = vmatmul.bf16.gmra.mxu0 %v7811
    %v7946 = vpop.f32.mrf.mxu0
    %v7947 = vadd.f32 0.0, %v7946
    %v7948 = vpop.f32.mrf.mxu0
    %7949 = vdwg.mxu0
    %7950 = vmatpush.bf16.msra.mxu0 0
    %7951 = vmatpush.bf16.msra.mxu0 0
    %7952 = vmatpush.bf16.msra.mxu0 0
    %7953 = vmatpush.bf16.msra.mxu0 0
    %7954 = vmatpush.bf16.msra.mxu0 %v7908
    %7955 = vmatpush.bf16.msra.mxu0 %v7906
    %7956 = vmatpush.bf16.msra.mxu0 %v7904
    %7957 = vmatpush.bf16.msra.mxu0 %v7902
    %7958 = vmatmul.bf16.gmra.mxu0 %v7935
    %v7959 = vpop.f32.mrf.mxu0
    %v7960 = vadd.f32 %v7947, %v7959
    %v7961 = vpop.f32.mrf.mxu0
    %7962 = vdwg.mxu0
    %7963 = vmatpush.bf16.msra.mxu0 %v7901
    %7964 = vmatpush.bf16.msra.mxu0 %v7899
    %7965 = vmatpush.bf16.msra.mxu0 %v7897
    %7966 = vmatpush.bf16.msra.mxu0 %v7895
    %7967 = vmatpush.bf16.msra.mxu0 %v7893
    %7968 = vmatpush.bf16.msra.mxu0 %v7891
    %7969 = vmatpush.bf16.msra.mxu0 %v7889
    %7970 = vmatpush.bf16.msra.mxu0 %v7887
    %7971 = vmatmul.bf16.gmra.mxu0 %v7811
    %v7972 = vpop.f32.mrf.mxu0
    %v7973 = vadd.f32 0.0, %v7972
    %v7974 = vpop.f32.mrf.mxu0
    %7975 = vdwg.mxu0
    %7976 = vmatpush.bf16.msra.mxu0 0
    %7977 = vmatpush.bf16.msra.mxu0 0
    %7978 = vmatpush.bf16.msra.mxu0 0
    %7979 = vmatpush.bf16.msra.mxu0 0
    %7980 = vmatpush.bf16.msra.mxu0 %v7909
    %7981 = vmatpush.bf16.msra.mxu0 %v7907
    %7982 = vmatpush.bf16.msra.mxu0 %v7905
    %7983 = vmatpush.bf16.msra.mxu0 %v7903
    %7984 = vmatmul.bf16.gmra.mxu0 %v7935
    %v7985 = vpop.f32.mrf.mxu0
    %v7986 = vadd.f32 %v7973, %v7985
    %v7987 = vpop.f32.mrf.mxu0
    %7988 = vdwg.mxu0
    %v7989 = vadd.f32 %v7785, %v7960
    %v7990 = vadd.f32 %v7786, %v7986
    %v7993 = vrot.slane %v7990, 7
    %v7994 = vsel %vm4024, %v7989, %v7993
    %s7996 = scalar_lea.vmem [#allocation2], 1
    %7997 = vst.msk [vmem:[%s7996] ss:$2 sm:$0x3] %vm4030, %v7994
    %v7998 = vld [vmem:[%s3] sm:$0x3]
    %v7999 = vld [vmem:[%s4] sm:$0xff]
    %v8000 = vld [vmem:[%s5] sm:$0x1]
    %v8002 = vperm.slane %v8000, 0
    %vm8004 = vcmask 64512
    %v8006 = vsel %vm8004, %v7998, 0
    %8008 = vmatpush.msra.mxu0 0.0
    %8009 = vmatpush.msra.mxu0 0.0
    %8010 = vmatpush.msra.mxu0 0.0
    %8011 = vmatpush.msra.mxu0 0.0
    %8012 = vmatpush.msra.mxu0 0.0
    %8013 = vmatpush.msra.mxu0 0.0
    %8014 = vmatpush.msra.mxu0 0.0
    %8015 = vmatpush.msra.mxu0 0.0
    %8016 = vmatpush.msra.mxu0 0.0
    %8017 = vmatpush.msra.mxu0 0.0
    %8018 = vmatpush.msra.mxu0 0.0
    %8019 = vmatpush.msra.mxu0 0.0
    %8020 = vmatpush.msra.mxu0 0.0
    %8021 = vmatpush.msra.mxu0 0.0
    %8022 = vmatpush.msra.mxu0 0.0
    %8023 = vmatpush.msra.mxu0 %v7999
    %8024 = vmatmul.f32.gmra.mxu0 %v8006
    %v8025 = vpop.f32.mrf.mxu0
    %v8026 = vadd.f32 %v8002, %v8025
    %8027 = vdwg.mxu0
    %v8028 = vmax.f32 %v8026, 0.0
    %v8029 = vpack.c.bf16 %v8028, %v8028
    %v8030 = vld [vmem:[%s6] sm:$0xff]
    %v8031 = vld [vmem:[%s6 + $0x8] sm:$0xff]
    %v8032 = vld [vmem:[#allocation2] sm:$0xf]
    %v8035 = vunpack.c.l.b16 %v8030
    %v8036 = vunpack.c.h.b16 %v8030
    %v8037 = vunpack.c.l.b16 %v8031
    %v8038 = vunpack.c.h.b16 %v8031
    %v8039 = vpack.c.b16 %v8037, %v8035
    %v8040 = vpack.c.b16 %v8038, %v8036
    %8044 = vst [vmem:[#allocation1] ss:$4 sm:$0xff] %v8032
    %v8045 = vld.sshfl [vmem:[#allocation1] sm:$0xff pattern:$0x73625140]
    %v8046 = vld.sshfl [vmem:[#allocation1 + $0x8] sm:$0xff pattern:$0x73625140]
    %vm8049 = vcmask 130048
    %v8051 = vsel %vm8049, %v8029, 0
    %8053 = vmatpush.bf16.msra.mxu0 0
    %8054 = vmatpush.bf16.msra.mxu0 0
    %8055 = vmatpush.bf16.msra.mxu0 0
    %8056 = vmatpush.bf16.msra.mxu0 0
    %8057 = vmatpush.bf16.msra.mxu0 0
    %8058 = vmatpush.bf16.msra.mxu0 0
    %8059 = vmatpush.bf16.msra.mxu0 0
    %8060 = vmatpush.bf16.msra.mxu0 %v8039
    %8061 = vmatmul.bf16.gmra.mxu0 %v8051
    %v8062 = vpop.f32.mrf.mxu0
    %v8063 = vadd.f32 %v8045, %v8062
    %v8064 = vpop.f32.mrf.mxu0
    %8065 = vdwg.mxu0
    %8066 = vmatpush.bf16.msra.mxu0 0
    %8067 = vmatpush.bf16.msra.mxu0 0
    %8068 = vmatpush.bf16.msra.mxu0 0
    %8069 = vmatpush.bf16.msra.mxu0 0
    %8070 = vmatpush.bf16.msra.mxu0 0
    %8071 = vmatpush.bf16.msra.mxu0 0
    %8072 = vmatpush.bf16.msra.mxu0 0
    %8073 = vmatpush.bf16.msra.mxu0 %v8040
    %8074 = vmatmul.bf16.gmra.mxu0 %v8051
    %v8075 = vpop.f32.mrf.mxu0
    %v8076 = vadd.f32 %v8046, %v8075
    %v8077 = vpop.f32.mrf.mxu0
    %8078 = vdwg.mxu0
    %v8079 = vld [vmem:[%s8] sm:$0x3]
    %v8081 = vperm.slane %v8079, 0
    %v8082 = vperm.slane %v8079, 1
    %v8085 = vadd.f32 %v8063, %v8081
    %v8086 = vadd.f32 %v8076, %v8082
    %v8087 = vmax.f32 %v8085, 0.0
    %v8088 = vmax.f32 %v8086, 0.0
    %v8089 = vpack.c.bf16 %v8087, %v8087
    %v8090 = vpack.c.bf16 %v8088, %v8088
    %v8091 = vld [vmem:[%s9] sm:$0xf]
    %v8092 = vld [vmem:[%s9 + $0x4] sm:$0xf]
    %v8093 = vld [vmem:[%s9 + $0x8] sm:$0xf]
    %v8094 = vld [vmem:[%s9 + $0xc] sm:$0xf]
    %v8095 = vld [vmem:[%s9 + $0x10] sm:$0xf]
    %v8096 = vld [vmem:[%s9 + $0x14] sm:$0xf]
    %v8097 = vld [vmem:[%s9 + $0x18] sm:$0xf]
    %v8098 = vld [vmem:[%s9 + $0x1c] sm:$0xf]
    %v8099 = vld [vmem:[%s9 + $0x20] sm:$0xf]
    %v8100 = vld [vmem:[%s9 + $0x24] sm:$0xf]
    %v8101 = vld [vmem:[%s9 + $0x28] sm:$0xf]
    %v8102 = vld [vmem:[%s9 + $0x2c] sm:$0xf]
    %v8103 = vld [vmem:[%s9 + $0x30] sm:$0xf]
    %v8104 = vld [vmem:[%s9 + $0x34] sm:$0xf]
    %v8105 = vld [vmem:[%s9 + $0x38] sm:$0xf]
    %v8106 = vld [vmem:[%s9 + $0x3c] sm:$0xf]
    %v8107 = vld [vmem:[%s9 + $0x40] sm:$0xf]
    %v8108 = vld [vmem:[%s9 + $0x44] sm:$0xf]
    %v8109 = vld [vmem:[%s9 + $0x48] sm:$0xf]
    %v8110 = vld [vmem:[%s9 + $0x4c] sm:$0xf]
    %v8111 = vld [vmem:[%s9 + $0x50] sm:$0xf]
    %v8112 = vld [vmem:[%s9 + $0x54] sm:$0xf]
    %v8113 = vld [vmem:[%s9 + $0x58] sm:$0xf]
    %v8114 = vld [vmem:[%s9 + $0x5c] sm:$0xf]
    %v8115 = vld [vmem:[%s9 + $0x60] sm:$0xf]
    %v8116 = vld [vmem:[%s9 + $0x64] sm:$0xf]
    %v8117 = vld [vmem:[%s9 + $0x68] sm:$0xf]
    %v8118 = vld [vmem:[%s9 + $0x6c] sm:$0xf]
    %v8119 = vld [vmem:[%s9 + $0x70] sm:$0xf]
    %v8120 = vld [vmem:[%s9 + $0x74] sm:$0xf]
    %v8121 = vld [vmem:[%s9 + $0x78] sm:$0xf]
    %v8122 = vld [vmem:[%s9 + $0x7c] sm:$0xf]
    %v8123 = vld [vmem:[%s10] sm:$0x1]
    %v8125 = vperm.slane %v8123, 0
    %v8159 = vunpack.c.l.b16 %v8091
    %v8160 = vunpack.c.l.b16 %v8092
    %v8161 = vunpack.c.l.b16 %v8093
    %v8162 = vunpack.c.l.b16 %v8094
    %v8163 = vunpack.c.l.b16 %v8095
    %v8164 = vunpack.c.l.b16 %v8096
    %v8165 = vunpack.c.l.b16 %v8097
    %v8166 = vunpack.c.l.b16 %v8098
    %v8167 = vunpack.c.l.b16 %v8099
    %v8168 = vunpack.c.l.b16 %v8100
    %v8169 = vunpack.c.l.b16 %v8101
    %v8170 = vunpack.c.l.b16 %v8102
    %v8171 = vunpack.c.l.b16 %v8103
    %v8172 = vunpack.c.l.b16 %v8104
    %v8173 = vunpack.c.l.b16 %v8105
    %v8174 = vunpack.c.l.b16 %v8106
    %v8175 = vunpack.c.l.b16 %v8107
    %v8176 = vunpack.c.l.b16 %v8108
    %v8177 = vunpack.c.l.b16 %v8109
    %v8178 = vunpack.c.l.b16 %v8110
    %v8179 = vunpack.c.l.b16 %v8111
    %v8180 = vunpack.c.l.b16 %v8112
    %v8181 = vunpack.c.l.b16 %v8113
    %v8182 = vunpack.c.l.b16 %v8114
    %v8183 = vunpack.c.l.b16 %v8115
    %v8184 = vunpack.c.l.b16 %v8116
    %v8185 = vunpack.c.l.b16 %v8117
    %v8186 = vunpack.c.l.b16 %v8118
    %v8187 = vunpack.c.l.b16 %v8119
    %v8188 = vunpack.c.l.b16 %v8120
    %v8189 = vunpack.c.l.b16 %v8121
    %v8190 = vunpack.c.l.b16 %v8122
    %v8191 = vpack.c.b16 %v8160, %v8159
    %v8192 = vpack.c.b16 %v8162, %v8161
    %v8193 = vpack.c.b16 %v8164, %v8163
    %v8194 = vpack.c.b16 %v8166, %v8165
    %v8195 = vpack.c.b16 %v8168, %v8167
    %v8196 = vpack.c.b16 %v8170, %v8169
    %v8197 = vpack.c.b16 %v8172, %v8171
    %v8198 = vpack.c.b16 %v8174, %v8173
    %v8199 = vpack.c.b16 %v8176, %v8175
    %v8200 = vpack.c.b16 %v8178, %v8177
    %v8201 = vpack.c.b16 %v8180, %v8179
    %v8202 = vpack.c.b16 %v8182, %v8181
    %v8203 = vpack.c.b16 %v8184, %v8183
    %v8204 = vpack.c.b16 %v8186, %v8185
    %v8205 = vpack.c.b16 %v8188, %v8187
    %v8206 = vpack.c.b16 %v8190, %v8189
    %8223 = vmatpush.bf16.msra.mxu0 %v8198
    %8224 = vmatpush.bf16.msra.mxu0 %v8197
    %8225 = vmatpush.bf16.msra.mxu0 %v8196
    %8226 = vmatpush.bf16.msra.mxu0 %v8195
    %8227 = vmatpush.bf16.msra.mxu0 %v8194
    %8228 = vmatpush.bf16.msra.mxu0 %v8193
    %8229 = vmatpush.bf16.msra.mxu0 %v8192
    %8230 = vmatpush.bf16.msra.mxu0 %v8191
    %8231 = vmatmul.bf16.gmra.mxu0 %v8089
    %v8232 = vpop.f32.mrf.mxu0
    %v8233 = vadd.f32 %v8125, %v8232
    %v8234 = vpop.f32.mrf.mxu0
    %8235 = vdwg.mxu0
    %8236 = vmatpush.bf16.msra.mxu0 %v8206
    %8237 = vmatpush.bf16.msra.mxu0 %v8205
    %8238 = vmatpush.bf16.msra.mxu0 %v8204
    %8239 = vmatpush.bf16.msra.mxu0 %v8203
    %8240 = vmatpush.bf16.msra.mxu0 %v8202
    %8241 = vmatpush.bf16.msra.mxu0 %v8201
    %8242 = vmatpush.bf16.msra.mxu0 %v8200
    %8243 = vmatpush.bf16.msra.mxu0 %v8199
    %8244 = vmatmul.bf16.gmra.mxu0 %v8090
    %v8245 = vpop.f32.mrf.mxu0
    %v8246 = vadd.f32 %v8233, %v8245
    %v8247 = vpop.f32.mrf.mxu0
    %8248 = vdwg.mxu0
    %8249 = vst [vmem:[#allocation3] sm:$0x3] %v8246
    // Predicated region
    $region46: #{actor_cnn_forward.3} parent=1 // pred_check
      _
    $region47: #{actor_cnn_forward.3} parent=1 // pred_check_branch
      %8251 = sbr.rel (0) target = $region49
    $region48: #{actor_cnn_forward.3} parent=1 // pred_region
      %8253 = vsyncadd [#allocation4], 0
      %s8255 = sshll.u32 [#allocation3], 4
      %s8256 = int_to_ptr.vmem [resolvable:$true] %s8255
      %s8257 = sshll.u32 %s11, 4
      %s8258 = int_to_ptr.hbm [resolvable:$true] %s8257
      %8260 = dma.vmem_to_hbm [thread:$0]  %s8256, 32, %s8258, [#allocation4]
    $region49: #{actor_cnn_forward.3} parent=1 // pred_fallthru
      _
    // Predicated region
    $region50: #{actor_cnn_forward.3} parent=1 // pred_check
      _
    $region51: #{actor_cnn_forward.3} parent=1 // pred_check_branch
      %8262 = sbr.rel (0) target = $region53
    $region52: #{actor_cnn_forward.3} parent=1 // pred_region
      %8264 = dma.done [#allocation4], 32
    $region53: #{actor_cnn_forward.3} parent=1 // pred_fallthru
      _
    %8265 = vsyncpa [#allocation4], 1

</llo_original>
